<compile_context>
chip_gen: v7x
topology: tpu7x:2x2x1
jax: 0.10.0
libtpu: 0.0.40
codegen_flags: <defaults>
</compile_context>

<pallas_src>
import jax
import jax.numpy as jnp
from jax.experimental import pallas as pl
from jax.experimental.pallas import tpu as pltpu

BN_EPS = 1e-5


# ----------------------------------------------------------------------------
# helpers
# ----------------------------------------------------------------------------
def _fold_bn(p):
    """Fold eval-mode BatchNorm into the (Cin, Cout) matmul weight + bias."""
    inv = p["gamma"] / jnp.sqrt(p["var"] + BN_EPS)
    return p["w"] * inv[None, :], p["beta"] - p["mean"] * inv


# ----------------------------------------------------------------------------
# Kernel 1: pointwise (1x1) conv with folded BN + SiLU:  y = silu(x @ w_s + b)
# ----------------------------------------------------------------------------
def _pw_kernel(x_ref, w_ref, b_ref, o_ref):
    y = jnp.dot(x_ref[...], w_ref[...], preferred_element_type=jnp.float32)
    y = y + b_ref[...]
    o_ref[...] = (y * jax.nn.sigmoid(y)).astype(o_ref.dtype)


def _pw_call(xf, w_scaled, bias, tm=512):
    """xf: (M, Cin) activations, w_scaled: (Cin, Cout), bias: (Cout,)."""
    M, Cin = xf.shape
    Cout = w_scaled.shape[1]
    tm = min(tm, M)                       # large M tile; tail handled by padding
    Mp = pl.cdiv(M, tm) * tm
    if Mp != M:
        xf = jnp.pad(xf, ((0, Mp - M), (0, 0)))
    out = pl.pallas_call(
        _pw_kernel,
        out_shape=jax.ShapeDtypeStruct((Mp, Cout), xf.dtype),
        grid=(Mp // tm,),
        in_specs=[
            pl.BlockSpec((tm, Cin), lambda i: (i, 0)),
            pl.BlockSpec((Cin, Cout), lambda i: (0, 0)),
            pl.BlockSpec((1, Cout), lambda i: (0, 0)),
        ],
        out_specs=pl.BlockSpec((tm, Cout), lambda i: (i, 0)),
        compiler_params=pltpu.CompilerParams(dimension_semantics=("parallel",)),
    )(xf, w_scaled, bias.reshape(1, Cout))
    return out[:M] if Mp != M else out


def pw_conv_bn_silu(x, p, tm=512):
    B, H, W, Cin = x.shape
    w_s, b = _fold_bn(p)
    return _pw_call(x.reshape(B * H * W, Cin), w_s, b, tm=tm).reshape(
        B, H, W, w_s.shape[1])


# ----------------------------------------------------------------------------
# Kernel 2: cv3 over cat(h, y2) WITHOUT materializing the concat:
#           y = silu(h @ Wa + y2 @ Wb + b),  y2 = first c_ channels of y12
# ----------------------------------------------------------------------------
def _cv3_kernel(h_ref, y12_ref, wa_ref, wb_ref, b_ref, o_ref):
    c_half = wb_ref.shape[0]
    y2 = y12_ref[...][:, :c_half]                 # cv2(x) half stored first in y12
    y = jnp.dot(h_ref[...], wa_ref[...], preferred_element_type=jnp.float32)
    y = y + jnp.dot(y2, wb_ref[...], preferred_element_type=jnp.float32)
    y = y + b_ref[...]
    o_ref[...] = (y * jax.nn.sigmoid(y)).astype(o_ref.dtype)


def cv3_conv_bn_silu(h, y12, p, tm=512):
    B, H, W, c_ = h.shape
    w_s, b = _fold_bn(p)
    Cout = w_s.shape[1]
    wa, wb = w_s[:c_], w_s[c_:]                    # rows for h and for cv2(x)
    M = B * H * W
    hf = h.reshape(M, c_)
    yf = y12.reshape(M, 2 * c_)
    tm = min(tm, M)
    Mp = pl.cdiv(M, tm) * tm
    if Mp != M:
        hf = jnp.pad(hf, ((0, Mp - M), (0, 0)))
        yf = jnp.pad(yf, ((0, Mp - M), (0, 0)))
    out = pl.pallas_call(
        _cv3_kernel,
        out_shape=jax.ShapeDtypeStruct((Mp, Cout), h.dtype),
        grid=(Mp // tm,),
        in_specs=[
            pl.BlockSpec((tm, c_), lambda i: (i, 0)),
            pl.BlockSpec((tm, 2 * c_), lambda i: (i, 0)),
            pl.BlockSpec((c_, Cout), lambda i: (0, 0)),
            pl.BlockSpec((c_, Cout), lambda i: (0, 0)),
            pl.BlockSpec((1, Cout), lambda i: (0, 0)),
        ],
        out_specs=pl.BlockSpec((tm, Cout), lambda i: (i, 0)),
        compiler_params=pltpu.CompilerParams(dimension_semantics=("parallel",)),
    )(hf, yf, wa, wb, b.reshape(1, Cout))
    out = out[:M] if Mp != M else out
    return out.reshape(B, H, W, Cout)


# ----------------------------------------------------------------------------
# Kernel 3: ODConv 3x3 (stride 1, pad 1, groups 1) with per-batch aggregated
# weights (channel/filter attention pre-folded) + optional fused residual add.
# The 9 taps are sliced in-kernel from a single halo'd padded-row tile.
# ----------------------------------------------------------------------------
def _make_odconv_kernel(TH, W, Cin, Cout, with_res):
    def _accumulate(xp_ref, w_ref):
        acc = jnp.zeros((TH * W, Cout), jnp.float32)
        for dy in range(3):                       # static unroll over the 3x3 taps
            for dx in range(3):
                tap = xp_ref[0, dy:dy + TH, dx:dx + W, :].reshape(TH * W, Cin)
                acc = acc + jnp.dot(tap, w_ref[0, 3 * dy + dx],
                                    preferred_element_type=jnp.float32)
        return acc

    if with_res:
        def kernel(xp_ref, w_ref, res_ref, o_ref):
            acc = _accumulate(xp_ref, w_ref)
            o_ref[0] = (acc + res_ref[0].astype(jnp.float32)).astype(o_ref.dtype)
    else:
        def kernel(xp_ref, w_ref, o_ref):
            acc = _accumulate(xp_ref, w_ref)
            o_ref[0] = acc.astype(o_ref.dtype)
    return kernel


def _choose_row_tile(H, W, target_rows=1024):
    """Largest divisor TH of H with TH*W output rows per tile <= target_rows."""
    th = 1
    for cand in range(1, H + 1):
        if H % cand == 0 and cand * W <= target_rows:
            th = cand
    return th


def odconv2d_3x3(x, p, residual=None):
    """ODConv2d(cin, cout, k=3, s=1, p=1, d=1, g=1, kernel_num=K).
    If `residual` is given, the Bottleneck shortcut add is fused into the kernel."""
    B, H, W, Cin = x.shape
    K, Cout = p["weight"].shape[0], p["weight"].shape[1]
    HW = H * W

    # ---- attention branch: tiny (B, C) vectors, plain-JAX glue ----
    pooled = jnp.mean(x, axis=(1, 2))                                 # AdaptiveAvgPool2d(1)
    a = jax.nn.relu(pooled @ p["fc_w"])                               # Attention: fc -> relu (no BN in forward)
    ca = jax.nn.sigmoid(a @ p["channel_w"] + p["channel_b"])          # (B, Cin)
    fa = jax.nn.sigmoid(a @ p["filter_w"] + p["filter_b"])            # (B, Cout)
    sa = jax.nn.sigmoid(a @ p["spatial_w"] + p["spatial_b"])          # (B, 9)
    ka = jax.nn.softmax(a @ p["kernel_w"] + p["kernel_b"], axis=1)    # (B, K)

    # ---- per-batch aggregated weight: sum_k sa*ka*W_k -> (B, Cout, Cin, 3, 3) ----
    w = p["weight"][None]                                             # (1, K, Cout, Cin, 3, 3)
    agg = jnp.sum(sa.reshape(B, 1, 1, 1, 3, 3) *
                  ka.reshape(B, K, 1, 1, 1, 1) * w, axis=1)
    agg = agg * ca.reshape(B, 1, Cin, 1, 1)      # x * channel_att folded (conv is linear)
    agg = agg * fa.reshape(B, Cout, 1, 1, 1)     # out * filter_att folded (per-Cout scale)
    # (B, ky, kx, Cin, Cout) -> (B, 9, Cin, Cout), tap index = ky*3 + kx
    w_taps = jnp.transpose(agg, (0, 3, 4, 2, 1)).reshape(B, 9, Cin, Cout)

    # ---- halo'd row tiles of the padded input: 1x HBM traffic (+2 halo rows per tile) ----
    TH = _choose_row_tile(H, W)
    nT = H // TH
    xpad = jnp.pad(x, ((0, 0), (1, 1), (1, 1), (0, 0)))               # (B, H+2, W+2, Cin)
    if nT == 1:
        xrows = xpad                                                  # (B, H+2, W+2, Cin)
    else:
        xrows = jnp.stack([xpad[:, t * TH:t * TH + TH + 2] for t in range(nT)],
                          axis=1).reshape(B * nT, TH + 2, W + 2, Cin)

    with_res = residual is not None
    kernel = _make_odconv_kernel(TH, W, Cin, Cout, with_res)

    in_specs = [
        pl.BlockSpec((1, TH + 2, W + 2, Cin), lambda b, t: (b * nT + t, 0, 0, 0)),
        pl.BlockSpec((1, 9, Cin, Cout), lambda b, t: (b, 0, 0, 0)),
    ]
    inputs = [xrows, w_taps]
    if with_res:
        in_specs.append(pl.BlockSpec((1, TH * W, Cout), lambda b, t: (b, t, 0)))
        inputs.append(residual.reshape(B, HW, Cout))

    out = pl.pallas_call(
        kernel,
        out_shape=jax.ShapeDtypeStruct((B, HW, Cout), x.dtype),
        grid=(B, nT),
        in_specs=in_specs,
        out_specs=pl.BlockSpec((1, TH * W, Cout), lambda b, t: (b, t, 0)),
        compiler_params=pltpu.CompilerParams(
            dimension_semantics=("parallel", "parallel"),
            vmem_limit_bytes=64 * 1024 * 1024),
    )(*inputs)
    return out.reshape(B, H, W, Cout)


# ----------------------------------------------------------------------------
# C3 forward: fused(cv2|cv1) -> Bottleneck(Conv1x1 + ODConv3x3 + shortcut)* -> cv3
# ----------------------------------------------------------------------------
def c3_forward(x, params, shortcut=True):
    B, H, W, Cin = x.shape
    c_ = params["cv1"]["w"].shape[1]

    # cv2 | cv1 fused into one matmul pass over x (cv2's half first so cv3 can
    # read it with an offset-0 in-kernel slice; no HBM concat anywhere).
    w2s, b2 = _fold_bn(params["cv2"])
    w1s, b1 = _fold_bn(params["cv1"])
    y12 = _pw_call(x.reshape(B * H * W, Cin),
                   jnp.concatenate([w2s, w1s], axis=1),
                   jnp.concatenate([b2, b1])).reshape(B, H, W, 2 * c_)

    h = y12[..., c_:]                      # cv1(x): input to the bottleneck chain
    for bp in params["m"]:
        t = pw_conv_bn_silu(h, bp["cv1"])
        # Bottleneck: c1 == c2 == c_, so add == shortcut; no BN/act after ODConv (per spec)
        h = odconv2d_3x3(t, bp["cv2"], residual=h if shortcut else None)

    return cv3_conv_bn_silu(h, y12, params["cv3"])


# ----------------------------------------------------------------------------
# Deterministic synthetic parameter init (shapes follow the module's __init__)
# ----------------------------------------------------------------------------
def _conv_bn_params(key, cin, cout):
    k = jax.random.split(key, 5)
    return dict(
        w=jax.random.normal(k[0], (cin, cout), jnp.float32) * (2.0 / cin) ** 0.5,
        gamma=1.0 + 0.1 * jax.random.normal(k[1], (cout,), jnp.float32),
        beta=0.1 * jax.random.normal(k[2], (cout,), jnp.float32),
        mean=0.1 * jax.random.normal(k[3], (cout,), jnp.float32),
        var=1.0 + 0.25 * jax.random.uniform(k[4], (cout,), jnp.float32),
    )


def _odconv_params(key, cin, cout, kernel_num=4, reduction=0.0625, min_channel=16):
    attn = max(int(cin * reduction), min_channel)
    k = jax.random.split(key, 6)

    def w(kk, i, o):
        return jax.random.normal(kk, (i, o), jnp.float32) * (2.0 / i) ** 0.5

    return dict(
        fc_w=w(k[0], cin, attn),
        channel_w=w(k[1], attn, cin), channel_b=jnp.zeros((cin,), jnp.float32),
        filter_w=w(k[2], attn, cout), filter_b=jnp.zeros((cout,), jnp.float32),
        spatial_w=w(k[3], attn, 9), spatial_b=jnp.zeros((9,), jnp.float32),
        kernel_w=w(k[4], attn, kernel_num), kernel_b=jnp.zeros((kernel_num,), jnp.float32),
        weight=jax.random.normal(k[5], (kernel_num, cout, cin, 3, 3), jnp.float32)
               * (2.0 / (cin * 9)) ** 0.5,
    )


def init_c3_params(key, c1, c2, n=1, e=0.5):
    c_ = int(c2 * e)
    keys = jax.random.split(key, 3 + 2 * n)
    return dict(
        cv1=_conv_bn_params(keys[0], c1, c_),
        cv2=_conv_bn_params(keys[1], c1, c_),
        cv3=_conv_bn_params(keys[2], 2 * c_, c2),
        m=[dict(cv1=_conv_bn_params(keys[3 + 2 * i], c_, c_),
                cv2=_odconv_params(keys[4 + 2 * i], c_, c_))
           for i in range(n)],
    )


if __name__ == "__main__":
    key = jax.random.PRNGKey(0)
    kx, kp = jax.random.split(key)

    B, H, W, c1 = 2, 16, 16, 8
    c2, n = 8, 1
    x = jax.random.normal(kx, (B, H, W, c1), jnp.float32)   # NHWC
    params = init_c3_params(kp, c1, c2, n=n)

    out = jax.jit(c3_forward)(x, params)
    jax.block_until_ready(out)
    assert out.shape == (B, H, W, c2), out.shape
    assert bool(jnp.all(jnp.isfinite(out)))
    print("KERNEL_OK")
</pallas_src>

<mosaic_0001>
module attributes {stable_mosaic.version = 11 : i64} {
  func.func @_pw_kernel(%arg0: i32, %arg1: memref<512x8xf32, #tpu.memory_space<vmem>>, %arg2: memref<8x8xf32, #tpu.memory_space<vmem>>, %arg3: memref<1x8xf32, #tpu.memory_space<vmem>>, %arg4: memref<512x8xf32, #tpu.memory_space<vmem>>) attributes {dimension_semantics = [#tpu.dimension_semantics<parallel>], iteration_bounds = array<i64: 1>, scalar_prefetch = 0 : i64, scratch_operands = 0 : i64, tpu.core_type = #tpu.core_type<tc>, window_params = [{transform_indices = @transform_0, window_bounds = array<i64: 512, 8>}, {pipeline_mode = #tpu.pipeline_mode<synchronous>, transform_indices = @transform_1, window_bounds = array<i64: 8, 8>}, {pipeline_mode = #tpu.pipeline_mode<synchronous>, transform_indices = @transform_2, window_bounds = array<i64: 1, 8>}, {transform_indices = @transform_3, window_bounds = array<i64: 512, 8>}]} {
    %c0 = arith.constant 0 : index
    %c0_0 = arith.constant 0 : index
    %0 = vector.load %arg1[%c0, %c0_0] : memref<512x8xf32, #tpu.memory_space<vmem>>, vector<512x8xf32>
    %c0_1 = arith.constant 0 : index
    %c0_2 = arith.constant 0 : index
    %1 = vector.load %arg2[%c0_1, %c0_2] : memref<8x8xf32, #tpu.memory_space<vmem>>, vector<8x8xf32>
    %cst = arith.constant dense<0.000000e+00> : vector<512x8xf32>
    %2 = tpu.matmul %0, %1, %cst {dimension_numbers = #tpu.dot_dimension_numbers<[1], [0], [0], [1], [0, 0, 1, 1], [], []>} : vector<512x8xf32>, vector<8x8xf32>, vector<512x8xf32> -> vector<512x8xf32>
    %c0_3 = arith.constant 0 : index
    %c0_4 = arith.constant 0 : index
    %3 = vector.load %arg3[%c0_3, %c0_4] : memref<1x8xf32, #tpu.memory_space<vmem>>, vector<1x8xf32>
    %4 = vector.broadcast %3 : vector<1x8xf32> to vector<512x8xf32>
    %5 = arith.addf %2, %4 : vector<512x8xf32>
    %6 = arith.negf %5 : vector<512x8xf32>
    %7 = math.exp %6 : vector<512x8xf32>
    %cst_5 = arith.constant 1.000000e+00 : f32
    %8 = vector.broadcast %cst_5 : f32 to vector<512x8xf32>
    %9 = arith.addf %8, %7 : vector<512x8xf32>
    %10 = arith.divf %8, %9 : vector<512x8xf32>
    %11 = arith.mulf %5, %10 : vector<512x8xf32>
    %c0_6 = arith.constant 0 : index
    %c0_7 = arith.constant 0 : index
    %12 = vector.load %arg4[%c0_6, %c0_7] : memref<512x8xf32, #tpu.memory_space<vmem>>, vector<512x8xf32>
    tpu.vector_store %arg4[%c0_6, %c0_7], %11 {strides = array<i32>} : memref<512x8xf32, #tpu.memory_space<vmem>>, vector<512x8xf32>,
    return
  }
  func.func @transform_0(%arg0: i32) -> (i32, i32) {
    %c0_i32 = arith.constant 0 : i32
    %c0_i32_0 = arith.constant 0 : i32
    return %arg0, %c0_i32 : i32, i32
  }
  func.func @transform_1(%arg0: i32) -> (i32, i32) {
    %c0_i32 = arith.constant 0 : i32
    %c0_i32_0 = arith.constant 0 : i32
    %c0_i32_1 = arith.constant 0 : i32
    return %c0_i32, %c0_i32_0 : i32, i32
  }
  func.func @transform_2(%arg0: i32) -> (i32, i32) {
    %c0_i32 = arith.constant 0 : i32
    %c0_i32_0 = arith.constant 0 : i32
    %c0_i32_1 = arith.constant 0 : i32
    return %c0_i32, %c0_i32_0 : i32, i32
  }
  func.func @transform_3(%arg0: i32) -> (i32, i32) {
    %c0_i32 = arith.constant 0 : i32
    %c0_i32_0 = arith.constant 0 : i32
    return %arg0, %c0_i32 : i32, i32
  }
}

module attributes {stable_mosaic.version = 11 : i64} {
  func.func @_pw_kernel(%arg0: i32, %arg1: memref<512x4xf32, #tpu.memory_space<vmem>>, %arg2: memref<4x4xf32, #tpu.memory_space<vmem>>, %arg3: memref<1x4xf32, #tpu.memory_space<vmem>>, %arg4: memref<512x4xf32, #tpu.memory_space<vmem>>) attributes {dimension_semantics = [#tpu.dimension_semantics<parallel>], iteration_bounds = array<i64: 1>, scalar_prefetch = 0 : i64, scratch_operands = 0 : i64, tpu.core_type = #tpu.core_type<tc>, window_params = [{transform_indices = @transform_0, window_bounds = array<i64: 512, 4>}, {pipeline_mode = #tpu.pipeline_mode<synchronous>, transform_indices = @transform_1, window_bounds = array<i64: 4, 4>}, {pipeline_mode = #tpu.pipeline_mode<synchronous>, transform_indices = @transform_2, window_bounds = array<i64: 1, 4>}, {transform_indices = @transform_3, window_bounds = array<i64: 512, 4>}]} {
    %c0 = arith.constant 0 : index
    %c0_0 = arith.constant 0 : index
    %0 = vector.load %arg1[%c0, %c0_0] : memref<512x4xf32, #tpu.memory_space<vmem>>, vector<512x4xf32>
    %c0_1 = arith.constant 0 : index
    %c0_2 = arith.constant 0 : index
    %1 = vector.load %arg2[%c0_1, %c0_2] : memref<4x4xf32, #tpu.memory_space<vmem>>, vector<4x4xf32>
    %cst = arith.constant dense<0.000000e+00> : vector<512x4xf32>
    %2 = tpu.matmul %0, %1, %cst {dimension_numbers = #tpu.dot_dimension_numbers<[1], [0], [0], [1], [0, 0, 1, 1], [], []>} : vector<512x4xf32>, vector<4x4xf32>, vector<512x4xf32> -> vector<512x4xf32>
    %c0_3 = arith.constant 0 : index
    %c0_4 = arith.constant 0 : index
    %3 = vector.load %arg3[%c0_3, %c0_4] : memref<1x4xf32, #tpu.memory_space<vmem>>, vector<1x4xf32>
    %4 = vector.broadcast %3 : vector<1x4xf32> to vector<512x4xf32>
    %5 = arith.addf %2, %4 : vector<512x4xf32>
    %6 = arith.negf %5 : vector<512x4xf32>
    %7 = math.exp %6 : vector<512x4xf32>
    %cst_5 = arith.constant 1.000000e+00 : f32
    %8 = vector.broadcast %cst_5 : f32 to vector<512x4xf32>
    %9 = arith.addf %8, %7 : vector<512x4xf32>
    %10 = arith.divf %8, %9 : vector<512x4xf32>
    %11 = arith.mulf %5, %10 : vector<512x4xf32>
    %c0_6 = arith.constant 0 : index
    %c0_7 = arith.constant 0 : index
    %12 = vector.load %arg4[%c0_6, %c0_7] : memref<512x4xf32, #tpu.memory_space<vmem>>, vector<512x4xf32>
    tpu.vector_store %arg4[%c0_6, %c0_7], %11 {strides = array<i32>} : memref<512x4xf32, #tpu.memory_space<vmem>>, vector<512x4xf32>,
    return
  }
  func.func @transform_0(%arg0: i32) -> (i32, i32) {
    %c0_i32 = arith.constant 0 : i32
    %c0_i32_0 = arith.constant 0 : i32
    return %arg0, %c0_i32 : i32, i32
  }
  func.func @transform_1(%arg0: i32) -> (i32, i32) {
    %c0_i32 = arith.constant 0 : i32
    %c0_i32_0 = arith.constant 0 : i32
    %c0_i32_1 = arith.constant 0 : i32
    return %c0_i32, %c0_i32_0 : i32, i32
  }
  func.func @transform_2(%arg0: i32) -> (i32, i32) {
    %c0_i32 = arith.constant 0 : i32
    %c0_i32_0 = arith.constant 0 : i32
    %c0_i32_1 = arith.constant 0 : i32
    return %c0_i32, %c0_i32_0 : i32, i32
  }
  func.func @transform_3(%arg0: i32) -> (i32, i32) {
    %c0_i32 = arith.constant 0 : i32
    %c0_i32_0 = arith.constant 0 : i32
    return %arg0, %c0_i32 : i32, i32
  }
}

module attributes {stable_mosaic.version = 11 : i64} {
  func.func @kernel(%arg0: i32, %arg1: i32, %arg2: memref<1x18x18x4xf32, #tpu.memory_space<vmem>>, %arg3: memref<1x9x4x4xf32, #tpu.memory_space<vmem>>, %arg4: memref<1x256x4xf32, #tpu.memory_space<vmem>>, %arg5: memref<1x256x4xf32, #tpu.memory_space<vmem>>) attributes {dimension_semantics = [#tpu.dimension_semantics<parallel>, #tpu.dimension_semantics<parallel>], iteration_bounds = array<i64: 2, 1>, scalar_prefetch = 0 : i64, scratch_operands = 0 : i64, tpu.core_type = #tpu.core_type<tc>, window_params = [{transform_indices = @transform_0, window_bounds = array<i64: 1, 18, 18, 4>}, {transform_indices = @transform_1, window_bounds = array<i64: 1, 9, 4, 4>}, {transform_indices = @transform_2, window_bounds = array<i64: 1, 256, 4>}, {transform_indices = @transform_3, window_bounds = array<i64: 1, 256, 4>}]} {
    %cst = arith.constant 0.000000e+00 : f32
    %0 = vector.broadcast %cst : f32 to vector<256x4xf32>
    %c0 = arith.constant 0 : index
    %c0_0 = arith.constant 0 : index
    %c0_1 = arith.constant 0 : index
    %c0_2 = arith.constant 0 : index
    %1 = vector.load %arg2[%c0, %c0_0, %c0_1, %c0_2] : memref<1x18x18x4xf32, #tpu.memory_space<vmem>>, vector<1x16x16x4xf32>
    %2 = vector.shape_cast %1 : vector<1x16x16x4xf32> to vector<16x16x4xf32>
    %3 = vector.shape_cast %2 : vector<16x16x4xf32> to vector<256x4xf32>
    %c0_3 = arith.constant 0 : index
    %c0_4 = arith.constant 0 : index
    %c0_5 = arith.constant 0 : index
    %c0_6 = arith.constant 0 : index
    %4 = vector.load %arg3[%c0_3, %c0_4, %c0_5, %c0_6] : memref<1x9x4x4xf32, #tpu.memory_space<vmem>>, vector<1x1x4x4xf32>
    %5 = vector.shape_cast %4 : vector<1x1x4x4xf32> to vector<4x4xf32>
    %cst_7 = arith.constant dense<0.000000e+00> : vector<256x4xf32>
    %6 = tpu.matmul %3, %5, %cst_7 {dimension_numbers = #tpu.dot_dimension_numbers<[1], [0], [0], [1], [0, 0, 1, 1], [], []>} : vector<256x4xf32>, vector<4x4xf32>, vector<256x4xf32> -> vector<256x4xf32>
    %7 = arith.addf %0, %6 : vector<256x4xf32>
    %c0_8 = arith.constant 0 : index
    %c0_9 = arith.constant 0 : index
    %c1 = arith.constant 1 : index
    %c0_10 = arith.constant 0 : index
    %8 = vector.load %arg2[%c0_8, %c0_9, %c1, %c0_10] : memref<1x18x18x4xf32, #tpu.memory_space<vmem>>, vector<1x16x16x4xf32>
    %9 = vector.shape_cast %8 : vector<1x16x16x4xf32> to vector<16x16x4xf32>
    %10 = vector.shape_cast %9 : vector<16x16x4xf32> to vector<256x4xf32>
    %c0_11 = arith.constant 0 : index
    %c1_12 = arith.constant 1 : index
    %c0_13 = arith.constant 0 : index
    %c0_14 = arith.constant 0 : index
    %11 = vector.load %arg3[%c0_11, %c1_12, %c0_13, %c0_14] : memref<1x9x4x4xf32, #tpu.memory_space<vmem>>, vector<1x1x4x4xf32>
    %12 = vector.shape_cast %11 : vector<1x1x4x4xf32> to vector<4x4xf32>
    %cst_15 = arith.constant dense<0.000000e+00> : vector<256x4xf32>
    %13 = tpu.matmul %10, %12, %cst_15 {dimension_numbers = #tpu.dot_dimension_numbers<[1], [0], [0], [1], [0, 0, 1, 1], [], []>} : vector<256x4xf32>, vector<4x4xf32>, vector<256x4xf32> -> vector<256x4xf32>
    %14 = arith.addf %7, %13 : vector<256x4xf32>
    %c0_16 = arith.constant 0 : index
    %c0_17 = arith.constant 0 : index
    %c2 = arith.constant 2 : index
    %c0_18 = arith.constant 0 : index
    %15 = vector.load %arg2[%c0_16, %c0_17, %c2, %c0_18] : memref<1x18x18x4xf32, #tpu.memory_space<vmem>>, vector<1x16x16x4xf32>
    %16 = vector.shape_cast %15 : vector<1x16x16x4xf32> to vector<16x16x4xf32>
    %17 = vector.shape_cast %16 : vector<16x16x4xf32> to vector<256x4xf32>
    %c0_19 = arith.constant 0 : index
    %c2_20 = arith.constant 2 : index
    %c0_21 = arith.constant 0 : index
    %c0_22 = arith.constant 0 : index
    %18 = vector.load %arg3[%c0_19, %c2_20, %c0_21, %c0_22] : memref<1x9x4x4xf32, #tpu.memory_space<vmem>>, vector<1x1x4x4xf32>
    %19 = vector.shape_cast %18 : vector<1x1x4x4xf32> to vector<4x4xf32>
    %cst_23 = arith.constant dense<0.000000e+00> : vector<256x4xf32>
    %20 = tpu.matmul %17, %19, %cst_23 {dimension_numbers = #tpu.dot_dimension_numbers<[1], [0], [0], [1], [0, 0, 1, 1], [], []>} : vector<256x4xf32>, vector<4x4xf32>, vector<256x4xf32> -> vector<256x4xf32>
    %21 = arith.addf %14, %20 : vector<256x4xf32>
    %c0_24 = arith.constant 0 : index
    %c1_25 = arith.constant 1 : index
    %c0_26 = arith.constant 0 : index
    %c0_27 = arith.constant 0 : index
    %22 = vector.load %arg2[%c0_24, %c1_25, %c0_26, %c0_27] : memref<1x18x18x4xf32, #tpu.memory_space<vmem>>, vector<1x16x16x4xf32>
    %23 = vector.shape_cast %22 : vector<1x16x16x4xf32> to vector<16x16x4xf32>
    %24 = vector.shape_cast %23 : vector<16x16x4xf32> to vector<256x4xf32>
    %c0_28 = arith.constant 0 : index
    %c3 = arith.constant 3 : index
    %c0_29 = arith.constant 0 : index
    %c0_30 = arith.constant 0 : index
    %25 = vector.load %arg3[%c0_28, %c3, %c0_29, %c0_30] : memref<1x9x4x4xf32, #tpu.memory_space<vmem>>, vector<1x1x4x4xf32>
    %26 = vector.shape_cast %25 : vector<1x1x4x4xf32> to vector<4x4xf32>
    %cst_31 = arith.constant dense<0.000000e+00> : vector<256x4xf32>
    %27 = tpu.matmul %24, %26, %cst_31 {dimension_numbers = #tpu.dot_dimension_numbers<[1], [0], [0], [1], [0, 0, 1, 1], [], []>} : vector<256x4xf32>, vector<4x4xf32>, vector<256x4xf32> -> vector<256x4xf32>
    %28 = arith.addf %21, %27 : vector<256x4xf32>
    %c0_32 = arith.constant 0 : index
    %c1_33 = arith.constant 1 : index
    %c1_34 = arith.constant 1 : index
    %c0_35 = arith.constant 0 : index
    %29 = vector.load %arg2[%c0_32, %c1_33, %c1_34, %c0_35] : memref<1x18x18x4xf32, #tpu.memory_space<vmem>>, vector<1x16x16x4xf32>
    %30 = vector.shape_cast %29 : vector<1x16x16x4xf32> to vector<16x16x4xf32>
    %31 = vector.shape_cast %30 : vector<16x16x4xf32> to vector<256x4xf32>
    %c0_36 = arith.constant 0 : index
    %c4 = arith.constant 4 : index
    %c0_37 = arith.constant 0 : index
    %c0_38 = arith.constant 0 : index
    %32 = vector.load %arg3[%c0_36, %c4, %c0_37, %c0_38] : memref<1x9x4x4xf32, #tpu.memory_space<vmem>>, vector<1x1x4x4xf32>
    %33 = vector.shape_cast %32 : vector<1x1x4x4xf32> to vector<4x4xf32>
    %cst_39 = arith.constant dense<0.000000e+00> : vector<256x4xf32>
    %34 = tpu.matmul %31, %33, %cst_39 {dimension_numbers = #tpu.dot_dimension_numbers<[1], [0], [0], [1], [0, 0, 1, 1], [], []>} : vector<256x4xf32>, vector<4x4xf32>, vector<256x4xf32> -> vector<256x4xf32>
    %35 = arith.addf %28, %34 : vector<256x4xf32>
    %c0_40 = arith.constant 0 : index
    %c1_41 = arith.constant 1 : index
    %c2_42 = arith.constant 2 : index
    %c0_43 = arith.constant 0 : index
    %36 = vector.load %arg2[%c0_40, %c1_41, %c2_42, %c0_43] : memref<1x18x18x4xf32, #tpu.memory_space<vmem>>, vector<1x16x16x4xf32>
    %37 = vector.shape_cast %36 : vector<1x16x16x4xf32> to vector<16x16x4xf32>
    %38 = vector.shape_cast %37 : vector<16x16x4xf32> to vector<256x4xf32>
    %c0_44 = arith.constant 0 : index
    %c5 = arith.constant 5 : index
    %c0_45 = arith.constant 0 : index
    %c0_46 = arith.constant 0 : index
    %39 = vector.load %arg3[%c0_44, %c5, %c0_45, %c0_46] : memref<1x9x4x4xf32, #tpu.memory_space<vmem>>, vector<1x1x4x4xf32>
    %40 = vector.shape_cast %39 : vector<1x1x4x4xf32> to vector<4x4xf32>
    %cst_47 = arith.constant dense<0.000000e+00> : vector<256x4xf32>
    %41 = tpu.matmul %38, %40, %cst_47 {dimension_numbers = #tpu.dot_dimension_numbers<[1], [0], [0], [1], [0, 0, 1, 1], [], []>} : vector<256x4xf32>, vector<4x4xf32>, vector<256x4xf32> -> vector<256x4xf32>
    %42 = arith.addf %35, %41 : vector<256x4xf32>
    %c0_48 = arith.constant 0 : index
    %c2_49 = arith.constant 2 : index
    %c0_50 = arith.constant 0 : index
    %c0_51 = arith.constant 0 : index
    %43 = vector.load %arg2[%c0_48, %c2_49, %c0_50, %c0_51] : memref<1x18x18x4xf32, #tpu.memory_space<vmem>>, vector<1x16x16x4xf32>
    %44 = vector.shape_cast %43 : vector<1x16x16x4xf32> to vector<16x16x4xf32>
    %45 = vector.shape_cast %44 : vector<16x16x4xf32> to vector<256x4xf32>
    %c0_52 = arith.constant 0 : index
    %c6 = arith.constant 6 : index
    %c0_53 = arith.constant 0 : index
    %c0_54 = arith.constant 0 : index
    %46 = vector.load %arg3[%c0_52, %c6, %c0_53, %c0_54] : memref<1x9x4x4xf32, #tpu.memory_space<vmem>>, vector<1x1x4x4xf32>
    %47 = vector.shape_cast %46 : vector<1x1x4x4xf32> to vector<4x4xf32>
    %cst_55 = arith.constant dense<0.000000e+00> : vector<256x4xf32>
    %48 = tpu.matmul %45, %47, %cst_55 {dimension_numbers = #tpu.dot_dimension_numbers<[1], [0], [0], [1], [0, 0, 1, 1], [], []>} : vector<256x4xf32>, vector<4x4xf32>, vector<256x4xf32> -> vector<256x4xf32>
    %49 = arith.addf %42, %48 : vector<256x4xf32>
    %c0_56 = arith.constant 0 : index
    %c2_57 = arith.constant 2 : index
    %c1_58 = arith.constant 1 : index
    %c0_59 = arith.constant 0 : index
    %50 = vector.load %arg2[%c0_56, %c2_57, %c1_58, %c0_59] : memref<1x18x18x4xf32, #tpu.memory_space<vmem>>, vector<1x16x16x4xf32>
    %51 = vector.shape_cast %50 : vector<1x16x16x4xf32> to vector<16x16x4xf32>
    %52 = vector.shape_cast %51 : vector<16x16x4xf32> to vector<256x4xf32>
    %c0_60 = arith.constant 0 : index
    %c7 = arith.constant 7 : index
    %c0_61 = arith.constant 0 : index
    %c0_62 = arith.constant 0 : index
    %53 = vector.load %arg3[%c0_60, %c7, %c0_61, %c0_62] : memref<1x9x4x4xf32, #tpu.memory_space<vmem>>, vector<1x1x4x4xf32>
    %54 = vector.shape_cast %53 : vector<1x1x4x4xf32> to vector<4x4xf32>
    %cst_63 = arith.constant dense<0.000000e+00> : vector<256x4xf32>
    %55 = tpu.matmul %52, %54, %cst_63 {dimension_numbers = #tpu.dot_dimension_numbers<[1], [0], [0], [1], [0, 0, 1, 1], [], []>} : vector<256x4xf32>, vector<4x4xf32>, vector<256x4xf32> -> vector<256x4xf32>
    %56 = arith.addf %49, %55 : vector<256x4xf32>
    %c0_64 = arith.constant 0 : index
    %c2_65 = arith.constant 2 : index
    %c2_66 = arith.constant 2 : index
    %c0_67 = arith.constant 0 : index
    %57 = vector.load %arg2[%c0_64, %c2_65, %c2_66, %c0_67] : memref<1x18x18x4xf32, #tpu.memory_space<vmem>>, vector<1x16x16x4xf32>
    %58 = vector.shape_cast %57 : vector<1x16x16x4xf32> to vector<16x16x4xf32>
    %59 = vector.shape_cast %58 : vector<16x16x4xf32> to vector<256x4xf32>
    %c0_68 = arith.constant 0 : index
    %c8 = arith.constant 8 : index
    %c0_69 = arith.constant 0 : index
    %c0_70 = arith.constant 0 : index
    %60 = vector.load %arg3[%c0_68, %c8, %c0_69, %c0_70] : memref<1x9x4x4xf32, #tpu.memory_space<vmem>>, vector<1x1x4x4xf32>
    %61 = vector.shape_cast %60 : vector<1x1x4x4xf32> to vector<4x4xf32>
    %cst_71 = arith.constant dense<0.000000e+00> : vector<256x4xf32>
    %62 = tpu.matmul %59, %61, %cst_71 {dimension_numbers = #tpu.dot_dimension_numbers<[1], [0], [0], [1], [0, 0, 1, 1], [], []>} : vector<256x4xf32>, vector<4x4xf32>, vector<256x4xf32> -> vector<256x4xf32>
    %63 = arith.addf %56, %62 : vector<256x4xf32>
    %c0_72 = arith.constant 0 : index
    %c0_73 = arith.constant 0 : index
    %c0_74 = arith.constant 0 : index
    %64 = vector.load %arg4[%c0_72, %c0_73, %c0_74] : memref<1x256x4xf32, #tpu.memory_space<vmem>>, vector<1x256x4xf32>
    %65 = vector.shape_cast %64 : vector<1x256x4xf32> to vector<256x4xf32>
    %66 = arith.addf %63, %65 : vector<256x4xf32>
    %c0_75 = arith.constant 0 : index
    %c0_76 = arith.constant 0 : index
    %c0_77 = arith.constant 0 : index
    %67 = vector.load %arg5[%c0_75, %c0_76, %c0_77] : memref<1x256x4xf32, #tpu.memory_space<vmem>>, vector<1x256x4xf32>
    %68 = vector.shape_cast %67 : vector<1x256x4xf32> to vector<256x4xf32>
    %69 = vector.shape_cast %66 : vector<256x4xf32> to vector<1x256x4xf32>
    tpu.vector_store %arg5[%c0_75, %c0_76, %c0_77], %69 {strides = array<i32>} : memref<1x256x4xf32, #tpu.memory_space<vmem>>, vector<1x256x4xf32>,
    return
  }
  func.func @transform_0(%arg0: i32, %arg1: i32) -> (i32, i32, i32, i32) {
    %c1_i32 = arith.constant 1 : i32
    %0 = arith.muli %arg0, %c1_i32 : i32
    %1 = arith.addi %0, %arg1 : i32
    %c0_i32 = arith.constant 0 : i32
    %c0_i32_0 = arith.constant 0 : i32
    %c0_i32_1 = arith.constant 0 : i32
    %c0_i32_2 = arith.constant 0 : i32
    return %1, %c0_i32, %c0_i32_0, %c0_i32_1 : i32, i32, i32, i32
  }
  func.func @transform_1(%arg0: i32, %arg1: i32) -> (i32, i32, i32, i32) {
    %c0_i32 = arith.constant 0 : i32
    %c0_i32_0 = arith.constant 0 : i32
    %c0_i32_1 = arith.constant 0 : i32
    %c0_i32_2 = arith.constant 0 : i32
    return %arg0, %c0_i32, %c0_i32_0, %c0_i32_1 : i32, i32, i32, i32
  }
  func.func @transform_2(%arg0: i32, %arg1: i32) -> (i32, i32, i32) {
    %c0_i32 = arith.constant 0 : i32
    %c0_i32_0 = arith.constant 0 : i32
    return %arg0, %arg1, %c0_i32 : i32, i32, i32
  }
  func.func @transform_3(%arg0: i32, %arg1: i32) -> (i32, i32, i32) {
    %c0_i32 = arith.constant 0 : i32
    %c0_i32_0 = arith.constant 0 : i32
    return %arg0, %arg1, %c0_i32 : i32, i32, i32
  }
}

module attributes {stable_mosaic.version = 11 : i64} {
  func.func @_cv3_kernel(%arg0: i32, %arg1: memref<512x4xf32, #tpu.memory_space<vmem>>, %arg2: memref<512x8xf32, #tpu.memory_space<vmem>>, %arg3: memref<4x8xf32, #tpu.memory_space<vmem>>, %arg4: memref<4x8xf32, #tpu.memory_space<vmem>>, %arg5: memref<1x8xf32, #tpu.memory_space<vmem>>, %arg6: memref<512x8xf32, #tpu.memory_space<vmem>>) attributes {dimension_semantics = [#tpu.dimension_semantics<parallel>], iteration_bounds = array<i64: 1>, scalar_prefetch = 0 : i64, scratch_operands = 0 : i64, tpu.core_type = #tpu.core_type<tc>, window_params = [{transform_indices = @transform_0, window_bounds = array<i64: 512, 4>}, {transform_indices = @transform_1, window_bounds = array<i64: 512, 8>}, {pipeline_mode = #tpu.pipeline_mode<synchronous>, transform_indices = @transform_2, window_bounds = array<i64: 4, 8>}, {pipeline_mode = #tpu.pipeline_mode<synchronous>, transform_indices = @transform_3, window_bounds = array<i64: 4, 8>}, {pipeline_mode = #tpu.pipeline_mode<synchronous>, transform_indices = @transform_4, window_bounds = array<i64: 1, 8>}, {transform_indices = @transform_5, window_bounds = array<i64: 512, 8>}]} {
    %c0 = arith.constant 0 : index
    %c0_0 = arith.constant 0 : index
    %0 = vector.load %arg2[%c0, %c0_0] : memref<512x8xf32, #tpu.memory_space<vmem>>, vector<512x8xf32>
    %1 = vector.extract_strided_slice %0 {offsets = [0, 0], sizes = [512, 4], strides = [1, 1]} : vector<512x8xf32> to vector<512x4xf32>
    %c0_1 = arith.constant 0 : index
    %c0_2 = arith.constant 0 : index
    %2 = vector.load %arg1[%c0_1, %c0_2] : memref<512x4xf32, #tpu.memory_space<vmem>>, vector<512x4xf32>
    %c0_3 = arith.constant 0 : index
    %c0_4 = arith.constant 0 : index
    %3 = vector.load %arg3[%c0_3, %c0_4] : memref<4x8xf32, #tpu.memory_space<vmem>>, vector<4x8xf32>
    %cst = arith.constant dense<0.000000e+00> : vector<512x8xf32>
    %4 = tpu.matmul %2, %3, %cst {dimension_numbers = #tpu.dot_dimension_numbers<[1], [0], [0], [1], [0, 0, 1, 1], [], []>} : vector<512x4xf32>, vector<4x8xf32>, vector<512x8xf32> -> vector<512x8xf32>
    %c0_5 = arith.constant 0 : index
    %c0_6 = arith.constant 0 : index
    %5 = vector.load %arg4[%c0_5, %c0_6] : memref<4x8xf32, #tpu.memory_space<vmem>>, vector<4x8xf32>
    %cst_7 = arith.constant dense<0.000000e+00> : vector<512x8xf32>
    %6 = tpu.matmul %1, %5, %cst_7 {dimension_numbers = #tpu.dot_dimension_numbers<[1], [0], [0], [1], [0, 0, 1, 1], [], []>} : vector<512x4xf32>, vector<4x8xf32>, vector<512x8xf32> -> vector<512x8xf32>
    %7 = arith.addf %4, %6 : vector<512x8xf32>
    %c0_8 = arith.constant 0 : index
    %c0_9 = arith.constant 0 : index
    %8 = vector.load %arg5[%c0_8, %c0_9] : memref<1x8xf32, #tpu.memory_space<vmem>>, vector<1x8xf32>
    %9 = vector.broadcast %8 : vector<1x8xf32> to vector<512x8xf32>
    %10 = arith.addf %7, %9 : vector<512x8xf32>
    %11 = arith.negf %10 : vector<512x8xf32>
    %12 = math.exp %11 : vector<512x8xf32>
    %cst_10 = arith.constant 1.000000e+00 : f32
    %13 = vector.broadcast %cst_10 : f32 to vector<512x8xf32>
    %14 = arith.addf %13, %12 : vector<512x8xf32>
    %15 = arith.divf %13, %14 : vector<512x8xf32>
    %16 = arith.mulf %10, %15 : vector<512x8xf32>
    %c0_11 = arith.constant 0 : index
    %c0_12 = arith.constant 0 : index
    %17 = vector.load %arg6[%c0_11, %c0_12] : memref<512x8xf32, #tpu.memory_space<vmem>>, vector<512x8xf32>
    tpu.vector_store %arg6[%c0_11, %c0_12], %16 {strides = array<i32>} : memref<512x8xf32, #tpu.memory_space<vmem>>, vector<512x8xf32>,
    return
  }
  func.func @transform_0(%arg0: i32) -> (i32, i32) {
    %c0_i32 = arith.constant 0 : i32
    %c0_i32_0 = arith.constant 0 : i32
    return %arg0, %c0_i32 : i32, i32
  }
  func.func @transform_1(%arg0: i32) -> (i32, i32) {
    %c0_i32 = arith.constant 0 : i32
    %c0_i32_0 = arith.constant 0 : i32
    return %arg0, %c0_i32 : i32, i32
  }
  func.func @transform_2(%arg0: i32) -> (i32, i32) {
    %c0_i32 = arith.constant 0 : i32
    %c0_i32_0 = arith.constant 0 : i32
    %c0_i32_1 = arith.constant 0 : i32
    return %c0_i32, %c0_i32_0 : i32, i32
  }
  func.func @transform_3(%arg0: i32) -> (i32, i32) {
    %c0_i32 = arith.constant 0 : i32
    %c0_i32_0 = arith.constant 0 : i32
    %c0_i32_1 = arith.constant 0 : i32
    return %c0_i32, %c0_i32_0 : i32, i32
  }
  func.func @transform_4(%arg0: i32) -> (i32, i32) {
    %c0_i32 = arith.constant 0 : i32
    %c0_i32_0 = arith.constant 0 : i32
    %c0_i32_1 = arith.constant 0 : i32
    return %c0_i32, %c0_i32_0 : i32, i32
  }
  func.func @transform_5(%arg0: i32) -> (i32, i32) {
    %c0_i32 = arith.constant 0 : i32
    %c0_i32_0 = arith.constant 0 : i32
    return %arg0, %c0_i32 : i32, i32
  }
}

</mosaic_0001>

<llo_original>
// kernel: c3_forward.4
$region0: #{c3_forward.4}
  #allocation0 [shape = 'u32[]', space=smem, size = 0x4, offset = 0x4, fixed_abs, tag = 'smem constant byte address 0x4 - core index']
  #allocation1 [shape = 'u32[144,128]{1,0:T(1,128)}', space=vmem, size = 0x12000, scoped, tag = 'internal scratch']
  %s0 = inlined_call_operand.vmem [shape: f32[512,8], index: 0, kind: input, shape index: {}]
  %s1 = inlined_call_operand.vmem [shape: f32[8,8], index: 1, kind: input, shape index: {}]
  %s2 = inlined_call_operand.vmem [shape: f32[1,8], index: 2, kind: input, shape index: {}]
  %s3 = inlined_call_operand.vmem [shape: f32[512,8], index: 3, kind: output, shape index: {}]
  %s4 = sld [smem:[#allocation0]]
  $region22: #{c3_forward.4} parent=0
    _
  %s6 = ssub.s32 1, %s4
  %s7 = scalar_select 0, %s6, %s4
  // Predicated region
  $region2: #{c3_forward.4} parent=0 // pred_check
    _
  $region3: #{c3_forward.4} parent=0 // pred_check_branch
    %9 = sbr.rel (0) target = $region5
  $region4: #{c3_forward.4} parent=0 // pred_region
    _
  $region5: #{c3_forward.4} parent=0 // pred_fallthru
    _
  // Predicated region
  $region6: #{c3_forward.4} parent=0 // pred_check
    _
  $region7: #{c3_forward.4} parent=0 // pred_check_branch
    %11 = sbr.rel (0) target = $region9
  $region8: #{c3_forward.4} parent=0 // pred_region
    _
  $region9: #{c3_forward.4} parent=0 // pred_fallthru
    _
  // Predicated region
  $region10: #{c3_forward.4} parent=0 // pred_check
    _
  $region11: #{c3_forward.4} parent=0 // pred_check_branch
    %13 = sbr.rel (0) target = $region13
  $region12: #{c3_forward.4} parent=0 // pred_region
    _
  $region13: #{c3_forward.4} parent=0 // pred_fallthru
    _
  %v14 = vld [vmem:[%s0] sm:$0xff]
  %v15 = vld [vmem:[%s0 + $0x8] sm:$0xff]
  %v16 = vld [vmem:[%s0 + $0x10] sm:$0xff]
  %v17 = vld [vmem:[%s0 + $0x18] sm:$0xff]
  %v18 = vld [vmem:[%s0 + $0x20] sm:$0xff]
  %v19 = vld [vmem:[%s0 + $0x28] sm:$0xff]
  %v20 = vld [vmem:[%s0 + $0x30] sm:$0xff]
  %v21 = vld [vmem:[%s0 + $0x38] sm:$0xff]
  %v22 = vld [vmem:[%s0 + $0x40] sm:$0xff]
  %v23 = vld [vmem:[%s0 + $0x48] sm:$0xff]
  %v24 = vld [vmem:[%s0 + $0x50] sm:$0xff]
  %v25 = vld [vmem:[%s0 + $0x58] sm:$0xff]
  %v26 = vld [vmem:[%s0 + $0x60] sm:$0xff]
  %v27 = vld [vmem:[%s0 + $0x68] sm:$0xff]
  %v28 = vld [vmem:[%s0 + $0x70] sm:$0xff]
  %v29 = vld [vmem:[%s0 + $0x78] sm:$0xff]
  %v30 = vld [vmem:[%s0 + $0x80] sm:$0xff]
  %v31 = vld [vmem:[%s0 + $0x88] sm:$0xff]
  %v32 = vld [vmem:[%s0 + $0x90] sm:$0xff]
  %v33 = vld [vmem:[%s0 + $0x98] sm:$0xff]
  %v34 = vld [vmem:[%s0 + $0xa0] sm:$0xff]
  %v35 = vld [vmem:[%s0 + $0xa8] sm:$0xff]
  %v36 = vld [vmem:[%s0 + $0xb0] sm:$0xff]
  %v37 = vld [vmem:[%s0 + $0xb8] sm:$0xff]
  %v38 = vld [vmem:[%s0 + $0xc0] sm:$0xff]
  %v39 = vld [vmem:[%s0 + $0xc8] sm:$0xff]
  %v40 = vld [vmem:[%s0 + $0xd0] sm:$0xff]
  %v41 = vld [vmem:[%s0 + $0xd8] sm:$0xff]
  %v42 = vld [vmem:[%s0 + $0xe0] sm:$0xff]
  %v43 = vld [vmem:[%s0 + $0xe8] sm:$0xff]
  %v44 = vld [vmem:[%s0 + $0xf0] sm:$0xff]
  %v45 = vld [vmem:[%s0 + $0xf8] sm:$0xff]
  %v46 = vld [vmem:[%s0 + $0x100] sm:$0xff]
  %v47 = vld [vmem:[%s0 + $0x108] sm:$0xff]
  %v48 = vld [vmem:[%s0 + $0x110] sm:$0xff]
  %v49 = vld [vmem:[%s0 + $0x118] sm:$0xff]
  %v50 = vld [vmem:[%s0 + $0x120] sm:$0xff]
  %v51 = vld [vmem:[%s0 + $0x128] sm:$0xff]
  %v52 = vld [vmem:[%s0 + $0x130] sm:$0xff]
  %v53 = vld [vmem:[%s0 + $0x138] sm:$0xff]
  %v54 = vld [vmem:[%s0 + $0x140] sm:$0xff]
  %v55 = vld [vmem:[%s0 + $0x148] sm:$0xff]
  %v56 = vld [vmem:[%s0 + $0x150] sm:$0xff]
  %v57 = vld [vmem:[%s0 + $0x158] sm:$0xff]
  %v58 = vld [vmem:[%s0 + $0x160] sm:$0xff]
  %v59 = vld [vmem:[%s0 + $0x168] sm:$0xff]
  %v60 = vld [vmem:[%s0 + $0x170] sm:$0xff]
  %v61 = vld [vmem:[%s0 + $0x178] sm:$0xff]
  %v62 = vld [vmem:[%s0 + $0x180] sm:$0xff]
  %v63 = vld [vmem:[%s0 + $0x188] sm:$0xff]
  %v64 = vld [vmem:[%s0 + $0x190] sm:$0xff]
  %v65 = vld [vmem:[%s0 + $0x198] sm:$0xff]
  %v66 = vld [vmem:[%s0 + $0x1a0] sm:$0xff]
  %v67 = vld [vmem:[%s0 + $0x1a8] sm:$0xff]
  %v68 = vld [vmem:[%s0 + $0x1b0] sm:$0xff]
  %v69 = vld [vmem:[%s0 + $0x1b8] sm:$0xff]
  %v70 = vld [vmem:[%s0 + $0x1c0] sm:$0xff]
  %v71 = vld [vmem:[%s0 + $0x1c8] sm:$0xff]
  %v72 = vld [vmem:[%s0 + $0x1d0] sm:$0xff]
  %v73 = vld [vmem:[%s0 + $0x1d8] sm:$0xff]
  %v74 = vld [vmem:[%s0 + $0x1e0] sm:$0xff]
  %v75 = vld [vmem:[%s0 + $0x1e8] sm:$0xff]
  %v76 = vld [vmem:[%s0 + $0x1f0] sm:$0xff]
  %v77 = vld [vmem:[%s0 + $0x1f8] sm:$0xff]
  %v78 = vld [vmem:[%s1] sm:$0xff]
  %v79 = vld [vmem:[%s2] sm:$0x1]
  %v81 = vlaneseq
  %v82 = vshrl.u32 %v81, 7
  %v83 = vsub.s32 0, %v82
  %v84 = vrot.slane %v79, %v83
  %vm86 = vcmask 64512
  %v88 = vsel %vm86, %v14, 0
  %v91 = vsel %vm86, %v15, 0
  %v94 = vsel %vm86, %v16, 0
  %v97 = vsel %vm86, %v17, 0
  %v100 = vsel %vm86, %v18, 0
  %v103 = vsel %vm86, %v19, 0
  %v106 = vsel %vm86, %v20, 0
  %v109 = vsel %vm86, %v21, 0
  %v112 = vsel %vm86, %v22, 0
  %v115 = vsel %vm86, %v23, 0
  %v118 = vsel %vm86, %v24, 0
  %v121 = vsel %vm86, %v25, 0
  %v124 = vsel %vm86, %v26, 0
  %v127 = vsel %vm86, %v27, 0
  %v130 = vsel %vm86, %v28, 0
  %v133 = vsel %vm86, %v29, 0
  %v136 = vsel %vm86, %v30, 0
  %v139 = vsel %vm86, %v31, 0
  %v142 = vsel %vm86, %v32, 0
  %v145 = vsel %vm86, %v33, 0
  %v148 = vsel %vm86, %v34, 0
  %v151 = vsel %vm86, %v35, 0
  %v154 = vsel %vm86, %v36, 0
  %v157 = vsel %vm86, %v37, 0
  %v160 = vsel %vm86, %v38, 0
  %v163 = vsel %vm86, %v39, 0
  %v166 = vsel %vm86, %v40, 0
  %v169 = vsel %vm86, %v41, 0
  %v172 = vsel %vm86, %v42, 0
  %v175 = vsel %vm86, %v43, 0
  %v178 = vsel %vm86, %v44, 0
  %v181 = vsel %vm86, %v45, 0
  %v184 = vsel %vm86, %v46, 0
  %v187 = vsel %vm86, %v47, 0
  %v190 = vsel %vm86, %v48, 0
  %v193 = vsel %vm86, %v49, 0
  %v196 = vsel %vm86, %v50, 0
  %v199 = vsel %vm86, %v51, 0
  %v202 = vsel %vm86, %v52, 0
  %v205 = vsel %vm86, %v53, 0
  %v208 = vsel %vm86, %v54, 0
  %v211 = vsel %vm86, %v55, 0
  %v214 = vsel %vm86, %v56, 0
  %v217 = vsel %vm86, %v57, 0
  %v220 = vsel %vm86, %v58, 0
  %v223 = vsel %vm86, %v59, 0
  %v226 = vsel %vm86, %v60, 0
  %v229 = vsel %vm86, %v61, 0
  %v232 = vsel %vm86, %v62, 0
  %v235 = vsel %vm86, %v63, 0
  %v238 = vsel %vm86, %v64, 0
  %v241 = vsel %vm86, %v65, 0
  %v244 = vsel %vm86, %v66, 0
  %v247 = vsel %vm86, %v67, 0
  %v250 = vsel %vm86, %v68, 0
  %v253 = vsel %vm86, %v69, 0
  %v256 = vsel %vm86, %v70, 0
  %v259 = vsel %vm86, %v71, 0
  %v262 = vsel %vm86, %v72, 0
  %v265 = vsel %vm86, %v73, 0
  %v268 = vsel %vm86, %v74, 0
  %v271 = vsel %vm86, %v75, 0
  %v274 = vsel %vm86, %v76, 0
  %v277 = vsel %vm86, %v77, 0
  %279 = vmatprep.subr.mxu0 0.0
  %280 = vmatpush1.msra.mxu0 %v78
  %281 = vmatprep.subr.mxu0 0.0
  %282 = vmatpush1.msra.mxu0 0.0
  %283 = vmatprep.subr.mxu0 0.0
  %284 = vmatpush1.msra.mxu0 0.0
  %285 = vmatprep.subr.mxu0 0.0
  %286 = vmatpush1.msra.mxu0 0.0
  %287 = vmatprep.subr.mxu0 0.0
  %288 = vmatpush1.msra.mxu0 0.0
  %289 = vmatprep.subr.mxu0 0.0
  %290 = vmatpush1.msra.mxu0 0.0
  %291 = vmatprep.subr.mxu0 0.0
  %292 = vmatpush1.msra.mxu0 0.0
  %293 = vmatprep.subr.mxu0 0.0
  %294 = vmatpush1.msra.mxu0 0.0
  %295 = vmatprep.subr.mxu0 0.0
  %296 = vmatpush1.msra.mxu0 0.0
  %297 = vmatprep.subr.mxu0 0.0
  %298 = vmatpush1.msra.mxu0 0.0
  %299 = vmatprep.subr.mxu0 0.0
  %300 = vmatpush1.msra.mxu0 0.0
  %301 = vmatprep.subr.mxu0 0.0
  %302 = vmatpush1.msra.mxu0 0.0
  %303 = vmatprep.subr.mxu0 0.0
  %304 = vmatpush1.msra.mxu0 0.0
  %305 = vmatprep.subr.mxu0 0.0
  %306 = vmatpush1.msra.mxu0 0.0
  %307 = vmatprep.subr.mxu0 0.0
  %308 = vmatpush1.msra.mxu0 0.0
  %309 = vmatprep.subr.mxu0 0.0
  %310 = vmatpush1.msra.mxu0 0.0
  %311 = vmatprep.subr.mxu0 0.0
  %312 = vmatpush1.msra.mxu0 0.0
  %313 = vmatprep.subr.mxu0 0.0
  %314 = vmatpush1.msra.mxu0 0.0
  %315 = vmatprep.subr.mxu0 0.0
  %316 = vmatpush1.msra.mxu0 0.0
  %317 = vmatprep.subr.mxu0 0.0
  %318 = vmatpush1.msra.mxu0 0.0
  %319 = vmatprep.subr.mxu0 0.0
  %320 = vmatpush1.msra.mxu0 0.0
  %321 = vmatprep.subr.mxu0 0.0
  %322 = vmatpush1.msra.mxu0 0.0
  %323 = vmatprep.subr.mxu0 0.0
  %324 = vmatpush1.msra.mxu0 0.0
  %325 = vmatprep.subr.mxu0 0.0
  %326 = vmatpush1.msra.mxu0 0.0
  %327 = vmatprep.subr.mxu0 0.0
  %328 = vmatpush1.msra.mxu0 0.0
  %329 = vmatprep.subr.mxu0 0.0
  %330 = vmatpush1.msra.mxu0 0.0
  %331 = vmatprep.subr.mxu0 0.0
  %332 = vmatpush1.msra.mxu0 0.0
  %333 = vmatprep.subr.mxu0 0.0
  %334 = vmatpush1.msra.mxu0 0.0
  %335 = vmatprep.subr.mxu0 0.0
  %336 = vmatpush1.msra.mxu0 0.0
  %337 = vmatprep.subr.mxu0 0.0
  %338 = vmatpush1.msra.mxu0 0.0
  %339 = vmatprep.subr.mxu0 0.0
  %340 = vmatpush1.msra.mxu0 0.0
  %341 = vmatprep.subr.mxu0 0.0
  %342 = vmatpush1.msra.mxu0 0.0
  %343 = vmatprep.mubr.f32.mxu0 0.0
  %344 = vmatmul.mubr.f32.gmra.mrb[0].mxu0 %v88
  %v345 = vpop.f32.mrb[0].mxu0
  %v346 = vadd.f32 %v84, %v345
  %v347 = vpop.f32.mrb[0].mxu0
  %348 = vmatprep.mubr.f32.mxu0 0.0
  %349 = vmatmul.mubr.f32.gmra.mrb[0].mxu0 %v91
  %v350 = vpop.f32.mrb[0].mxu0
  %v351 = vadd.f32 %v84, %v350
  %v352 = vpop.f32.mrb[0].mxu0
  %353 = vmatprep.mubr.f32.mxu0 0.0
  %354 = vmatmul.mubr.f32.gmra.mrb[0].mxu0 %v94
  %v355 = vpop.f32.mrb[0].mxu0
  %v356 = vadd.f32 %v84, %v355
  %v357 = vpop.f32.mrb[0].mxu0
  %358 = vmatprep.mubr.f32.mxu0 0.0
  %359 = vmatmul.mubr.f32.gmra.mrb[0].mxu0 %v97
  %v360 = vpop.f32.mrb[0].mxu0
  %v361 = vadd.f32 %v84, %v360
  %v362 = vpop.f32.mrb[0].mxu0
  %363 = vmatprep.mubr.f32.mxu0 0.0
  %364 = vmatmul.mubr.f32.gmra.mrb[0].mxu0 %v100
  %v365 = vpop.f32.mrb[0].mxu0
  %v366 = vadd.f32 %v84, %v365
  %v367 = vpop.f32.mrb[0].mxu0
  %368 = vmatprep.mubr.f32.mxu0 0.0
  %369 = vmatmul.mubr.f32.gmra.mrb[0].mxu0 %v103
  %v370 = vpop.f32.mrb[0].mxu0
  %v371 = vadd.f32 %v84, %v370
  %v372 = vpop.f32.mrb[0].mxu0
  %373 = vmatprep.mubr.f32.mxu0 0.0
  %374 = vmatmul.mubr.f32.gmra.mrb[0].mxu0 %v106
  %v375 = vpop.f32.mrb[0].mxu0
  %v376 = vadd.f32 %v84, %v375
  %v377 = vpop.f32.mrb[0].mxu0
  %378 = vmatprep.mubr.f32.mxu0 0.0
  %379 = vmatmul.mubr.f32.gmra.mrb[0].mxu0 %v109
  %v380 = vpop.f32.mrb[0].mxu0
  %v381 = vadd.f32 %v84, %v380
  %v382 = vpop.f32.mrb[0].mxu0
  %383 = vmatprep.mubr.f32.mxu0 0.0
  %384 = vmatmul.mubr.f32.gmra.mrb[0].mxu0 %v112
  %v385 = vpop.f32.mrb[0].mxu0
  %v386 = vadd.f32 %v84, %v385
  %v387 = vpop.f32.mrb[0].mxu0
  %388 = vmatprep.mubr.f32.mxu0 0.0
  %389 = vmatmul.mubr.f32.gmra.mrb[0].mxu0 %v115
  %v390 = vpop.f32.mrb[0].mxu0
  %v391 = vadd.f32 %v84, %v390
  %v392 = vpop.f32.mrb[0].mxu0
  %393 = vmatprep.mubr.f32.mxu0 0.0
  %394 = vmatmul.mubr.f32.gmra.mrb[0].mxu0 %v118
  %v395 = vpop.f32.mrb[0].mxu0
  %v396 = vadd.f32 %v84, %v395
  %v397 = vpop.f32.mrb[0].mxu0
  %398 = vmatprep.mubr.f32.mxu0 0.0
  %399 = vmatmul.mubr.f32.gmra.mrb[0].mxu0 %v121
  %v400 = vpop.f32.mrb[0].mxu0
  %v401 = vadd.f32 %v84, %v400
  %v402 = vpop.f32.mrb[0].mxu0
  %403 = vmatprep.mubr.f32.mxu0 0.0
  %404 = vmatmul.mubr.f32.gmra.mrb[0].mxu0 %v124
  %v405 = vpop.f32.mrb[0].mxu0
  %v406 = vadd.f32 %v84, %v405
  %v407 = vpop.f32.mrb[0].mxu0
  %408 = vmatprep.mubr.f32.mxu0 0.0
  %409 = vmatmul.mubr.f32.gmra.mrb[0].mxu0 %v127
  %v410 = vpop.f32.mrb[0].mxu0
  %v411 = vadd.f32 %v84, %v410
  %v412 = vpop.f32.mrb[0].mxu0
  %413 = vmatprep.mubr.f32.mxu0 0.0
  %414 = vmatmul.mubr.f32.gmra.mrb[0].mxu0 %v130
  %v415 = vpop.f32.mrb[0].mxu0
  %v416 = vadd.f32 %v84, %v415
  %v417 = vpop.f32.mrb[0].mxu0
  %418 = vmatprep.mubr.f32.mxu0 0.0
  %419 = vmatmul.mubr.f32.gmra.mrb[0].mxu0 %v133
  %v420 = vpop.f32.mrb[0].mxu0
  %v421 = vadd.f32 %v84, %v420
  %v422 = vpop.f32.mrb[0].mxu0
  %423 = vmatprep.mubr.f32.mxu0 0.0
  %424 = vmatmul.mubr.f32.gmra.mrb[0].mxu0 %v136
  %v425 = vpop.f32.mrb[0].mxu0
  %v426 = vadd.f32 %v84, %v425
  %v427 = vpop.f32.mrb[0].mxu0
  %428 = vmatprep.mubr.f32.mxu0 0.0
  %429 = vmatmul.mubr.f32.gmra.mrb[0].mxu0 %v139
  %v430 = vpop.f32.mrb[0].mxu0
  %v431 = vadd.f32 %v84, %v430
  %v432 = vpop.f32.mrb[0].mxu0
  %433 = vmatprep.mubr.f32.mxu0 0.0
  %434 = vmatmul.mubr.f32.gmra.mrb[0].mxu0 %v142
  %v435 = vpop.f32.mrb[0].mxu0
  %v436 = vadd.f32 %v84, %v435
  %v437 = vpop.f32.mrb[0].mxu0
  %438 = vmatprep.mubr.f32.mxu0 0.0
  %439 = vmatmul.mubr.f32.gmra.mrb[0].mxu0 %v145
  %v440 = vpop.f32.mrb[0].mxu0
  %v441 = vadd.f32 %v84, %v440
  %v442 = vpop.f32.mrb[0].mxu0
  %443 = vmatprep.mubr.f32.mxu0 0.0
  %444 = vmatmul.mubr.f32.gmra.mrb[0].mxu0 %v148
  %v445 = vpop.f32.mrb[0].mxu0
  %v446 = vadd.f32 %v84, %v445
  %v447 = vpop.f32.mrb[0].mxu0
  %448 = vmatprep.mubr.f32.mxu0 0.0
  %449 = vmatmul.mubr.f32.gmra.mrb[0].mxu0 %v151
  %v450 = vpop.f32.mrb[0].mxu0
  %v451 = vadd.f32 %v84, %v450
  %v452 = vpop.f32.mrb[0].mxu0
  %453 = vmatprep.mubr.f32.mxu0 0.0
  %454 = vmatmul.mubr.f32.gmra.mrb[0].mxu0 %v154
  %v455 = vpop.f32.mrb[0].mxu0
  %v456 = vadd.f32 %v84, %v455
  %v457 = vpop.f32.mrb[0].mxu0
  %458 = vmatprep.mubr.f32.mxu0 0.0
  %459 = vmatmul.mubr.f32.gmra.mrb[0].mxu0 %v157
  %v460 = vpop.f32.mrb[0].mxu0
  %v461 = vadd.f32 %v84, %v460
  %v462 = vpop.f32.mrb[0].mxu0
  %463 = vmatprep.mubr.f32.mxu0 0.0
  %464 = vmatmul.mubr.f32.gmra.mrb[0].mxu0 %v160
  %v465 = vpop.f32.mrb[0].mxu0
  %v466 = vadd.f32 %v84, %v465
  %v467 = vpop.f32.mrb[0].mxu0
  %468 = vmatprep.mubr.f32.mxu0 0.0
  %469 = vmatmul.mubr.f32.gmra.mrb[0].mxu0 %v163
  %v470 = vpop.f32.mrb[0].mxu0
  %v471 = vadd.f32 %v84, %v470
  %v472 = vpop.f32.mrb[0].mxu0
  %473 = vmatprep.mubr.f32.mxu0 0.0
  %474 = vmatmul.mubr.f32.gmra.mrb[0].mxu0 %v166
  %v475 = vpop.f32.mrb[0].mxu0
  %v476 = vadd.f32 %v84, %v475
  %v477 = vpop.f32.mrb[0].mxu0
  %478 = vmatprep.mubr.f32.mxu0 0.0
  %479 = vmatmul.mubr.f32.gmra.mrb[0].mxu0 %v169
  %v480 = vpop.f32.mrb[0].mxu0
  %v481 = vadd.f32 %v84, %v480
  %v482 = vpop.f32.mrb[0].mxu0
  %483 = vmatprep.mubr.f32.mxu0 0.0
  %484 = vmatmul.mubr.f32.gmra.mrb[0].mxu0 %v172
  %v485 = vpop.f32.mrb[0].mxu0
  %v486 = vadd.f32 %v84, %v485
  %v487 = vpop.f32.mrb[0].mxu0
  %488 = vmatprep.mubr.f32.mxu0 0.0
  %489 = vmatmul.mubr.f32.gmra.mrb[0].mxu0 %v175
  %v490 = vpop.f32.mrb[0].mxu0
  %v491 = vadd.f32 %v84, %v490
  %v492 = vpop.f32.mrb[0].mxu0
  %493 = vmatprep.mubr.f32.mxu0 0.0
  %494 = vmatmul.mubr.f32.gmra.mrb[0].mxu0 %v178
  %v495 = vpop.f32.mrb[0].mxu0
  %v496 = vadd.f32 %v84, %v495
  %v497 = vpop.f32.mrb[0].mxu0
  %498 = vmatprep.mubr.f32.mxu0 0.0
  %499 = vmatmul.mubr.f32.gmra.mrb[0].mxu0 %v181
  %v500 = vpop.f32.mrb[0].mxu0
  %v501 = vadd.f32 %v84, %v500
  %v502 = vpop.f32.mrb[0].mxu0
  %503 = vmatprep.mubr.f32.mxu0 0.0
  %504 = vmatmul.mubr.f32.gmra.mrb[0].mxu0 %v184
  %v505 = vpop.f32.mrb[0].mxu0
  %v506 = vadd.f32 %v84, %v505
  %v507 = vpop.f32.mrb[0].mxu0
  %508 = vmatprep.mubr.f32.mxu0 0.0
  %509 = vmatmul.mubr.f32.gmra.mrb[0].mxu0 %v187
  %v510 = vpop.f32.mrb[0].mxu0
  %v511 = vadd.f32 %v84, %v510
  %v512 = vpop.f32.mrb[0].mxu0
  %513 = vmatprep.mubr.f32.mxu0 0.0
  %514 = vmatmul.mubr.f32.gmra.mrb[0].mxu0 %v190
  %v515 = vpop.f32.mrb[0].mxu0
  %v516 = vadd.f32 %v84, %v515
  %v517 = vpop.f32.mrb[0].mxu0
  %518 = vmatprep.mubr.f32.mxu0 0.0
  %519 = vmatmul.mubr.f32.gmra.mrb[0].mxu0 %v193
  %v520 = vpop.f32.mrb[0].mxu0
  %v521 = vadd.f32 %v84, %v520
  %v522 = vpop.f32.mrb[0].mxu0
  %523 = vmatprep.mubr.f32.mxu0 0.0
  %524 = vmatmul.mubr.f32.gmra.mrb[0].mxu0 %v196
  %v525 = vpop.f32.mrb[0].mxu0
  %v526 = vadd.f32 %v84, %v525
  %v527 = vpop.f32.mrb[0].mxu0
  %528 = vmatprep.mubr.f32.mxu0 0.0
  %529 = vmatmul.mubr.f32.gmra.mrb[0].mxu0 %v199
  %v530 = vpop.f32.mrb[0].mxu0
  %v531 = vadd.f32 %v84, %v530
  %v532 = vpop.f32.mrb[0].mxu0
  %533 = vmatprep.mubr.f32.mxu0 0.0
  %534 = vmatmul.mubr.f32.gmra.mrb[0].mxu0 %v202
  %v535 = vpop.f32.mrb[0].mxu0
  %v536 = vadd.f32 %v84, %v535
  %v537 = vpop.f32.mrb[0].mxu0
  %538 = vmatprep.mubr.f32.mxu0 0.0
  %539 = vmatmul.mubr.f32.gmra.mrb[0].mxu0 %v205
  %v540 = vpop.f32.mrb[0].mxu0
  %v541 = vadd.f32 %v84, %v540
  %v542 = vpop.f32.mrb[0].mxu0
  %543 = vmatprep.mubr.f32.mxu0 0.0
  %544 = vmatmul.mubr.f32.gmra.mrb[0].mxu0 %v208
  %v545 = vpop.f32.mrb[0].mxu0
  %v546 = vadd.f32 %v84, %v545
  %v547 = vpop.f32.mrb[0].mxu0
  %548 = vmatprep.mubr.f32.mxu0 0.0
  %549 = vmatmul.mubr.f32.gmra.mrb[0].mxu0 %v211
  %v550 = vpop.f32.mrb[0].mxu0
  %v551 = vadd.f32 %v84, %v550
  %v552 = vpop.f32.mrb[0].mxu0
  %553 = vmatprep.mubr.f32.mxu0 0.0
  %554 = vmatmul.mubr.f32.gmra.mrb[0].mxu0 %v214
  %v555 = vpop.f32.mrb[0].mxu0
  %v556 = vadd.f32 %v84, %v555
  %v557 = vpop.f32.mrb[0].mxu0
  %558 = vmatprep.mubr.f32.mxu0 0.0
  %559 = vmatmul.mubr.f32.gmra.mrb[0].mxu0 %v217
  %v560 = vpop.f32.mrb[0].mxu0
  %v561 = vadd.f32 %v84, %v560
  %v562 = vpop.f32.mrb[0].mxu0
  %563 = vmatprep.mubr.f32.mxu0 0.0
  %564 = vmatmul.mubr.f32.gmra.mrb[0].mxu0 %v220
  %v565 = vpop.f32.mrb[0].mxu0
  %v566 = vadd.f32 %v84, %v565
  %v567 = vpop.f32.mrb[0].mxu0
  %568 = vmatprep.mubr.f32.mxu0 0.0
  %569 = vmatmul.mubr.f32.gmra.mrb[0].mxu0 %v223
  %v570 = vpop.f32.mrb[0].mxu0
  %v571 = vadd.f32 %v84, %v570
  %v572 = vpop.f32.mrb[0].mxu0
  %573 = vmatprep.mubr.f32.mxu0 0.0
  %574 = vmatmul.mubr.f32.gmra.mrb[0].mxu0 %v226
  %v575 = vpop.f32.mrb[0].mxu0
  %v576 = vadd.f32 %v84, %v575
  %v577 = vpop.f32.mrb[0].mxu0
  %578 = vmatprep.mubr.f32.mxu0 0.0
  %579 = vmatmul.mubr.f32.gmra.mrb[0].mxu0 %v229
  %v580 = vpop.f32.mrb[0].mxu0
  %v581 = vadd.f32 %v84, %v580
  %v582 = vpop.f32.mrb[0].mxu0
  %583 = vmatprep.mubr.f32.mxu0 0.0
  %584 = vmatmul.mubr.f32.gmra.mrb[0].mxu0 %v232
  %v585 = vpop.f32.mrb[0].mxu0
  %v586 = vadd.f32 %v84, %v585
  %v587 = vpop.f32.mrb[0].mxu0
  %588 = vmatprep.mubr.f32.mxu0 0.0
  %589 = vmatmul.mubr.f32.gmra.mrb[0].mxu0 %v235
  %v590 = vpop.f32.mrb[0].mxu0
  %v591 = vadd.f32 %v84, %v590
  %v592 = vpop.f32.mrb[0].mxu0
  %593 = vmatprep.mubr.f32.mxu0 0.0
  %594 = vmatmul.mubr.f32.gmra.mrb[0].mxu0 %v238
  %v595 = vpop.f32.mrb[0].mxu0
  %v596 = vadd.f32 %v84, %v595
  %v597 = vpop.f32.mrb[0].mxu0
  %598 = vmatprep.mubr.f32.mxu0 0.0
  %599 = vmatmul.mubr.f32.gmra.mrb[0].mxu0 %v241
  %v600 = vpop.f32.mrb[0].mxu0
  %v601 = vadd.f32 %v84, %v600
  %v602 = vpop.f32.mrb[0].mxu0
  %603 = vmatprep.mubr.f32.mxu0 0.0
  %604 = vmatmul.mubr.f32.gmra.mrb[0].mxu0 %v244
  %v605 = vpop.f32.mrb[0].mxu0
  %v606 = vadd.f32 %v84, %v605
  %v607 = vpop.f32.mrb[0].mxu0
  %608 = vmatprep.mubr.f32.mxu0 0.0
  %609 = vmatmul.mubr.f32.gmra.mrb[0].mxu0 %v247
  %v610 = vpop.f32.mrb[0].mxu0
  %v611 = vadd.f32 %v84, %v610
  %v612 = vpop.f32.mrb[0].mxu0
  %613 = vmatprep.mubr.f32.mxu0 0.0
  %614 = vmatmul.mubr.f32.gmra.mrb[0].mxu0 %v250
  %v615 = vpop.f32.mrb[0].mxu0
  %v616 = vadd.f32 %v84, %v615
  %v617 = vpop.f32.mrb[0].mxu0
  %618 = vmatprep.mubr.f32.mxu0 0.0
  %619 = vmatmul.mubr.f32.gmra.mrb[0].mxu0 %v253
  %v620 = vpop.f32.mrb[0].mxu0
  %v621 = vadd.f32 %v84, %v620
  %v622 = vpop.f32.mrb[0].mxu0
  %623 = vmatprep.mubr.f32.mxu0 0.0
  %624 = vmatmul.mubr.f32.gmra.mrb[0].mxu0 %v256
  %v625 = vpop.f32.mrb[0].mxu0
  %v626 = vadd.f32 %v84, %v625
  %v627 = vpop.f32.mrb[0].mxu0
  %628 = vmatprep.mubr.f32.mxu0 0.0
  %629 = vmatmul.mubr.f32.gmra.mrb[0].mxu0 %v259
  %v630 = vpop.f32.mrb[0].mxu0
  %v631 = vadd.f32 %v84, %v630
  %v632 = vpop.f32.mrb[0].mxu0
  %633 = vmatprep.mubr.f32.mxu0 0.0
  %634 = vmatmul.mubr.f32.gmra.mrb[0].mxu0 %v262
  %v635 = vpop.f32.mrb[0].mxu0
  %v636 = vadd.f32 %v84, %v635
  %v637 = vpop.f32.mrb[0].mxu0
  %638 = vmatprep.mubr.f32.mxu0 0.0
  %639 = vmatmul.mubr.f32.gmra.mrb[0].mxu0 %v265
  %v640 = vpop.f32.mrb[0].mxu0
  %v641 = vadd.f32 %v84, %v640
  %v642 = vpop.f32.mrb[0].mxu0
  %643 = vmatprep.mubr.f32.mxu0 0.0
  %644 = vmatmul.mubr.f32.gmra.mrb[0].mxu0 %v268
  %v645 = vpop.f32.mrb[0].mxu0
  %v646 = vadd.f32 %v84, %v645
  %v647 = vpop.f32.mrb[0].mxu0
  %648 = vmatprep.mubr.f32.mxu0 0.0
  %649 = vmatmul.mubr.f32.gmra.mrb[0].mxu0 %v271
  %v650 = vpop.f32.mrb[0].mxu0
  %v651 = vadd.f32 %v84, %v650
  %v652 = vpop.f32.mrb[0].mxu0
  %653 = vmatprep.mubr.f32.mxu0 0.0
  %654 = vmatmul.mubr.f32.gmra.mrb[0].mxu0 %v274
  %v655 = vpop.f32.mrb[0].mxu0
  %v656 = vadd.f32 %v84, %v655
  %v657 = vpop.f32.mrb[0].mxu0
  %658 = vmatprep.mubr.f32.mxu0 0.0
  %659 = vmatmul.mubr.f32.gmra.mrb[0].mxu0 %v277
  %v660 = vpop.f32.mrb[0].mxu0
  %v661 = vadd.f32 %v84, %v660
  %v662 = vpop.f32.mrb[0].mxu0
  %663 = vdwg.mxu0
  %v664 = vxor.u32 %v346, 2147483648
  %v665 = vxor.u32 %v351, 2147483648
  %v666 = vxor.u32 %v356, 2147483648
  %v667 = vxor.u32 %v361, 2147483648
  %v668 = vxor.u32 %v366, 2147483648
  %v669 = vxor.u32 %v371, 2147483648
  %v670 = vxor.u32 %v376, 2147483648
  %v671 = vxor.u32 %v381, 2147483648
  %v672 = vxor.u32 %v386, 2147483648
  %v673 = vxor.u32 %v391, 2147483648
  %v674 = vxor.u32 %v396, 2147483648
  %v675 = vxor.u32 %v401, 2147483648
  %v676 = vxor.u32 %v406, 2147483648
  %v677 = vxor.u32 %v411, 2147483648
  %v678 = vxor.u32 %v416, 2147483648
  %v679 = vxor.u32 %v421, 2147483648
  %v680 = vxor.u32 %v426, 2147483648
  %v681 = vxor.u32 %v431, 2147483648
  %v682 = vxor.u32 %v436, 2147483648
  %v683 = vxor.u32 %v441, 2147483648
  %v684 = vxor.u32 %v446, 2147483648
  %v685 = vxor.u32 %v451, 2147483648
  %v686 = vxor.u32 %v456, 2147483648
  %v687 = vxor.u32 %v461, 2147483648
  %v688 = vxor.u32 %v466, 2147483648
  %v689 = vxor.u32 %v471, 2147483648
  %v690 = vxor.u32 %v476, 2147483648
  %v691 = vxor.u32 %v481, 2147483648
  %v692 = vxor.u32 %v486, 2147483648
  %v693 = vxor.u32 %v491, 2147483648
  %v694 = vxor.u32 %v496, 2147483648
  %v695 = vxor.u32 %v501, 2147483648
  %v696 = vxor.u32 %v506, 2147483648
  %v697 = vxor.u32 %v511, 2147483648
  %v698 = vxor.u32 %v516, 2147483648
  %v699 = vxor.u32 %v521, 2147483648
  %v700 = vxor.u32 %v526, 2147483648
  %v701 = vxor.u32 %v531, 2147483648
  %v702 = vxor.u32 %v536, 2147483648
  %v703 = vxor.u32 %v541, 2147483648
  %v704 = vxor.u32 %v546, 2147483648
  %v705 = vxor.u32 %v551, 2147483648
  %v706 = vxor.u32 %v556, 2147483648
  %v707 = vxor.u32 %v561, 2147483648
  %v708 = vxor.u32 %v566, 2147483648
  %v709 = vxor.u32 %v571, 2147483648
  %v710 = vxor.u32 %v576, 2147483648
  %v711 = vxor.u32 %v581, 2147483648
  %v712 = vxor.u32 %v586, 2147483648
  %v713 = vxor.u32 %v591, 2147483648
  %v714 = vxor.u32 %v596, 2147483648
  %v715 = vxor.u32 %v601, 2147483648
  %v716 = vxor.u32 %v606, 2147483648
  %v717 = vxor.u32 %v611, 2147483648
  %v718 = vxor.u32 %v616, 2147483648
  %v719 = vxor.u32 %v621, 2147483648
  %v720 = vxor.u32 %v626, 2147483648
  %v721 = vxor.u32 %v631, 2147483648
  %v722 = vxor.u32 %v636, 2147483648
  %v723 = vxor.u32 %v641, 2147483648
  %v724 = vxor.u32 %v646, 2147483648
  %v725 = vxor.u32 %v651, 2147483648
  %v726 = vxor.u32 %v656, 2147483648
  %v727 = vxor.u32 %v661, 2147483648
  %v728 = vmul.f32 %v664, 1.442695
  %v729 = vpow.pop %v728
  %v730 = vmul.f32 %v665, 1.442695
  %v731 = vpow.pop %v730
  %v732 = vmul.f32 %v666, 1.442695
  %v733 = vpow.pop %v732
  %v734 = vmul.f32 %v667, 1.442695
  %v735 = vpow.pop %v734
  %v736 = vmul.f32 %v668, 1.442695
  %v737 = vpow.pop %v736
  %v738 = vmul.f32 %v669, 1.442695
  %v739 = vpow.pop %v738
  %v740 = vmul.f32 %v670, 1.442695
  %v741 = vpow.pop %v740
  %v742 = vmul.f32 %v671, 1.442695
  %v743 = vpow.pop %v742
  %v744 = vmul.f32 %v672, 1.442695
  %v745 = vpow.pop %v744
  %v746 = vmul.f32 %v673, 1.442695
  %v747 = vpow.pop %v746
  %v748 = vmul.f32 %v674, 1.442695
  %v749 = vpow.pop %v748
  %v750 = vmul.f32 %v675, 1.442695
  %v751 = vpow.pop %v750
  %v752 = vmul.f32 %v676, 1.442695
  %v753 = vpow.pop %v752
  %v754 = vmul.f32 %v677, 1.442695
  %v755 = vpow.pop %v754
  %v756 = vmul.f32 %v678, 1.442695
  %v757 = vpow.pop %v756
  %v758 = vmul.f32 %v679, 1.442695
  %v759 = vpow.pop %v758
  %v760 = vmul.f32 %v680, 1.442695
  %v761 = vpow.pop %v760
  %v762 = vmul.f32 %v681, 1.442695
  %v763 = vpow.pop %v762
  %v764 = vmul.f32 %v682, 1.442695
  %v765 = vpow.pop %v764
  %v766 = vmul.f32 %v683, 1.442695
  %v767 = vpow.pop %v766
  %v768 = vmul.f32 %v684, 1.442695
  %v769 = vpow.pop %v768
  %v770 = vmul.f32 %v685, 1.442695
  %v771 = vpow.pop %v770
  %v772 = vmul.f32 %v686, 1.442695
  %v773 = vpow.pop %v772
  %v774 = vmul.f32 %v687, 1.442695
  %v775 = vpow.pop %v774
  %v776 = vmul.f32 %v688, 1.442695
  %v777 = vpow.pop %v776
  %v778 = vmul.f32 %v689, 1.442695
  %v779 = vpow.pop %v778
  %v780 = vmul.f32 %v690, 1.442695
  %v781 = vpow.pop %v780
  %v782 = vmul.f32 %v691, 1.442695
  %v783 = vpow.pop %v782
  %v784 = vmul.f32 %v692, 1.442695
  %v785 = vpow.pop %v784
  %v786 = vmul.f32 %v693, 1.442695
  %v787 = vpow.pop %v786
  %v788 = vmul.f32 %v694, 1.442695
  %v789 = vpow.pop %v788
  %v790 = vmul.f32 %v695, 1.442695
  %v791 = vpow.pop %v790
  %v792 = vmul.f32 %v696, 1.442695
  %v793 = vpow.pop %v792
  %v794 = vmul.f32 %v697, 1.442695
  %v795 = vpow.pop %v794
  %v796 = vmul.f32 %v698, 1.442695
  %v797 = vpow.pop %v796
  %v798 = vmul.f32 %v699, 1.442695
  %v799 = vpow.pop %v798
  %v800 = vmul.f32 %v700, 1.442695
  %v801 = vpow.pop %v800
  %v802 = vmul.f32 %v701, 1.442695
  %v803 = vpow.pop %v802
  %v804 = vmul.f32 %v702, 1.442695
  %v805 = vpow.pop %v804
  %v806 = vmul.f32 %v703, 1.442695
  %v807 = vpow.pop %v806
  %v808 = vmul.f32 %v704, 1.442695
  %v809 = vpow.pop %v808
  %v810 = vmul.f32 %v705, 1.442695
  %v811 = vpow.pop %v810
  %v812 = vmul.f32 %v706, 1.442695
  %v813 = vpow.pop %v812
  %v814 = vmul.f32 %v707, 1.442695
  %v815 = vpow.pop %v814
  %v816 = vmul.f32 %v708, 1.442695
  %v817 = vpow.pop %v816
  %v818 = vmul.f32 %v709, 1.442695
  %v819 = vpow.pop %v818
  %v820 = vmul.f32 %v710, 1.442695
  %v821 = vpow.pop %v820
  %v822 = vmul.f32 %v711, 1.442695
  %v823 = vpow.pop %v822
  %v824 = vmul.f32 %v712, 1.442695
  %v825 = vpow.pop %v824
  %v826 = vmul.f32 %v713, 1.442695
  %v827 = vpow.pop %v826
  %v828 = vmul.f32 %v714, 1.442695
  %v829 = vpow.pop %v828
  %v830 = vmul.f32 %v715, 1.442695
  %v831 = vpow.pop %v830
  %v832 = vmul.f32 %v716, 1.442695
  %v833 = vpow.pop %v832
  %v834 = vmul.f32 %v717, 1.442695
  %v835 = vpow.pop %v834
  %v836 = vmul.f32 %v718, 1.442695
  %v837 = vpow.pop %v836
  %v838 = vmul.f32 %v719, 1.442695
  %v839 = vpow.pop %v838
  %v840 = vmul.f32 %v720, 1.442695
  %v841 = vpow.pop %v840
  %v842 = vmul.f32 %v721, 1.442695
  %v843 = vpow.pop %v842
  %v844 = vmul.f32 %v722, 1.442695
  %v845 = vpow.pop %v844
  %v846 = vmul.f32 %v723, 1.442695
  %v847 = vpow.pop %v846
  %v848 = vmul.f32 %v724, 1.442695
  %v849 = vpow.pop %v848
  %v850 = vmul.f32 %v725, 1.442695
  %v851 = vpow.pop %v850
  %v852 = vmul.f32 %v726, 1.442695
  %v853 = vpow.pop %v852
  %v854 = vmul.f32 %v727, 1.442695
  %v855 = vpow.pop %v854
  %v856 = vadd.f32 %v729, 1.0
  %v857 = vadd.f32 %v731, 1.0
  %v858 = vadd.f32 %v733, 1.0
  %v859 = vadd.f32 %v735, 1.0
  %v860 = vadd.f32 %v737, 1.0
  %v861 = vadd.f32 %v739, 1.0
  %v862 = vadd.f32 %v741, 1.0
  %v863 = vadd.f32 %v743, 1.0
  %v864 = vadd.f32 %v745, 1.0
  %v865 = vadd.f32 %v747, 1.0
  %v866 = vadd.f32 %v749, 1.0
  %v867 = vadd.f32 %v751, 1.0
  %v868 = vadd.f32 %v753, 1.0
  %v869 = vadd.f32 %v755, 1.0
  %v870 = vadd.f32 %v757, 1.0
  %v871 = vadd.f32 %v759, 1.0
  %v872 = vadd.f32 %v761, 1.0
  %v873 = vadd.f32 %v763, 1.0
  %v874 = vadd.f32 %v765, 1.0
  %v875 = vadd.f32 %v767, 1.0
  %v876 = vadd.f32 %v769, 1.0
  %v877 = vadd.f32 %v771, 1.0
  %v878 = vadd.f32 %v773, 1.0
  %v879 = vadd.f32 %v775, 1.0
  %v880 = vadd.f32 %v777, 1.0
  %v881 = vadd.f32 %v779, 1.0
  %v882 = vadd.f32 %v781, 1.0
  %v883 = vadd.f32 %v783, 1.0
  %v884 = vadd.f32 %v785, 1.0
  %v885 = vadd.f32 %v787, 1.0
  %v886 = vadd.f32 %v789, 1.0
  %v887 = vadd.f32 %v791, 1.0
  %v888 = vadd.f32 %v793, 1.0
  %v889 = vadd.f32 %v795, 1.0
  %v890 = vadd.f32 %v797, 1.0
  %v891 = vadd.f32 %v799, 1.0
  %v892 = vadd.f32 %v801, 1.0
  %v893 = vadd.f32 %v803, 1.0
  %v894 = vadd.f32 %v805, 1.0
  %v895 = vadd.f32 %v807, 1.0
  %v896 = vadd.f32 %v809, 1.0
  %v897 = vadd.f32 %v811, 1.0
  %v898 = vadd.f32 %v813, 1.0
  %v899 = vadd.f32 %v815, 1.0
  %v900 = vadd.f32 %v817, 1.0
  %v901 = vadd.f32 %v819, 1.0
  %v902 = vadd.f32 %v821, 1.0
  %v903 = vadd.f32 %v823, 1.0
  %v904 = vadd.f32 %v825, 1.0
  %v905 = vadd.f32 %v827, 1.0
  %v906 = vadd.f32 %v829, 1.0
  %v907 = vadd.f32 %v831, 1.0
  %v908 = vadd.f32 %v833, 1.0
  %v909 = vadd.f32 %v835, 1.0
  %v910 = vadd.f32 %v837, 1.0
  %v911 = vadd.f32 %v839, 1.0
  %v912 = vadd.f32 %v841, 1.0
  %v913 = vadd.f32 %v843, 1.0
  %v914 = vadd.f32 %v845, 1.0
  %v915 = vadd.f32 %v847, 1.0
  %v916 = vadd.f32 %v849, 1.0
  %v917 = vadd.f32 %v851, 1.0
  %v918 = vadd.f32 %v853, 1.0
  %v919 = vadd.f32 %v855, 1.0
  %v920 = vrcp.pop %v856
  %v921 = vmul.f32 1.0, %v920
  %v922 = vrcp.pop %v857
  %v923 = vmul.f32 1.0, %v922
  %v924 = vrcp.pop %v858
  %v925 = vmul.f32 1.0, %v924
  %v926 = vrcp.pop %v859
  %v927 = vmul.f32 1.0, %v926
  %v928 = vrcp.pop %v860
  %v929 = vmul.f32 1.0, %v928
  %v930 = vrcp.pop %v861
  %v931 = vmul.f32 1.0, %v930
  %v932 = vrcp.pop %v862
  %v933 = vmul.f32 1.0, %v932
  %v934 = vrcp.pop %v863
  %v935 = vmul.f32 1.0, %v934
  %v936 = vrcp.pop %v864
  %v937 = vmul.f32 1.0, %v936
  %v938 = vrcp.pop %v865
  %v939 = vmul.f32 1.0, %v938
  %v940 = vrcp.pop %v866
  %v941 = vmul.f32 1.0, %v940
  %v942 = vrcp.pop %v867
  %v943 = vmul.f32 1.0, %v942
  %v944 = vrcp.pop %v868
  %v945 = vmul.f32 1.0, %v944
  %v946 = vrcp.pop %v869
  %v947 = vmul.f32 1.0, %v946
  %v948 = vrcp.pop %v870
  %v949 = vmul.f32 1.0, %v948
  %v950 = vrcp.pop %v871
  %v951 = vmul.f32 1.0, %v950
  %v952 = vrcp.pop %v872
  %v953 = vmul.f32 1.0, %v952
  %v954 = vrcp.pop %v873
  %v955 = vmul.f32 1.0, %v954
  %v956 = vrcp.pop %v874
  %v957 = vmul.f32 1.0, %v956
  %v958 = vrcp.pop %v875
  %v959 = vmul.f32 1.0, %v958
  %v960 = vrcp.pop %v876
  %v961 = vmul.f32 1.0, %v960
  %v962 = vrcp.pop %v877
  %v963 = vmul.f32 1.0, %v962
  %v964 = vrcp.pop %v878
  %v965 = vmul.f32 1.0, %v964
  %v966 = vrcp.pop %v879
  %v967 = vmul.f32 1.0, %v966
  %v968 = vrcp.pop %v880
  %v969 = vmul.f32 1.0, %v968
  %v970 = vrcp.pop %v881
  %v971 = vmul.f32 1.0, %v970
  %v972 = vrcp.pop %v882
  %v973 = vmul.f32 1.0, %v972
  %v974 = vrcp.pop %v883
  %v975 = vmul.f32 1.0, %v974
  %v976 = vrcp.pop %v884
  %v977 = vmul.f32 1.0, %v976
  %v978 = vrcp.pop %v885
  %v979 = vmul.f32 1.0, %v978
  %v980 = vrcp.pop %v886
  %v981 = vmul.f32 1.0, %v980
  %v982 = vrcp.pop %v887
  %v983 = vmul.f32 1.0, %v982
  %v984 = vrcp.pop %v888
  %v985 = vmul.f32 1.0, %v984
  %v986 = vrcp.pop %v889
  %v987 = vmul.f32 1.0, %v986
  %v988 = vrcp.pop %v890
  %v989 = vmul.f32 1.0, %v988
  %v990 = vrcp.pop %v891
  %v991 = vmul.f32 1.0, %v990
  %v992 = vrcp.pop %v892
  %v993 = vmul.f32 1.0, %v992
  %v994 = vrcp.pop %v893
  %v995 = vmul.f32 1.0, %v994
  %v996 = vrcp.pop %v894
  %v997 = vmul.f32 1.0, %v996
  %v998 = vrcp.pop %v895
  %v999 = vmul.f32 1.0, %v998
  %v1000 = vrcp.pop %v896
  %v1001 = vmul.f32 1.0, %v1000
  %v1002 = vrcp.pop %v897
  %v1003 = vmul.f32 1.0, %v1002
  %v1004 = vrcp.pop %v898
  %v1005 = vmul.f32 1.0, %v1004
  %v1006 = vrcp.pop %v899
  %v1007 = vmul.f32 1.0, %v1006
  %v1008 = vrcp.pop %v900
  %v1009 = vmul.f32 1.0, %v1008
  %v1010 = vrcp.pop %v901
  %v1011 = vmul.f32 1.0, %v1010
  %v1012 = vrcp.pop %v902
  %v1013 = vmul.f32 1.0, %v1012
  %v1014 = vrcp.pop %v903
  %v1015 = vmul.f32 1.0, %v1014
  %v1016 = vrcp.pop %v904
  %v1017 = vmul.f32 1.0, %v1016
  %v1018 = vrcp.pop %v905
  %v1019 = vmul.f32 1.0, %v1018
  %v1020 = vrcp.pop %v906
  %v1021 = vmul.f32 1.0, %v1020
  %v1022 = vrcp.pop %v907
  %v1023 = vmul.f32 1.0, %v1022
  %v1024 = vrcp.pop %v908
  %v1025 = vmul.f32 1.0, %v1024
  %v1026 = vrcp.pop %v909
  %v1027 = vmul.f32 1.0, %v1026
  %v1028 = vrcp.pop %v910
  %v1029 = vmul.f32 1.0, %v1028
  %v1030 = vrcp.pop %v911
  %v1031 = vmul.f32 1.0, %v1030
  %v1032 = vrcp.pop %v912
  %v1033 = vmul.f32 1.0, %v1032
  %v1034 = vrcp.pop %v913
  %v1035 = vmul.f32 1.0, %v1034
  %v1036 = vrcp.pop %v914
  %v1037 = vmul.f32 1.0, %v1036
  %v1038 = vrcp.pop %v915
  %v1039 = vmul.f32 1.0, %v1038
  %v1040 = vrcp.pop %v916
  %v1041 = vmul.f32 1.0, %v1040
  %v1042 = vrcp.pop %v917
  %v1043 = vmul.f32 1.0, %v1042
  %v1044 = vrcp.pop %v918
  %v1045 = vmul.f32 1.0, %v1044
  %v1046 = vrcp.pop %v919
  %v1047 = vmul.f32 1.0, %v1046
  %v1048 = vmul.f32 %v346, %v921
  %v1049 = vmul.f32 %v351, %v923
  %v1050 = vmul.f32 %v356, %v925
  %v1051 = vmul.f32 %v361, %v927
  %v1052 = vmul.f32 %v366, %v929
  %v1053 = vmul.f32 %v371, %v931
  %v1054 = vmul.f32 %v376, %v933
  %v1055 = vmul.f32 %v381, %v935
  %v1056 = vmul.f32 %v386, %v937
  %v1057 = vmul.f32 %v391, %v939
  %v1058 = vmul.f32 %v396, %v941
  %v1059 = vmul.f32 %v401, %v943
  %v1060 = vmul.f32 %v406, %v945
  %v1061 = vmul.f32 %v411, %v947
  %v1062 = vmul.f32 %v416, %v949
  %v1063 = vmul.f32 %v421, %v951
  %v1064 = vmul.f32 %v426, %v953
  %v1065 = vmul.f32 %v431, %v955
  %v1066 = vmul.f32 %v436, %v957
  %v1067 = vmul.f32 %v441, %v959
  %v1068 = vmul.f32 %v446, %v961
  %v1069 = vmul.f32 %v451, %v963
  %v1070 = vmul.f32 %v456, %v965
  %v1071 = vmul.f32 %v461, %v967
  %v1072 = vmul.f32 %v466, %v969
  %v1073 = vmul.f32 %v471, %v971
  %v1074 = vmul.f32 %v476, %v973
  %v1075 = vmul.f32 %v481, %v975
  %v1076 = vmul.f32 %v486, %v977
  %v1077 = vmul.f32 %v491, %v979
  %v1078 = vmul.f32 %v496, %v981
  %v1079 = vmul.f32 %v501, %v983
  %v1080 = vmul.f32 %v506, %v985
  %v1081 = vmul.f32 %v511, %v987
  %v1082 = vmul.f32 %v516, %v989
  %v1083 = vmul.f32 %v521, %v991
  %v1084 = vmul.f32 %v526, %v993
  %v1085 = vmul.f32 %v531, %v995
  %v1086 = vmul.f32 %v536, %v997
  %v1087 = vmul.f32 %v541, %v999
  %v1088 = vmul.f32 %v546, %v1001
  %v1089 = vmul.f32 %v551, %v1003
  %v1090 = vmul.f32 %v556, %v1005
  %v1091 = vmul.f32 %v561, %v1007
  %v1092 = vmul.f32 %v566, %v1009
  %v1093 = vmul.f32 %v571, %v1011
  %v1094 = vmul.f32 %v576, %v1013
  %v1095 = vmul.f32 %v581, %v1015
  %v1096 = vmul.f32 %v586, %v1017
  %v1097 = vmul.f32 %v591, %v1019
  %v1098 = vmul.f32 %v596, %v1021
  %v1099 = vmul.f32 %v601, %v1023
  %v1100 = vmul.f32 %v606, %v1025
  %v1101 = vmul.f32 %v611, %v1027
  %v1102 = vmul.f32 %v616, %v1029
  %v1103 = vmul.f32 %v621, %v1031
  %v1104 = vmul.f32 %v626, %v1033
  %v1105 = vmul.f32 %v631, %v1035
  %v1106 = vmul.f32 %v636, %v1037
  %v1107 = vmul.f32 %v641, %v1039
  %v1108 = vmul.f32 %v646, %v1041
  %v1109 = vmul.f32 %v651, %v1043
  %v1110 = vmul.f32 %v656, %v1045
  %v1111 = vmul.f32 %v661, %v1047
  %1112 = vst.msk [vmem:[%s3] sm:$0xff] %vm86, %v1048
  %1113 = vst.msk [vmem:[%s3 + $0x8] sm:$0xff] %vm86, %v1049
  %1114 = vst.msk [vmem:[%s3 + $0x10] sm:$0xff] %vm86, %v1050
  %1115 = vst.msk [vmem:[%s3 + $0x18] sm:$0xff] %vm86, %v1051
  %1116 = vst.msk [vmem:[%s3 + $0x20] sm:$0xff] %vm86, %v1052
  %1117 = vst.msk [vmem:[%s3 + $0x28] sm:$0xff] %vm86, %v1053
  %1118 = vst.msk [vmem:[%s3 + $0x30] sm:$0xff] %vm86, %v1054
  %1119 = vst.msk [vmem:[%s3 + $0x38] sm:$0xff] %vm86, %v1055
  %1120 = vst.msk [vmem:[%s3 + $0x40] sm:$0xff] %vm86, %v1056
  %1121 = vst.msk [vmem:[%s3 + $0x48] sm:$0xff] %vm86, %v1057
  %1122 = vst.msk [vmem:[%s3 + $0x50] sm:$0xff] %vm86, %v1058
  %1123 = vst.msk [vmem:[%s3 + $0x58] sm:$0xff] %vm86, %v1059
  %1124 = vst.msk [vmem:[%s3 + $0x60] sm:$0xff] %vm86, %v1060
  %1125 = vst.msk [vmem:[%s3 + $0x68] sm:$0xff] %vm86, %v1061
  %1126 = vst.msk [vmem:[%s3 + $0x70] sm:$0xff] %vm86, %v1062
  %1127 = vst.msk [vmem:[%s3 + $0x78] sm:$0xff] %vm86, %v1063
  %1128 = vst.msk [vmem:[%s3 + $0x80] sm:$0xff] %vm86, %v1064
  %1129 = vst.msk [vmem:[%s3 + $0x88] sm:$0xff] %vm86, %v1065
  %1130 = vst.msk [vmem:[%s3 + $0x90] sm:$0xff] %vm86, %v1066
  %1131 = vst.msk [vmem:[%s3 + $0x98] sm:$0xff] %vm86, %v1067
  %1132 = vst.msk [vmem:[%s3 + $0xa0] sm:$0xff] %vm86, %v1068
  %1133 = vst.msk [vmem:[%s3 + $0xa8] sm:$0xff] %vm86, %v1069
  %1134 = vst.msk [vmem:[%s3 + $0xb0] sm:$0xff] %vm86, %v1070
  %1135 = vst.msk [vmem:[%s3 + $0xb8] sm:$0xff] %vm86, %v1071
  %1136 = vst.msk [vmem:[%s3 + $0xc0] sm:$0xff] %vm86, %v1072
  %1137 = vst.msk [vmem:[%s3 + $0xc8] sm:$0xff] %vm86, %v1073
  %1138 = vst.msk [vmem:[%s3 + $0xd0] sm:$0xff] %vm86, %v1074
  %1139 = vst.msk [vmem:[%s3 + $0xd8] sm:$0xff] %vm86, %v1075
  %1140 = vst.msk [vmem:[%s3 + $0xe0] sm:$0xff] %vm86, %v1076
  %1141 = vst.msk [vmem:[%s3 + $0xe8] sm:$0xff] %vm86, %v1077
  %1142 = vst.msk [vmem:[%s3 + $0xf0] sm:$0xff] %vm86, %v1078
  %1143 = vst.msk [vmem:[%s3 + $0xf8] sm:$0xff] %vm86, %v1079
  %1144 = vst.msk [vmem:[%s3 + $0x100] sm:$0xff] %vm86, %v1080
  %1145 = vst.msk [vmem:[%s3 + $0x108] sm:$0xff] %vm86, %v1081
  %1146 = vst.msk [vmem:[%s3 + $0x110] sm:$0xff] %vm86, %v1082
  %1147 = vst.msk [vmem:[%s3 + $0x118] sm:$0xff] %vm86, %v1083
  %1148 = vst.msk [vmem:[%s3 + $0x120] sm:$0xff] %vm86, %v1084
  %1149 = vst.msk [vmem:[%s3 + $0x128] sm:$0xff] %vm86, %v1085
  %1150 = vst.msk [vmem:[%s3 + $0x130] sm:$0xff] %vm86, %v1086
  %1151 = vst.msk [vmem:[%s3 + $0x138] sm:$0xff] %vm86, %v1087
  %1152 = vst.msk [vmem:[%s3 + $0x140] sm:$0xff] %vm86, %v1088
  %1153 = vst.msk [vmem:[%s3 + $0x148] sm:$0xff] %vm86, %v1089
  %1154 = vst.msk [vmem:[%s3 + $0x150] sm:$0xff] %vm86, %v1090
  %1155 = vst.msk [vmem:[%s3 + $0x158] sm:$0xff] %vm86, %v1091
  %1156 = vst.msk [vmem:[%s3 + $0x160] sm:$0xff] %vm86, %v1092
  %1157 = vst.msk [vmem:[%s3 + $0x168] sm:$0xff] %vm86, %v1093
  %1158 = vst.msk [vmem:[%s3 + $0x170] sm:$0xff] %vm86, %v1094
  %1159 = vst.msk [vmem:[%s3 + $0x178] sm:$0xff] %vm86, %v1095
  %1160 = vst.msk [vmem:[%s3 + $0x180] sm:$0xff] %vm86, %v1096
  %1161 = vst.msk [vmem:[%s3 + $0x188] sm:$0xff] %vm86, %v1097
  %1162 = vst.msk [vmem:[%s3 + $0x190] sm:$0xff] %vm86, %v1098
  %1163 = vst.msk [vmem:[%s3 + $0x198] sm:$0xff] %vm86, %v1099
  %1164 = vst.msk [vmem:[%s3 + $0x1a0] sm:$0xff] %vm86, %v1100
  %1165 = vst.msk [vmem:[%s3 + $0x1a8] sm:$0xff] %vm86, %v1101
  %1166 = vst.msk [vmem:[%s3 + $0x1b0] sm:$0xff] %vm86, %v1102
  %1167 = vst.msk [vmem:[%s3 + $0x1b8] sm:$0xff] %vm86, %v1103
  %1168 = vst.msk [vmem:[%s3 + $0x1c0] sm:$0xff] %vm86, %v1104
  %1169 = vst.msk [vmem:[%s3 + $0x1c8] sm:$0xff] %vm86, %v1105
  %1170 = vst.msk [vmem:[%s3 + $0x1d0] sm:$0xff] %vm86, %v1106
  %1171 = vst.msk [vmem:[%s3 + $0x1d8] sm:$0xff] %vm86, %v1107
  %1172 = vst.msk [vmem:[%s3 + $0x1e0] sm:$0xff] %vm86, %v1108
  %1173 = vst.msk [vmem:[%s3 + $0x1e8] sm:$0xff] %vm86, %v1109
  %1174 = vst.msk [vmem:[%s3 + $0x1f0] sm:$0xff] %vm86, %v1110
  %1175 = vst.msk [vmem:[%s3 + $0x1f8] sm:$0xff] %vm86, %v1111
  // Predicated region
  $region14: #{c3_forward.4} parent=0 // pred_check
    _
  $region15: #{c3_forward.4} parent=0 // pred_check_branch
    %1177 = sbr.rel (0) target = $region17
  $region16: #{c3_forward.4} parent=0 // pred_region
    _
  $region17: #{c3_forward.4} parent=0 // pred_fallthru
    _
  // Predicated region
  $region18: #{c3_forward.4} parent=0 // pred_check
    _
  $region19: #{c3_forward.4} parent=0 // pred_check_branch
    %1179 = sbr.rel (0) target = $region21
  $region20: #{c3_forward.4} parent=0 // pred_region
    _
  $region21: #{c3_forward.4} parent=0 // pred_fallthru
    _

// kernel: c3_forward.5
$region0: #{c3_forward.5}
  #allocation0 [shape = 'u32[]', space=smem, size = 0x4, offset = 0x4, fixed_abs, tag = 'smem constant byte address 0x4 - core index']
  #allocation1 [shape = 'u32[144,128]{1,0:T(1,128)}', space=vmem, size = 0x12000, scoped, tag = 'internal scratch']
  %s0 = inlined_call_operand.vmem [shape: f32[512,4], index: 0, kind: input, shape index: {}]
  %s1 = inlined_call_operand.vmem [shape: f32[4,4], index: 1, kind: input, shape index: {}]
  %s2 = inlined_call_operand.vmem [shape: f32[1,4], index: 2, kind: input, shape index: {}]
  %s3 = inlined_call_operand.vmem [shape: f32[512,4], index: 3, kind: output, shape index: {}]
  %s4 = sld [smem:[#allocation0]]
  $region22: #{c3_forward.5} parent=0
    _
  %s6 = ssub.s32 1, %s4
  %s7 = scalar_select 0, %s6, %s4
  // Predicated region
  $region2: #{c3_forward.5} parent=0 // pred_check
    _
  $region3: #{c3_forward.5} parent=0 // pred_check_branch
    %9 = sbr.rel (0) target = $region5
  $region4: #{c3_forward.5} parent=0 // pred_region
    _
  $region5: #{c3_forward.5} parent=0 // pred_fallthru
    _
  // Predicated region
  $region6: #{c3_forward.5} parent=0 // pred_check
    _
  $region7: #{c3_forward.5} parent=0 // pred_check_branch
    %11 = sbr.rel (0) target = $region9
  $region8: #{c3_forward.5} parent=0 // pred_region
    _
  $region9: #{c3_forward.5} parent=0 // pred_fallthru
    _
  // Predicated region
  $region10: #{c3_forward.5} parent=0 // pred_check
    _
  $region11: #{c3_forward.5} parent=0 // pred_check_branch
    %13 = sbr.rel (0) target = $region13
  $region12: #{c3_forward.5} parent=0 // pred_region
    _
  $region13: #{c3_forward.5} parent=0 // pred_fallthru
    _
  %v14 = vld [vmem:[%s0] sm:$0xff]
  %v15 = vld [vmem:[%s0 + $0x8] sm:$0xff]
  %v16 = vld [vmem:[%s0 + $0x10] sm:$0xff]
  %v17 = vld [vmem:[%s0 + $0x18] sm:$0xff]
  %v18 = vld [vmem:[%s0 + $0x20] sm:$0xff]
  %v19 = vld [vmem:[%s0 + $0x28] sm:$0xff]
  %v20 = vld [vmem:[%s0 + $0x30] sm:$0xff]
  %v21 = vld [vmem:[%s0 + $0x38] sm:$0xff]
  %v22 = vld [vmem:[%s0 + $0x40] sm:$0xff]
  %v23 = vld [vmem:[%s0 + $0x48] sm:$0xff]
  %v24 = vld [vmem:[%s0 + $0x50] sm:$0xff]
  %v25 = vld [vmem:[%s0 + $0x58] sm:$0xff]
  %v26 = vld [vmem:[%s0 + $0x60] sm:$0xff]
  %v27 = vld [vmem:[%s0 + $0x68] sm:$0xff]
  %v28 = vld [vmem:[%s0 + $0x70] sm:$0xff]
  %v29 = vld [vmem:[%s0 + $0x78] sm:$0xff]
  %v30 = vld [vmem:[%s0 + $0x80] sm:$0xff]
  %v31 = vld [vmem:[%s0 + $0x88] sm:$0xff]
  %v32 = vld [vmem:[%s0 + $0x90] sm:$0xff]
  %v33 = vld [vmem:[%s0 + $0x98] sm:$0xff]
  %v34 = vld [vmem:[%s0 + $0xa0] sm:$0xff]
  %v35 = vld [vmem:[%s0 + $0xa8] sm:$0xff]
  %v36 = vld [vmem:[%s0 + $0xb0] sm:$0xff]
  %v37 = vld [vmem:[%s0 + $0xb8] sm:$0xff]
  %v38 = vld [vmem:[%s0 + $0xc0] sm:$0xff]
  %v39 = vld [vmem:[%s0 + $0xc8] sm:$0xff]
  %v40 = vld [vmem:[%s0 + $0xd0] sm:$0xff]
  %v41 = vld [vmem:[%s0 + $0xd8] sm:$0xff]
  %v42 = vld [vmem:[%s0 + $0xe0] sm:$0xff]
  %v43 = vld [vmem:[%s0 + $0xe8] sm:$0xff]
  %v44 = vld [vmem:[%s0 + $0xf0] sm:$0xff]
  %v45 = vld [vmem:[%s0 + $0xf8] sm:$0xff]
  %v46 = vld [vmem:[%s0 + $0x100] sm:$0xff]
  %v47 = vld [vmem:[%s0 + $0x108] sm:$0xff]
  %v48 = vld [vmem:[%s0 + $0x110] sm:$0xff]
  %v49 = vld [vmem:[%s0 + $0x118] sm:$0xff]
  %v50 = vld [vmem:[%s0 + $0x120] sm:$0xff]
  %v51 = vld [vmem:[%s0 + $0x128] sm:$0xff]
  %v52 = vld [vmem:[%s0 + $0x130] sm:$0xff]
  %v53 = vld [vmem:[%s0 + $0x138] sm:$0xff]
  %v54 = vld [vmem:[%s0 + $0x140] sm:$0xff]
  %v55 = vld [vmem:[%s0 + $0x148] sm:$0xff]
  %v56 = vld [vmem:[%s0 + $0x150] sm:$0xff]
  %v57 = vld [vmem:[%s0 + $0x158] sm:$0xff]
  %v58 = vld [vmem:[%s0 + $0x160] sm:$0xff]
  %v59 = vld [vmem:[%s0 + $0x168] sm:$0xff]
  %v60 = vld [vmem:[%s0 + $0x170] sm:$0xff]
  %v61 = vld [vmem:[%s0 + $0x178] sm:$0xff]
  %v62 = vld [vmem:[%s0 + $0x180] sm:$0xff]
  %v63 = vld [vmem:[%s0 + $0x188] sm:$0xff]
  %v64 = vld [vmem:[%s0 + $0x190] sm:$0xff]
  %v65 = vld [vmem:[%s0 + $0x198] sm:$0xff]
  %v66 = vld [vmem:[%s0 + $0x1a0] sm:$0xff]
  %v67 = vld [vmem:[%s0 + $0x1a8] sm:$0xff]
  %v68 = vld [vmem:[%s0 + $0x1b0] sm:$0xff]
  %v69 = vld [vmem:[%s0 + $0x1b8] sm:$0xff]
  %v70 = vld [vmem:[%s0 + $0x1c0] sm:$0xff]
  %v71 = vld [vmem:[%s0 + $0x1c8] sm:$0xff]
  %v72 = vld [vmem:[%s0 + $0x1d0] sm:$0xff]
  %v73 = vld [vmem:[%s0 + $0x1d8] sm:$0xff]
  %v74 = vld [vmem:[%s0 + $0x1e0] sm:$0xff]
  %v75 = vld [vmem:[%s0 + $0x1e8] sm:$0xff]
  %v76 = vld [vmem:[%s0 + $0x1f0] sm:$0xff]
  %v77 = vld [vmem:[%s0 + $0x1f8] sm:$0xff]
  %v78 = vld [vmem:[%s1] sm:$0xf]
  %v79 = vld [vmem:[%s2] sm:$0x1]
  %v81 = vlaneseq
  %v82 = vshrl.u32 %v81, 7
  %v83 = vsub.s32 0, %v82
  %v84 = vrot.slane %v79, %v83
  %vm86 = vcmask 31744
  %v88 = vsel %vm86, %v14, 0
  %v91 = vsel %vm86, %v15, 0
  %v94 = vsel %vm86, %v16, 0
  %v97 = vsel %vm86, %v17, 0
  %v100 = vsel %vm86, %v18, 0
  %v103 = vsel %vm86, %v19, 0
  %v106 = vsel %vm86, %v20, 0
  %v109 = vsel %vm86, %v21, 0
  %v112 = vsel %vm86, %v22, 0
  %v115 = vsel %vm86, %v23, 0
  %v118 = vsel %vm86, %v24, 0
  %v121 = vsel %vm86, %v25, 0
  %v124 = vsel %vm86, %v26, 0
  %v127 = vsel %vm86, %v27, 0
  %v130 = vsel %vm86, %v28, 0
  %v133 = vsel %vm86, %v29, 0
  %v136 = vsel %vm86, %v30, 0
  %v139 = vsel %vm86, %v31, 0
  %v142 = vsel %vm86, %v32, 0
  %v145 = vsel %vm86, %v33, 0
  %v148 = vsel %vm86, %v34, 0
  %v151 = vsel %vm86, %v35, 0
  %v154 = vsel %vm86, %v36, 0
  %v157 = vsel %vm86, %v37, 0
  %v160 = vsel %vm86, %v38, 0
  %v163 = vsel %vm86, %v39, 0
  %v166 = vsel %vm86, %v40, 0
  %v169 = vsel %vm86, %v41, 0
  %v172 = vsel %vm86, %v42, 0
  %v175 = vsel %vm86, %v43, 0
  %v178 = vsel %vm86, %v44, 0
  %v181 = vsel %vm86, %v45, 0
  %v184 = vsel %vm86, %v46, 0
  %v187 = vsel %vm86, %v47, 0
  %v190 = vsel %vm86, %v48, 0
  %v193 = vsel %vm86, %v49, 0
  %v196 = vsel %vm86, %v50, 0
  %v199 = vsel %vm86, %v51, 0
  %v202 = vsel %vm86, %v52, 0
  %v205 = vsel %vm86, %v53, 0
  %v208 = vsel %vm86, %v54, 0
  %v211 = vsel %vm86, %v55, 0
  %v214 = vsel %vm86, %v56, 0
  %v217 = vsel %vm86, %v57, 0
  %v220 = vsel %vm86, %v58, 0
  %v223 = vsel %vm86, %v59, 0
  %v226 = vsel %vm86, %v60, 0
  %v229 = vsel %vm86, %v61, 0
  %v232 = vsel %vm86, %v62, 0
  %v235 = vsel %vm86, %v63, 0
  %v238 = vsel %vm86, %v64, 0
  %v241 = vsel %vm86, %v65, 0
  %v244 = vsel %vm86, %v66, 0
  %v247 = vsel %vm86, %v67, 0
  %v250 = vsel %vm86, %v68, 0
  %v253 = vsel %vm86, %v69, 0
  %v256 = vsel %vm86, %v70, 0
  %v259 = vsel %vm86, %v71, 0
  %v262 = vsel %vm86, %v72, 0
  %v265 = vsel %vm86, %v73, 0
  %v268 = vsel %vm86, %v74, 0
  %v271 = vsel %vm86, %v75, 0
  %v274 = vsel %vm86, %v76, 0
  %v277 = vsel %vm86, %v77, 0
  %vm279 = vcmask 1043456
  %v281 = vsel %vm279, %v78, 0
  %283 = vmatprep.subr.mxu0 0.0
  %284 = vmatpush1.msra.mxu0 %v281
  %285 = vmatprep.subr.mxu0 0.0
  %286 = vmatpush1.msra.mxu0 0.0
  %287 = vmatprep.subr.mxu0 0.0
  %288 = vmatpush1.msra.mxu0 0.0
  %289 = vmatprep.subr.mxu0 0.0
  %290 = vmatpush1.msra.mxu0 0.0
  %291 = vmatprep.subr.mxu0 0.0
  %292 = vmatpush1.msra.mxu0 0.0
  %293 = vmatprep.subr.mxu0 0.0
  %294 = vmatpush1.msra.mxu0 0.0
  %295 = vmatprep.subr.mxu0 0.0
  %296 = vmatpush1.msra.mxu0 0.0
  %297 = vmatprep.subr.mxu0 0.0
  %298 = vmatpush1.msra.mxu0 0.0
  %299 = vmatprep.subr.mxu0 0.0
  %300 = vmatpush1.msra.mxu0 0.0
  %301 = vmatprep.subr.mxu0 0.0
  %302 = vmatpush1.msra.mxu0 0.0
  %303 = vmatprep.subr.mxu0 0.0
  %304 = vmatpush1.msra.mxu0 0.0
  %305 = vmatprep.subr.mxu0 0.0
  %306 = vmatpush1.msra.mxu0 0.0
  %307 = vmatprep.subr.mxu0 0.0
  %308 = vmatpush1.msra.mxu0 0.0
  %309 = vmatprep.subr.mxu0 0.0
  %310 = vmatpush1.msra.mxu0 0.0
  %311 = vmatprep.subr.mxu0 0.0
  %312 = vmatpush1.msra.mxu0 0.0
  %313 = vmatprep.subr.mxu0 0.0
  %314 = vmatpush1.msra.mxu0 0.0
  %315 = vmatprep.subr.mxu0 0.0
  %316 = vmatpush1.msra.mxu0 0.0
  %317 = vmatprep.subr.mxu0 0.0
  %318 = vmatpush1.msra.mxu0 0.0
  %319 = vmatprep.subr.mxu0 0.0
  %320 = vmatpush1.msra.mxu0 0.0
  %321 = vmatprep.subr.mxu0 0.0
  %322 = vmatpush1.msra.mxu0 0.0
  %323 = vmatprep.subr.mxu0 0.0
  %324 = vmatpush1.msra.mxu0 0.0
  %325 = vmatprep.subr.mxu0 0.0
  %326 = vmatpush1.msra.mxu0 0.0
  %327 = vmatprep.subr.mxu0 0.0
  %328 = vmatpush1.msra.mxu0 0.0
  %329 = vmatprep.subr.mxu0 0.0
  %330 = vmatpush1.msra.mxu0 0.0
  %331 = vmatprep.subr.mxu0 0.0
  %332 = vmatpush1.msra.mxu0 0.0
  %333 = vmatprep.subr.mxu0 0.0
  %334 = vmatpush1.msra.mxu0 0.0
  %335 = vmatprep.subr.mxu0 0.0
  %336 = vmatpush1.msra.mxu0 0.0
  %337 = vmatprep.subr.mxu0 0.0
  %338 = vmatpush1.msra.mxu0 0.0
  %339 = vmatprep.subr.mxu0 0.0
  %340 = vmatpush1.msra.mxu0 0.0
  %341 = vmatprep.subr.mxu0 0.0
  %342 = vmatpush1.msra.mxu0 0.0
  %343 = vmatprep.subr.mxu0 0.0
  %344 = vmatpush1.msra.mxu0 0.0
  %345 = vmatprep.subr.mxu0 0.0
  %346 = vmatpush1.msra.mxu0 0.0
  %347 = vmatprep.mubr.f32.mxu0 0.0
  %348 = vmatmul.mubr.f32.gmra.mrb[0].mxu0 %v88
  %v349 = vpop.f32.mrb[0].mxu0
  %v350 = vadd.f32 %v84, %v349
  %v351 = vpop.f32.mrb[0].mxu0
  %352 = vmatprep.mubr.f32.mxu0 0.0
  %353 = vmatmul.mubr.f32.gmra.mrb[0].mxu0 %v91
  %v354 = vpop.f32.mrb[0].mxu0
  %v355 = vadd.f32 %v84, %v354
  %v356 = vpop.f32.mrb[0].mxu0
  %357 = vmatprep.mubr.f32.mxu0 0.0
  %358 = vmatmul.mubr.f32.gmra.mrb[0].mxu0 %v94
  %v359 = vpop.f32.mrb[0].mxu0
  %v360 = vadd.f32 %v84, %v359
  %v361 = vpop.f32.mrb[0].mxu0
  %362 = vmatprep.mubr.f32.mxu0 0.0
  %363 = vmatmul.mubr.f32.gmra.mrb[0].mxu0 %v97
  %v364 = vpop.f32.mrb[0].mxu0
  %v365 = vadd.f32 %v84, %v364
  %v366 = vpop.f32.mrb[0].mxu0
  %367 = vmatprep.mubr.f32.mxu0 0.0
  %368 = vmatmul.mubr.f32.gmra.mrb[0].mxu0 %v100
  %v369 = vpop.f32.mrb[0].mxu0
  %v370 = vadd.f32 %v84, %v369
  %v371 = vpop.f32.mrb[0].mxu0
  %372 = vmatprep.mubr.f32.mxu0 0.0
  %373 = vmatmul.mubr.f32.gmra.mrb[0].mxu0 %v103
  %v374 = vpop.f32.mrb[0].mxu0
  %v375 = vadd.f32 %v84, %v374
  %v376 = vpop.f32.mrb[0].mxu0
  %377 = vmatprep.mubr.f32.mxu0 0.0
  %378 = vmatmul.mubr.f32.gmra.mrb[0].mxu0 %v106
  %v379 = vpop.f32.mrb[0].mxu0
  %v380 = vadd.f32 %v84, %v379
  %v381 = vpop.f32.mrb[0].mxu0
  %382 = vmatprep.mubr.f32.mxu0 0.0
  %383 = vmatmul.mubr.f32.gmra.mrb[0].mxu0 %v109
  %v384 = vpop.f32.mrb[0].mxu0
  %v385 = vadd.f32 %v84, %v384
  %v386 = vpop.f32.mrb[0].mxu0
  %387 = vmatprep.mubr.f32.mxu0 0.0
  %388 = vmatmul.mubr.f32.gmra.mrb[0].mxu0 %v112
  %v389 = vpop.f32.mrb[0].mxu0
  %v390 = vadd.f32 %v84, %v389
  %v391 = vpop.f32.mrb[0].mxu0
  %392 = vmatprep.mubr.f32.mxu0 0.0
  %393 = vmatmul.mubr.f32.gmra.mrb[0].mxu0 %v115
  %v394 = vpop.f32.mrb[0].mxu0
  %v395 = vadd.f32 %v84, %v394
  %v396 = vpop.f32.mrb[0].mxu0
  %397 = vmatprep.mubr.f32.mxu0 0.0
  %398 = vmatmul.mubr.f32.gmra.mrb[0].mxu0 %v118
  %v399 = vpop.f32.mrb[0].mxu0
  %v400 = vadd.f32 %v84, %v399
  %v401 = vpop.f32.mrb[0].mxu0
  %402 = vmatprep.mubr.f32.mxu0 0.0
  %403 = vmatmul.mubr.f32.gmra.mrb[0].mxu0 %v121
  %v404 = vpop.f32.mrb[0].mxu0
  %v405 = vadd.f32 %v84, %v404
  %v406 = vpop.f32.mrb[0].mxu0
  %407 = vmatprep.mubr.f32.mxu0 0.0
  %408 = vmatmul.mubr.f32.gmra.mrb[0].mxu0 %v124
  %v409 = vpop.f32.mrb[0].mxu0
  %v410 = vadd.f32 %v84, %v409
  %v411 = vpop.f32.mrb[0].mxu0
  %412 = vmatprep.mubr.f32.mxu0 0.0
  %413 = vmatmul.mubr.f32.gmra.mrb[0].mxu0 %v127
  %v414 = vpop.f32.mrb[0].mxu0
  %v415 = vadd.f32 %v84, %v414
  %v416 = vpop.f32.mrb[0].mxu0
  %417 = vmatprep.mubr.f32.mxu0 0.0
  %418 = vmatmul.mubr.f32.gmra.mrb[0].mxu0 %v130
  %v419 = vpop.f32.mrb[0].mxu0
  %v420 = vadd.f32 %v84, %v419
  %v421 = vpop.f32.mrb[0].mxu0
  %422 = vmatprep.mubr.f32.mxu0 0.0
  %423 = vmatmul.mubr.f32.gmra.mrb[0].mxu0 %v133
  %v424 = vpop.f32.mrb[0].mxu0
  %v425 = vadd.f32 %v84, %v424
  %v426 = vpop.f32.mrb[0].mxu0
  %427 = vmatprep.mubr.f32.mxu0 0.0
  %428 = vmatmul.mubr.f32.gmra.mrb[0].mxu0 %v136
  %v429 = vpop.f32.mrb[0].mxu0
  %v430 = vadd.f32 %v84, %v429
  %v431 = vpop.f32.mrb[0].mxu0
  %432 = vmatprep.mubr.f32.mxu0 0.0
  %433 = vmatmul.mubr.f32.gmra.mrb[0].mxu0 %v139
  %v434 = vpop.f32.mrb[0].mxu0
  %v435 = vadd.f32 %v84, %v434
  %v436 = vpop.f32.mrb[0].mxu0
  %437 = vmatprep.mubr.f32.mxu0 0.0
  %438 = vmatmul.mubr.f32.gmra.mrb[0].mxu0 %v142
  %v439 = vpop.f32.mrb[0].mxu0
  %v440 = vadd.f32 %v84, %v439
  %v441 = vpop.f32.mrb[0].mxu0
  %442 = vmatprep.mubr.f32.mxu0 0.0
  %443 = vmatmul.mubr.f32.gmra.mrb[0].mxu0 %v145
  %v444 = vpop.f32.mrb[0].mxu0
  %v445 = vadd.f32 %v84, %v444
  %v446 = vpop.f32.mrb[0].mxu0
  %447 = vmatprep.mubr.f32.mxu0 0.0
  %448 = vmatmul.mubr.f32.gmra.mrb[0].mxu0 %v148
  %v449 = vpop.f32.mrb[0].mxu0
  %v450 = vadd.f32 %v84, %v449
  %v451 = vpop.f32.mrb[0].mxu0
  %452 = vmatprep.mubr.f32.mxu0 0.0
  %453 = vmatmul.mubr.f32.gmra.mrb[0].mxu0 %v151
  %v454 = vpop.f32.mrb[0].mxu0
  %v455 = vadd.f32 %v84, %v454
  %v456 = vpop.f32.mrb[0].mxu0
  %457 = vmatprep.mubr.f32.mxu0 0.0
  %458 = vmatmul.mubr.f32.gmra.mrb[0].mxu0 %v154
  %v459 = vpop.f32.mrb[0].mxu0
  %v460 = vadd.f32 %v84, %v459
  %v461 = vpop.f32.mrb[0].mxu0
  %462 = vmatprep.mubr.f32.mxu0 0.0
  %463 = vmatmul.mubr.f32.gmra.mrb[0].mxu0 %v157
  %v464 = vpop.f32.mrb[0].mxu0
  %v465 = vadd.f32 %v84, %v464
  %v466 = vpop.f32.mrb[0].mxu0
  %467 = vmatprep.mubr.f32.mxu0 0.0
  %468 = vmatmul.mubr.f32.gmra.mrb[0].mxu0 %v160
  %v469 = vpop.f32.mrb[0].mxu0
  %v470 = vadd.f32 %v84, %v469
  %v471 = vpop.f32.mrb[0].mxu0
  %472 = vmatprep.mubr.f32.mxu0 0.0
  %473 = vmatmul.mubr.f32.gmra.mrb[0].mxu0 %v163
  %v474 = vpop.f32.mrb[0].mxu0
  %v475 = vadd.f32 %v84, %v474
  %v476 = vpop.f32.mrb[0].mxu0
  %477 = vmatprep.mubr.f32.mxu0 0.0
  %478 = vmatmul.mubr.f32.gmra.mrb[0].mxu0 %v166
  %v479 = vpop.f32.mrb[0].mxu0
  %v480 = vadd.f32 %v84, %v479
  %v481 = vpop.f32.mrb[0].mxu0
  %482 = vmatprep.mubr.f32.mxu0 0.0
  %483 = vmatmul.mubr.f32.gmra.mrb[0].mxu0 %v169
  %v484 = vpop.f32.mrb[0].mxu0
  %v485 = vadd.f32 %v84, %v484
  %v486 = vpop.f32.mrb[0].mxu0
  %487 = vmatprep.mubr.f32.mxu0 0.0
  %488 = vmatmul.mubr.f32.gmra.mrb[0].mxu0 %v172
  %v489 = vpop.f32.mrb[0].mxu0
  %v490 = vadd.f32 %v84, %v489
  %v491 = vpop.f32.mrb[0].mxu0
  %492 = vmatprep.mubr.f32.mxu0 0.0
  %493 = vmatmul.mubr.f32.gmra.mrb[0].mxu0 %v175
  %v494 = vpop.f32.mrb[0].mxu0
  %v495 = vadd.f32 %v84, %v494
  %v496 = vpop.f32.mrb[0].mxu0
  %497 = vmatprep.mubr.f32.mxu0 0.0
  %498 = vmatmul.mubr.f32.gmra.mrb[0].mxu0 %v178
  %v499 = vpop.f32.mrb[0].mxu0
  %v500 = vadd.f32 %v84, %v499
  %v501 = vpop.f32.mrb[0].mxu0
  %502 = vmatprep.mubr.f32.mxu0 0.0
  %503 = vmatmul.mubr.f32.gmra.mrb[0].mxu0 %v181
  %v504 = vpop.f32.mrb[0].mxu0
  %v505 = vadd.f32 %v84, %v504
  %v506 = vpop.f32.mrb[0].mxu0
  %507 = vmatprep.mubr.f32.mxu0 0.0
  %508 = vmatmul.mubr.f32.gmra.mrb[0].mxu0 %v184
  %v509 = vpop.f32.mrb[0].mxu0
  %v510 = vadd.f32 %v84, %v509
  %v511 = vpop.f32.mrb[0].mxu0
  %512 = vmatprep.mubr.f32.mxu0 0.0
  %513 = vmatmul.mubr.f32.gmra.mrb[0].mxu0 %v187
  %v514 = vpop.f32.mrb[0].mxu0
  %v515 = vadd.f32 %v84, %v514
  %v516 = vpop.f32.mrb[0].mxu0
  %517 = vmatprep.mubr.f32.mxu0 0.0
  %518 = vmatmul.mubr.f32.gmra.mrb[0].mxu0 %v190
  %v519 = vpop.f32.mrb[0].mxu0
  %v520 = vadd.f32 %v84, %v519
  %v521 = vpop.f32.mrb[0].mxu0
  %522 = vmatprep.mubr.f32.mxu0 0.0
  %523 = vmatmul.mubr.f32.gmra.mrb[0].mxu0 %v193
  %v524 = vpop.f32.mrb[0].mxu0
  %v525 = vadd.f32 %v84, %v524
  %v526 = vpop.f32.mrb[0].mxu0
  %527 = vmatprep.mubr.f32.mxu0 0.0
  %528 = vmatmul.mubr.f32.gmra.mrb[0].mxu0 %v196
  %v529 = vpop.f32.mrb[0].mxu0
  %v530 = vadd.f32 %v84, %v529
  %v531 = vpop.f32.mrb[0].mxu0
  %532 = vmatprep.mubr.f32.mxu0 0.0
  %533 = vmatmul.mubr.f32.gmra.mrb[0].mxu0 %v199
  %v534 = vpop.f32.mrb[0].mxu0
  %v535 = vadd.f32 %v84, %v534
  %v536 = vpop.f32.mrb[0].mxu0
  %537 = vmatprep.mubr.f32.mxu0 0.0
  %538 = vmatmul.mubr.f32.gmra.mrb[0].mxu0 %v202
  %v539 = vpop.f32.mrb[0].mxu0
  %v540 = vadd.f32 %v84, %v539
  %v541 = vpop.f32.mrb[0].mxu0
  %542 = vmatprep.mubr.f32.mxu0 0.0
  %543 = vmatmul.mubr.f32.gmra.mrb[0].mxu0 %v205
  %v544 = vpop.f32.mrb[0].mxu0
  %v545 = vadd.f32 %v84, %v544
  %v546 = vpop.f32.mrb[0].mxu0
  %547 = vmatprep.mubr.f32.mxu0 0.0
  %548 = vmatmul.mubr.f32.gmra.mrb[0].mxu0 %v208
  %v549 = vpop.f32.mrb[0].mxu0
  %v550 = vadd.f32 %v84, %v549
  %v551 = vpop.f32.mrb[0].mxu0
  %552 = vmatprep.mubr.f32.mxu0 0.0
  %553 = vmatmul.mubr.f32.gmra.mrb[0].mxu0 %v211
  %v554 = vpop.f32.mrb[0].mxu0
  %v555 = vadd.f32 %v84, %v554
  %v556 = vpop.f32.mrb[0].mxu0
  %557 = vmatprep.mubr.f32.mxu0 0.0
  %558 = vmatmul.mubr.f32.gmra.mrb[0].mxu0 %v214
  %v559 = vpop.f32.mrb[0].mxu0
  %v560 = vadd.f32 %v84, %v559
  %v561 = vpop.f32.mrb[0].mxu0
  %562 = vmatprep.mubr.f32.mxu0 0.0
  %563 = vmatmul.mubr.f32.gmra.mrb[0].mxu0 %v217
  %v564 = vpop.f32.mrb[0].mxu0
  %v565 = vadd.f32 %v84, %v564
  %v566 = vpop.f32.mrb[0].mxu0
  %567 = vmatprep.mubr.f32.mxu0 0.0
  %568 = vmatmul.mubr.f32.gmra.mrb[0].mxu0 %v220
  %v569 = vpop.f32.mrb[0].mxu0
  %v570 = vadd.f32 %v84, %v569
  %v571 = vpop.f32.mrb[0].mxu0
  %572 = vmatprep.mubr.f32.mxu0 0.0
  %573 = vmatmul.mubr.f32.gmra.mrb[0].mxu0 %v223
  %v574 = vpop.f32.mrb[0].mxu0
  %v575 = vadd.f32 %v84, %v574
  %v576 = vpop.f32.mrb[0].mxu0
  %577 = vmatprep.mubr.f32.mxu0 0.0
  %578 = vmatmul.mubr.f32.gmra.mrb[0].mxu0 %v226
  %v579 = vpop.f32.mrb[0].mxu0
  %v580 = vadd.f32 %v84, %v579
  %v581 = vpop.f32.mrb[0].mxu0
  %582 = vmatprep.mubr.f32.mxu0 0.0
  %583 = vmatmul.mubr.f32.gmra.mrb[0].mxu0 %v229
  %v584 = vpop.f32.mrb[0].mxu0
  %v585 = vadd.f32 %v84, %v584
  %v586 = vpop.f32.mrb[0].mxu0
  %587 = vmatprep.mubr.f32.mxu0 0.0
  %588 = vmatmul.mubr.f32.gmra.mrb[0].mxu0 %v232
  %v589 = vpop.f32.mrb[0].mxu0
  %v590 = vadd.f32 %v84, %v589
  %v591 = vpop.f32.mrb[0].mxu0
  %592 = vmatprep.mubr.f32.mxu0 0.0
  %593 = vmatmul.mubr.f32.gmra.mrb[0].mxu0 %v235
  %v594 = vpop.f32.mrb[0].mxu0
  %v595 = vadd.f32 %v84, %v594
  %v596 = vpop.f32.mrb[0].mxu0
  %597 = vmatprep.mubr.f32.mxu0 0.0
  %598 = vmatmul.mubr.f32.gmra.mrb[0].mxu0 %v238
  %v599 = vpop.f32.mrb[0].mxu0
  %v600 = vadd.f32 %v84, %v599
  %v601 = vpop.f32.mrb[0].mxu0
  %602 = vmatprep.mubr.f32.mxu0 0.0
  %603 = vmatmul.mubr.f32.gmra.mrb[0].mxu0 %v241
  %v604 = vpop.f32.mrb[0].mxu0
  %v605 = vadd.f32 %v84, %v604
  %v606 = vpop.f32.mrb[0].mxu0
  %607 = vmatprep.mubr.f32.mxu0 0.0
  %608 = vmatmul.mubr.f32.gmra.mrb[0].mxu0 %v244
  %v609 = vpop.f32.mrb[0].mxu0
  %v610 = vadd.f32 %v84, %v609
  %v611 = vpop.f32.mrb[0].mxu0
  %612 = vmatprep.mubr.f32.mxu0 0.0
  %613 = vmatmul.mubr.f32.gmra.mrb[0].mxu0 %v247
  %v614 = vpop.f32.mrb[0].mxu0
  %v615 = vadd.f32 %v84, %v614
  %v616 = vpop.f32.mrb[0].mxu0
  %617 = vmatprep.mubr.f32.mxu0 0.0
  %618 = vmatmul.mubr.f32.gmra.mrb[0].mxu0 %v250
  %v619 = vpop.f32.mrb[0].mxu0
  %v620 = vadd.f32 %v84, %v619
  %v621 = vpop.f32.mrb[0].mxu0
  %622 = vmatprep.mubr.f32.mxu0 0.0
  %623 = vmatmul.mubr.f32.gmra.mrb[0].mxu0 %v253
  %v624 = vpop.f32.mrb[0].mxu0
  %v625 = vadd.f32 %v84, %v624
  %v626 = vpop.f32.mrb[0].mxu0
  %627 = vmatprep.mubr.f32.mxu0 0.0
  %628 = vmatmul.mubr.f32.gmra.mrb[0].mxu0 %v256
  %v629 = vpop.f32.mrb[0].mxu0
  %v630 = vadd.f32 %v84, %v629
  %v631 = vpop.f32.mrb[0].mxu0
  %632 = vmatprep.mubr.f32.mxu0 0.0
  %633 = vmatmul.mubr.f32.gmra.mrb[0].mxu0 %v259
  %v634 = vpop.f32.mrb[0].mxu0
  %v635 = vadd.f32 %v84, %v634
  %v636 = vpop.f32.mrb[0].mxu0
  %637 = vmatprep.mubr.f32.mxu0 0.0
  %638 = vmatmul.mubr.f32.gmra.mrb[0].mxu0 %v262
  %v639 = vpop.f32.mrb[0].mxu0
  %v640 = vadd.f32 %v84, %v639
  %v641 = vpop.f32.mrb[0].mxu0
  %642 = vmatprep.mubr.f32.mxu0 0.0
  %643 = vmatmul.mubr.f32.gmra.mrb[0].mxu0 %v265
  %v644 = vpop.f32.mrb[0].mxu0
  %v645 = vadd.f32 %v84, %v644
  %v646 = vpop.f32.mrb[0].mxu0
  %647 = vmatprep.mubr.f32.mxu0 0.0
  %648 = vmatmul.mubr.f32.gmra.mrb[0].mxu0 %v268
  %v649 = vpop.f32.mrb[0].mxu0
  %v650 = vadd.f32 %v84, %v649
  %v651 = vpop.f32.mrb[0].mxu0
  %652 = vmatprep.mubr.f32.mxu0 0.0
  %653 = vmatmul.mubr.f32.gmra.mrb[0].mxu0 %v271
  %v654 = vpop.f32.mrb[0].mxu0
  %v655 = vadd.f32 %v84, %v654
  %v656 = vpop.f32.mrb[0].mxu0
  %657 = vmatprep.mubr.f32.mxu0 0.0
  %658 = vmatmul.mubr.f32.gmra.mrb[0].mxu0 %v274
  %v659 = vpop.f32.mrb[0].mxu0
  %v660 = vadd.f32 %v84, %v659
  %v661 = vpop.f32.mrb[0].mxu0
  %662 = vmatprep.mubr.f32.mxu0 0.0
  %663 = vmatmul.mubr.f32.gmra.mrb[0].mxu0 %v277
  %v664 = vpop.f32.mrb[0].mxu0
  %v665 = vadd.f32 %v84, %v664
  %v666 = vpop.f32.mrb[0].mxu0
  %667 = vdwg.mxu0
  %v668 = vxor.u32 %v350, 2147483648
  %v669 = vxor.u32 %v355, 2147483648
  %v670 = vxor.u32 %v360, 2147483648
  %v671 = vxor.u32 %v365, 2147483648
  %v672 = vxor.u32 %v370, 2147483648
  %v673 = vxor.u32 %v375, 2147483648
  %v674 = vxor.u32 %v380, 2147483648
  %v675 = vxor.u32 %v385, 2147483648
  %v676 = vxor.u32 %v390, 2147483648
  %v677 = vxor.u32 %v395, 2147483648
  %v678 = vxor.u32 %v400, 2147483648
  %v679 = vxor.u32 %v405, 2147483648
  %v680 = vxor.u32 %v410, 2147483648
  %v681 = vxor.u32 %v415, 2147483648
  %v682 = vxor.u32 %v420, 2147483648
  %v683 = vxor.u32 %v425, 2147483648
  %v684 = vxor.u32 %v430, 2147483648
  %v685 = vxor.u32 %v435, 2147483648
  %v686 = vxor.u32 %v440, 2147483648
  %v687 = vxor.u32 %v445, 2147483648
  %v688 = vxor.u32 %v450, 2147483648
  %v689 = vxor.u32 %v455, 2147483648
  %v690 = vxor.u32 %v460, 2147483648
  %v691 = vxor.u32 %v465, 2147483648
  %v692 = vxor.u32 %v470, 2147483648
  %v693 = vxor.u32 %v475, 2147483648
  %v694 = vxor.u32 %v480, 2147483648
  %v695 = vxor.u32 %v485, 2147483648
  %v696 = vxor.u32 %v490, 2147483648
  %v697 = vxor.u32 %v495, 2147483648
  %v698 = vxor.u32 %v500, 2147483648
  %v699 = vxor.u32 %v505, 2147483648
  %v700 = vxor.u32 %v510, 2147483648
  %v701 = vxor.u32 %v515, 2147483648
  %v702 = vxor.u32 %v520, 2147483648
  %v703 = vxor.u32 %v525, 2147483648
  %v704 = vxor.u32 %v530, 2147483648
  %v705 = vxor.u32 %v535, 2147483648
  %v706 = vxor.u32 %v540, 2147483648
  %v707 = vxor.u32 %v545, 2147483648
  %v708 = vxor.u32 %v550, 2147483648
  %v709 = vxor.u32 %v555, 2147483648
  %v710 = vxor.u32 %v560, 2147483648
  %v711 = vxor.u32 %v565, 2147483648
  %v712 = vxor.u32 %v570, 2147483648
  %v713 = vxor.u32 %v575, 2147483648
  %v714 = vxor.u32 %v580, 2147483648
  %v715 = vxor.u32 %v585, 2147483648
  %v716 = vxor.u32 %v590, 2147483648
  %v717 = vxor.u32 %v595, 2147483648
  %v718 = vxor.u32 %v600, 2147483648
  %v719 = vxor.u32 %v605, 2147483648
  %v720 = vxor.u32 %v610, 2147483648
  %v721 = vxor.u32 %v615, 2147483648
  %v722 = vxor.u32 %v620, 2147483648
  %v723 = vxor.u32 %v625, 2147483648
  %v724 = vxor.u32 %v630, 2147483648
  %v725 = vxor.u32 %v635, 2147483648
  %v726 = vxor.u32 %v640, 2147483648
  %v727 = vxor.u32 %v645, 2147483648
  %v728 = vxor.u32 %v650, 2147483648
  %v729 = vxor.u32 %v655, 2147483648
  %v730 = vxor.u32 %v660, 2147483648
  %v731 = vxor.u32 %v665, 2147483648
  %v732 = vmul.f32 %v668, 1.442695
  %v733 = vpow.pop %v732
  %v734 = vmul.f32 %v669, 1.442695
  %v735 = vpow.pop %v734
  %v736 = vmul.f32 %v670, 1.442695
  %v737 = vpow.pop %v736
  %v738 = vmul.f32 %v671, 1.442695
  %v739 = vpow.pop %v738
  %v740 = vmul.f32 %v672, 1.442695
  %v741 = vpow.pop %v740
  %v742 = vmul.f32 %v673, 1.442695
  %v743 = vpow.pop %v742
  %v744 = vmul.f32 %v674, 1.442695
  %v745 = vpow.pop %v744
  %v746 = vmul.f32 %v675, 1.442695
  %v747 = vpow.pop %v746
  %v748 = vmul.f32 %v676, 1.442695
  %v749 = vpow.pop %v748
  %v750 = vmul.f32 %v677, 1.442695
  %v751 = vpow.pop %v750
  %v752 = vmul.f32 %v678, 1.442695
  %v753 = vpow.pop %v752
  %v754 = vmul.f32 %v679, 1.442695
  %v755 = vpow.pop %v754
  %v756 = vmul.f32 %v680, 1.442695
  %v757 = vpow.pop %v756
  %v758 = vmul.f32 %v681, 1.442695
  %v759 = vpow.pop %v758
  %v760 = vmul.f32 %v682, 1.442695
  %v761 = vpow.pop %v760
  %v762 = vmul.f32 %v683, 1.442695
  %v763 = vpow.pop %v762
  %v764 = vmul.f32 %v684, 1.442695
  %v765 = vpow.pop %v764
  %v766 = vmul.f32 %v685, 1.442695
  %v767 = vpow.pop %v766
  %v768 = vmul.f32 %v686, 1.442695
  %v769 = vpow.pop %v768
  %v770 = vmul.f32 %v687, 1.442695
  %v771 = vpow.pop %v770
  %v772 = vmul.f32 %v688, 1.442695
  %v773 = vpow.pop %v772
  %v774 = vmul.f32 %v689, 1.442695
  %v775 = vpow.pop %v774
  %v776 = vmul.f32 %v690, 1.442695
  %v777 = vpow.pop %v776
  %v778 = vmul.f32 %v691, 1.442695
  %v779 = vpow.pop %v778
  %v780 = vmul.f32 %v692, 1.442695
  %v781 = vpow.pop %v780
  %v782 = vmul.f32 %v693, 1.442695
  %v783 = vpow.pop %v782
  %v784 = vmul.f32 %v694, 1.442695
  %v785 = vpow.pop %v784
  %v786 = vmul.f32 %v695, 1.442695
  %v787 = vpow.pop %v786
  %v788 = vmul.f32 %v696, 1.442695
  %v789 = vpow.pop %v788
  %v790 = vmul.f32 %v697, 1.442695
  %v791 = vpow.pop %v790
  %v792 = vmul.f32 %v698, 1.442695
  %v793 = vpow.pop %v792
  %v794 = vmul.f32 %v699, 1.442695
  %v795 = vpow.pop %v794
  %v796 = vmul.f32 %v700, 1.442695
  %v797 = vpow.pop %v796
  %v798 = vmul.f32 %v701, 1.442695
  %v799 = vpow.pop %v798
  %v800 = vmul.f32 %v702, 1.442695
  %v801 = vpow.pop %v800
  %v802 = vmul.f32 %v703, 1.442695
  %v803 = vpow.pop %v802
  %v804 = vmul.f32 %v704, 1.442695
  %v805 = vpow.pop %v804
  %v806 = vmul.f32 %v705, 1.442695
  %v807 = vpow.pop %v806
  %v808 = vmul.f32 %v706, 1.442695
  %v809 = vpow.pop %v808
  %v810 = vmul.f32 %v707, 1.442695
  %v811 = vpow.pop %v810
  %v812 = vmul.f32 %v708, 1.442695
  %v813 = vpow.pop %v812
  %v814 = vmul.f32 %v709, 1.442695
  %v815 = vpow.pop %v814
  %v816 = vmul.f32 %v710, 1.442695
  %v817 = vpow.pop %v816
  %v818 = vmul.f32 %v711, 1.442695
  %v819 = vpow.pop %v818
  %v820 = vmul.f32 %v712, 1.442695
  %v821 = vpow.pop %v820
  %v822 = vmul.f32 %v713, 1.442695
  %v823 = vpow.pop %v822
  %v824 = vmul.f32 %v714, 1.442695
  %v825 = vpow.pop %v824
  %v826 = vmul.f32 %v715, 1.442695
  %v827 = vpow.pop %v826
  %v828 = vmul.f32 %v716, 1.442695
  %v829 = vpow.pop %v828
  %v830 = vmul.f32 %v717, 1.442695
  %v831 = vpow.pop %v830
  %v832 = vmul.f32 %v718, 1.442695
  %v833 = vpow.pop %v832
  %v834 = vmul.f32 %v719, 1.442695
  %v835 = vpow.pop %v834
  %v836 = vmul.f32 %v720, 1.442695
  %v837 = vpow.pop %v836
  %v838 = vmul.f32 %v721, 1.442695
  %v839 = vpow.pop %v838
  %v840 = vmul.f32 %v722, 1.442695
  %v841 = vpow.pop %v840
  %v842 = vmul.f32 %v723, 1.442695
  %v843 = vpow.pop %v842
  %v844 = vmul.f32 %v724, 1.442695
  %v845 = vpow.pop %v844
  %v846 = vmul.f32 %v725, 1.442695
  %v847 = vpow.pop %v846
  %v848 = vmul.f32 %v726, 1.442695
  %v849 = vpow.pop %v848
  %v850 = vmul.f32 %v727, 1.442695
  %v851 = vpow.pop %v850
  %v852 = vmul.f32 %v728, 1.442695
  %v853 = vpow.pop %v852
  %v854 = vmul.f32 %v729, 1.442695
  %v855 = vpow.pop %v854
  %v856 = vmul.f32 %v730, 1.442695
  %v857 = vpow.pop %v856
  %v858 = vmul.f32 %v731, 1.442695
  %v859 = vpow.pop %v858
  %v860 = vadd.f32 %v733, 1.0
  %v861 = vadd.f32 %v735, 1.0
  %v862 = vadd.f32 %v737, 1.0
  %v863 = vadd.f32 %v739, 1.0
  %v864 = vadd.f32 %v741, 1.0
  %v865 = vadd.f32 %v743, 1.0
  %v866 = vadd.f32 %v745, 1.0
  %v867 = vadd.f32 %v747, 1.0
  %v868 = vadd.f32 %v749, 1.0
  %v869 = vadd.f32 %v751, 1.0
  %v870 = vadd.f32 %v753, 1.0
  %v871 = vadd.f32 %v755, 1.0
  %v872 = vadd.f32 %v757, 1.0
  %v873 = vadd.f32 %v759, 1.0
  %v874 = vadd.f32 %v761, 1.0
  %v875 = vadd.f32 %v763, 1.0
  %v876 = vadd.f32 %v765, 1.0
  %v877 = vadd.f32 %v767, 1.0
  %v878 = vadd.f32 %v769, 1.0
  %v879 = vadd.f32 %v771, 1.0
  %v880 = vadd.f32 %v773, 1.0
  %v881 = vadd.f32 %v775, 1.0
  %v882 = vadd.f32 %v777, 1.0
  %v883 = vadd.f32 %v779, 1.0
  %v884 = vadd.f32 %v781, 1.0
  %v885 = vadd.f32 %v783, 1.0
  %v886 = vadd.f32 %v785, 1.0
  %v887 = vadd.f32 %v787, 1.0
  %v888 = vadd.f32 %v789, 1.0
  %v889 = vadd.f32 %v791, 1.0
  %v890 = vadd.f32 %v793, 1.0
  %v891 = vadd.f32 %v795, 1.0
  %v892 = vadd.f32 %v797, 1.0
  %v893 = vadd.f32 %v799, 1.0
  %v894 = vadd.f32 %v801, 1.0
  %v895 = vadd.f32 %v803, 1.0
  %v896 = vadd.f32 %v805, 1.0
  %v897 = vadd.f32 %v807, 1.0
  %v898 = vadd.f32 %v809, 1.0
  %v899 = vadd.f32 %v811, 1.0
  %v900 = vadd.f32 %v813, 1.0
  %v901 = vadd.f32 %v815, 1.0
  %v902 = vadd.f32 %v817, 1.0
  %v903 = vadd.f32 %v819, 1.0
  %v904 = vadd.f32 %v821, 1.0
  %v905 = vadd.f32 %v823, 1.0
  %v906 = vadd.f32 %v825, 1.0
  %v907 = vadd.f32 %v827, 1.0
  %v908 = vadd.f32 %v829, 1.0
  %v909 = vadd.f32 %v831, 1.0
  %v910 = vadd.f32 %v833, 1.0
  %v911 = vadd.f32 %v835, 1.0
  %v912 = vadd.f32 %v837, 1.0
  %v913 = vadd.f32 %v839, 1.0
  %v914 = vadd.f32 %v841, 1.0
  %v915 = vadd.f32 %v843, 1.0
  %v916 = vadd.f32 %v845, 1.0
  %v917 = vadd.f32 %v847, 1.0
  %v918 = vadd.f32 %v849, 1.0
  %v919 = vadd.f32 %v851, 1.0
  %v920 = vadd.f32 %v853, 1.0
  %v921 = vadd.f32 %v855, 1.0
  %v922 = vadd.f32 %v857, 1.0
  %v923 = vadd.f32 %v859, 1.0
  %v924 = vrcp.pop %v860
  %v925 = vmul.f32 1.0, %v924
  %v926 = vrcp.pop %v861
  %v927 = vmul.f32 1.0, %v926
  %v928 = vrcp.pop %v862
  %v929 = vmul.f32 1.0, %v928
  %v930 = vrcp.pop %v863
  %v931 = vmul.f32 1.0, %v930
  %v932 = vrcp.pop %v864
  %v933 = vmul.f32 1.0, %v932
  %v934 = vrcp.pop %v865
  %v935 = vmul.f32 1.0, %v934
  %v936 = vrcp.pop %v866
  %v937 = vmul.f32 1.0, %v936
  %v938 = vrcp.pop %v867
  %v939 = vmul.f32 1.0, %v938
  %v940 = vrcp.pop %v868
  %v941 = vmul.f32 1.0, %v940
  %v942 = vrcp.pop %v869
  %v943 = vmul.f32 1.0, %v942
  %v944 = vrcp.pop %v870
  %v945 = vmul.f32 1.0, %v944
  %v946 = vrcp.pop %v871
  %v947 = vmul.f32 1.0, %v946
  %v948 = vrcp.pop %v872
  %v949 = vmul.f32 1.0, %v948
  %v950 = vrcp.pop %v873
  %v951 = vmul.f32 1.0, %v950
  %v952 = vrcp.pop %v874
  %v953 = vmul.f32 1.0, %v952
  %v954 = vrcp.pop %v875
  %v955 = vmul.f32 1.0, %v954
  %v956 = vrcp.pop %v876
  %v957 = vmul.f32 1.0, %v956
  %v958 = vrcp.pop %v877
  %v959 = vmul.f32 1.0, %v958
  %v960 = vrcp.pop %v878
  %v961 = vmul.f32 1.0, %v960
  %v962 = vrcp.pop %v879
  %v963 = vmul.f32 1.0, %v962
  %v964 = vrcp.pop %v880
  %v965 = vmul.f32 1.0, %v964
  %v966 = vrcp.pop %v881
  %v967 = vmul.f32 1.0, %v966
  %v968 = vrcp.pop %v882
  %v969 = vmul.f32 1.0, %v968
  %v970 = vrcp.pop %v883
  %v971 = vmul.f32 1.0, %v970
  %v972 = vrcp.pop %v884
  %v973 = vmul.f32 1.0, %v972
  %v974 = vrcp.pop %v885
  %v975 = vmul.f32 1.0, %v974
  %v976 = vrcp.pop %v886
  %v977 = vmul.f32 1.0, %v976
  %v978 = vrcp.pop %v887
  %v979 = vmul.f32 1.0, %v978
  %v980 = vrcp.pop %v888
  %v981 = vmul.f32 1.0, %v980
  %v982 = vrcp.pop %v889
  %v983 = vmul.f32 1.0, %v982
  %v984 = vrcp.pop %v890
  %v985 = vmul.f32 1.0, %v984
  %v986 = vrcp.pop %v891
  %v987 = vmul.f32 1.0, %v986
  %v988 = vrcp.pop %v892
  %v989 = vmul.f32 1.0, %v988
  %v990 = vrcp.pop %v893
  %v991 = vmul.f32 1.0, %v990
  %v992 = vrcp.pop %v894
  %v993 = vmul.f32 1.0, %v992
  %v994 = vrcp.pop %v895
  %v995 = vmul.f32 1.0, %v994
  %v996 = vrcp.pop %v896
  %v997 = vmul.f32 1.0, %v996
  %v998 = vrcp.pop %v897
  %v999 = vmul.f32 1.0, %v998
  %v1000 = vrcp.pop %v898
  %v1001 = vmul.f32 1.0, %v1000
  %v1002 = vrcp.pop %v899
  %v1003 = vmul.f32 1.0, %v1002
  %v1004 = vrcp.pop %v900
  %v1005 = vmul.f32 1.0, %v1004
  %v1006 = vrcp.pop %v901
  %v1007 = vmul.f32 1.0, %v1006
  %v1008 = vrcp.pop %v902
  %v1009 = vmul.f32 1.0, %v1008
  %v1010 = vrcp.pop %v903
  %v1011 = vmul.f32 1.0, %v1010
  %v1012 = vrcp.pop %v904
  %v1013 = vmul.f32 1.0, %v1012
  %v1014 = vrcp.pop %v905
  %v1015 = vmul.f32 1.0, %v1014
  %v1016 = vrcp.pop %v906
  %v1017 = vmul.f32 1.0, %v1016
  %v1018 = vrcp.pop %v907
  %v1019 = vmul.f32 1.0, %v1018
  %v1020 = vrcp.pop %v908
  %v1021 = vmul.f32 1.0, %v1020
  %v1022 = vrcp.pop %v909
  %v1023 = vmul.f32 1.0, %v1022
  %v1024 = vrcp.pop %v910
  %v1025 = vmul.f32 1.0, %v1024
  %v1026 = vrcp.pop %v911
  %v1027 = vmul.f32 1.0, %v1026
  %v1028 = vrcp.pop %v912
  %v1029 = vmul.f32 1.0, %v1028
  %v1030 = vrcp.pop %v913
  %v1031 = vmul.f32 1.0, %v1030
  %v1032 = vrcp.pop %v914
  %v1033 = vmul.f32 1.0, %v1032
  %v1034 = vrcp.pop %v915
  %v1035 = vmul.f32 1.0, %v1034
  %v1036 = vrcp.pop %v916
  %v1037 = vmul.f32 1.0, %v1036
  %v1038 = vrcp.pop %v917
  %v1039 = vmul.f32 1.0, %v1038
  %v1040 = vrcp.pop %v918
  %v1041 = vmul.f32 1.0, %v1040
  %v1042 = vrcp.pop %v919
  %v1043 = vmul.f32 1.0, %v1042
  %v1044 = vrcp.pop %v920
  %v1045 = vmul.f32 1.0, %v1044
  %v1046 = vrcp.pop %v921
  %v1047 = vmul.f32 1.0, %v1046
  %v1048 = vrcp.pop %v922
  %v1049 = vmul.f32 1.0, %v1048
  %v1050 = vrcp.pop %v923
  %v1051 = vmul.f32 1.0, %v1050
  %v1052 = vmul.f32 %v350, %v925
  %v1053 = vmul.f32 %v355, %v927
  %v1054 = vmul.f32 %v360, %v929
  %v1055 = vmul.f32 %v365, %v931
  %v1056 = vmul.f32 %v370, %v933
  %v1057 = vmul.f32 %v375, %v935
  %v1058 = vmul.f32 %v380, %v937
  %v1059 = vmul.f32 %v385, %v939
  %v1060 = vmul.f32 %v390, %v941
  %v1061 = vmul.f32 %v395, %v943
  %v1062 = vmul.f32 %v400, %v945
  %v1063 = vmul.f32 %v405, %v947
  %v1064 = vmul.f32 %v410, %v949
  %v1065 = vmul.f32 %v415, %v951
  %v1066 = vmul.f32 %v420, %v953
  %v1067 = vmul.f32 %v425, %v955
  %v1068 = vmul.f32 %v430, %v957
  %v1069 = vmul.f32 %v435, %v959
  %v1070 = vmul.f32 %v440, %v961
  %v1071 = vmul.f32 %v445, %v963
  %v1072 = vmul.f32 %v450, %v965
  %v1073 = vmul.f32 %v455, %v967
  %v1074 = vmul.f32 %v460, %v969
  %v1075 = vmul.f32 %v465, %v971
  %v1076 = vmul.f32 %v470, %v973
  %v1077 = vmul.f32 %v475, %v975
  %v1078 = vmul.f32 %v480, %v977
  %v1079 = vmul.f32 %v485, %v979
  %v1080 = vmul.f32 %v490, %v981
  %v1081 = vmul.f32 %v495, %v983
  %v1082 = vmul.f32 %v500, %v985
  %v1083 = vmul.f32 %v505, %v987
  %v1084 = vmul.f32 %v510, %v989
  %v1085 = vmul.f32 %v515, %v991
  %v1086 = vmul.f32 %v520, %v993
  %v1087 = vmul.f32 %v525, %v995
  %v1088 = vmul.f32 %v530, %v997
  %v1089 = vmul.f32 %v535, %v999
  %v1090 = vmul.f32 %v540, %v1001
  %v1091 = vmul.f32 %v545, %v1003
  %v1092 = vmul.f32 %v550, %v1005
  %v1093 = vmul.f32 %v555, %v1007
  %v1094 = vmul.f32 %v560, %v1009
  %v1095 = vmul.f32 %v565, %v1011
  %v1096 = vmul.f32 %v570, %v1013
  %v1097 = vmul.f32 %v575, %v1015
  %v1098 = vmul.f32 %v580, %v1017
  %v1099 = vmul.f32 %v585, %v1019
  %v1100 = vmul.f32 %v590, %v1021
  %v1101 = vmul.f32 %v595, %v1023
  %v1102 = vmul.f32 %v600, %v1025
  %v1103 = vmul.f32 %v605, %v1027
  %v1104 = vmul.f32 %v610, %v1029
  %v1105 = vmul.f32 %v615, %v1031
  %v1106 = vmul.f32 %v620, %v1033
  %v1107 = vmul.f32 %v625, %v1035
  %v1108 = vmul.f32 %v630, %v1037
  %v1109 = vmul.f32 %v635, %v1039
  %v1110 = vmul.f32 %v640, %v1041
  %v1111 = vmul.f32 %v645, %v1043
  %v1112 = vmul.f32 %v650, %v1045
  %v1113 = vmul.f32 %v655, %v1047
  %v1114 = vmul.f32 %v660, %v1049
  %v1115 = vmul.f32 %v665, %v1051
  %1116 = vst.msk [vmem:[%s3] sm:$0xff] %vm86, %v1052
  %1117 = vst.msk [vmem:[%s3 + $0x8] sm:$0xff] %vm86, %v1053
  %1118 = vst.msk [vmem:[%s3 + $0x10] sm:$0xff] %vm86, %v1054
  %1119 = vst.msk [vmem:[%s3 + $0x18] sm:$0xff] %vm86, %v1055
  %1120 = vst.msk [vmem:[%s3 + $0x20] sm:$0xff] %vm86, %v1056
  %1121 = vst.msk [vmem:[%s3 + $0x28] sm:$0xff] %vm86, %v1057
  %1122 = vst.msk [vmem:[%s3 + $0x30] sm:$0xff] %vm86, %v1058
  %1123 = vst.msk [vmem:[%s3 + $0x38] sm:$0xff] %vm86, %v1059
  %1124 = vst.msk [vmem:[%s3 + $0x40] sm:$0xff] %vm86, %v1060
  %1125 = vst.msk [vmem:[%s3 + $0x48] sm:$0xff] %vm86, %v1061
  %1126 = vst.msk [vmem:[%s3 + $0x50] sm:$0xff] %vm86, %v1062
  %1127 = vst.msk [vmem:[%s3 + $0x58] sm:$0xff] %vm86, %v1063
  %1128 = vst.msk [vmem:[%s3 + $0x60] sm:$0xff] %vm86, %v1064
  %1129 = vst.msk [vmem:[%s3 + $0x68] sm:$0xff] %vm86, %v1065
  %1130 = vst.msk [vmem:[%s3 + $0x70] sm:$0xff] %vm86, %v1066
  %1131 = vst.msk [vmem:[%s3 + $0x78] sm:$0xff] %vm86, %v1067
  %1132 = vst.msk [vmem:[%s3 + $0x80] sm:$0xff] %vm86, %v1068
  %1133 = vst.msk [vmem:[%s3 + $0x88] sm:$0xff] %vm86, %v1069
  %1134 = vst.msk [vmem:[%s3 + $0x90] sm:$0xff] %vm86, %v1070
  %1135 = vst.msk [vmem:[%s3 + $0x98] sm:$0xff] %vm86, %v1071
  %1136 = vst.msk [vmem:[%s3 + $0xa0] sm:$0xff] %vm86, %v1072
  %1137 = vst.msk [vmem:[%s3 + $0xa8] sm:$0xff] %vm86, %v1073
  %1138 = vst.msk [vmem:[%s3 + $0xb0] sm:$0xff] %vm86, %v1074
  %1139 = vst.msk [vmem:[%s3 + $0xb8] sm:$0xff] %vm86, %v1075
  %1140 = vst.msk [vmem:[%s3 + $0xc0] sm:$0xff] %vm86, %v1076
  %1141 = vst.msk [vmem:[%s3 + $0xc8] sm:$0xff] %vm86, %v1077
  %1142 = vst.msk [vmem:[%s3 + $0xd0] sm:$0xff] %vm86, %v1078
  %1143 = vst.msk [vmem:[%s3 + $0xd8] sm:$0xff] %vm86, %v1079
  %1144 = vst.msk [vmem:[%s3 + $0xe0] sm:$0xff] %vm86, %v1080
  %1145 = vst.msk [vmem:[%s3 + $0xe8] sm:$0xff] %vm86, %v1081
  %1146 = vst.msk [vmem:[%s3 + $0xf0] sm:$0xff] %vm86, %v1082
  %1147 = vst.msk [vmem:[%s3 + $0xf8] sm:$0xff] %vm86, %v1083
  %1148 = vst.msk [vmem:[%s3 + $0x100] sm:$0xff] %vm86, %v1084
  %1149 = vst.msk [vmem:[%s3 + $0x108] sm:$0xff] %vm86, %v1085
  %1150 = vst.msk [vmem:[%s3 + $0x110] sm:$0xff] %vm86, %v1086
  %1151 = vst.msk [vmem:[%s3 + $0x118] sm:$0xff] %vm86, %v1087
  %1152 = vst.msk [vmem:[%s3 + $0x120] sm:$0xff] %vm86, %v1088
  %1153 = vst.msk [vmem:[%s3 + $0x128] sm:$0xff] %vm86, %v1089
  %1154 = vst.msk [vmem:[%s3 + $0x130] sm:$0xff] %vm86, %v1090
  %1155 = vst.msk [vmem:[%s3 + $0x138] sm:$0xff] %vm86, %v1091
  %1156 = vst.msk [vmem:[%s3 + $0x140] sm:$0xff] %vm86, %v1092
  %1157 = vst.msk [vmem:[%s3 + $0x148] sm:$0xff] %vm86, %v1093
  %1158 = vst.msk [vmem:[%s3 + $0x150] sm:$0xff] %vm86, %v1094
  %1159 = vst.msk [vmem:[%s3 + $0x158] sm:$0xff] %vm86, %v1095
  %1160 = vst.msk [vmem:[%s3 + $0x160] sm:$0xff] %vm86, %v1096
  %1161 = vst.msk [vmem:[%s3 + $0x168] sm:$0xff] %vm86, %v1097
  %1162 = vst.msk [vmem:[%s3 + $0x170] sm:$0xff] %vm86, %v1098
  %1163 = vst.msk [vmem:[%s3 + $0x178] sm:$0xff] %vm86, %v1099
  %1164 = vst.msk [vmem:[%s3 + $0x180] sm:$0xff] %vm86, %v1100
  %1165 = vst.msk [vmem:[%s3 + $0x188] sm:$0xff] %vm86, %v1101
  %1166 = vst.msk [vmem:[%s3 + $0x190] sm:$0xff] %vm86, %v1102
  %1167 = vst.msk [vmem:[%s3 + $0x198] sm:$0xff] %vm86, %v1103
  %1168 = vst.msk [vmem:[%s3 + $0x1a0] sm:$0xff] %vm86, %v1104
  %1169 = vst.msk [vmem:[%s3 + $0x1a8] sm:$0xff] %vm86, %v1105
  %1170 = vst.msk [vmem:[%s3 + $0x1b0] sm:$0xff] %vm86, %v1106
  %1171 = vst.msk [vmem:[%s3 + $0x1b8] sm:$0xff] %vm86, %v1107
  %1172 = vst.msk [vmem:[%s3 + $0x1c0] sm:$0xff] %vm86, %v1108
  %1173 = vst.msk [vmem:[%s3 + $0x1c8] sm:$0xff] %vm86, %v1109
  %1174 = vst.msk [vmem:[%s3 + $0x1d0] sm:$0xff] %vm86, %v1110
  %1175 = vst.msk [vmem:[%s3 + $0x1d8] sm:$0xff] %vm86, %v1111
  %1176 = vst.msk [vmem:[%s3 + $0x1e0] sm:$0xff] %vm86, %v1112
  %1177 = vst.msk [vmem:[%s3 + $0x1e8] sm:$0xff] %vm86, %v1113
  %1178 = vst.msk [vmem:[%s3 + $0x1f0] sm:$0xff] %vm86, %v1114
  %1179 = vst.msk [vmem:[%s3 + $0x1f8] sm:$0xff] %vm86, %v1115
  // Predicated region
  $region14: #{c3_forward.5} parent=0 // pred_check
    _
  $region15: #{c3_forward.5} parent=0 // pred_check_branch
    %1181 = sbr.rel (0) target = $region17
  $region16: #{c3_forward.5} parent=0 // pred_region
    _
  $region17: #{c3_forward.5} parent=0 // pred_fallthru
    _
  // Predicated region
  $region18: #{c3_forward.5} parent=0 // pred_check
    _
  $region19: #{c3_forward.5} parent=0 // pred_check_branch
    %1183 = sbr.rel (0) target = $region21
  $region20: #{c3_forward.5} parent=0 // pred_region
    _
  $region21: #{c3_forward.5} parent=0 // pred_fallthru
    _

// kernel: c3_forward.7
$region0: #{c3_forward.7}
  #allocation0 [shape = 'u32[]', space=smem, size = 0x4, offset = 0x4, fixed_abs, tag = 'smem constant byte address 0x4 - core index']
  #allocation1 [shape = 'u32[144,128]{1,0:T(1,128)}', space=vmem, size = 0x12000, scoped, tag = 'internal scratch']
  %s0 = inlined_call_operand.hbm [shape: f32[512,4], index: 0, kind: input, shape index: {}]
  %s1 = inlined_call_operand.hbm [shape: f32[512,8], index: 1, kind: input, shape index: {}]
  %s2 = inlined_call_operand.vmem [shape: f32[4,8], index: 2, kind: input, shape index: {}]
  %s3 = inlined_call_operand.vmem [shape: f32[4,8], index: 3, kind: input, shape index: {}]
  %s4 = inlined_call_operand.vmem [shape: f32[1,8], index: 4, kind: input, shape index: {}]
  %s5 = inlined_call_operand.vmem [shape: f32[512,8], index: 5, kind: output, shape index: {}]
  %s6 = sld [smem:[#allocation0]]
  $region38: #{c3_forward.7} parent=0
    _
  %s8 = ssub.s32 1, %s6
  %s9 = scalar_select 0, %s8, %s6
  $region1: #{c3_forward.7} parent=0
    #allocation2 [shape = 'u8[262144]{0}', space=vmem, size = 0x40000, scoped, tag = 'input window, operand 0, single buffered']
    #allocation3 [shape = 's32[1]{0}', space=sflag, size = 0x4, scoped, tag = 'scoped memory for c3_forward.7']
    #allocation4 [shape = 'u8[262144]{0}', space=vmem, size = 0x40000, scoped, tag = 'input window, operand 1, single buffered']
    #allocation5 [shape = 's32[1]{0}', space=sflag, size = 0x4, scoped, tag = 'scoped memory for c3_forward.7']
    %10 = vsyncpa [#allocation3], 0
    %11 = vsyncpa [#allocation5], 0
    // Predicated region
    $region2: #{c3_forward.7} parent=1 // pred_check
      _
    $region3: #{c3_forward.7} parent=1 // pred_check_branch
      %13 = sbr.rel (0) target = $region5
    $region4: #{c3_forward.7} parent=1 // pred_region
      %s15 = ssub.s32 8192, 8192
      %16 = vsyncadd [#allocation3], %s15
      %s17 = sshll.u32 [#allocation2], 4
      %s18 = int_to_ptr.vmem [resolvable:$true] %s17
      %23 = dma.hbm_to_vmem [thread:$0]  %s0, 8192, %s18, [#allocation3], 128, 128, 8
    $region5: #{c3_forward.7} parent=1 // pred_fallthru
      _
    // Predicated region
    $region6: #{c3_forward.7} parent=1 // pred_check
      _
    $region7: #{c3_forward.7} parent=1 // pred_check_branch
      %25 = sbr.rel (0) target = $region9
    $region8: #{c3_forward.7} parent=1 // pred_region
      %s27 = ssub.s32 8192, 8192
      %28 = vsyncadd [#allocation5], %s27
      %s29 = sshll.u32 [#allocation4], 4
      %s30 = int_to_ptr.vmem [resolvable:$true] %s29
      %35 = dma.hbm_to_vmem [thread:$0]  %s1, 8192, %s30, [#allocation5], 128, 128, 8
    $region9: #{c3_forward.7} parent=1 // pred_fallthru
      _
    // Predicated region
    $region10: #{c3_forward.7} parent=1 // pred_check
      _
    $region11: #{c3_forward.7} parent=1 // pred_check_branch
      %37 = sbr.rel (0) target = $region13
    $region12: #{c3_forward.7} parent=1 // pred_region
      _
    $region13: #{c3_forward.7} parent=1 // pred_fallthru
      _
    // Predicated region
    $region14: #{c3_forward.7} parent=1 // pred_check
      _
    $region15: #{c3_forward.7} parent=1 // pred_check_branch
      %39 = sbr.rel (0) target = $region17
    $region16: #{c3_forward.7} parent=1 // pred_region
      _
    $region17: #{c3_forward.7} parent=1 // pred_fallthru
      _
    // Predicated region
    $region18: #{c3_forward.7} parent=1 // pred_check
      _
    $region19: #{c3_forward.7} parent=1 // pred_check_branch
      %41 = sbr.rel (0) target = $region21
    $region20: #{c3_forward.7} parent=1 // pred_region
      _
    $region21: #{c3_forward.7} parent=1 // pred_fallthru
      _
    // Predicated region
    $region22: #{c3_forward.7} parent=1 // pred_check
      _
    $region23: #{c3_forward.7} parent=1 // pred_check_branch
      %43 = sbr.rel (0) target = $region25
    $region24: #{c3_forward.7} parent=1 // pred_region
      %44 = dma.done [#allocation3], 8192
    $region25: #{c3_forward.7} parent=1 // pred_fallthru
      _
    // Predicated region
    $region26: #{c3_forward.7} parent=1 // pred_check
      _
    $region27: #{c3_forward.7} parent=1 // pred_check_branch
      %46 = sbr.rel (0) target = $region29
    $region28: #{c3_forward.7} parent=1 // pred_region
      %47 = dma.done [#allocation5], 8192
    $region29: #{c3_forward.7} parent=1 // pred_fallthru
      _
    %v48 = vld [vmem:[#allocation4] sm:$0xff]
    %v49 = vld [vmem:[#allocation4 + $0x8] sm:$0xff]
    %v50 = vld [vmem:[#allocation4 + $0x10] sm:$0xff]
    %v51 = vld [vmem:[#allocation4 + $0x18] sm:$0xff]
    %v52 = vld [vmem:[#allocation4 + $0x20] sm:$0xff]
    %v53 = vld [vmem:[#allocation4 + $0x28] sm:$0xff]
    %v54 = vld [vmem:[#allocation4 + $0x30] sm:$0xff]
    %v55 = vld [vmem:[#allocation4 + $0x38] sm:$0xff]
    %v56 = vld [vmem:[#allocation4 + $0x40] sm:$0xff]
    %v57 = vld [vmem:[#allocation4 + $0x48] sm:$0xff]
    %v58 = vld [vmem:[#allocation4 + $0x50] sm:$0xff]
    %v59 = vld [vmem:[#allocation4 + $0x58] sm:$0xff]
    %v60 = vld [vmem:[#allocation4 + $0x60] sm:$0xff]
    %v61 = vld [vmem:[#allocation4 + $0x68] sm:$0xff]
    %v62 = vld [vmem:[#allocation4 + $0x70] sm:$0xff]
    %v63 = vld [vmem:[#allocation4 + $0x78] sm:$0xff]
    %v64 = vld [vmem:[#allocation4 + $0x80] sm:$0xff]
    %v65 = vld [vmem:[#allocation4 + $0x88] sm:$0xff]
    %v66 = vld [vmem:[#allocation4 + $0x90] sm:$0xff]
    %v67 = vld [vmem:[#allocation4 + $0x98] sm:$0xff]
    %v68 = vld [vmem:[#allocation4 + $0xa0] sm:$0xff]
    %v69 = vld [vmem:[#allocation4 + $0xa8] sm:$0xff]
    %v70 = vld [vmem:[#allocation4 + $0xb0] sm:$0xff]
    %v71 = vld [vmem:[#allocation4 + $0xb8] sm:$0xff]
    %v72 = vld [vmem:[#allocation4 + $0xc0] sm:$0xff]
    %v73 = vld [vmem:[#allocation4 + $0xc8] sm:$0xff]
    %v74 = vld [vmem:[#allocation4 + $0xd0] sm:$0xff]
    %v75 = vld [vmem:[#allocation4 + $0xd8] sm:$0xff]
    %v76 = vld [vmem:[#allocation4 + $0xe0] sm:$0xff]
    %v77 = vld [vmem:[#allocation4 + $0xe8] sm:$0xff]
    %v78 = vld [vmem:[#allocation4 + $0xf0] sm:$0xff]
    %v79 = vld [vmem:[#allocation4 + $0xf8] sm:$0xff]
    %v80 = vld [vmem:[#allocation4 + $0x100] sm:$0xff]
    %v81 = vld [vmem:[#allocation4 + $0x108] sm:$0xff]
    %v82 = vld [vmem:[#allocation4 + $0x110] sm:$0xff]
    %v83 = vld [vmem:[#allocation4 + $0x118] sm:$0xff]
    %v84 = vld [vmem:[#allocation4 + $0x120] sm:$0xff]
    %v85 = vld [vmem:[#allocation4 + $0x128] sm:$0xff]
    %v86 = vld [vmem:[#allocation4 + $0x130] sm:$0xff]
    %v87 = vld [vmem:[#allocation4 + $0x138] sm:$0xff]
    %v88 = vld [vmem:[#allocation4 + $0x140] sm:$0xff]
    %v89 = vld [vmem:[#allocation4 + $0x148] sm:$0xff]
    %v90 = vld [vmem:[#allocation4 + $0x150] sm:$0xff]
    %v91 = vld [vmem:[#allocation4 + $0x158] sm:$0xff]
    %v92 = vld [vmem:[#allocation4 + $0x160] sm:$0xff]
    %v93 = vld [vmem:[#allocation4 + $0x168] sm:$0xff]
    %v94 = vld [vmem:[#allocation4 + $0x170] sm:$0xff]
    %v95 = vld [vmem:[#allocation4 + $0x178] sm:$0xff]
    %v96 = vld [vmem:[#allocation4 + $0x180] sm:$0xff]
    %v97 = vld [vmem:[#allocation4 + $0x188] sm:$0xff]
    %v98 = vld [vmem:[#allocation4 + $0x190] sm:$0xff]
    %v99 = vld [vmem:[#allocation4 + $0x198] sm:$0xff]
    %v100 = vld [vmem:[#allocation4 + $0x1a0] sm:$0xff]
    %v101 = vld [vmem:[#allocation4 + $0x1a8] sm:$0xff]
    %v102 = vld [vmem:[#allocation4 + $0x1b0] sm:$0xff]
    %v103 = vld [vmem:[#allocation4 + $0x1b8] sm:$0xff]
    %v104 = vld [vmem:[#allocation4 + $0x1c0] sm:$0xff]
    %v105 = vld [vmem:[#allocation4 + $0x1c8] sm:$0xff]
    %v106 = vld [vmem:[#allocation4 + $0x1d0] sm:$0xff]
    %v107 = vld [vmem:[#allocation4 + $0x1d8] sm:$0xff]
    %v108 = vld [vmem:[#allocation4 + $0x1e0] sm:$0xff]
    %v109 = vld [vmem:[#allocation4 + $0x1e8] sm:$0xff]
    %v110 = vld [vmem:[#allocation4 + $0x1f0] sm:$0xff]
    %v111 = vld [vmem:[#allocation4 + $0x1f8] sm:$0xff]
    %v112 = vld [vmem:[#allocation2] sm:$0xff]
    %v113 = vld [vmem:[#allocation2 + $0x8] sm:$0xff]
    %v114 = vld [vmem:[#allocation2 + $0x10] sm:$0xff]
    %v115 = vld [vmem:[#allocation2 + $0x18] sm:$0xff]
    %v116 = vld [vmem:[#allocation2 + $0x20] sm:$0xff]
    %v117 = vld [vmem:[#allocation2 + $0x28] sm:$0xff]
    %v118 = vld [vmem:[#allocation2 + $0x30] sm:$0xff]
    %v119 = vld [vmem:[#allocation2 + $0x38] sm:$0xff]
    %v120 = vld [vmem:[#allocation2 + $0x40] sm:$0xff]
    %v121 = vld [vmem:[#allocation2 + $0x48] sm:$0xff]
    %v122 = vld [vmem:[#allocation2 + $0x50] sm:$0xff]
    %v123 = vld [vmem:[#allocation2 + $0x58] sm:$0xff]
    %v124 = vld [vmem:[#allocation2 + $0x60] sm:$0xff]
    %v125 = vld [vmem:[#allocation2 + $0x68] sm:$0xff]
    %v126 = vld [vmem:[#allocation2 + $0x70] sm:$0xff]
    %v127 = vld [vmem:[#allocation2 + $0x78] sm:$0xff]
    %v128 = vld [vmem:[#allocation2 + $0x80] sm:$0xff]
    %v129 = vld [vmem:[#allocation2 + $0x88] sm:$0xff]
    %v130 = vld [vmem:[#allocation2 + $0x90] sm:$0xff]
    %v131 = vld [vmem:[#allocation2 + $0x98] sm:$0xff]
    %v132 = vld [vmem:[#allocation2 + $0xa0] sm:$0xff]
    %v133 = vld [vmem:[#allocation2 + $0xa8] sm:$0xff]
    %v134 = vld [vmem:[#allocation2 + $0xb0] sm:$0xff]
    %v135 = vld [vmem:[#allocation2 + $0xb8] sm:$0xff]
    %v136 = vld [vmem:[#allocation2 + $0xc0] sm:$0xff]
    %v137 = vld [vmem:[#allocation2 + $0xc8] sm:$0xff]
    %v138 = vld [vmem:[#allocation2 + $0xd0] sm:$0xff]
    %v139 = vld [vmem:[#allocation2 + $0xd8] sm:$0xff]
    %v140 = vld [vmem:[#allocation2 + $0xe0] sm:$0xff]
    %v141 = vld [vmem:[#allocation2 + $0xe8] sm:$0xff]
    %v142 = vld [vmem:[#allocation2 + $0xf0] sm:$0xff]
    %v143 = vld [vmem:[#allocation2 + $0xf8] sm:$0xff]
    %v144 = vld [vmem:[#allocation2 + $0x100] sm:$0xff]
    %v145 = vld [vmem:[#allocation2 + $0x108] sm:$0xff]
    %v146 = vld [vmem:[#allocation2 + $0x110] sm:$0xff]
    %v147 = vld [vmem:[#allocation2 + $0x118] sm:$0xff]
    %v148 = vld [vmem:[#allocation2 + $0x120] sm:$0xff]
    %v149 = vld [vmem:[#allocation2 + $0x128] sm:$0xff]
    %v150 = vld [vmem:[#allocation2 + $0x130] sm:$0xff]
    %v151 = vld [vmem:[#allocation2 + $0x138] sm:$0xff]
    %v152 = vld [vmem:[#allocation2 + $0x140] sm:$0xff]
    %v153 = vld [vmem:[#allocation2 + $0x148] sm:$0xff]
    %v154 = vld [vmem:[#allocation2 + $0x150] sm:$0xff]
    %v155 = vld [vmem:[#allocation2 + $0x158] sm:$0xff]
    %v156 = vld [vmem:[#allocation2 + $0x160] sm:$0xff]
    %v157 = vld [vmem:[#allocation2 + $0x168] sm:$0xff]
    %v158 = vld [vmem:[#allocation2 + $0x170] sm:$0xff]
    %v159 = vld [vmem:[#allocation2 + $0x178] sm:$0xff]
    %v160 = vld [vmem:[#allocation2 + $0x180] sm:$0xff]
    %v161 = vld [vmem:[#allocation2 + $0x188] sm:$0xff]
    %v162 = vld [vmem:[#allocation2 + $0x190] sm:$0xff]
    %v163 = vld [vmem:[#allocation2 + $0x198] sm:$0xff]
    %v164 = vld [vmem:[#allocation2 + $0x1a0] sm:$0xff]
    %v165 = vld [vmem:[#allocation2 + $0x1a8] sm:$0xff]
    %v166 = vld [vmem:[#allocation2 + $0x1b0] sm:$0xff]
    %v167 = vld [vmem:[#allocation2 + $0x1b8] sm:$0xff]
    %v168 = vld [vmem:[#allocation2 + $0x1c0] sm:$0xff]
    %v169 = vld [vmem:[#allocation2 + $0x1c8] sm:$0xff]
    %v170 = vld [vmem:[#allocation2 + $0x1d0] sm:$0xff]
    %v171 = vld [vmem:[#allocation2 + $0x1d8] sm:$0xff]
    %v172 = vld [vmem:[#allocation2 + $0x1e0] sm:$0xff]
    %v173 = vld [vmem:[#allocation2 + $0x1e8] sm:$0xff]
    %v174 = vld [vmem:[#allocation2 + $0x1f0] sm:$0xff]
    %v175 = vld [vmem:[#allocation2 + $0x1f8] sm:$0xff]
    %v176 = vld [vmem:[%s2] sm:$0xf]
    %v177 = vld [vmem:[%s3] sm:$0xf]
    %vm178 = vcmask 31744
    %v180 = vsel %vm178, %v48, 0
    %v183 = vsel %vm178, %v49, 0
    %v186 = vsel %vm178, %v50, 0
    %v189 = vsel %vm178, %v51, 0
    %v192 = vsel %vm178, %v52, 0
    %v195 = vsel %vm178, %v53, 0
    %v198 = vsel %vm178, %v54, 0
    %v201 = vsel %vm178, %v55, 0
    %v204 = vsel %vm178, %v56, 0
    %v207 = vsel %vm178, %v57, 0
    %v210 = vsel %vm178, %v58, 0
    %v213 = vsel %vm178, %v59, 0
    %v216 = vsel %vm178, %v60, 0
    %v219 = vsel %vm178, %v61, 0
    %v222 = vsel %vm178, %v62, 0
    %v225 = vsel %vm178, %v63, 0
    %v228 = vsel %vm178, %v64, 0
    %v231 = vsel %vm178, %v65, 0
    %v234 = vsel %vm178, %v66, 0
    %v237 = vsel %vm178, %v67, 0
    %v240 = vsel %vm178, %v68, 0
    %v243 = vsel %vm178, %v69, 0
    %v246 = vsel %vm178, %v70, 0
    %v249 = vsel %vm178, %v71, 0
    %v252 = vsel %vm178, %v72, 0
    %v255 = vsel %vm178, %v73, 0
    %v258 = vsel %vm178, %v74, 0
    %v261 = vsel %vm178, %v75, 0
    %v264 = vsel %vm178, %v76, 0
    %v267 = vsel %vm178, %v77, 0
    %v270 = vsel %vm178, %v78, 0
    %v273 = vsel %vm178, %v79, 0
    %v276 = vsel %vm178, %v80, 0
    %v279 = vsel %vm178, %v81, 0
    %v282 = vsel %vm178, %v82, 0
    %v285 = vsel %vm178, %v83, 0
    %v288 = vsel %vm178, %v84, 0
    %v291 = vsel %vm178, %v85, 0
    %v294 = vsel %vm178, %v86, 0
    %v297 = vsel %vm178, %v87, 0
    %v300 = vsel %vm178, %v88, 0
    %v303 = vsel %vm178, %v89, 0
    %v306 = vsel %vm178, %v90, 0
    %v309 = vsel %vm178, %v91, 0
    %v312 = vsel %vm178, %v92, 0
    %v315 = vsel %vm178, %v93, 0
    %v318 = vsel %vm178, %v94, 0
    %v321 = vsel %vm178, %v95, 0
    %v324 = vsel %vm178, %v96, 0
    %v327 = vsel %vm178, %v97, 0
    %v330 = vsel %vm178, %v98, 0
    %v333 = vsel %vm178, %v99, 0
    %v336 = vsel %vm178, %v100, 0
    %v339 = vsel %vm178, %v101, 0
    %v342 = vsel %vm178, %v102, 0
    %v345 = vsel %vm178, %v103, 0
    %v348 = vsel %vm178, %v104, 0
    %v351 = vsel %vm178, %v105, 0
    %v354 = vsel %vm178, %v106, 0
    %v357 = vsel %vm178, %v107, 0
    %v360 = vsel %vm178, %v108, 0
    %v363 = vsel %vm178, %v109, 0
    %v366 = vsel %vm178, %v110, 0
    %v369 = vsel %vm178, %v111, 0
    %vm371 = vcmask 1043456
    %v373 = vsel %vm371, %v177, 0
    %375 = vmatprep.subr.mxu0 0.0
    %376 = vmatpush1.msra.mxu0 %v373
    %377 = vmatprep.subr.mxu0 0.0
    %378 = vmatpush1.msra.mxu0 0.0
    %379 = vmatprep.subr.mxu0 0.0
    %380 = vmatpush1.msra.mxu0 0.0
    %381 = vmatprep.subr.mxu0 0.0
    %382 = vmatpush1.msra.mxu0 0.0
    %383 = vmatprep.subr.mxu0 0.0
    %384 = vmatpush1.msra.mxu0 0.0
    %385 = vmatprep.subr.mxu0 0.0
    %386 = vmatpush1.msra.mxu0 0.0
    %387 = vmatprep.subr.mxu0 0.0
    %388 = vmatpush1.msra.mxu0 0.0
    %389 = vmatprep.subr.mxu0 0.0
    %390 = vmatpush1.msra.mxu0 0.0
    %391 = vmatprep.subr.mxu0 0.0
    %392 = vmatpush1.msra.mxu0 0.0
    %393 = vmatprep.subr.mxu0 0.0
    %394 = vmatpush1.msra.mxu0 0.0
    %395 = vmatprep.subr.mxu0 0.0
    %396 = vmatpush1.msra.mxu0 0.0
    %397 = vmatprep.subr.mxu0 0.0
    %398 = vmatpush1.msra.mxu0 0.0
    %399 = vmatprep.subr.mxu0 0.0
    %400 = vmatpush1.msra.mxu0 0.0
    %401 = vmatprep.subr.mxu0 0.0
    %402 = vmatpush1.msra.mxu0 0.0
    %403 = vmatprep.subr.mxu0 0.0
    %404 = vmatpush1.msra.mxu0 0.0
    %405 = vmatprep.subr.mxu0 0.0
    %406 = vmatpush1.msra.mxu0 0.0
    %407 = vmatprep.subr.mxu0 0.0
    %408 = vmatpush1.msra.mxu0 0.0
    %409 = vmatprep.subr.mxu0 0.0
    %410 = vmatpush1.msra.mxu0 0.0
    %411 = vmatprep.subr.mxu0 0.0
    %412 = vmatpush1.msra.mxu0 0.0
    %413 = vmatprep.subr.mxu0 0.0
    %414 = vmatpush1.msra.mxu0 0.0
    %415 = vmatprep.subr.mxu0 0.0
    %416 = vmatpush1.msra.mxu0 0.0
    %417 = vmatprep.subr.mxu0 0.0
    %418 = vmatpush1.msra.mxu0 0.0
    %419 = vmatprep.subr.mxu0 0.0
    %420 = vmatpush1.msra.mxu0 0.0
    %421 = vmatprep.subr.mxu0 0.0
    %422 = vmatpush1.msra.mxu0 0.0
    %423 = vmatprep.subr.mxu0 0.0
    %424 = vmatpush1.msra.mxu0 0.0
    %425 = vmatprep.subr.mxu0 0.0
    %426 = vmatpush1.msra.mxu0 0.0
    %427 = vmatprep.subr.mxu0 0.0
    %428 = vmatpush1.msra.mxu0 0.0
    %429 = vmatprep.subr.mxu0 0.0
    %430 = vmatpush1.msra.mxu0 0.0
    %431 = vmatprep.subr.mxu0 0.0
    %432 = vmatpush1.msra.mxu0 0.0
    %433 = vmatprep.subr.mxu0 0.0
    %434 = vmatpush1.msra.mxu0 0.0
    %435 = vmatprep.subr.mxu0 0.0
    %436 = vmatpush1.msra.mxu0 0.0
    %437 = vmatprep.subr.mxu0 0.0
    %438 = vmatpush1.msra.mxu0 0.0
    %439 = vmatprep.mubr.f32.mxu0 0.0
    %440 = vmatmul.mubr.f32.gmra.mrb[0].mxu0 %v180
    %v441 = vpop.f32.mrb[0].mxu0
    %v442 = vadd.f32 0.0, %v441
    %v443 = vpop.f32.mrb[0].mxu0
    %444 = vmatprep.mubr.f32.mxu0 0.0
    %445 = vmatmul.mubr.f32.gmra.mrb[0].mxu0 %v183
    %v446 = vpop.f32.mrb[0].mxu0
    %v447 = vadd.f32 0.0, %v446
    %v448 = vpop.f32.mrb[0].mxu0
    %449 = vmatprep.mubr.f32.mxu0 0.0
    %450 = vmatmul.mubr.f32.gmra.mrb[0].mxu0 %v186
    %v451 = vpop.f32.mrb[0].mxu0
    %v452 = vadd.f32 0.0, %v451
    %v453 = vpop.f32.mrb[0].mxu0
    %454 = vmatprep.mubr.f32.mxu0 0.0
    %455 = vmatmul.mubr.f32.gmra.mrb[0].mxu0 %v189
    %v456 = vpop.f32.mrb[0].mxu0
    %v457 = vadd.f32 0.0, %v456
    %v458 = vpop.f32.mrb[0].mxu0
    %459 = vmatprep.mubr.f32.mxu0 0.0
    %460 = vmatmul.mubr.f32.gmra.mrb[0].mxu0 %v192
    %v461 = vpop.f32.mrb[0].mxu0
    %v462 = vadd.f32 0.0, %v461
    %v463 = vpop.f32.mrb[0].mxu0
    %464 = vmatprep.mubr.f32.mxu0 0.0
    %465 = vmatmul.mubr.f32.gmra.mrb[0].mxu0 %v195
    %v466 = vpop.f32.mrb[0].mxu0
    %v467 = vadd.f32 0.0, %v466
    %v468 = vpop.f32.mrb[0].mxu0
    %469 = vmatprep.mubr.f32.mxu0 0.0
    %470 = vmatmul.mubr.f32.gmra.mrb[0].mxu0 %v198
    %v471 = vpop.f32.mrb[0].mxu0
    %v472 = vadd.f32 0.0, %v471
    %v473 = vpop.f32.mrb[0].mxu0
    %474 = vmatprep.mubr.f32.mxu0 0.0
    %475 = vmatmul.mubr.f32.gmra.mrb[0].mxu0 %v201
    %v476 = vpop.f32.mrb[0].mxu0
    %v477 = vadd.f32 0.0, %v476
    %v478 = vpop.f32.mrb[0].mxu0
    %479 = vmatprep.mubr.f32.mxu0 0.0
    %480 = vmatmul.mubr.f32.gmra.mrb[0].mxu0 %v204
    %v481 = vpop.f32.mrb[0].mxu0
    %v482 = vadd.f32 0.0, %v481
    %v483 = vpop.f32.mrb[0].mxu0
    %484 = vmatprep.mubr.f32.mxu0 0.0
    %485 = vmatmul.mubr.f32.gmra.mrb[0].mxu0 %v207
    %v486 = vpop.f32.mrb[0].mxu0
    %v487 = vadd.f32 0.0, %v486
    %v488 = vpop.f32.mrb[0].mxu0
    %489 = vmatprep.mubr.f32.mxu0 0.0
    %490 = vmatmul.mubr.f32.gmra.mrb[0].mxu0 %v210
    %v491 = vpop.f32.mrb[0].mxu0
    %v492 = vadd.f32 0.0, %v491
    %v493 = vpop.f32.mrb[0].mxu0
    %494 = vmatprep.mubr.f32.mxu0 0.0
    %495 = vmatmul.mubr.f32.gmra.mrb[0].mxu0 %v213
    %v496 = vpop.f32.mrb[0].mxu0
    %v497 = vadd.f32 0.0, %v496
    %v498 = vpop.f32.mrb[0].mxu0
    %499 = vmatprep.mubr.f32.mxu0 0.0
    %500 = vmatmul.mubr.f32.gmra.mrb[0].mxu0 %v216
    %v501 = vpop.f32.mrb[0].mxu0
    %v502 = vadd.f32 0.0, %v501
    %v503 = vpop.f32.mrb[0].mxu0
    %504 = vmatprep.mubr.f32.mxu0 0.0
    %505 = vmatmul.mubr.f32.gmra.mrb[0].mxu0 %v219
    %v506 = vpop.f32.mrb[0].mxu0
    %v507 = vadd.f32 0.0, %v506
    %v508 = vpop.f32.mrb[0].mxu0
    %509 = vmatprep.mubr.f32.mxu0 0.0
    %510 = vmatmul.mubr.f32.gmra.mrb[0].mxu0 %v222
    %v511 = vpop.f32.mrb[0].mxu0
    %v512 = vadd.f32 0.0, %v511
    %v513 = vpop.f32.mrb[0].mxu0
    %514 = vmatprep.mubr.f32.mxu0 0.0
    %515 = vmatmul.mubr.f32.gmra.mrb[0].mxu0 %v225
    %v516 = vpop.f32.mrb[0].mxu0
    %v517 = vadd.f32 0.0, %v516
    %v518 = vpop.f32.mrb[0].mxu0
    %519 = vmatprep.mubr.f32.mxu0 0.0
    %520 = vmatmul.mubr.f32.gmra.mrb[0].mxu0 %v228
    %v521 = vpop.f32.mrb[0].mxu0
    %v522 = vadd.f32 0.0, %v521
    %v523 = vpop.f32.mrb[0].mxu0
    %524 = vmatprep.mubr.f32.mxu0 0.0
    %525 = vmatmul.mubr.f32.gmra.mrb[0].mxu0 %v231
    %v526 = vpop.f32.mrb[0].mxu0
    %v527 = vadd.f32 0.0, %v526
    %v528 = vpop.f32.mrb[0].mxu0
    %529 = vmatprep.mubr.f32.mxu0 0.0
    %530 = vmatmul.mubr.f32.gmra.mrb[0].mxu0 %v234
    %v531 = vpop.f32.mrb[0].mxu0
    %v532 = vadd.f32 0.0, %v531
    %v533 = vpop.f32.mrb[0].mxu0
    %534 = vmatprep.mubr.f32.mxu0 0.0
    %535 = vmatmul.mubr.f32.gmra.mrb[0].mxu0 %v237
    %v536 = vpop.f32.mrb[0].mxu0
    %v537 = vadd.f32 0.0, %v536
    %v538 = vpop.f32.mrb[0].mxu0
    %539 = vmatprep.mubr.f32.mxu0 0.0
    %540 = vmatmul.mubr.f32.gmra.mrb[0].mxu0 %v240
    %v541 = vpop.f32.mrb[0].mxu0
    %v542 = vadd.f32 0.0, %v541
    %v543 = vpop.f32.mrb[0].mxu0
    %544 = vmatprep.mubr.f32.mxu0 0.0
    %545 = vmatmul.mubr.f32.gmra.mrb[0].mxu0 %v243
    %v546 = vpop.f32.mrb[0].mxu0
    %v547 = vadd.f32 0.0, %v546
    %v548 = vpop.f32.mrb[0].mxu0
    %549 = vmatprep.mubr.f32.mxu0 0.0
    %550 = vmatmul.mubr.f32.gmra.mrb[0].mxu0 %v246
    %v551 = vpop.f32.mrb[0].mxu0
    %v552 = vadd.f32 0.0, %v551
    %v553 = vpop.f32.mrb[0].mxu0
    %554 = vmatprep.mubr.f32.mxu0 0.0
    %555 = vmatmul.mubr.f32.gmra.mrb[0].mxu0 %v249
    %v556 = vpop.f32.mrb[0].mxu0
    %v557 = vadd.f32 0.0, %v556
    %v558 = vpop.f32.mrb[0].mxu0
    %559 = vmatprep.mubr.f32.mxu0 0.0
    %560 = vmatmul.mubr.f32.gmra.mrb[0].mxu0 %v252
    %v561 = vpop.f32.mrb[0].mxu0
    %v562 = vadd.f32 0.0, %v561
    %v563 = vpop.f32.mrb[0].mxu0
    %564 = vmatprep.mubr.f32.mxu0 0.0
    %565 = vmatmul.mubr.f32.gmra.mrb[0].mxu0 %v255
    %v566 = vpop.f32.mrb[0].mxu0
    %v567 = vadd.f32 0.0, %v566
    %v568 = vpop.f32.mrb[0].mxu0
    %569 = vmatprep.mubr.f32.mxu0 0.0
    %570 = vmatmul.mubr.f32.gmra.mrb[0].mxu0 %v258
    %v571 = vpop.f32.mrb[0].mxu0
    %v572 = vadd.f32 0.0, %v571
    %v573 = vpop.f32.mrb[0].mxu0
    %574 = vmatprep.mubr.f32.mxu0 0.0
    %575 = vmatmul.mubr.f32.gmra.mrb[0].mxu0 %v261
    %v576 = vpop.f32.mrb[0].mxu0
    %v577 = vadd.f32 0.0, %v576
    %v578 = vpop.f32.mrb[0].mxu0
    %579 = vmatprep.mubr.f32.mxu0 0.0
    %580 = vmatmul.mubr.f32.gmra.mrb[0].mxu0 %v264
    %v581 = vpop.f32.mrb[0].mxu0
    %v582 = vadd.f32 0.0, %v581
    %v583 = vpop.f32.mrb[0].mxu0
    %584 = vmatprep.mubr.f32.mxu0 0.0
    %585 = vmatmul.mubr.f32.gmra.mrb[0].mxu0 %v267
    %v586 = vpop.f32.mrb[0].mxu0
    %v587 = vadd.f32 0.0, %v586
    %v588 = vpop.f32.mrb[0].mxu0
    %589 = vmatprep.mubr.f32.mxu0 0.0
    %590 = vmatmul.mubr.f32.gmra.mrb[0].mxu0 %v270
    %v591 = vpop.f32.mrb[0].mxu0
    %v592 = vadd.f32 0.0, %v591
    %v593 = vpop.f32.mrb[0].mxu0
    %594 = vmatprep.mubr.f32.mxu0 0.0
    %595 = vmatmul.mubr.f32.gmra.mrb[0].mxu0 %v273
    %v596 = vpop.f32.mrb[0].mxu0
    %v597 = vadd.f32 0.0, %v596
    %v598 = vpop.f32.mrb[0].mxu0
    %599 = vmatprep.mubr.f32.mxu0 0.0
    %600 = vmatmul.mubr.f32.gmra.mrb[0].mxu0 %v276
    %v601 = vpop.f32.mrb[0].mxu0
    %v602 = vadd.f32 0.0, %v601
    %v603 = vpop.f32.mrb[0].mxu0
    %604 = vmatprep.mubr.f32.mxu0 0.0
    %605 = vmatmul.mubr.f32.gmra.mrb[0].mxu0 %v279
    %v606 = vpop.f32.mrb[0].mxu0
    %v607 = vadd.f32 0.0, %v606
    %v608 = vpop.f32.mrb[0].mxu0
    %609 = vmatprep.mubr.f32.mxu0 0.0
    %610 = vmatmul.mubr.f32.gmra.mrb[0].mxu0 %v282
    %v611 = vpop.f32.mrb[0].mxu0
    %v612 = vadd.f32 0.0, %v611
    %v613 = vpop.f32.mrb[0].mxu0
    %614 = vmatprep.mubr.f32.mxu0 0.0
    %615 = vmatmul.mubr.f32.gmra.mrb[0].mxu0 %v285
    %v616 = vpop.f32.mrb[0].mxu0
    %v617 = vadd.f32 0.0, %v616
    %v618 = vpop.f32.mrb[0].mxu0
    %619 = vmatprep.mubr.f32.mxu0 0.0
    %620 = vmatmul.mubr.f32.gmra.mrb[0].mxu0 %v288
    %v621 = vpop.f32.mrb[0].mxu0
    %v622 = vadd.f32 0.0, %v621
    %v623 = vpop.f32.mrb[0].mxu0
    %624 = vmatprep.mubr.f32.mxu0 0.0
    %625 = vmatmul.mubr.f32.gmra.mrb[0].mxu0 %v291
    %v626 = vpop.f32.mrb[0].mxu0
    %v627 = vadd.f32 0.0, %v626
    %v628 = vpop.f32.mrb[0].mxu0
    %629 = vmatprep.mubr.f32.mxu0 0.0
    %630 = vmatmul.mubr.f32.gmra.mrb[0].mxu0 %v294
    %v631 = vpop.f32.mrb[0].mxu0
    %v632 = vadd.f32 0.0, %v631
    %v633 = vpop.f32.mrb[0].mxu0
    %634 = vmatprep.mubr.f32.mxu0 0.0
    %635 = vmatmul.mubr.f32.gmra.mrb[0].mxu0 %v297
    %v636 = vpop.f32.mrb[0].mxu0
    %v637 = vadd.f32 0.0, %v636
    %v638 = vpop.f32.mrb[0].mxu0
    %639 = vmatprep.mubr.f32.mxu0 0.0
    %640 = vmatmul.mubr.f32.gmra.mrb[0].mxu0 %v300
    %v641 = vpop.f32.mrb[0].mxu0
    %v642 = vadd.f32 0.0, %v641
    %v643 = vpop.f32.mrb[0].mxu0
    %644 = vmatprep.mubr.f32.mxu0 0.0
    %645 = vmatmul.mubr.f32.gmra.mrb[0].mxu0 %v303
    %v646 = vpop.f32.mrb[0].mxu0
    %v647 = vadd.f32 0.0, %v646
    %v648 = vpop.f32.mrb[0].mxu0
    %649 = vmatprep.mubr.f32.mxu0 0.0
    %650 = vmatmul.mubr.f32.gmra.mrb[0].mxu0 %v306
    %v651 = vpop.f32.mrb[0].mxu0
    %v652 = vadd.f32 0.0, %v651
    %v653 = vpop.f32.mrb[0].mxu0
    %654 = vmatprep.mubr.f32.mxu0 0.0
    %655 = vmatmul.mubr.f32.gmra.mrb[0].mxu0 %v309
    %v656 = vpop.f32.mrb[0].mxu0
    %v657 = vadd.f32 0.0, %v656
    %v658 = vpop.f32.mrb[0].mxu0
    %659 = vmatprep.mubr.f32.mxu0 0.0
    %660 = vmatmul.mubr.f32.gmra.mrb[0].mxu0 %v312
    %v661 = vpop.f32.mrb[0].mxu0
    %v662 = vadd.f32 0.0, %v661
    %v663 = vpop.f32.mrb[0].mxu0
    %664 = vmatprep.mubr.f32.mxu0 0.0
    %665 = vmatmul.mubr.f32.gmra.mrb[0].mxu0 %v315
    %v666 = vpop.f32.mrb[0].mxu0
    %v667 = vadd.f32 0.0, %v666
    %v668 = vpop.f32.mrb[0].mxu0
    %669 = vmatprep.mubr.f32.mxu0 0.0
    %670 = vmatmul.mubr.f32.gmra.mrb[0].mxu0 %v318
    %v671 = vpop.f32.mrb[0].mxu0
    %v672 = vadd.f32 0.0, %v671
    %v673 = vpop.f32.mrb[0].mxu0
    %674 = vmatprep.mubr.f32.mxu0 0.0
    %675 = vmatmul.mubr.f32.gmra.mrb[0].mxu0 %v321
    %v676 = vpop.f32.mrb[0].mxu0
    %v677 = vadd.f32 0.0, %v676
    %v678 = vpop.f32.mrb[0].mxu0
    %679 = vmatprep.mubr.f32.mxu0 0.0
    %680 = vmatmul.mubr.f32.gmra.mrb[0].mxu0 %v324
    %v681 = vpop.f32.mrb[0].mxu0
    %v682 = vadd.f32 0.0, %v681
    %v683 = vpop.f32.mrb[0].mxu0
    %684 = vmatprep.mubr.f32.mxu0 0.0
    %685 = vmatmul.mubr.f32.gmra.mrb[0].mxu0 %v327
    %v686 = vpop.f32.mrb[0].mxu0
    %v687 = vadd.f32 0.0, %v686
    %v688 = vpop.f32.mrb[0].mxu0
    %689 = vmatprep.mubr.f32.mxu0 0.0
    %690 = vmatmul.mubr.f32.gmra.mrb[0].mxu0 %v330
    %v691 = vpop.f32.mrb[0].mxu0
    %v692 = vadd.f32 0.0, %v691
    %v693 = vpop.f32.mrb[0].mxu0
    %694 = vmatprep.mubr.f32.mxu0 0.0
    %695 = vmatmul.mubr.f32.gmra.mrb[0].mxu0 %v333
    %v696 = vpop.f32.mrb[0].mxu0
    %v697 = vadd.f32 0.0, %v696
    %v698 = vpop.f32.mrb[0].mxu0
    %699 = vmatprep.mubr.f32.mxu0 0.0
    %700 = vmatmul.mubr.f32.gmra.mrb[0].mxu0 %v336
    %v701 = vpop.f32.mrb[0].mxu0
    %v702 = vadd.f32 0.0, %v701
    %v703 = vpop.f32.mrb[0].mxu0
    %704 = vmatprep.mubr.f32.mxu0 0.0
    %705 = vmatmul.mubr.f32.gmra.mrb[0].mxu0 %v339
    %v706 = vpop.f32.mrb[0].mxu0
    %v707 = vadd.f32 0.0, %v706
    %v708 = vpop.f32.mrb[0].mxu0
    %709 = vmatprep.mubr.f32.mxu0 0.0
    %710 = vmatmul.mubr.f32.gmra.mrb[0].mxu0 %v342
    %v711 = vpop.f32.mrb[0].mxu0
    %v712 = vadd.f32 0.0, %v711
    %v713 = vpop.f32.mrb[0].mxu0
    %714 = vmatprep.mubr.f32.mxu0 0.0
    %715 = vmatmul.mubr.f32.gmra.mrb[0].mxu0 %v345
    %v716 = vpop.f32.mrb[0].mxu0
    %v717 = vadd.f32 0.0, %v716
    %v718 = vpop.f32.mrb[0].mxu0
    %719 = vmatprep.mubr.f32.mxu0 0.0
    %720 = vmatmul.mubr.f32.gmra.mrb[0].mxu0 %v348
    %v721 = vpop.f32.mrb[0].mxu0
    %v722 = vadd.f32 0.0, %v721
    %v723 = vpop.f32.mrb[0].mxu0
    %724 = vmatprep.mubr.f32.mxu0 0.0
    %725 = vmatmul.mubr.f32.gmra.mrb[0].mxu0 %v351
    %v726 = vpop.f32.mrb[0].mxu0
    %v727 = vadd.f32 0.0, %v726
    %v728 = vpop.f32.mrb[0].mxu0
    %729 = vmatprep.mubr.f32.mxu0 0.0
    %730 = vmatmul.mubr.f32.gmra.mrb[0].mxu0 %v354
    %v731 = vpop.f32.mrb[0].mxu0
    %v732 = vadd.f32 0.0, %v731
    %v733 = vpop.f32.mrb[0].mxu0
    %734 = vmatprep.mubr.f32.mxu0 0.0
    %735 = vmatmul.mubr.f32.gmra.mrb[0].mxu0 %v357
    %v736 = vpop.f32.mrb[0].mxu0
    %v737 = vadd.f32 0.0, %v736
    %v738 = vpop.f32.mrb[0].mxu0
    %739 = vmatprep.mubr.f32.mxu0 0.0
    %740 = vmatmul.mubr.f32.gmra.mrb[0].mxu0 %v360
    %v741 = vpop.f32.mrb[0].mxu0
    %v742 = vadd.f32 0.0, %v741
    %v743 = vpop.f32.mrb[0].mxu0
    %744 = vmatprep.mubr.f32.mxu0 0.0
    %745 = vmatmul.mubr.f32.gmra.mrb[0].mxu0 %v363
    %v746 = vpop.f32.mrb[0].mxu0
    %v747 = vadd.f32 0.0, %v746
    %v748 = vpop.f32.mrb[0].mxu0
    %749 = vmatprep.mubr.f32.mxu0 0.0
    %750 = vmatmul.mubr.f32.gmra.mrb[0].mxu0 %v366
    %v751 = vpop.f32.mrb[0].mxu0
    %v752 = vadd.f32 0.0, %v751
    %v753 = vpop.f32.mrb[0].mxu0
    %754 = vmatprep.mubr.f32.mxu0 0.0
    %755 = vmatmul.mubr.f32.gmra.mrb[0].mxu0 %v369
    %v756 = vpop.f32.mrb[0].mxu0
    %v757 = vadd.f32 0.0, %v756
    %v758 = vpop.f32.mrb[0].mxu0
    %759 = vdwg.mxu0
    %v761 = vsel %vm178, %v112, 0
    %v764 = vsel %vm178, %v113, 0
    %v767 = vsel %vm178, %v114, 0
    %v770 = vsel %vm178, %v115, 0
    %v773 = vsel %vm178, %v116, 0
    %v776 = vsel %vm178, %v117, 0
    %v779 = vsel %vm178, %v118, 0
    %v782 = vsel %vm178, %v119, 0
    %v785 = vsel %vm178, %v120, 0
    %v788 = vsel %vm178, %v121, 0
    %v791 = vsel %vm178, %v122, 0
    %v794 = vsel %vm178, %v123, 0
    %v797 = vsel %vm178, %v124, 0
    %v800 = vsel %vm178, %v125, 0
    %v803 = vsel %vm178, %v126, 0
    %v806 = vsel %vm178, %v127, 0
    %v809 = vsel %vm178, %v128, 0
    %v812 = vsel %vm178, %v129, 0
    %v815 = vsel %vm178, %v130, 0
    %v818 = vsel %vm178, %v131, 0
    %v821 = vsel %vm178, %v132, 0
    %v824 = vsel %vm178, %v133, 0
    %v827 = vsel %vm178, %v134, 0
    %v830 = vsel %vm178, %v135, 0
    %v833 = vsel %vm178, %v136, 0
    %v836 = vsel %vm178, %v137, 0
    %v839 = vsel %vm178, %v138, 0
    %v842 = vsel %vm178, %v139, 0
    %v845 = vsel %vm178, %v140, 0
    %v848 = vsel %vm178, %v141, 0
    %v851 = vsel %vm178, %v142, 0
    %v854 = vsel %vm178, %v143, 0
    %v857 = vsel %vm178, %v144, 0
    %v860 = vsel %vm178, %v145, 0
    %v863 = vsel %vm178, %v146, 0
    %v866 = vsel %vm178, %v147, 0
    %v869 = vsel %vm178, %v148, 0
    %v872 = vsel %vm178, %v149, 0
    %v875 = vsel %vm178, %v150, 0
    %v878 = vsel %vm178, %v151, 0
    %v881 = vsel %vm178, %v152, 0
    %v884 = vsel %vm178, %v153, 0
    %v887 = vsel %vm178, %v154, 0
    %v890 = vsel %vm178, %v155, 0
    %v893 = vsel %vm178, %v156, 0
    %v896 = vsel %vm178, %v157, 0
    %v899 = vsel %vm178, %v158, 0
    %v902 = vsel %vm178, %v159, 0
    %v905 = vsel %vm178, %v160, 0
    %v908 = vsel %vm178, %v161, 0
    %v911 = vsel %vm178, %v162, 0
    %v914 = vsel %vm178, %v163, 0
    %v917 = vsel %vm178, %v164, 0
    %v920 = vsel %vm178, %v165, 0
    %v923 = vsel %vm178, %v166, 0
    %v926 = vsel %vm178, %v167, 0
    %v929 = vsel %vm178, %v168, 0
    %v932 = vsel %vm178, %v169, 0
    %v935 = vsel %vm178, %v170, 0
    %v938 = vsel %vm178, %v171, 0
    %v941 = vsel %vm178, %v172, 0
    %v944 = vsel %vm178, %v173, 0
    %v947 = vsel %vm178, %v174, 0
    %v950 = vsel %vm178, %v175, 0
    %v953 = vsel %vm371, %v176, 0
    %955 = vmatprep.subr.mxu0 0.0
    %956 = vmatpush1.msra.mxu0 %v953
    %957 = vmatprep.subr.mxu0 0.0
    %958 = vmatpush1.msra.mxu0 0.0
    %959 = vmatprep.subr.mxu0 0.0
    %960 = vmatpush1.msra.mxu0 0.0
    %961 = vmatprep.subr.mxu0 0.0
    %962 = vmatpush1.msra.mxu0 0.0
    %963 = vmatprep.subr.mxu0 0.0
    %964 = vmatpush1.msra.mxu0 0.0
    %965 = vmatprep.subr.mxu0 0.0
    %966 = vmatpush1.msra.mxu0 0.0
    %967 = vmatprep.subr.mxu0 0.0
    %968 = vmatpush1.msra.mxu0 0.0
    %969 = vmatprep.subr.mxu0 0.0
    %970 = vmatpush1.msra.mxu0 0.0
    %971 = vmatprep.subr.mxu0 0.0
    %972 = vmatpush1.msra.mxu0 0.0
    %973 = vmatprep.subr.mxu0 0.0
    %974 = vmatpush1.msra.mxu0 0.0
    %975 = vmatprep.subr.mxu0 0.0
    %976 = vmatpush1.msra.mxu0 0.0
    %977 = vmatprep.subr.mxu0 0.0
    %978 = vmatpush1.msra.mxu0 0.0
    %979 = vmatprep.subr.mxu0 0.0
    %980 = vmatpush1.msra.mxu0 0.0
    %981 = vmatprep.subr.mxu0 0.0
    %982 = vmatpush1.msra.mxu0 0.0
    %983 = vmatprep.subr.mxu0 0.0
    %984 = vmatpush1.msra.mxu0 0.0
    %985 = vmatprep.subr.mxu0 0.0
    %986 = vmatpush1.msra.mxu0 0.0
    %987 = vmatprep.subr.mxu0 0.0
    %988 = vmatpush1.msra.mxu0 0.0
    %989 = vmatprep.subr.mxu0 0.0
    %990 = vmatpush1.msra.mxu0 0.0
    %991 = vmatprep.subr.mxu0 0.0
    %992 = vmatpush1.msra.mxu0 0.0
    %993 = vmatprep.subr.mxu0 0.0
    %994 = vmatpush1.msra.mxu0 0.0
    %995 = vmatprep.subr.mxu0 0.0
    %996 = vmatpush1.msra.mxu0 0.0
    %997 = vmatprep.subr.mxu0 0.0
    %998 = vmatpush1.msra.mxu0 0.0
    %999 = vmatprep.subr.mxu0 0.0
    %1000 = vmatpush1.msra.mxu0 0.0
    %1001 = vmatprep.subr.mxu0 0.0
    %1002 = vmatpush1.msra.mxu0 0.0
    %1003 = vmatprep.subr.mxu0 0.0
    %1004 = vmatpush1.msra.mxu0 0.0
    %1005 = vmatprep.subr.mxu0 0.0
    %1006 = vmatpush1.msra.mxu0 0.0
    %1007 = vmatprep.subr.mxu0 0.0
    %1008 = vmatpush1.msra.mxu0 0.0
    %1009 = vmatprep.subr.mxu0 0.0
    %1010 = vmatpush1.msra.mxu0 0.0
    %1011 = vmatprep.subr.mxu0 0.0
    %1012 = vmatpush1.msra.mxu0 0.0
    %1013 = vmatprep.subr.mxu0 0.0
    %1014 = vmatpush1.msra.mxu0 0.0
    %1015 = vmatprep.subr.mxu0 0.0
    %1016 = vmatpush1.msra.mxu0 0.0
    %1017 = vmatprep.subr.mxu0 0.0
    %1018 = vmatpush1.msra.mxu0 0.0
    %1019 = vmatprep.mubr.f32.mxu0 0.0
    %1020 = vmatmul.mubr.f32.gmra.mrb[0].mxu0 %v761
    %v1021 = vpop.f32.mrb[0].mxu0
    %v1022 = vadd.f32 %v442, %v1021
    %v1023 = vpop.f32.mrb[0].mxu0
    %1024 = vmatprep.mubr.f32.mxu0 0.0
    %1025 = vmatmul.mubr.f32.gmra.mrb[0].mxu0 %v764
    %v1026 = vpop.f32.mrb[0].mxu0
    %v1027 = vadd.f32 %v447, %v1026
    %v1028 = vpop.f32.mrb[0].mxu0
    %1029 = vmatprep.mubr.f32.mxu0 0.0
    %1030 = vmatmul.mubr.f32.gmra.mrb[0].mxu0 %v767
    %v1031 = vpop.f32.mrb[0].mxu0
    %v1032 = vadd.f32 %v452, %v1031
    %v1033 = vpop.f32.mrb[0].mxu0
    %1034 = vmatprep.mubr.f32.mxu0 0.0
    %1035 = vmatmul.mubr.f32.gmra.mrb[0].mxu0 %v770
    %v1036 = vpop.f32.mrb[0].mxu0
    %v1037 = vadd.f32 %v457, %v1036
    %v1038 = vpop.f32.mrb[0].mxu0
    %1039 = vmatprep.mubr.f32.mxu0 0.0
    %1040 = vmatmul.mubr.f32.gmra.mrb[0].mxu0 %v773
    %v1041 = vpop.f32.mrb[0].mxu0
    %v1042 = vadd.f32 %v462, %v1041
    %v1043 = vpop.f32.mrb[0].mxu0
    %1044 = vmatprep.mubr.f32.mxu0 0.0
    %1045 = vmatmul.mubr.f32.gmra.mrb[0].mxu0 %v776
    %v1046 = vpop.f32.mrb[0].mxu0
    %v1047 = vadd.f32 %v467, %v1046
    %v1048 = vpop.f32.mrb[0].mxu0
    %1049 = vmatprep.mubr.f32.mxu0 0.0
    %1050 = vmatmul.mubr.f32.gmra.mrb[0].mxu0 %v779
    %v1051 = vpop.f32.mrb[0].mxu0
    %v1052 = vadd.f32 %v472, %v1051
    %v1053 = vpop.f32.mrb[0].mxu0
    %1054 = vmatprep.mubr.f32.mxu0 0.0
    %1055 = vmatmul.mubr.f32.gmra.mrb[0].mxu0 %v782
    %v1056 = vpop.f32.mrb[0].mxu0
    %v1057 = vadd.f32 %v477, %v1056
    %v1058 = vpop.f32.mrb[0].mxu0
    %1059 = vmatprep.mubr.f32.mxu0 0.0
    %1060 = vmatmul.mubr.f32.gmra.mrb[0].mxu0 %v785
    %v1061 = vpop.f32.mrb[0].mxu0
    %v1062 = vadd.f32 %v482, %v1061
    %v1063 = vpop.f32.mrb[0].mxu0
    %1064 = vmatprep.mubr.f32.mxu0 0.0
    %1065 = vmatmul.mubr.f32.gmra.mrb[0].mxu0 %v788
    %v1066 = vpop.f32.mrb[0].mxu0
    %v1067 = vadd.f32 %v487, %v1066
    %v1068 = vpop.f32.mrb[0].mxu0
    %1069 = vmatprep.mubr.f32.mxu0 0.0
    %1070 = vmatmul.mubr.f32.gmra.mrb[0].mxu0 %v791
    %v1071 = vpop.f32.mrb[0].mxu0
    %v1072 = vadd.f32 %v492, %v1071
    %v1073 = vpop.f32.mrb[0].mxu0
    %1074 = vmatprep.mubr.f32.mxu0 0.0
    %1075 = vmatmul.mubr.f32.gmra.mrb[0].mxu0 %v794
    %v1076 = vpop.f32.mrb[0].mxu0
    %v1077 = vadd.f32 %v497, %v1076
    %v1078 = vpop.f32.mrb[0].mxu0
    %1079 = vmatprep.mubr.f32.mxu0 0.0
    %1080 = vmatmul.mubr.f32.gmra.mrb[0].mxu0 %v797
    %v1081 = vpop.f32.mrb[0].mxu0
    %v1082 = vadd.f32 %v502, %v1081
    %v1083 = vpop.f32.mrb[0].mxu0
    %1084 = vmatprep.mubr.f32.mxu0 0.0
    %1085 = vmatmul.mubr.f32.gmra.mrb[0].mxu0 %v800
    %v1086 = vpop.f32.mrb[0].mxu0
    %v1087 = vadd.f32 %v507, %v1086
    %v1088 = vpop.f32.mrb[0].mxu0
    %1089 = vmatprep.mubr.f32.mxu0 0.0
    %1090 = vmatmul.mubr.f32.gmra.mrb[0].mxu0 %v803
    %v1091 = vpop.f32.mrb[0].mxu0
    %v1092 = vadd.f32 %v512, %v1091
    %v1093 = vpop.f32.mrb[0].mxu0
    %1094 = vmatprep.mubr.f32.mxu0 0.0
    %1095 = vmatmul.mubr.f32.gmra.mrb[0].mxu0 %v806
    %v1096 = vpop.f32.mrb[0].mxu0
    %v1097 = vadd.f32 %v517, %v1096
    %v1098 = vpop.f32.mrb[0].mxu0
    %1099 = vmatprep.mubr.f32.mxu0 0.0
    %1100 = vmatmul.mubr.f32.gmra.mrb[0].mxu0 %v809
    %v1101 = vpop.f32.mrb[0].mxu0
    %v1102 = vadd.f32 %v522, %v1101
    %v1103 = vpop.f32.mrb[0].mxu0
    %1104 = vmatprep.mubr.f32.mxu0 0.0
    %1105 = vmatmul.mubr.f32.gmra.mrb[0].mxu0 %v812
    %v1106 = vpop.f32.mrb[0].mxu0
    %v1107 = vadd.f32 %v527, %v1106
    %v1108 = vpop.f32.mrb[0].mxu0
    %1109 = vmatprep.mubr.f32.mxu0 0.0
    %1110 = vmatmul.mubr.f32.gmra.mrb[0].mxu0 %v815
    %v1111 = vpop.f32.mrb[0].mxu0
    %v1112 = vadd.f32 %v532, %v1111
    %v1113 = vpop.f32.mrb[0].mxu0
    %1114 = vmatprep.mubr.f32.mxu0 0.0
    %1115 = vmatmul.mubr.f32.gmra.mrb[0].mxu0 %v818
    %v1116 = vpop.f32.mrb[0].mxu0
    %v1117 = vadd.f32 %v537, %v1116
    %v1118 = vpop.f32.mrb[0].mxu0
    %1119 = vmatprep.mubr.f32.mxu0 0.0
    %1120 = vmatmul.mubr.f32.gmra.mrb[0].mxu0 %v821
    %v1121 = vpop.f32.mrb[0].mxu0
    %v1122 = vadd.f32 %v542, %v1121
    %v1123 = vpop.f32.mrb[0].mxu0
    %1124 = vmatprep.mubr.f32.mxu0 0.0
    %1125 = vmatmul.mubr.f32.gmra.mrb[0].mxu0 %v824
    %v1126 = vpop.f32.mrb[0].mxu0
    %v1127 = vadd.f32 %v547, %v1126
    %v1128 = vpop.f32.mrb[0].mxu0
    %1129 = vmatprep.mubr.f32.mxu0 0.0
    %1130 = vmatmul.mubr.f32.gmra.mrb[0].mxu0 %v827
    %v1131 = vpop.f32.mrb[0].mxu0
    %v1132 = vadd.f32 %v552, %v1131
    %v1133 = vpop.f32.mrb[0].mxu0
    %1134 = vmatprep.mubr.f32.mxu0 0.0
    %1135 = vmatmul.mubr.f32.gmra.mrb[0].mxu0 %v830
    %v1136 = vpop.f32.mrb[0].mxu0
    %v1137 = vadd.f32 %v557, %v1136
    %v1138 = vpop.f32.mrb[0].mxu0
    %1139 = vmatprep.mubr.f32.mxu0 0.0
    %1140 = vmatmul.mubr.f32.gmra.mrb[0].mxu0 %v833
    %v1141 = vpop.f32.mrb[0].mxu0
    %v1142 = vadd.f32 %v562, %v1141
    %v1143 = vpop.f32.mrb[0].mxu0
    %1144 = vmatprep.mubr.f32.mxu0 0.0
    %1145 = vmatmul.mubr.f32.gmra.mrb[0].mxu0 %v836
    %v1146 = vpop.f32.mrb[0].mxu0
    %v1147 = vadd.f32 %v567, %v1146
    %v1148 = vpop.f32.mrb[0].mxu0
    %1149 = vmatprep.mubr.f32.mxu0 0.0
    %1150 = vmatmul.mubr.f32.gmra.mrb[0].mxu0 %v839
    %v1151 = vpop.f32.mrb[0].mxu0
    %v1152 = vadd.f32 %v572, %v1151
    %v1153 = vpop.f32.mrb[0].mxu0
    %1154 = vmatprep.mubr.f32.mxu0 0.0
    %1155 = vmatmul.mubr.f32.gmra.mrb[0].mxu0 %v842
    %v1156 = vpop.f32.mrb[0].mxu0
    %v1157 = vadd.f32 %v577, %v1156
    %v1158 = vpop.f32.mrb[0].mxu0
    %1159 = vmatprep.mubr.f32.mxu0 0.0
    %1160 = vmatmul.mubr.f32.gmra.mrb[0].mxu0 %v845
    %v1161 = vpop.f32.mrb[0].mxu0
    %v1162 = vadd.f32 %v582, %v1161
    %v1163 = vpop.f32.mrb[0].mxu0
    %1164 = vmatprep.mubr.f32.mxu0 0.0
    %1165 = vmatmul.mubr.f32.gmra.mrb[0].mxu0 %v848
    %v1166 = vpop.f32.mrb[0].mxu0
    %v1167 = vadd.f32 %v587, %v1166
    %v1168 = vpop.f32.mrb[0].mxu0
    %1169 = vmatprep.mubr.f32.mxu0 0.0
    %1170 = vmatmul.mubr.f32.gmra.mrb[0].mxu0 %v851
    %v1171 = vpop.f32.mrb[0].mxu0
    %v1172 = vadd.f32 %v592, %v1171
    %v1173 = vpop.f32.mrb[0].mxu0
    %1174 = vmatprep.mubr.f32.mxu0 0.0
    %1175 = vmatmul.mubr.f32.gmra.mrb[0].mxu0 %v854
    %v1176 = vpop.f32.mrb[0].mxu0
    %v1177 = vadd.f32 %v597, %v1176
    %v1178 = vpop.f32.mrb[0].mxu0
    %1179 = vmatprep.mubr.f32.mxu0 0.0
    %1180 = vmatmul.mubr.f32.gmra.mrb[0].mxu0 %v857
    %v1181 = vpop.f32.mrb[0].mxu0
    %v1182 = vadd.f32 %v602, %v1181
    %v1183 = vpop.f32.mrb[0].mxu0
    %1184 = vmatprep.mubr.f32.mxu0 0.0
    %1185 = vmatmul.mubr.f32.gmra.mrb[0].mxu0 %v860
    %v1186 = vpop.f32.mrb[0].mxu0
    %v1187 = vadd.f32 %v607, %v1186
    %v1188 = vpop.f32.mrb[0].mxu0
    %1189 = vmatprep.mubr.f32.mxu0 0.0
    %1190 = vmatmul.mubr.f32.gmra.mrb[0].mxu0 %v863
    %v1191 = vpop.f32.mrb[0].mxu0
    %v1192 = vadd.f32 %v612, %v1191
    %v1193 = vpop.f32.mrb[0].mxu0
    %1194 = vmatprep.mubr.f32.mxu0 0.0
    %1195 = vmatmul.mubr.f32.gmra.mrb[0].mxu0 %v866
    %v1196 = vpop.f32.mrb[0].mxu0
    %v1197 = vadd.f32 %v617, %v1196
    %v1198 = vpop.f32.mrb[0].mxu0
    %1199 = vmatprep.mubr.f32.mxu0 0.0
    %1200 = vmatmul.mubr.f32.gmra.mrb[0].mxu0 %v869
    %v1201 = vpop.f32.mrb[0].mxu0
    %v1202 = vadd.f32 %v622, %v1201
    %v1203 = vpop.f32.mrb[0].mxu0
    %1204 = vmatprep.mubr.f32.mxu0 0.0
    %1205 = vmatmul.mubr.f32.gmra.mrb[0].mxu0 %v872
    %v1206 = vpop.f32.mrb[0].mxu0
    %v1207 = vadd.f32 %v627, %v1206
    %v1208 = vpop.f32.mrb[0].mxu0
    %1209 = vmatprep.mubr.f32.mxu0 0.0
    %1210 = vmatmul.mubr.f32.gmra.mrb[0].mxu0 %v875
    %v1211 = vpop.f32.mrb[0].mxu0
    %v1212 = vadd.f32 %v632, %v1211
    %v1213 = vpop.f32.mrb[0].mxu0
    %1214 = vmatprep.mubr.f32.mxu0 0.0
    %1215 = vmatmul.mubr.f32.gmra.mrb[0].mxu0 %v878
    %v1216 = vpop.f32.mrb[0].mxu0
    %v1217 = vadd.f32 %v637, %v1216
    %v1218 = vpop.f32.mrb[0].mxu0
    %1219 = vmatprep.mubr.f32.mxu0 0.0
    %1220 = vmatmul.mubr.f32.gmra.mrb[0].mxu0 %v881
    %v1221 = vpop.f32.mrb[0].mxu0
    %v1222 = vadd.f32 %v642, %v1221
    %v1223 = vpop.f32.mrb[0].mxu0
    %1224 = vmatprep.mubr.f32.mxu0 0.0
    %1225 = vmatmul.mubr.f32.gmra.mrb[0].mxu0 %v884
    %v1226 = vpop.f32.mrb[0].mxu0
    %v1227 = vadd.f32 %v647, %v1226
    %v1228 = vpop.f32.mrb[0].mxu0
    %1229 = vmatprep.mubr.f32.mxu0 0.0
    %1230 = vmatmul.mubr.f32.gmra.mrb[0].mxu0 %v887
    %v1231 = vpop.f32.mrb[0].mxu0
    %v1232 = vadd.f32 %v652, %v1231
    %v1233 = vpop.f32.mrb[0].mxu0
    %1234 = vmatprep.mubr.f32.mxu0 0.0
    %1235 = vmatmul.mubr.f32.gmra.mrb[0].mxu0 %v890
    %v1236 = vpop.f32.mrb[0].mxu0
    %v1237 = vadd.f32 %v657, %v1236
    %v1238 = vpop.f32.mrb[0].mxu0
    %1239 = vmatprep.mubr.f32.mxu0 0.0
    %1240 = vmatmul.mubr.f32.gmra.mrb[0].mxu0 %v893
    %v1241 = vpop.f32.mrb[0].mxu0
    %v1242 = vadd.f32 %v662, %v1241
    %v1243 = vpop.f32.mrb[0].mxu0
    %1244 = vmatprep.mubr.f32.mxu0 0.0
    %1245 = vmatmul.mubr.f32.gmra.mrb[0].mxu0 %v896
    %v1246 = vpop.f32.mrb[0].mxu0
    %v1247 = vadd.f32 %v667, %v1246
    %v1248 = vpop.f32.mrb[0].mxu0
    %1249 = vmatprep.mubr.f32.mxu0 0.0
    %1250 = vmatmul.mubr.f32.gmra.mrb[0].mxu0 %v899
    %v1251 = vpop.f32.mrb[0].mxu0
    %v1252 = vadd.f32 %v672, %v1251
    %v1253 = vpop.f32.mrb[0].mxu0
    %1254 = vmatprep.mubr.f32.mxu0 0.0
    %1255 = vmatmul.mubr.f32.gmra.mrb[0].mxu0 %v902
    %v1256 = vpop.f32.mrb[0].mxu0
    %v1257 = vadd.f32 %v677, %v1256
    %v1258 = vpop.f32.mrb[0].mxu0
    %1259 = vmatprep.mubr.f32.mxu0 0.0
    %1260 = vmatmul.mubr.f32.gmra.mrb[0].mxu0 %v905
    %v1261 = vpop.f32.mrb[0].mxu0
    %v1262 = vadd.f32 %v682, %v1261
    %v1263 = vpop.f32.mrb[0].mxu0
    %1264 = vmatprep.mubr.f32.mxu0 0.0
    %1265 = vmatmul.mubr.f32.gmra.mrb[0].mxu0 %v908
    %v1266 = vpop.f32.mrb[0].mxu0
    %v1267 = vadd.f32 %v687, %v1266
    %v1268 = vpop.f32.mrb[0].mxu0
    %1269 = vmatprep.mubr.f32.mxu0 0.0
    %1270 = vmatmul.mubr.f32.gmra.mrb[0].mxu0 %v911
    %v1271 = vpop.f32.mrb[0].mxu0
    %v1272 = vadd.f32 %v692, %v1271
    %v1273 = vpop.f32.mrb[0].mxu0
    %1274 = vmatprep.mubr.f32.mxu0 0.0
    %1275 = vmatmul.mubr.f32.gmra.mrb[0].mxu0 %v914
    %v1276 = vpop.f32.mrb[0].mxu0
    %v1277 = vadd.f32 %v697, %v1276
    %v1278 = vpop.f32.mrb[0].mxu0
    %1279 = vmatprep.mubr.f32.mxu0 0.0
    %1280 = vmatmul.mubr.f32.gmra.mrb[0].mxu0 %v917
    %v1281 = vpop.f32.mrb[0].mxu0
    %v1282 = vadd.f32 %v702, %v1281
    %v1283 = vpop.f32.mrb[0].mxu0
    %1284 = vmatprep.mubr.f32.mxu0 0.0
    %1285 = vmatmul.mubr.f32.gmra.mrb[0].mxu0 %v920
    %v1286 = vpop.f32.mrb[0].mxu0
    %v1287 = vadd.f32 %v707, %v1286
    %v1288 = vpop.f32.mrb[0].mxu0
    %1289 = vmatprep.mubr.f32.mxu0 0.0
    %1290 = vmatmul.mubr.f32.gmra.mrb[0].mxu0 %v923
    %v1291 = vpop.f32.mrb[0].mxu0
    %v1292 = vadd.f32 %v712, %v1291
    %v1293 = vpop.f32.mrb[0].mxu0
    %1294 = vmatprep.mubr.f32.mxu0 0.0
    %1295 = vmatmul.mubr.f32.gmra.mrb[0].mxu0 %v926
    %v1296 = vpop.f32.mrb[0].mxu0
    %v1297 = vadd.f32 %v717, %v1296
    %v1298 = vpop.f32.mrb[0].mxu0
    %1299 = vmatprep.mubr.f32.mxu0 0.0
    %1300 = vmatmul.mubr.f32.gmra.mrb[0].mxu0 %v929
    %v1301 = vpop.f32.mrb[0].mxu0
    %v1302 = vadd.f32 %v722, %v1301
    %v1303 = vpop.f32.mrb[0].mxu0
    %1304 = vmatprep.mubr.f32.mxu0 0.0
    %1305 = vmatmul.mubr.f32.gmra.mrb[0].mxu0 %v932
    %v1306 = vpop.f32.mrb[0].mxu0
    %v1307 = vadd.f32 %v727, %v1306
    %v1308 = vpop.f32.mrb[0].mxu0
    %1309 = vmatprep.mubr.f32.mxu0 0.0
    %1310 = vmatmul.mubr.f32.gmra.mrb[0].mxu0 %v935
    %v1311 = vpop.f32.mrb[0].mxu0
    %v1312 = vadd.f32 %v732, %v1311
    %v1313 = vpop.f32.mrb[0].mxu0
    %1314 = vmatprep.mubr.f32.mxu0 0.0
    %1315 = vmatmul.mubr.f32.gmra.mrb[0].mxu0 %v938
    %v1316 = vpop.f32.mrb[0].mxu0
    %v1317 = vadd.f32 %v737, %v1316
    %v1318 = vpop.f32.mrb[0].mxu0
    %1319 = vmatprep.mubr.f32.mxu0 0.0
    %1320 = vmatmul.mubr.f32.gmra.mrb[0].mxu0 %v941
    %v1321 = vpop.f32.mrb[0].mxu0
    %v1322 = vadd.f32 %v742, %v1321
    %v1323 = vpop.f32.mrb[0].mxu0
    %1324 = vmatprep.mubr.f32.mxu0 0.0
    %1325 = vmatmul.mubr.f32.gmra.mrb[0].mxu0 %v944
    %v1326 = vpop.f32.mrb[0].mxu0
    %v1327 = vadd.f32 %v747, %v1326
    %v1328 = vpop.f32.mrb[0].mxu0
    %1329 = vmatprep.mubr.f32.mxu0 0.0
    %1330 = vmatmul.mubr.f32.gmra.mrb[0].mxu0 %v947
    %v1331 = vpop.f32.mrb[0].mxu0
    %v1332 = vadd.f32 %v752, %v1331
    %v1333 = vpop.f32.mrb[0].mxu0
    %1334 = vmatprep.mubr.f32.mxu0 0.0
    %1335 = vmatmul.mubr.f32.gmra.mrb[0].mxu0 %v950
    %v1336 = vpop.f32.mrb[0].mxu0
    %v1337 = vadd.f32 %v757, %v1336
    %v1338 = vpop.f32.mrb[0].mxu0
    %1339 = vdwg.mxu0
    %v1340 = vld [vmem:[%s4] sm:$0x1]
    %v1342 = vlaneseq
    %v1343 = vshrl.u32 %v1342, 7
    %v1344 = vsub.s32 0, %v1343
    %v1345 = vrot.slane %v1340, %v1344
    %v1347 = vadd.f32 %v1022, %v1345
    %v1348 = vadd.f32 %v1027, %v1345
    %v1349 = vadd.f32 %v1032, %v1345
    %v1350 = vadd.f32 %v1037, %v1345
    %v1351 = vadd.f32 %v1042, %v1345
    %v1352 = vadd.f32 %v1047, %v1345
    %v1353 = vadd.f32 %v1052, %v1345
    %v1354 = vadd.f32 %v1057, %v1345
    %v1355 = vadd.f32 %v1062, %v1345
    %v1356 = vadd.f32 %v1067, %v1345
    %v1357 = vadd.f32 %v1072, %v1345
    %v1358 = vadd.f32 %v1077, %v1345
    %v1359 = vadd.f32 %v1082, %v1345
    %v1360 = vadd.f32 %v1087, %v1345
    %v1361 = vadd.f32 %v1092, %v1345
    %v1362 = vadd.f32 %v1097, %v1345
    %v1363 = vadd.f32 %v1102, %v1345
    %v1364 = vadd.f32 %v1107, %v1345
    %v1365 = vadd.f32 %v1112, %v1345
    %v1366 = vadd.f32 %v1117, %v1345
    %v1367 = vadd.f32 %v1122, %v1345
    %v1368 = vadd.f32 %v1127, %v1345
    %v1369 = vadd.f32 %v1132, %v1345
    %v1370 = vadd.f32 %v1137, %v1345
    %v1371 = vadd.f32 %v1142, %v1345
    %v1372 = vadd.f32 %v1147, %v1345
    %v1373 = vadd.f32 %v1152, %v1345
    %v1374 = vadd.f32 %v1157, %v1345
    %v1375 = vadd.f32 %v1162, %v1345
    %v1376 = vadd.f32 %v1167, %v1345
    %v1377 = vadd.f32 %v1172, %v1345
    %v1378 = vadd.f32 %v1177, %v1345
    %v1379 = vadd.f32 %v1182, %v1345
    %v1380 = vadd.f32 %v1187, %v1345
    %v1381 = vadd.f32 %v1192, %v1345
    %v1382 = vadd.f32 %v1197, %v1345
    %v1383 = vadd.f32 %v1202, %v1345
    %v1384 = vadd.f32 %v1207, %v1345
    %v1385 = vadd.f32 %v1212, %v1345
    %v1386 = vadd.f32 %v1217, %v1345
    %v1387 = vadd.f32 %v1222, %v1345
    %v1388 = vadd.f32 %v1227, %v1345
    %v1389 = vadd.f32 %v1232, %v1345
    %v1390 = vadd.f32 %v1237, %v1345
    %v1391 = vadd.f32 %v1242, %v1345
    %v1392 = vadd.f32 %v1247, %v1345
    %v1393 = vadd.f32 %v1252, %v1345
    %v1394 = vadd.f32 %v1257, %v1345
    %v1395 = vadd.f32 %v1262, %v1345
    %v1396 = vadd.f32 %v1267, %v1345
    %v1397 = vadd.f32 %v1272, %v1345
    %v1398 = vadd.f32 %v1277, %v1345
    %v1399 = vadd.f32 %v1282, %v1345
    %v1400 = vadd.f32 %v1287, %v1345
    %v1401 = vadd.f32 %v1292, %v1345
    %v1402 = vadd.f32 %v1297, %v1345
    %v1403 = vadd.f32 %v1302, %v1345
    %v1404 = vadd.f32 %v1307, %v1345
    %v1405 = vadd.f32 %v1312, %v1345
    %v1406 = vadd.f32 %v1317, %v1345
    %v1407 = vadd.f32 %v1322, %v1345
    %v1408 = vadd.f32 %v1327, %v1345
    %v1409 = vadd.f32 %v1332, %v1345
    %v1410 = vadd.f32 %v1337, %v1345
    %v1411 = vxor.u32 %v1347, 2147483648
    %v1412 = vxor.u32 %v1348, 2147483648
    %v1413 = vxor.u32 %v1349, 2147483648
    %v1414 = vxor.u32 %v1350, 2147483648
    %v1415 = vxor.u32 %v1351, 2147483648
    %v1416 = vxor.u32 %v1352, 2147483648
    %v1417 = vxor.u32 %v1353, 2147483648
    %v1418 = vxor.u32 %v1354, 2147483648
    %v1419 = vxor.u32 %v1355, 2147483648
    %v1420 = vxor.u32 %v1356, 2147483648
    %v1421 = vxor.u32 %v1357, 2147483648
    %v1422 = vxor.u32 %v1358, 2147483648
    %v1423 = vxor.u32 %v1359, 2147483648
    %v1424 = vxor.u32 %v1360, 2147483648
    %v1425 = vxor.u32 %v1361, 2147483648
    %v1426 = vxor.u32 %v1362, 2147483648
    %v1427 = vxor.u32 %v1363, 2147483648
    %v1428 = vxor.u32 %v1364, 2147483648
    %v1429 = vxor.u32 %v1365, 2147483648
    %v1430 = vxor.u32 %v1366, 2147483648
    %v1431 = vxor.u32 %v1367, 2147483648
    %v1432 = vxor.u32 %v1368, 2147483648
    %v1433 = vxor.u32 %v1369, 2147483648
    %v1434 = vxor.u32 %v1370, 2147483648
    %v1435 = vxor.u32 %v1371, 2147483648
    %v1436 = vxor.u32 %v1372, 2147483648
    %v1437 = vxor.u32 %v1373, 2147483648
    %v1438 = vxor.u32 %v1374, 2147483648
    %v1439 = vxor.u32 %v1375, 2147483648
    %v1440 = vxor.u32 %v1376, 2147483648
    %v1441 = vxor.u32 %v1377, 2147483648
    %v1442 = vxor.u32 %v1378, 2147483648
    %v1443 = vxor.u32 %v1379, 2147483648
    %v1444 = vxor.u32 %v1380, 2147483648
    %v1445 = vxor.u32 %v1381, 2147483648
    %v1446 = vxor.u32 %v1382, 2147483648
    %v1447 = vxor.u32 %v1383, 2147483648
    %v1448 = vxor.u32 %v1384, 2147483648
    %v1449 = vxor.u32 %v1385, 2147483648
    %v1450 = vxor.u32 %v1386, 2147483648
    %v1451 = vxor.u32 %v1387, 2147483648
    %v1452 = vxor.u32 %v1388, 2147483648
    %v1453 = vxor.u32 %v1389, 2147483648
    %v1454 = vxor.u32 %v1390, 2147483648
    %v1455 = vxor.u32 %v1391, 2147483648
    %v1456 = vxor.u32 %v1392, 2147483648
    %v1457 = vxor.u32 %v1393, 2147483648
    %v1458 = vxor.u32 %v1394, 2147483648
    %v1459 = vxor.u32 %v1395, 2147483648
    %v1460 = vxor.u32 %v1396, 2147483648
    %v1461 = vxor.u32 %v1397, 2147483648
    %v1462 = vxor.u32 %v1398, 2147483648
    %v1463 = vxor.u32 %v1399, 2147483648
    %v1464 = vxor.u32 %v1400, 2147483648
    %v1465 = vxor.u32 %v1401, 2147483648
    %v1466 = vxor.u32 %v1402, 2147483648
    %v1467 = vxor.u32 %v1403, 2147483648
    %v1468 = vxor.u32 %v1404, 2147483648
    %v1469 = vxor.u32 %v1405, 2147483648
    %v1470 = vxor.u32 %v1406, 2147483648
    %v1471 = vxor.u32 %v1407, 2147483648
    %v1472 = vxor.u32 %v1408, 2147483648
    %v1473 = vxor.u32 %v1409, 2147483648
    %v1474 = vxor.u32 %v1410, 2147483648
    %v1475 = vmul.f32 %v1411, 1.442695
    %v1476 = vpow.pop %v1475
    %v1477 = vmul.f32 %v1412, 1.442695
    %v1478 = vpow.pop %v1477
    %v1479 = vmul.f32 %v1413, 1.442695
    %v1480 = vpow.pop %v1479
    %v1481 = vmul.f32 %v1414, 1.442695
    %v1482 = vpow.pop %v1481
    %v1483 = vmul.f32 %v1415, 1.442695
    %v1484 = vpow.pop %v1483
    %v1485 = vmul.f32 %v1416, 1.442695
    %v1486 = vpow.pop %v1485
    %v1487 = vmul.f32 %v1417, 1.442695
    %v1488 = vpow.pop %v1487
    %v1489 = vmul.f32 %v1418, 1.442695
    %v1490 = vpow.pop %v1489
    %v1491 = vmul.f32 %v1419, 1.442695
    %v1492 = vpow.pop %v1491
    %v1493 = vmul.f32 %v1420, 1.442695
    %v1494 = vpow.pop %v1493
    %v1495 = vmul.f32 %v1421, 1.442695
    %v1496 = vpow.pop %v1495
    %v1497 = vmul.f32 %v1422, 1.442695
    %v1498 = vpow.pop %v1497
    %v1499 = vmul.f32 %v1423, 1.442695
    %v1500 = vpow.pop %v1499
    %v1501 = vmul.f32 %v1424, 1.442695
    %v1502 = vpow.pop %v1501
    %v1503 = vmul.f32 %v1425, 1.442695
    %v1504 = vpow.pop %v1503
    %v1505 = vmul.f32 %v1426, 1.442695
    %v1506 = vpow.pop %v1505
    %v1507 = vmul.f32 %v1427, 1.442695
    %v1508 = vpow.pop %v1507
    %v1509 = vmul.f32 %v1428, 1.442695
    %v1510 = vpow.pop %v1509
    %v1511 = vmul.f32 %v1429, 1.442695
    %v1512 = vpow.pop %v1511
    %v1513 = vmul.f32 %v1430, 1.442695
    %v1514 = vpow.pop %v1513
    %v1515 = vmul.f32 %v1431, 1.442695
    %v1516 = vpow.pop %v1515
    %v1517 = vmul.f32 %v1432, 1.442695
    %v1518 = vpow.pop %v1517
    %v1519 = vmul.f32 %v1433, 1.442695
    %v1520 = vpow.pop %v1519
    %v1521 = vmul.f32 %v1434, 1.442695
    %v1522 = vpow.pop %v1521
    %v1523 = vmul.f32 %v1435, 1.442695
    %v1524 = vpow.pop %v1523
    %v1525 = vmul.f32 %v1436, 1.442695
    %v1526 = vpow.pop %v1525
    %v1527 = vmul.f32 %v1437, 1.442695
    %v1528 = vpow.pop %v1527
    %v1529 = vmul.f32 %v1438, 1.442695
    %v1530 = vpow.pop %v1529
    %v1531 = vmul.f32 %v1439, 1.442695
    %v1532 = vpow.pop %v1531
    %v1533 = vmul.f32 %v1440, 1.442695
    %v1534 = vpow.pop %v1533
    %v1535 = vmul.f32 %v1441, 1.442695
    %v1536 = vpow.pop %v1535
    %v1537 = vmul.f32 %v1442, 1.442695
    %v1538 = vpow.pop %v1537
    %v1539 = vmul.f32 %v1443, 1.442695
    %v1540 = vpow.pop %v1539
    %v1541 = vmul.f32 %v1444, 1.442695
    %v1542 = vpow.pop %v1541
    %v1543 = vmul.f32 %v1445, 1.442695
    %v1544 = vpow.pop %v1543
    %v1545 = vmul.f32 %v1446, 1.442695
    %v1546 = vpow.pop %v1545
    %v1547 = vmul.f32 %v1447, 1.442695
    %v1548 = vpow.pop %v1547
    %v1549 = vmul.f32 %v1448, 1.442695
    %v1550 = vpow.pop %v1549
    %v1551 = vmul.f32 %v1449, 1.442695
    %v1552 = vpow.pop %v1551
    %v1553 = vmul.f32 %v1450, 1.442695
    %v1554 = vpow.pop %v1553
    %v1555 = vmul.f32 %v1451, 1.442695
    %v1556 = vpow.pop %v1555
    %v1557 = vmul.f32 %v1452, 1.442695
    %v1558 = vpow.pop %v1557
    %v1559 = vmul.f32 %v1453, 1.442695
    %v1560 = vpow.pop %v1559
    %v1561 = vmul.f32 %v1454, 1.442695
    %v1562 = vpow.pop %v1561
    %v1563 = vmul.f32 %v1455, 1.442695
    %v1564 = vpow.pop %v1563
    %v1565 = vmul.f32 %v1456, 1.442695
    %v1566 = vpow.pop %v1565
    %v1567 = vmul.f32 %v1457, 1.442695
    %v1568 = vpow.pop %v1567
    %v1569 = vmul.f32 %v1458, 1.442695
    %v1570 = vpow.pop %v1569
    %v1571 = vmul.f32 %v1459, 1.442695
    %v1572 = vpow.pop %v1571
    %v1573 = vmul.f32 %v1460, 1.442695
    %v1574 = vpow.pop %v1573
    %v1575 = vmul.f32 %v1461, 1.442695
    %v1576 = vpow.pop %v1575
    %v1577 = vmul.f32 %v1462, 1.442695
    %v1578 = vpow.pop %v1577
    %v1579 = vmul.f32 %v1463, 1.442695
    %v1580 = vpow.pop %v1579
    %v1581 = vmul.f32 %v1464, 1.442695
    %v1582 = vpow.pop %v1581
    %v1583 = vmul.f32 %v1465, 1.442695
    %v1584 = vpow.pop %v1583
    %v1585 = vmul.f32 %v1466, 1.442695
    %v1586 = vpow.pop %v1585
    %v1587 = vmul.f32 %v1467, 1.442695
    %v1588 = vpow.pop %v1587
    %v1589 = vmul.f32 %v1468, 1.442695
    %v1590 = vpow.pop %v1589
    %v1591 = vmul.f32 %v1469, 1.442695
    %v1592 = vpow.pop %v1591
    %v1593 = vmul.f32 %v1470, 1.442695
    %v1594 = vpow.pop %v1593
    %v1595 = vmul.f32 %v1471, 1.442695
    %v1596 = vpow.pop %v1595
    %v1597 = vmul.f32 %v1472, 1.442695
    %v1598 = vpow.pop %v1597
    %v1599 = vmul.f32 %v1473, 1.442695
    %v1600 = vpow.pop %v1599
    %v1601 = vmul.f32 %v1474, 1.442695
    %v1602 = vpow.pop %v1601
    %v1603 = vadd.f32 %v1476, 1.0
    %v1604 = vadd.f32 %v1478, 1.0
    %v1605 = vadd.f32 %v1480, 1.0
    %v1606 = vadd.f32 %v1482, 1.0
    %v1607 = vadd.f32 %v1484, 1.0
    %v1608 = vadd.f32 %v1486, 1.0
    %v1609 = vadd.f32 %v1488, 1.0
    %v1610 = vadd.f32 %v1490, 1.0
    %v1611 = vadd.f32 %v1492, 1.0
    %v1612 = vadd.f32 %v1494, 1.0
    %v1613 = vadd.f32 %v1496, 1.0
    %v1614 = vadd.f32 %v1498, 1.0
    %v1615 = vadd.f32 %v1500, 1.0
    %v1616 = vadd.f32 %v1502, 1.0
    %v1617 = vadd.f32 %v1504, 1.0
    %v1618 = vadd.f32 %v1506, 1.0
    %v1619 = vadd.f32 %v1508, 1.0
    %v1620 = vadd.f32 %v1510, 1.0
    %v1621 = vadd.f32 %v1512, 1.0
    %v1622 = vadd.f32 %v1514, 1.0
    %v1623 = vadd.f32 %v1516, 1.0
    %v1624 = vadd.f32 %v1518, 1.0
    %v1625 = vadd.f32 %v1520, 1.0
    %v1626 = vadd.f32 %v1522, 1.0
    %v1627 = vadd.f32 %v1524, 1.0
    %v1628 = vadd.f32 %v1526, 1.0
    %v1629 = vadd.f32 %v1528, 1.0
    %v1630 = vadd.f32 %v1530, 1.0
    %v1631 = vadd.f32 %v1532, 1.0
    %v1632 = vadd.f32 %v1534, 1.0
    %v1633 = vadd.f32 %v1536, 1.0
    %v1634 = vadd.f32 %v1538, 1.0
    %v1635 = vadd.f32 %v1540, 1.0
    %v1636 = vadd.f32 %v1542, 1.0
    %v1637 = vadd.f32 %v1544, 1.0
    %v1638 = vadd.f32 %v1546, 1.0
    %v1639 = vadd.f32 %v1548, 1.0
    %v1640 = vadd.f32 %v1550, 1.0
    %v1641 = vadd.f32 %v1552, 1.0
    %v1642 = vadd.f32 %v1554, 1.0
    %v1643 = vadd.f32 %v1556, 1.0
    %v1644 = vadd.f32 %v1558, 1.0
    %v1645 = vadd.f32 %v1560, 1.0
    %v1646 = vadd.f32 %v1562, 1.0
    %v1647 = vadd.f32 %v1564, 1.0
    %v1648 = vadd.f32 %v1566, 1.0
    %v1649 = vadd.f32 %v1568, 1.0
    %v1650 = vadd.f32 %v1570, 1.0
    %v1651 = vadd.f32 %v1572, 1.0
    %v1652 = vadd.f32 %v1574, 1.0
    %v1653 = vadd.f32 %v1576, 1.0
    %v1654 = vadd.f32 %v1578, 1.0
    %v1655 = vadd.f32 %v1580, 1.0
    %v1656 = vadd.f32 %v1582, 1.0
    %v1657 = vadd.f32 %v1584, 1.0
    %v1658 = vadd.f32 %v1586, 1.0
    %v1659 = vadd.f32 %v1588, 1.0
    %v1660 = vadd.f32 %v1590, 1.0
    %v1661 = vadd.f32 %v1592, 1.0
    %v1662 = vadd.f32 %v1594, 1.0
    %v1663 = vadd.f32 %v1596, 1.0
    %v1664 = vadd.f32 %v1598, 1.0
    %v1665 = vadd.f32 %v1600, 1.0
    %v1666 = vadd.f32 %v1602, 1.0
    %v1667 = vrcp.pop %v1603
    %v1668 = vmul.f32 1.0, %v1667
    %v1669 = vrcp.pop %v1604
    %v1670 = vmul.f32 1.0, %v1669
    %v1671 = vrcp.pop %v1605
    %v1672 = vmul.f32 1.0, %v1671
    %v1673 = vrcp.pop %v1606
    %v1674 = vmul.f32 1.0, %v1673
    %v1675 = vrcp.pop %v1607
    %v1676 = vmul.f32 1.0, %v1675
    %v1677 = vrcp.pop %v1608
    %v1678 = vmul.f32 1.0, %v1677
    %v1679 = vrcp.pop %v1609
    %v1680 = vmul.f32 1.0, %v1679
    %v1681 = vrcp.pop %v1610
    %v1682 = vmul.f32 1.0, %v1681
    %v1683 = vrcp.pop %v1611
    %v1684 = vmul.f32 1.0, %v1683
    %v1685 = vrcp.pop %v1612
    %v1686 = vmul.f32 1.0, %v1685
    %v1687 = vrcp.pop %v1613
    %v1688 = vmul.f32 1.0, %v1687
    %v1689 = vrcp.pop %v1614
    %v1690 = vmul.f32 1.0, %v1689
    %v1691 = vrcp.pop %v1615
    %v1692 = vmul.f32 1.0, %v1691
    %v1693 = vrcp.pop %v1616
    %v1694 = vmul.f32 1.0, %v1693
    %v1695 = vrcp.pop %v1617
    %v1696 = vmul.f32 1.0, %v1695
    %v1697 = vrcp.pop %v1618
    %v1698 = vmul.f32 1.0, %v1697
    %v1699 = vrcp.pop %v1619
    %v1700 = vmul.f32 1.0, %v1699
    %v1701 = vrcp.pop %v1620
    %v1702 = vmul.f32 1.0, %v1701
    %v1703 = vrcp.pop %v1621
    %v1704 = vmul.f32 1.0, %v1703
    %v1705 = vrcp.pop %v1622
    %v1706 = vmul.f32 1.0, %v1705
    %v1707 = vrcp.pop %v1623
    %v1708 = vmul.f32 1.0, %v1707
    %v1709 = vrcp.pop %v1624
    %v1710 = vmul.f32 1.0, %v1709
    %v1711 = vrcp.pop %v1625
    %v1712 = vmul.f32 1.0, %v1711
    %v1713 = vrcp.pop %v1626
    %v1714 = vmul.f32 1.0, %v1713
    %v1715 = vrcp.pop %v1627
    %v1716 = vmul.f32 1.0, %v1715
    %v1717 = vrcp.pop %v1628
    %v1718 = vmul.f32 1.0, %v1717
    %v1719 = vrcp.pop %v1629
    %v1720 = vmul.f32 1.0, %v1719
    %v1721 = vrcp.pop %v1630
    %v1722 = vmul.f32 1.0, %v1721
    %v1723 = vrcp.pop %v1631
    %v1724 = vmul.f32 1.0, %v1723
    %v1725 = vrcp.pop %v1632
    %v1726 = vmul.f32 1.0, %v1725
    %v1727 = vrcp.pop %v1633
    %v1728 = vmul.f32 1.0, %v1727
    %v1729 = vrcp.pop %v1634
    %v1730 = vmul.f32 1.0, %v1729
    %v1731 = vrcp.pop %v1635
    %v1732 = vmul.f32 1.0, %v1731
    %v1733 = vrcp.pop %v1636
    %v1734 = vmul.f32 1.0, %v1733
    %v1735 = vrcp.pop %v1637
    %v1736 = vmul.f32 1.0, %v1735
    %v1737 = vrcp.pop %v1638
    %v1738 = vmul.f32 1.0, %v1737
    %v1739 = vrcp.pop %v1639
    %v1740 = vmul.f32 1.0, %v1739
    %v1741 = vrcp.pop %v1640
    %v1742 = vmul.f32 1.0, %v1741
    %v1743 = vrcp.pop %v1641
    %v1744 = vmul.f32 1.0, %v1743
    %v1745 = vrcp.pop %v1642
    %v1746 = vmul.f32 1.0, %v1745
    %v1747 = vrcp.pop %v1643
    %v1748 = vmul.f32 1.0, %v1747
    %v1749 = vrcp.pop %v1644
    %v1750 = vmul.f32 1.0, %v1749
    %v1751 = vrcp.pop %v1645
    %v1752 = vmul.f32 1.0, %v1751
    %v1753 = vrcp.pop %v1646
    %v1754 = vmul.f32 1.0, %v1753
    %v1755 = vrcp.pop %v1647
    %v1756 = vmul.f32 1.0, %v1755
    %v1757 = vrcp.pop %v1648
    %v1758 = vmul.f32 1.0, %v1757
    %v1759 = vrcp.pop %v1649
    %v1760 = vmul.f32 1.0, %v1759
    %v1761 = vrcp.pop %v1650
    %v1762 = vmul.f32 1.0, %v1761
    %v1763 = vrcp.pop %v1651
    %v1764 = vmul.f32 1.0, %v1763
    %v1765 = vrcp.pop %v1652
    %v1766 = vmul.f32 1.0, %v1765
    %v1767 = vrcp.pop %v1653
    %v1768 = vmul.f32 1.0, %v1767
    %v1769 = vrcp.pop %v1654
    %v1770 = vmul.f32 1.0, %v1769
    %v1771 = vrcp.pop %v1655
    %v1772 = vmul.f32 1.0, %v1771
    %v1773 = vrcp.pop %v1656
    %v1774 = vmul.f32 1.0, %v1773
    %v1775 = vrcp.pop %v1657
    %v1776 = vmul.f32 1.0, %v1775
    %v1777 = vrcp.pop %v1658
    %v1778 = vmul.f32 1.0, %v1777
    %v1779 = vrcp.pop %v1659
    %v1780 = vmul.f32 1.0, %v1779
    %v1781 = vrcp.pop %v1660
    %v1782 = vmul.f32 1.0, %v1781
    %v1783 = vrcp.pop %v1661
    %v1784 = vmul.f32 1.0, %v1783
    %v1785 = vrcp.pop %v1662
    %v1786 = vmul.f32 1.0, %v1785
    %v1787 = vrcp.pop %v1663
    %v1788 = vmul.f32 1.0, %v1787
    %v1789 = vrcp.pop %v1664
    %v1790 = vmul.f32 1.0, %v1789
    %v1791 = vrcp.pop %v1665
    %v1792 = vmul.f32 1.0, %v1791
    %v1793 = vrcp.pop %v1666
    %v1794 = vmul.f32 1.0, %v1793
    %v1795 = vmul.f32 %v1347, %v1668
    %v1796 = vmul.f32 %v1348, %v1670
    %v1797 = vmul.f32 %v1349, %v1672
    %v1798 = vmul.f32 %v1350, %v1674
    %v1799 = vmul.f32 %v1351, %v1676
    %v1800 = vmul.f32 %v1352, %v1678
    %v1801 = vmul.f32 %v1353, %v1680
    %v1802 = vmul.f32 %v1354, %v1682
    %v1803 = vmul.f32 %v1355, %v1684
    %v1804 = vmul.f32 %v1356, %v1686
    %v1805 = vmul.f32 %v1357, %v1688
    %v1806 = vmul.f32 %v1358, %v1690
    %v1807 = vmul.f32 %v1359, %v1692
    %v1808 = vmul.f32 %v1360, %v1694
    %v1809 = vmul.f32 %v1361, %v1696
    %v1810 = vmul.f32 %v1362, %v1698
    %v1811 = vmul.f32 %v1363, %v1700
    %v1812 = vmul.f32 %v1364, %v1702
    %v1813 = vmul.f32 %v1365, %v1704
    %v1814 = vmul.f32 %v1366, %v1706
    %v1815 = vmul.f32 %v1367, %v1708
    %v1816 = vmul.f32 %v1368, %v1710
    %v1817 = vmul.f32 %v1369, %v1712
    %v1818 = vmul.f32 %v1370, %v1714
    %v1819 = vmul.f32 %v1371, %v1716
    %v1820 = vmul.f32 %v1372, %v1718
    %v1821 = vmul.f32 %v1373, %v1720
    %v1822 = vmul.f32 %v1374, %v1722
    %v1823 = vmul.f32 %v1375, %v1724
    %v1824 = vmul.f32 %v1376, %v1726
    %v1825 = vmul.f32 %v1377, %v1728
    %v1826 = vmul.f32 %v1378, %v1730
    %v1827 = vmul.f32 %v1379, %v1732
    %v1828 = vmul.f32 %v1380, %v1734
    %v1829 = vmul.f32 %v1381, %v1736
    %v1830 = vmul.f32 %v1382, %v1738
    %v1831 = vmul.f32 %v1383, %v1740
    %v1832 = vmul.f32 %v1384, %v1742
    %v1833 = vmul.f32 %v1385, %v1744
    %v1834 = vmul.f32 %v1386, %v1746
    %v1835 = vmul.f32 %v1387, %v1748
    %v1836 = vmul.f32 %v1388, %v1750
    %v1837 = vmul.f32 %v1389, %v1752
    %v1838 = vmul.f32 %v1390, %v1754
    %v1839 = vmul.f32 %v1391, %v1756
    %v1840 = vmul.f32 %v1392, %v1758
    %v1841 = vmul.f32 %v1393, %v1760
    %v1842 = vmul.f32 %v1394, %v1762
    %v1843 = vmul.f32 %v1395, %v1764
    %v1844 = vmul.f32 %v1396, %v1766
    %v1845 = vmul.f32 %v1397, %v1768
    %v1846 = vmul.f32 %v1398, %v1770
    %v1847 = vmul.f32 %v1399, %v1772
    %v1848 = vmul.f32 %v1400, %v1774
    %v1849 = vmul.f32 %v1401, %v1776
    %v1850 = vmul.f32 %v1402, %v1778
    %v1851 = vmul.f32 %v1403, %v1780
    %v1852 = vmul.f32 %v1404, %v1782
    %v1853 = vmul.f32 %v1405, %v1784
    %v1854 = vmul.f32 %v1406, %v1786
    %v1855 = vmul.f32 %v1407, %v1788
    %v1856 = vmul.f32 %v1408, %v1790
    %v1857 = vmul.f32 %v1409, %v1792
    %v1858 = vmul.f32 %v1410, %v1794
    %vm1859 = vcmask 64512
    %1860 = vst.msk [vmem:[%s5] sm:$0xff] %vm1859, %v1795
    %1861 = vst.msk [vmem:[%s5 + $0x8] sm:$0xff] %vm1859, %v1796
    %1862 = vst.msk [vmem:[%s5 + $0x10] sm:$0xff] %vm1859, %v1797
    %1863 = vst.msk [vmem:[%s5 + $0x18] sm:$0xff] %vm1859, %v1798
    %1864 = vst.msk [vmem:[%s5 + $0x20] sm:$0xff] %vm1859, %v1799
    %1865 = vst.msk [vmem:[%s5 + $0x28] sm:$0xff] %vm1859, %v1800
    %1866 = vst.msk [vmem:[%s5 + $0x30] sm:$0xff] %vm1859, %v1801
    %1867 = vst.msk [vmem:[%s5 + $0x38] sm:$0xff] %vm1859, %v1802
    %1868 = vst.msk [vmem:[%s5 + $0x40] sm:$0xff] %vm1859, %v1803
    %1869 = vst.msk [vmem:[%s5 + $0x48] sm:$0xff] %vm1859, %v1804
    %1870 = vst.msk [vmem:[%s5 + $0x50] sm:$0xff] %vm1859, %v1805
    %1871 = vst.msk [vmem:[%s5 + $0x58] sm:$0xff] %vm1859, %v1806
    %1872 = vst.msk [vmem:[%s5 + $0x60] sm:$0xff] %vm1859, %v1807
    %1873 = vst.msk [vmem:[%s5 + $0x68] sm:$0xff] %vm1859, %v1808
    %1874 = vst.msk [vmem:[%s5 + $0x70] sm:$0xff] %vm1859, %v1809
    %1875 = vst.msk [vmem:[%s5 + $0x78] sm:$0xff] %vm1859, %v1810
    %1876 = vst.msk [vmem:[%s5 + $0x80] sm:$0xff] %vm1859, %v1811
    %1877 = vst.msk [vmem:[%s5 + $0x88] sm:$0xff] %vm1859, %v1812
    %1878 = vst.msk [vmem:[%s5 + $0x90] sm:$0xff] %vm1859, %v1813
    %1879 = vst.msk [vmem:[%s5 + $0x98] sm:$0xff] %vm1859, %v1814
    %1880 = vst.msk [vmem:[%s5 + $0xa0] sm:$0xff] %vm1859, %v1815
    %1881 = vst.msk [vmem:[%s5 + $0xa8] sm:$0xff] %vm1859, %v1816
    %1882 = vst.msk [vmem:[%s5 + $0xb0] sm:$0xff] %vm1859, %v1817
    %1883 = vst.msk [vmem:[%s5 + $0xb8] sm:$0xff] %vm1859, %v1818
    %1884 = vst.msk [vmem:[%s5 + $0xc0] sm:$0xff] %vm1859, %v1819
    %1885 = vst.msk [vmem:[%s5 + $0xc8] sm:$0xff] %vm1859, %v1820
    %1886 = vst.msk [vmem:[%s5 + $0xd0] sm:$0xff] %vm1859, %v1821
    %1887 = vst.msk [vmem:[%s5 + $0xd8] sm:$0xff] %vm1859, %v1822
    %1888 = vst.msk [vmem:[%s5 + $0xe0] sm:$0xff] %vm1859, %v1823
    %1889 = vst.msk [vmem:[%s5 + $0xe8] sm:$0xff] %vm1859, %v1824
    %1890 = vst.msk [vmem:[%s5 + $0xf0] sm:$0xff] %vm1859, %v1825
    %1891 = vst.msk [vmem:[%s5 + $0xf8] sm:$0xff] %vm1859, %v1826
    %1892 = vst.msk [vmem:[%s5 + $0x100] sm:$0xff] %vm1859, %v1827
    %1893 = vst.msk [vmem:[%s5 + $0x108] sm:$0xff] %vm1859, %v1828
    %1894 = vst.msk [vmem:[%s5 + $0x110] sm:$0xff] %vm1859, %v1829
    %1895 = vst.msk [vmem:[%s5 + $0x118] sm:$0xff] %vm1859, %v1830
    %1896 = vst.msk [vmem:[%s5 + $0x120] sm:$0xff] %vm1859, %v1831
    %1897 = vst.msk [vmem:[%s5 + $0x128] sm:$0xff] %vm1859, %v1832
    %1898 = vst.msk [vmem:[%s5 + $0x130] sm:$0xff] %vm1859, %v1833
    %1899 = vst.msk [vmem:[%s5 + $0x138] sm:$0xff] %vm1859, %v1834
    %1900 = vst.msk [vmem:[%s5 + $0x140] sm:$0xff] %vm1859, %v1835
    %1901 = vst.msk [vmem:[%s5 + $0x148] sm:$0xff] %vm1859, %v1836
    %1902 = vst.msk [vmem:[%s5 + $0x150] sm:$0xff] %vm1859, %v1837
    %1903 = vst.msk [vmem:[%s5 + $0x158] sm:$0xff] %vm1859, %v1838
    %1904 = vst.msk [vmem:[%s5 + $0x160] sm:$0xff] %vm1859, %v1839
    %1905 = vst.msk [vmem:[%s5 + $0x168] sm:$0xff] %vm1859, %v1840
    %1906 = vst.msk [vmem:[%s5 + $0x170] sm:$0xff] %vm1859, %v1841
    %1907 = vst.msk [vmem:[%s5 + $0x178] sm:$0xff] %vm1859, %v1842
    %1908 = vst.msk [vmem:[%s5 + $0x180] sm:$0xff] %vm1859, %v1843
    %1909 = vst.msk [vmem:[%s5 + $0x188] sm:$0xff] %vm1859, %v1844
    %1910 = vst.msk [vmem:[%s5 + $0x190] sm:$0xff] %vm1859, %v1845
    %1911 = vst.msk [vmem:[%s5 + $0x198] sm:$0xff] %vm1859, %v1846
    %1912 = vst.msk [vmem:[%s5 + $0x1a0] sm:$0xff] %vm1859, %v1847
    %1913 = vst.msk [vmem:[%s5 + $0x1a8] sm:$0xff] %vm1859, %v1848
    %1914 = vst.msk [vmem:[%s5 + $0x1b0] sm:$0xff] %vm1859, %v1849
    %1915 = vst.msk [vmem:[%s5 + $0x1b8] sm:$0xff] %vm1859, %v1850
    %1916 = vst.msk [vmem:[%s5 + $0x1c0] sm:$0xff] %vm1859, %v1851
    %1917 = vst.msk [vmem:[%s5 + $0x1c8] sm:$0xff] %vm1859, %v1852
    %1918 = vst.msk [vmem:[%s5 + $0x1d0] sm:$0xff] %vm1859, %v1853
    %1919 = vst.msk [vmem:[%s5 + $0x1d8] sm:$0xff] %vm1859, %v1854
    %1920 = vst.msk [vmem:[%s5 + $0x1e0] sm:$0xff] %vm1859, %v1855
    %1921 = vst.msk [vmem:[%s5 + $0x1e8] sm:$0xff] %vm1859, %v1856
    %1922 = vst.msk [vmem:[%s5 + $0x1f0] sm:$0xff] %vm1859, %v1857
    %1923 = vst.msk [vmem:[%s5 + $0x1f8] sm:$0xff] %vm1859, %v1858
    // Predicated region
    $region30: #{c3_forward.7} parent=1 // pred_check
      _
    $region31: #{c3_forward.7} parent=1 // pred_check_branch
      %1925 = sbr.rel (0) target = $region33
    $region32: #{c3_forward.7} parent=1 // pred_region
      _
    $region33: #{c3_forward.7} parent=1 // pred_fallthru
      _
    // Predicated region
    $region34: #{c3_forward.7} parent=1 // pred_check
      _
    $region35: #{c3_forward.7} parent=1 // pred_check_branch
      %1927 = sbr.rel (0) target = $region37
    $region36: #{c3_forward.7} parent=1 // pred_region
      _
    $region37: #{c3_forward.7} parent=1 // pred_fallthru
      _
    %1928 = vsyncpa [#allocation3], 1
    %1929 = vsyncpa [#allocation5], 1

// kernel: c3_forward.6
$region0: #{c3_forward.6}
  #allocation0 [shape = 'u32[]', space=smem, size = 0x4, offset = 0x4, fixed_abs, tag = 'smem constant byte address 0x4 - core index']
  #allocation1 [shape = 'u32[144,128]{1,0:T(1,128)}', space=vmem, size = 0x12000, scoped, tag = 'internal scratch']
  %s0 = inlined_call_operand.hbm [shape: f32[2,18,18,4], index: 0, kind: input, shape index: {}]
  %s1 = inlined_call_operand.hbm [shape: f32[2,9,4,4], index: 1, kind: input, shape index: {}]
  %s2 = inlined_call_operand.hbm [shape: f32[2,256,4], index: 2, kind: input, shape index: {}]
  %s3 = inlined_call_operand.hbm [shape: f32[2,256,4], index: 3, kind: output, shape index: {}]
  %s4 = sld [smem:[#allocation0]]
  $region57: #{c3_forward.6} parent=0
    _
  %s6 = ssub.s32 1, %s4
  %s7 = scalar_select 0, %s6, %s4
  $region1: #{c3_forward.6} parent=0
    #allocation2 [shape = 'u8[442368]{0}', space=vmem, size = 0x6c000, scoped, tag = 'input window, operand 0']
    #allocation3 [shape = 's32[2]{0}', space=sflag, size = 0x8, scoped, tag = 'scoped memory for c3_forward.6']
    #allocation4 [shape = 's32[2]{0}', space=sflag, size = 0x8, scoped, tag = 'scoped memory for c3_forward.6']
    #allocation5 [shape = 'u8[36864]{0}', space=vmem, size = 0x9000, scoped, tag = 'input window, operand 1']
    #allocation6 [shape = 's32[2]{0}', space=sflag, size = 0x8, scoped, tag = 'scoped memory for c3_forward.6']
    #allocation7 [shape = 'u8[262144]{0}', space=vmem, size = 0x40000, scoped, tag = 'input window, operand 2']
    #allocation8 [shape = 'u8[262144]{0}', space=vmem, size = 0x40000, scoped, tag = 'output window, operand 0']
    %8 = vsyncpa [#allocation3], 0
    %s9 = scalar_lea.sflag [#allocation3], 1
    %10 = vsyncpa %s9, 0
    %11 = vsyncpa [#allocation6], 0
    %s12 = scalar_lea.sflag [#allocation6], 1
    %13 = vsyncpa %s12, 0
    %14 = vsyncpa [#allocation4], 0
    %s15 = scalar_lea.sflag [#allocation4], 1
    %16 = vsyncpa %s15, 0
    loop: start=0, step=1, limit=4
    $region2: #{c3_forward.6} parent=1 // loop_pre_header
      _
    $region3: #{c3_forward.6} parent=1 // loop_header
      %s18 = sphi 0, %s22
      %p19 = scmp.ge.s32.totalorder %s18, 4
      %s25 = sphi 0, %s37
      %s26 = sphi 0, %s33
      %s27 = sphi 0, %s25
      %s28 = sphi 0, %s26
      %s29 = sphi 0, %s27
      %s30 = sphi 0, %s28
      %s42 = sphi 0, %s44
      %s45 = sphi 0, %s42
      %s46 = sphi 0, %s45
      %s62 = sphi 0, %s46
      %s68 = sphi 0, %s70
      %s71 = sphi 0, %s68
      %s72 = sphi 0, %s71
      %s88 = sphi 0, %s72
      %s96 = sphi 0, %s98
      %s99 = sphi 0, %s96
      %s100 = sphi 0, %s99
      %s116 = sphi 0, %s100
      %s124 = sphi 0, %s126
      %s127 = sphi 0, %s124
      %s128 = sphi 0, %s127
      %s144 = sphi 0, %s128
    $region4: #{c3_forward.6} parent=1 // loop_header_branch
      %21 = sbr.rel (%p19) target = $region8
    $region5: #{c3_forward.6} parent=1 // loop_body
      %s23 = ssub.s32 %s18, 1
      %s24 = ssub.s32 %s18, 2
      %s31 = sadd.s32 1, %s26
      %p32 = scmp.ge.s32.totalorder %s31, 1
      %s33 = scalar_select %p32, 0, %s31
      %s34 = sadd.s32 1, %s25
      %s35 = scalar_select %p32, %s34, %s25
      %p36 = scmp.ge.s32.totalorder %s35, 2
      %s37 = scalar_select %p36, 0, %s35
      %s38 = sadd.s32 %s25, %s26
      %s39 = sadd.s32 %s37, %s33
      %s40 = ssub.s32 %s38, %s39
      %p41 = scmp.eq.s32.totalorder %s40, 0
      %s43 = sadd.s32 %s42, 1
      %s44 = scalar_select %p41, %s42, %s43
      %p47 = pneg %p41
      %p48 = scmp.eq.s32.totalorder %s18, 1
      %p49 = por %p47, %p48
      %p50 = scmp.ne.s32.totalorder %s42, %s45
      %p51 = scmp.eq.s32.totalorder %s18, 0
      %p52 = por %p50, %p51
      %p53 = scmp.ne.s32.totalorder %s42, %s45
      %p54 = scmp.eq.s32.totalorder %s23, 1
      %p55 = por %p53, %p54
      %p56 = scmp.ne.s32.totalorder %s45, %s46
      %p57 = scmp.eq.s32.totalorder %s23, 0
      %p58 = por %p56, %p57
      %p59 = scmp.ne.s32.totalorder %s45, %s46
      %p60 = scmp.eq.s32.totalorder %s24, 1
      %p61 = por %p59, %p60
      %p63 = scmp.ne.s32.totalorder %s46, %s62
      %p64 = scmp.eq.s32.totalorder %s24, 0
      %p65 = por %p63, %p64
      %s66 = ssub.s32 %s25, %s37
      %p67 = scmp.eq.s32.totalorder %s66, 0
      %s69 = sadd.s32 %s68, 1
      %s70 = scalar_select %p67, %s68, %s69
      %p73 = pneg %p67
      %p74 = scmp.eq.s32.totalorder %s18, 1
      %p75 = por %p73, %p74
      %p76 = scmp.ne.s32.totalorder %s68, %s71
      %p77 = scmp.eq.s32.totalorder %s18, 0
      %p78 = por %p76, %p77
      %p79 = scmp.ne.s32.totalorder %s68, %s71
      %p80 = scmp.eq.s32.totalorder %s23, 1
      %p81 = por %p79, %p80
      %p82 = scmp.ne.s32.totalorder %s71, %s72
      %p83 = scmp.eq.s32.totalorder %s23, 0
      %p84 = por %p82, %p83
      %p85 = scmp.ne.s32.totalorder %s71, %s72
      %p86 = scmp.eq.s32.totalorder %s24, 1
      %p87 = por %p85, %p86
      %p89 = scmp.ne.s32.totalorder %s72, %s88
      %p90 = scmp.eq.s32.totalorder %s24, 0
      %p91 = por %p89, %p90
      %s92 = ssub.s32 %s25, %s37
      %s93 = ssub.s32 %s26, %s33
      %s94 = sor.u32 %s92, %s93
      %p95 = scmp.eq.s32.totalorder %s94, 0
      %s97 = sadd.s32 %s96, 1
      %s98 = scalar_select %p95, %s96, %s97
      %p101 = pneg %p95
      %p102 = scmp.eq.s32.totalorder %s18, 1
      %p103 = por %p101, %p102
      %p104 = scmp.ne.s32.totalorder %s96, %s99
      %p105 = scmp.eq.s32.totalorder %s18, 0
      %p106 = por %p104, %p105
      %p107 = scmp.ne.s32.totalorder %s96, %s99
      %p108 = scmp.eq.s32.totalorder %s23, 1
      %p109 = por %p107, %p108
      %p110 = scmp.ne.s32.totalorder %s99, %s100
      %p111 = scmp.eq.s32.totalorder %s23, 0
      %p112 = por %p110, %p111
      %p113 = scmp.ne.s32.totalorder %s99, %s100
      %p114 = scmp.eq.s32.totalorder %s24, 1
      %p115 = por %p113, %p114
      %p117 = scmp.ne.s32.totalorder %s100, %s116
      %p118 = scmp.eq.s32.totalorder %s24, 0
      %p119 = por %p117, %p118
      %s120 = ssub.s32 %s25, %s37
      %s121 = ssub.s32 %s26, %s33
      %s122 = sor.u32 %s120, %s121
      %p123 = scmp.eq.s32.totalorder %s122, 0
      %s125 = sadd.s32 %s124, 1
      %s126 = scalar_select %p123, %s124, %s125
      %p129 = pneg %p123
      %p130 = scmp.eq.s32.totalorder %s18, 1
      %p131 = por %p129, %p130
      %p132 = scmp.ne.s32.totalorder %s124, %s127
      %p133 = scmp.eq.s32.totalorder %s18, 0
      %p134 = por %p132, %p133
      %p135 = scmp.ne.s32.totalorder %s124, %s127
      %p136 = scmp.eq.s32.totalorder %s23, 1
      %p137 = por %p135, %p136
      %p138 = scmp.ne.s32.totalorder %s127, %s128
      %p139 = scmp.eq.s32.totalorder %s23, 0
      %p140 = por %p138, %p139
      %p141 = scmp.ne.s32.totalorder %s127, %s128
      %p142 = scmp.eq.s32.totalorder %s24, 1
      %p143 = por %p141, %p142
      %p145 = scmp.ne.s32.totalorder %s128, %s144
      %p146 = scmp.eq.s32.totalorder %s24, 0
      %p147 = por %p145, %p146
      %p148 = scmp.le.s32.totalorder 1, %s18
      %p149 = scmp.lt.s32.totalorder %s18, 3
      %p150 = pnand %p148, %p149
      %p151 = pneg %p150
      // Predicated region
      $region9: #{c3_forward.6} parent=5 // pred_check
        _
      $region10: #{c3_forward.6} parent=5 // pred_check_branch
        %153 = sbr.rel (%p150) target = $region12
      $region11: #{c3_forward.6} parent=5 // pred_region
        %s154 = ssub.s32 %s18, 1
      $region12: #{c3_forward.6} parent=5 // pred_fallthru
        _
      %p155 = scmp.lt.s32.totalorder %s18, 2
      // Predicated region
      $region13: #{c3_forward.6} parent=5 // pred_check
        %p156 = pneg %p155
      $region14: #{c3_forward.6} parent=5 // pred_check_branch
        %158 = sbr.rel (%p156) target = $region16
      $region15: #{c3_forward.6} parent=5 // pred_region
        // Predicated region
        $region17: #{c3_forward.6} parent=15 // pred_check
          %p159 = pneg %p52
        $region18: #{c3_forward.6} parent=15 // pred_check_branch
          %161 = sbr.rel (%p159) target = $region20
        $region19: #{c3_forward.6} parent=15 // pred_region
          %s162 = sand.u32 %s42, 1
          %s163 = scalar_lea.sflag [#allocation3], %s162
          %s164 = sand.u32 %s42, 1
          %s165 = smul.addr %s164, 432
          %s166 = scalar_lea.vmem [#allocation2], %s165
          %s167 = sadd.s32 %s25, %s26
          %s169 = ssub.s32 6912, 6912
          %170 = vsyncadd %s163, %s169
          %s171 = smul.addr %s167, 54
          %s172 = smul.addr %s171, 128
          %s173 = scalar_lea.hbm %s0, %s172
          %s174 = sshll.u32 %s166, 4
          %s175 = int_to_ptr.vmem [resolvable:$true] %s174
          %180 = dma.hbm_to_vmem [thread:$0]  %s173, 6912, %s175, %s163, 128, 128, 8
        $region20: #{c3_forward.6} parent=15 // pred_fallthru
          _
        // Predicated region
        $region21: #{c3_forward.6} parent=15 // pred_check
          %p181 = pneg %p78
        $region22: #{c3_forward.6} parent=15 // pred_check_branch
          %183 = sbr.rel (%p181) target = $region24
        $region23: #{c3_forward.6} parent=15 // pred_region
          %s184 = sand.u32 %s18, 1
          %s185 = scalar_lea.sflag [#allocation6], %s184
          %s186 = sand.u32 %s68, 1
          %s187 = smul.addr %s186, 36
          %s188 = scalar_lea.vmem [#allocation5], %s187
          %s190 = ssub.s32 576, 576
          %191 = vsyncadd %s185, %s190
          %s192 = smul.addr %s25, 9
          %s193 = smul.addr %s192, 64
          %s194 = scalar_lea.hbm %s1, %s193
          %s195 = sshll.u32 %s188, 4
          %s196 = int_to_ptr.vmem [resolvable:$true] %s195
          %201 = dma.hbm_to_vmem [thread:$0]  %s194, 576, %s196, %s185, 64, 64, 4
        $region24: #{c3_forward.6} parent=15 // pred_fallthru
          _
        // Predicated region
        $region25: #{c3_forward.6} parent=15 // pred_check
          %p202 = pneg %p106
        $region26: #{c3_forward.6} parent=15 // pred_check_branch
          %204 = sbr.rel (%p202) target = $region28
        $region27: #{c3_forward.6} parent=15 // pred_region
          %s205 = sand.u32 %s18, 1
          %s206 = scalar_lea.sflag [#allocation6], %s205
          %s207 = sand.u32 %s96, 1
          %s208 = smul.addr %s207, 256
          %s209 = scalar_lea.vmem [#allocation7], %s208
          %s210 = smul.u32 32, %s26
          %s212 = ssub.s32 4096, 4096
          %213 = vsyncadd %s206, %s212
          %s214 = smul.addr %s25, 32
          %s215 = sadd.s32 %s210, %s214
          %s216 = smul.addr %s215, 128
          %s217 = scalar_lea.hbm %s2, %s216
          %s218 = sshll.u32 %s209, 4
          %s219 = int_to_ptr.vmem [resolvable:$true] %s218
          %224 = dma.hbm_to_vmem [thread:$0]  %s217, 4096, %s219, %s206, 128, 128, 8
        $region28: #{c3_forward.6} parent=15 // pred_fallthru
          _
      $region16: #{c3_forward.6} parent=5 // pred_fallthru
        _
      %p225 = scmp.le.s32.totalorder 1, %s18
      %p226 = scmp.lt.s32.totalorder %s18, 3
      %p227 = pnand %p225, %p226
      %p228 = pneg %p227
      // Predicated region
      $region29: #{c3_forward.6} parent=5 // pred_check
        _
      $region30: #{c3_forward.6} parent=5 // pred_check_branch
        %230 = sbr.rel (%p227) target = $region32
      $region31: #{c3_forward.6} parent=5 // pred_region
        %s231 = ssub.s32 %s18, 1
        %s232 = sand.u32 %s45, 1
        %s233 = scalar_lea.sflag [#allocation3], %s232
        %s234 = sand.u32 %s45, 1
        %s235 = smul.addr %s234, 432
        %s236 = scalar_lea.vmem [#allocation2], %s235
        // Predicated region
        $region33: #{c3_forward.6} parent=31 // pred_check
          %p237 = pneg %p58
        $region34: #{c3_forward.6} parent=31 // pred_check_branch
          %239 = sbr.rel (%p237) target = $region36
        $region35: #{c3_forward.6} parent=31 // pred_region
          %240 = dma.done %s233, 6912
        $region36: #{c3_forward.6} parent=31 // pred_fallthru
          _
        %s241 = sand.u32 %s23, 1
        %s242 = scalar_lea.sflag [#allocation6], %s241
        %s243 = sand.u32 %s71, 1
        %s244 = smul.addr %s243, 36
        %s245 = scalar_lea.vmem [#allocation5], %s244
        // Predicated region
        $region37: #{c3_forward.6} parent=31 // pred_check
          %p246 = pneg %p84
        $region38: #{c3_forward.6} parent=31 // pred_check_branch
          %248 = sbr.rel (%p246) target = $region40
        $region39: #{c3_forward.6} parent=31 // pred_region
          %249 = dma.done %s242, 576
        $region40: #{c3_forward.6} parent=31 // pred_fallthru
          _
        %s250 = sand.u32 %s23, 1
        %s251 = scalar_lea.sflag [#allocation6], %s250
        %s252 = sand.u32 %s99, 1
        %s253 = smul.addr %s252, 256
        %s254 = scalar_lea.vmem [#allocation7], %s253
        // Predicated region
        $region41: #{c3_forward.6} parent=31 // pred_check
          %p255 = pneg %p112
        $region42: #{c3_forward.6} parent=31 // pred_check_branch
          %257 = sbr.rel (%p255) target = $region44
        $region43: #{c3_forward.6} parent=31 // pred_region
          %258 = dma.done %s251, 4096
        $region44: #{c3_forward.6} parent=31 // pred_fallthru
          _
        %s259 = sand.u32 %s45, 1
        %s260 = scalar_lea.sflag [#allocation3], %s259
        %s261 = sand.u32 %s45, 1
        %s262 = smul.addr %s261, 432
        %s263 = scalar_lea.vmem [#allocation2], %s262
        %p264 = pneg %p58
        %p265 = pneg %p55
        %s266 = sand.u32 %s23, 1
        %s267 = scalar_lea.sflag [#allocation6], %s266
        %s268 = sand.u32 %s71, 1
        %s269 = smul.addr %s268, 36
        %s270 = scalar_lea.vmem [#allocation5], %s269
        %p271 = pneg %p84
        %p272 = pneg %p81
        %s273 = sand.u32 %s23, 1
        %s274 = scalar_lea.sflag [#allocation6], %s273
        %s275 = sand.u32 %s99, 1
        %s276 = smul.addr %s275, 256
        %s277 = scalar_lea.vmem [#allocation7], %s276
        %p278 = pneg %p112
        %p279 = pneg %p109
        %p280 = pneg %p140
        %p281 = pneg %p137
        %s282 = sand.u32 %s127, 1
        %s283 = scalar_lea.sflag [#allocation4], %s282
        %s284 = sand.u32 %s127, 1
        %s285 = smul.addr %s284, 256
        %s286 = scalar_lea.vmem [#allocation8], %s285
        %s287 = sadd.s32 %s27, %s28
        %s288 = smul.u32 32, %s28
        %s289 = smul.u32 32, %s28
        %v290 = vld [vmem:[%s236] sm:$0xff]
        %v291 = vld [vmem:[%s236 + $0x8] sm:$0xff]
        %v292 = vld [vmem:[%s236 + $0x18] sm:$0xff]
        %v293 = vld [vmem:[%s236 + $0x20] sm:$0xff]
        %v294 = vld [vmem:[%s236 + $0x30] sm:$0xff]
        %v295 = vld [vmem:[%s236 + $0x38] sm:$0xff]
        %v296 = vld [vmem:[%s236 + $0x48] sm:$0xff]
        %v297 = vld [vmem:[%s236 + $0x50] sm:$0xff]
        %v298 = vld [vmem:[%s236 + $0x60] sm:$0xff]
        %v299 = vld [vmem:[%s236 + $0x68] sm:$0xff]
        %v300 = vld [vmem:[%s236 + $0x78] sm:$0xff]
        %v301 = vld [vmem:[%s236 + $0x80] sm:$0xff]
        %v302 = vld [vmem:[%s236 + $0x90] sm:$0xff]
        %v303 = vld [vmem:[%s236 + $0x98] sm:$0xff]
        %v304 = vld [vmem:[%s236 + $0xa8] sm:$0xff]
        %v305 = vld [vmem:[%s236 + $0xb0] sm:$0xff]
        %v306 = vld [vmem:[%s236 + $0xc0] sm:$0xff]
        %v307 = vld [vmem:[%s236 + $0xc8] sm:$0xff]
        %v308 = vld [vmem:[%s236 + $0xd8] sm:$0xff]
        %v309 = vld [vmem:[%s236 + $0xe0] sm:$0xff]
        %v310 = vld [vmem:[%s236 + $0xf0] sm:$0xff]
        %v311 = vld [vmem:[%s236 + $0xf8] sm:$0xff]
        %v312 = vld [vmem:[%s236 + $0x108] sm:$0xff]
        %v313 = vld [vmem:[%s236 + $0x110] sm:$0xff]
        %v314 = vld [vmem:[%s236 + $0x120] sm:$0xff]
        %v315 = vld [vmem:[%s236 + $0x128] sm:$0xff]
        %v316 = vld [vmem:[%s236 + $0x138] sm:$0xff]
        %v317 = vld [vmem:[%s236 + $0x140] sm:$0xff]
        %v318 = vld [vmem:[%s236 + $0x150] sm:$0xff]
        %v319 = vld [vmem:[%s236 + $0x158] sm:$0xff]
        %v320 = vld [vmem:[%s236 + $0x168] sm:$0xff]
        %v321 = vld [vmem:[%s236 + $0x170] sm:$0xff]
        %v322 = vld [vmem:[%s245] sm:$0xf]
        %v323 = vld [vmem:[%s236 + $0x1] sm:$0xff]
        %v324 = vld [vmem:[%s236 + $0x9] sm:$0xff]
        %v325 = vld [vmem:[%s236 + $0x19] sm:$0xff]
        %v326 = vld [vmem:[%s236 + $0x21] sm:$0xff]
        %v327 = vld [vmem:[%s236 + $0x31] sm:$0xff]
        %v328 = vld [vmem:[%s236 + $0x39] sm:$0xff]
        %v329 = vld [vmem:[%s236 + $0x49] sm:$0xff]
        %v330 = vld [vmem:[%s236 + $0x51] sm:$0xff]
        %v331 = vld [vmem:[%s236 + $0x61] sm:$0xff]
        %v332 = vld [vmem:[%s236 + $0x69] sm:$0xff]
        %v333 = vld [vmem:[%s236 + $0x79] sm:$0xff]
        %v334 = vld [vmem:[%s236 + $0x81] sm:$0xff]
        %v335 = vld [vmem:[%s236 + $0x91] sm:$0xff]
        %v336 = vld [vmem:[%s236 + $0x99] sm:$0xff]
        %v337 = vld [vmem:[%s236 + $0xa9] sm:$0xff]
        %v338 = vld [vmem:[%s236 + $0xb1] sm:$0xff]
        %v339 = vld [vmem:[%s236 + $0xc1] sm:$0xff]
        %v340 = vld [vmem:[%s236 + $0xc9] sm:$0xff]
        %v341 = vld [vmem:[%s236 + $0xd9] sm:$0xff]
        %v342 = vld [vmem:[%s236 + $0xe1] sm:$0xff]
        %v343 = vld [vmem:[%s236 + $0xf1] sm:$0xff]
        %v344 = vld [vmem:[%s236 + $0xf9] sm:$0xff]
        %v345 = vld [vmem:[%s236 + $0x109] sm:$0xff]
        %v346 = vld [vmem:[%s236 + $0x111] sm:$0xff]
        %v347 = vld [vmem:[%s236 + $0x121] sm:$0xff]
        %v348 = vld [vmem:[%s236 + $0x129] sm:$0xff]
        %v349 = vld [vmem:[%s236 + $0x139] sm:$0xff]
        %v350 = vld [vmem:[%s236 + $0x141] sm:$0xff]
        %v351 = vld [vmem:[%s236 + $0x151] sm:$0xff]
        %v352 = vld [vmem:[%s236 + $0x159] sm:$0xff]
        %v353 = vld [vmem:[%s236 + $0x169] sm:$0xff]
        %v354 = vld [vmem:[%s236 + $0x171] sm:$0xff]
        %s355 = scalar_lea.vmem %s245, 4 [#allocation5]
        %v356 = vld [vmem:[%s355] sm:$0xf]
        %vm357 = vcmask 31744
        %v359 = vsel %vm357, %v323, 0
        %v362 = vsel %vm357, %v324, 0
        %v365 = vsel %vm357, %v325, 0
        %v368 = vsel %vm357, %v326, 0
        %v371 = vsel %vm357, %v327, 0
        %v374 = vsel %vm357, %v328, 0
        %v377 = vsel %vm357, %v329, 0
        %v380 = vsel %vm357, %v330, 0
        %v383 = vsel %vm357, %v331, 0
        %v386 = vsel %vm357, %v332, 0
        %v389 = vsel %vm357, %v333, 0
        %v392 = vsel %vm357, %v334, 0
        %v395 = vsel %vm357, %v335, 0
        %v398 = vsel %vm357, %v336, 0
        %v401 = vsel %vm357, %v337, 0
        %v404 = vsel %vm357, %v338, 0
        %v407 = vsel %vm357, %v339, 0
        %v410 = vsel %vm357, %v340, 0
        %v413 = vsel %vm357, %v341, 0
        %v416 = vsel %vm357, %v342, 0
        %v419 = vsel %vm357, %v343, 0
        %v422 = vsel %vm357, %v344, 0
        %v425 = vsel %vm357, %v345, 0
        %v428 = vsel %vm357, %v346, 0
        %v431 = vsel %vm357, %v347, 0
        %v434 = vsel %vm357, %v348, 0
        %v437 = vsel %vm357, %v349, 0
        %v440 = vsel %vm357, %v350, 0
        %v443 = vsel %vm357, %v351, 0
        %v446 = vsel %vm357, %v352, 0
        %v449 = vsel %vm357, %v353, 0
        %v452 = vsel %vm357, %v354, 0
        %vm454 = vcmask 1043456
        %v456 = vsel %vm454, %v356, 0
        %458 = vmatprep.subr.mxu0 0.0
        %459 = vmatpush1.msra.mxu0 %v456
        %460 = vmatprep.subr.mxu0 0.0
        %461 = vmatpush1.msra.mxu0 0.0
        %462 = vmatprep.subr.mxu0 0.0
        %463 = vmatpush1.msra.mxu0 0.0
        %464 = vmatprep.subr.mxu0 0.0
        %465 = vmatpush1.msra.mxu0 0.0
        %466 = vmatprep.subr.mxu0 0.0
        %467 = vmatpush1.msra.mxu0 0.0
        %468 = vmatprep.subr.mxu0 0.0
        %469 = vmatpush1.msra.mxu0 0.0
        %470 = vmatprep.subr.mxu0 0.0
        %471 = vmatpush1.msra.mxu0 0.0
        %472 = vmatprep.subr.mxu0 0.0
        %473 = vmatpush1.msra.mxu0 0.0
        %474 = vmatprep.subr.mxu0 0.0
        %475 = vmatpush1.msra.mxu0 0.0
        %476 = vmatprep.subr.mxu0 0.0
        %477 = vmatpush1.msra.mxu0 0.0
        %478 = vmatprep.subr.mxu0 0.0
        %479 = vmatpush1.msra.mxu0 0.0
        %480 = vmatprep.subr.mxu0 0.0
        %481 = vmatpush1.msra.mxu0 0.0
        %482 = vmatprep.subr.mxu0 0.0
        %483 = vmatpush1.msra.mxu0 0.0
        %484 = vmatprep.subr.mxu0 0.0
        %485 = vmatpush1.msra.mxu0 0.0
        %486 = vmatprep.subr.mxu0 0.0
        %487 = vmatpush1.msra.mxu0 0.0
        %488 = vmatprep.subr.mxu0 0.0
        %489 = vmatpush1.msra.mxu0 0.0
        %490 = vmatprep.subr.mxu0 0.0
        %491 = vmatpush1.msra.mxu0 0.0
        %492 = vmatprep.subr.mxu0 0.0
        %493 = vmatpush1.msra.mxu0 0.0
        %494 = vmatprep.subr.mxu0 0.0
        %495 = vmatpush1.msra.mxu0 0.0
        %496 = vmatprep.subr.mxu0 0.0
        %497 = vmatpush1.msra.mxu0 0.0
        %498 = vmatprep.subr.mxu0 0.0
        %499 = vmatpush1.msra.mxu0 0.0
        %500 = vmatprep.subr.mxu0 0.0
        %501 = vmatpush1.msra.mxu0 0.0
        %502 = vmatprep.subr.mxu0 0.0
        %503 = vmatpush1.msra.mxu0 0.0
        %504 = vmatprep.subr.mxu0 0.0
        %505 = vmatpush1.msra.mxu0 0.0
        %506 = vmatprep.subr.mxu0 0.0
        %507 = vmatpush1.msra.mxu0 0.0
        %508 = vmatprep.subr.mxu0 0.0
        %509 = vmatpush1.msra.mxu0 0.0
        %510 = vmatprep.subr.mxu0 0.0
        %511 = vmatpush1.msra.mxu0 0.0
        %512 = vmatprep.subr.mxu0 0.0
        %513 = vmatpush1.msra.mxu0 0.0
        %514 = vmatprep.subr.mxu0 0.0
        %515 = vmatpush1.msra.mxu0 0.0
        %516 = vmatprep.subr.mxu0 0.0
        %517 = vmatpush1.msra.mxu0 0.0
        %518 = vmatprep.subr.mxu0 0.0
        %519 = vmatpush1.msra.mxu0 0.0
        %520 = vmatprep.subr.mxu0 0.0
        %521 = vmatpush1.msra.mxu0 0.0
        %522 = vmatprep.mubr.f32.mxu0 0.0
        %523 = vmatmul.mubr.f32.gmra.mrb[0].mxu0 %v359
        %v524 = vpop.f32.mrb[0].mxu0
        %v525 = vadd.f32 0.0, %v524
        %v526 = vpop.f32.mrb[0].mxu0
        %527 = vmatprep.mubr.f32.mxu0 0.0
        %528 = vmatmul.mubr.f32.gmra.mrb[0].mxu0 %v362
        %v529 = vpop.f32.mrb[0].mxu0
        %v530 = vadd.f32 0.0, %v529
        %v531 = vpop.f32.mrb[0].mxu0
        %532 = vmatprep.mubr.f32.mxu0 0.0
        %533 = vmatmul.mubr.f32.gmra.mrb[0].mxu0 %v365
        %v534 = vpop.f32.mrb[0].mxu0
        %v535 = vadd.f32 0.0, %v534
        %v536 = vpop.f32.mrb[0].mxu0
        %537 = vmatprep.mubr.f32.mxu0 0.0
        %538 = vmatmul.mubr.f32.gmra.mrb[0].mxu0 %v368
        %v539 = vpop.f32.mrb[0].mxu0
        %v540 = vadd.f32 0.0, %v539
        %v541 = vpop.f32.mrb[0].mxu0
        %542 = vmatprep.mubr.f32.mxu0 0.0
        %543 = vmatmul.mubr.f32.gmra.mrb[0].mxu0 %v371
        %v544 = vpop.f32.mrb[0].mxu0
        %v545 = vadd.f32 0.0, %v544
        %v546 = vpop.f32.mrb[0].mxu0
        %547 = vmatprep.mubr.f32.mxu0 0.0
        %548 = vmatmul.mubr.f32.gmra.mrb[0].mxu0 %v374
        %v549 = vpop.f32.mrb[0].mxu0
        %v550 = vadd.f32 0.0, %v549
        %v551 = vpop.f32.mrb[0].mxu0
        %552 = vmatprep.mubr.f32.mxu0 0.0
        %553 = vmatmul.mubr.f32.gmra.mrb[0].mxu0 %v377
        %v554 = vpop.f32.mrb[0].mxu0
        %v555 = vadd.f32 0.0, %v554
        %v556 = vpop.f32.mrb[0].mxu0
        %557 = vmatprep.mubr.f32.mxu0 0.0
        %558 = vmatmul.mubr.f32.gmra.mrb[0].mxu0 %v380
        %v559 = vpop.f32.mrb[0].mxu0
        %v560 = vadd.f32 0.0, %v559
        %v561 = vpop.f32.mrb[0].mxu0
        %562 = vmatprep.mubr.f32.mxu0 0.0
        %563 = vmatmul.mubr.f32.gmra.mrb[0].mxu0 %v383
        %v564 = vpop.f32.mrb[0].mxu0
        %v565 = vadd.f32 0.0, %v564
        %v566 = vpop.f32.mrb[0].mxu0
        %567 = vmatprep.mubr.f32.mxu0 0.0
        %568 = vmatmul.mubr.f32.gmra.mrb[0].mxu0 %v386
        %v569 = vpop.f32.mrb[0].mxu0
        %v570 = vadd.f32 0.0, %v569
        %v571 = vpop.f32.mrb[0].mxu0
        %572 = vmatprep.mubr.f32.mxu0 0.0
        %573 = vmatmul.mubr.f32.gmra.mrb[0].mxu0 %v389
        %v574 = vpop.f32.mrb[0].mxu0
        %v575 = vadd.f32 0.0, %v574
        %v576 = vpop.f32.mrb[0].mxu0
        %577 = vmatprep.mubr.f32.mxu0 0.0
        %578 = vmatmul.mubr.f32.gmra.mrb[0].mxu0 %v392
        %v579 = vpop.f32.mrb[0].mxu0
        %v580 = vadd.f32 0.0, %v579
        %v581 = vpop.f32.mrb[0].mxu0
        %582 = vmatprep.mubr.f32.mxu0 0.0
        %583 = vmatmul.mubr.f32.gmra.mrb[0].mxu0 %v395
        %v584 = vpop.f32.mrb[0].mxu0
        %v585 = vadd.f32 0.0, %v584
        %v586 = vpop.f32.mrb[0].mxu0
        %587 = vmatprep.mubr.f32.mxu0 0.0
        %588 = vmatmul.mubr.f32.gmra.mrb[0].mxu0 %v398
        %v589 = vpop.f32.mrb[0].mxu0
        %v590 = vadd.f32 0.0, %v589
        %v591 = vpop.f32.mrb[0].mxu0
        %592 = vmatprep.mubr.f32.mxu0 0.0
        %593 = vmatmul.mubr.f32.gmra.mrb[0].mxu0 %v401
        %v594 = vpop.f32.mrb[0].mxu0
        %v595 = vadd.f32 0.0, %v594
        %v596 = vpop.f32.mrb[0].mxu0
        %597 = vmatprep.mubr.f32.mxu0 0.0
        %598 = vmatmul.mubr.f32.gmra.mrb[0].mxu0 %v404
        %v599 = vpop.f32.mrb[0].mxu0
        %v600 = vadd.f32 0.0, %v599
        %v601 = vpop.f32.mrb[0].mxu0
        %602 = vmatprep.mubr.f32.mxu0 0.0
        %603 = vmatmul.mubr.f32.gmra.mrb[0].mxu0 %v407
        %v604 = vpop.f32.mrb[0].mxu0
        %v605 = vadd.f32 0.0, %v604
        %v606 = vpop.f32.mrb[0].mxu0
        %607 = vmatprep.mubr.f32.mxu0 0.0
        %608 = vmatmul.mubr.f32.gmra.mrb[0].mxu0 %v410
        %v609 = vpop.f32.mrb[0].mxu0
        %v610 = vadd.f32 0.0, %v609
        %v611 = vpop.f32.mrb[0].mxu0
        %612 = vmatprep.mubr.f32.mxu0 0.0
        %613 = vmatmul.mubr.f32.gmra.mrb[0].mxu0 %v413
        %v614 = vpop.f32.mrb[0].mxu0
        %v615 = vadd.f32 0.0, %v614
        %v616 = vpop.f32.mrb[0].mxu0
        %617 = vmatprep.mubr.f32.mxu0 0.0
        %618 = vmatmul.mubr.f32.gmra.mrb[0].mxu0 %v416
        %v619 = vpop.f32.mrb[0].mxu0
        %v620 = vadd.f32 0.0, %v619
        %v621 = vpop.f32.mrb[0].mxu0
        %622 = vmatprep.mubr.f32.mxu0 0.0
        %623 = vmatmul.mubr.f32.gmra.mrb[0].mxu0 %v419
        %v624 = vpop.f32.mrb[0].mxu0
        %v625 = vadd.f32 0.0, %v624
        %v626 = vpop.f32.mrb[0].mxu0
        %627 = vmatprep.mubr.f32.mxu0 0.0
        %628 = vmatmul.mubr.f32.gmra.mrb[0].mxu0 %v422
        %v629 = vpop.f32.mrb[0].mxu0
        %v630 = vadd.f32 0.0, %v629
        %v631 = vpop.f32.mrb[0].mxu0
        %632 = vmatprep.mubr.f32.mxu0 0.0
        %633 = vmatmul.mubr.f32.gmra.mrb[0].mxu0 %v425
        %v634 = vpop.f32.mrb[0].mxu0
        %v635 = vadd.f32 0.0, %v634
        %v636 = vpop.f32.mrb[0].mxu0
        %637 = vmatprep.mubr.f32.mxu0 0.0
        %638 = vmatmul.mubr.f32.gmra.mrb[0].mxu0 %v428
        %v639 = vpop.f32.mrb[0].mxu0
        %v640 = vadd.f32 0.0, %v639
        %v641 = vpop.f32.mrb[0].mxu0
        %642 = vmatprep.mubr.f32.mxu0 0.0
        %643 = vmatmul.mubr.f32.gmra.mrb[0].mxu0 %v431
        %v644 = vpop.f32.mrb[0].mxu0
        %v645 = vadd.f32 0.0, %v644
        %v646 = vpop.f32.mrb[0].mxu0
        %647 = vmatprep.mubr.f32.mxu0 0.0
        %648 = vmatmul.mubr.f32.gmra.mrb[0].mxu0 %v434
        %v649 = vpop.f32.mrb[0].mxu0
        %v650 = vadd.f32 0.0, %v649
        %v651 = vpop.f32.mrb[0].mxu0
        %652 = vmatprep.mubr.f32.mxu0 0.0
        %653 = vmatmul.mubr.f32.gmra.mrb[0].mxu0 %v437
        %v654 = vpop.f32.mrb[0].mxu0
        %v655 = vadd.f32 0.0, %v654
        %v656 = vpop.f32.mrb[0].mxu0
        %657 = vmatprep.mubr.f32.mxu0 0.0
        %658 = vmatmul.mubr.f32.gmra.mrb[0].mxu0 %v440
        %v659 = vpop.f32.mrb[0].mxu0
        %v660 = vadd.f32 0.0, %v659
        %v661 = vpop.f32.mrb[0].mxu0
        %662 = vmatprep.mubr.f32.mxu0 0.0
        %663 = vmatmul.mubr.f32.gmra.mrb[0].mxu0 %v443
        %v664 = vpop.f32.mrb[0].mxu0
        %v665 = vadd.f32 0.0, %v664
        %v666 = vpop.f32.mrb[0].mxu0
        %667 = vmatprep.mubr.f32.mxu0 0.0
        %668 = vmatmul.mubr.f32.gmra.mrb[0].mxu0 %v446
        %v669 = vpop.f32.mrb[0].mxu0
        %v670 = vadd.f32 0.0, %v669
        %v671 = vpop.f32.mrb[0].mxu0
        %672 = vmatprep.mubr.f32.mxu0 0.0
        %673 = vmatmul.mubr.f32.gmra.mrb[0].mxu0 %v449
        %v674 = vpop.f32.mrb[0].mxu0
        %v675 = vadd.f32 0.0, %v674
        %v676 = vpop.f32.mrb[0].mxu0
        %677 = vmatprep.mubr.f32.mxu0 0.0
        %678 = vmatmul.mubr.f32.gmra.mrb[0].mxu0 %v452
        %v679 = vpop.f32.mrb[0].mxu0
        %v680 = vadd.f32 0.0, %v679
        %v681 = vpop.f32.mrb[0].mxu0
        %682 = vdwg.mxu0
        %v684 = vsel %vm357, %v290, 0
        %v687 = vsel %vm357, %v291, 0
        %v690 = vsel %vm357, %v292, 0
        %v693 = vsel %vm357, %v293, 0
        %v696 = vsel %vm357, %v294, 0
        %v699 = vsel %vm357, %v295, 0
        %v702 = vsel %vm357, %v296, 0
        %v705 = vsel %vm357, %v297, 0
        %v708 = vsel %vm357, %v298, 0
        %v711 = vsel %vm357, %v299, 0
        %v714 = vsel %vm357, %v300, 0
        %v717 = vsel %vm357, %v301, 0
        %v720 = vsel %vm357, %v302, 0
        %v723 = vsel %vm357, %v303, 0
        %v726 = vsel %vm357, %v304, 0
        %v729 = vsel %vm357, %v305, 0
        %v732 = vsel %vm357, %v306, 0
        %v735 = vsel %vm357, %v307, 0
        %v738 = vsel %vm357, %v308, 0
        %v741 = vsel %vm357, %v309, 0
        %v744 = vsel %vm357, %v310, 0
        %v747 = vsel %vm357, %v311, 0
        %v750 = vsel %vm357, %v312, 0
        %v753 = vsel %vm357, %v313, 0
        %v756 = vsel %vm357, %v314, 0
        %v759 = vsel %vm357, %v315, 0
        %v762 = vsel %vm357, %v316, 0
        %v765 = vsel %vm357, %v317, 0
        %v768 = vsel %vm357, %v318, 0
        %v771 = vsel %vm357, %v319, 0
        %v774 = vsel %vm357, %v320, 0
        %v777 = vsel %vm357, %v321, 0
        %v780 = vsel %vm454, %v322, 0
        %782 = vmatprep.subr.mxu0 0.0
        %783 = vmatpush1.msra.mxu0 %v780
        %784 = vmatprep.subr.mxu0 0.0
        %785 = vmatpush1.msra.mxu0 0.0
        %786 = vmatprep.subr.mxu0 0.0
        %787 = vmatpush1.msra.mxu0 0.0
        %788 = vmatprep.subr.mxu0 0.0
        %789 = vmatpush1.msra.mxu0 0.0
        %790 = vmatprep.subr.mxu0 0.0
        %791 = vmatpush1.msra.mxu0 0.0
        %792 = vmatprep.subr.mxu0 0.0
        %793 = vmatpush1.msra.mxu0 0.0
        %794 = vmatprep.subr.mxu0 0.0
        %795 = vmatpush1.msra.mxu0 0.0
        %796 = vmatprep.subr.mxu0 0.0
        %797 = vmatpush1.msra.mxu0 0.0
        %798 = vmatprep.subr.mxu0 0.0
        %799 = vmatpush1.msra.mxu0 0.0
        %800 = vmatprep.subr.mxu0 0.0
        %801 = vmatpush1.msra.mxu0 0.0
        %802 = vmatprep.subr.mxu0 0.0
        %803 = vmatpush1.msra.mxu0 0.0
        %804 = vmatprep.subr.mxu0 0.0
        %805 = vmatpush1.msra.mxu0 0.0
        %806 = vmatprep.subr.mxu0 0.0
        %807 = vmatpush1.msra.mxu0 0.0
        %808 = vmatprep.subr.mxu0 0.0
        %809 = vmatpush1.msra.mxu0 0.0
        %810 = vmatprep.subr.mxu0 0.0
        %811 = vmatpush1.msra.mxu0 0.0
        %812 = vmatprep.subr.mxu0 0.0
        %813 = vmatpush1.msra.mxu0 0.0
        %814 = vmatprep.subr.mxu0 0.0
        %815 = vmatpush1.msra.mxu0 0.0
        %816 = vmatprep.subr.mxu0 0.0
        %817 = vmatpush1.msra.mxu0 0.0
        %818 = vmatprep.subr.mxu0 0.0
        %819 = vmatpush1.msra.mxu0 0.0
        %820 = vmatprep.subr.mxu0 0.0
        %821 = vmatpush1.msra.mxu0 0.0
        %822 = vmatprep.subr.mxu0 0.0
        %823 = vmatpush1.msra.mxu0 0.0
        %824 = vmatprep.subr.mxu0 0.0
        %825 = vmatpush1.msra.mxu0 0.0
        %826 = vmatprep.subr.mxu0 0.0
        %827 = vmatpush1.msra.mxu0 0.0
        %828 = vmatprep.subr.mxu0 0.0
        %829 = vmatpush1.msra.mxu0 0.0
        %830 = vmatprep.subr.mxu0 0.0
        %831 = vmatpush1.msra.mxu0 0.0
        %832 = vmatprep.subr.mxu0 0.0
        %833 = vmatpush1.msra.mxu0 0.0
        %834 = vmatprep.subr.mxu0 0.0
        %835 = vmatpush1.msra.mxu0 0.0
        %836 = vmatprep.subr.mxu0 0.0
        %837 = vmatpush1.msra.mxu0 0.0
        %838 = vmatprep.subr.mxu0 0.0
        %839 = vmatpush1.msra.mxu0 0.0
        %840 = vmatprep.subr.mxu0 0.0
        %841 = vmatpush1.msra.mxu0 0.0
        %842 = vmatprep.subr.mxu0 0.0
        %843 = vmatpush1.msra.mxu0 0.0
        %844 = vmatprep.subr.mxu0 0.0
        %845 = vmatpush1.msra.mxu0 0.0
        %846 = vmatprep.mubr.f32.mxu0 0.0
        %847 = vmatmul.mubr.f32.gmra.mrb[0].mxu0 %v684
        %v848 = vpop.f32.mrb[0].mxu0
        %v849 = vadd.f32 %v525, %v848
        %v850 = vpop.f32.mrb[0].mxu0
        %851 = vmatprep.mubr.f32.mxu0 0.0
        %852 = vmatmul.mubr.f32.gmra.mrb[0].mxu0 %v687
        %v853 = vpop.f32.mrb[0].mxu0
        %v854 = vadd.f32 %v530, %v853
        %v855 = vpop.f32.mrb[0].mxu0
        %856 = vmatprep.mubr.f32.mxu0 0.0
        %857 = vmatmul.mubr.f32.gmra.mrb[0].mxu0 %v690
        %v858 = vpop.f32.mrb[0].mxu0
        %v859 = vadd.f32 %v535, %v858
        %v860 = vpop.f32.mrb[0].mxu0
        %861 = vmatprep.mubr.f32.mxu0 0.0
        %862 = vmatmul.mubr.f32.gmra.mrb[0].mxu0 %v693
        %v863 = vpop.f32.mrb[0].mxu0
        %v864 = vadd.f32 %v540, %v863
        %v865 = vpop.f32.mrb[0].mxu0
        %866 = vmatprep.mubr.f32.mxu0 0.0
        %867 = vmatmul.mubr.f32.gmra.mrb[0].mxu0 %v696
        %v868 = vpop.f32.mrb[0].mxu0
        %v869 = vadd.f32 %v545, %v868
        %v870 = vpop.f32.mrb[0].mxu0
        %871 = vmatprep.mubr.f32.mxu0 0.0
        %872 = vmatmul.mubr.f32.gmra.mrb[0].mxu0 %v699
        %v873 = vpop.f32.mrb[0].mxu0
        %v874 = vadd.f32 %v550, %v873
        %v875 = vpop.f32.mrb[0].mxu0
        %876 = vmatprep.mubr.f32.mxu0 0.0
        %877 = vmatmul.mubr.f32.gmra.mrb[0].mxu0 %v702
        %v878 = vpop.f32.mrb[0].mxu0
        %v879 = vadd.f32 %v555, %v878
        %v880 = vpop.f32.mrb[0].mxu0
        %881 = vmatprep.mubr.f32.mxu0 0.0
        %882 = vmatmul.mubr.f32.gmra.mrb[0].mxu0 %v705
        %v883 = vpop.f32.mrb[0].mxu0
        %v884 = vadd.f32 %v560, %v883
        %v885 = vpop.f32.mrb[0].mxu0
        %886 = vmatprep.mubr.f32.mxu0 0.0
        %887 = vmatmul.mubr.f32.gmra.mrb[0].mxu0 %v708
        %v888 = vpop.f32.mrb[0].mxu0
        %v889 = vadd.f32 %v565, %v888
        %v890 = vpop.f32.mrb[0].mxu0
        %891 = vmatprep.mubr.f32.mxu0 0.0
        %892 = vmatmul.mubr.f32.gmra.mrb[0].mxu0 %v711
        %v893 = vpop.f32.mrb[0].mxu0
        %v894 = vadd.f32 %v570, %v893
        %v895 = vpop.f32.mrb[0].mxu0
        %896 = vmatprep.mubr.f32.mxu0 0.0
        %897 = vmatmul.mubr.f32.gmra.mrb[0].mxu0 %v714
        %v898 = vpop.f32.mrb[0].mxu0
        %v899 = vadd.f32 %v575, %v898
        %v900 = vpop.f32.mrb[0].mxu0
        %901 = vmatprep.mubr.f32.mxu0 0.0
        %902 = vmatmul.mubr.f32.gmra.mrb[0].mxu0 %v717
        %v903 = vpop.f32.mrb[0].mxu0
        %v904 = vadd.f32 %v580, %v903
        %v905 = vpop.f32.mrb[0].mxu0
        %906 = vmatprep.mubr.f32.mxu0 0.0
        %907 = vmatmul.mubr.f32.gmra.mrb[0].mxu0 %v720
        %v908 = vpop.f32.mrb[0].mxu0
        %v909 = vadd.f32 %v585, %v908
        %v910 = vpop.f32.mrb[0].mxu0
        %911 = vmatprep.mubr.f32.mxu0 0.0
        %912 = vmatmul.mubr.f32.gmra.mrb[0].mxu0 %v723
        %v913 = vpop.f32.mrb[0].mxu0
        %v914 = vadd.f32 %v590, %v913
        %v915 = vpop.f32.mrb[0].mxu0
        %916 = vmatprep.mubr.f32.mxu0 0.0
        %917 = vmatmul.mubr.f32.gmra.mrb[0].mxu0 %v726
        %v918 = vpop.f32.mrb[0].mxu0
        %v919 = vadd.f32 %v595, %v918
        %v920 = vpop.f32.mrb[0].mxu0
        %921 = vmatprep.mubr.f32.mxu0 0.0
        %922 = vmatmul.mubr.f32.gmra.mrb[0].mxu0 %v729
        %v923 = vpop.f32.mrb[0].mxu0
        %v924 = vadd.f32 %v600, %v923
        %v925 = vpop.f32.mrb[0].mxu0
        %926 = vmatprep.mubr.f32.mxu0 0.0
        %927 = vmatmul.mubr.f32.gmra.mrb[0].mxu0 %v732
        %v928 = vpop.f32.mrb[0].mxu0
        %v929 = vadd.f32 %v605, %v928
        %v930 = vpop.f32.mrb[0].mxu0
        %931 = vmatprep.mubr.f32.mxu0 0.0
        %932 = vmatmul.mubr.f32.gmra.mrb[0].mxu0 %v735
        %v933 = vpop.f32.mrb[0].mxu0
        %v934 = vadd.f32 %v610, %v933
        %v935 = vpop.f32.mrb[0].mxu0
        %936 = vmatprep.mubr.f32.mxu0 0.0
        %937 = vmatmul.mubr.f32.gmra.mrb[0].mxu0 %v738
        %v938 = vpop.f32.mrb[0].mxu0
        %v939 = vadd.f32 %v615, %v938
        %v940 = vpop.f32.mrb[0].mxu0
        %941 = vmatprep.mubr.f32.mxu0 0.0
        %942 = vmatmul.mubr.f32.gmra.mrb[0].mxu0 %v741
        %v943 = vpop.f32.mrb[0].mxu0
        %v944 = vadd.f32 %v620, %v943
        %v945 = vpop.f32.mrb[0].mxu0
        %946 = vmatprep.mubr.f32.mxu0 0.0
        %947 = vmatmul.mubr.f32.gmra.mrb[0].mxu0 %v744
        %v948 = vpop.f32.mrb[0].mxu0
        %v949 = vadd.f32 %v625, %v948
        %v950 = vpop.f32.mrb[0].mxu0
        %951 = vmatprep.mubr.f32.mxu0 0.0
        %952 = vmatmul.mubr.f32.gmra.mrb[0].mxu0 %v747
        %v953 = vpop.f32.mrb[0].mxu0
        %v954 = vadd.f32 %v630, %v953
        %v955 = vpop.f32.mrb[0].mxu0
        %956 = vmatprep.mubr.f32.mxu0 0.0
        %957 = vmatmul.mubr.f32.gmra.mrb[0].mxu0 %v750
        %v958 = vpop.f32.mrb[0].mxu0
        %v959 = vadd.f32 %v635, %v958
        %v960 = vpop.f32.mrb[0].mxu0
        %961 = vmatprep.mubr.f32.mxu0 0.0
        %962 = vmatmul.mubr.f32.gmra.mrb[0].mxu0 %v753
        %v963 = vpop.f32.mrb[0].mxu0
        %v964 = vadd.f32 %v640, %v963
        %v965 = vpop.f32.mrb[0].mxu0
        %966 = vmatprep.mubr.f32.mxu0 0.0
        %967 = vmatmul.mubr.f32.gmra.mrb[0].mxu0 %v756
        %v968 = vpop.f32.mrb[0].mxu0
        %v969 = vadd.f32 %v645, %v968
        %v970 = vpop.f32.mrb[0].mxu0
        %971 = vmatprep.mubr.f32.mxu0 0.0
        %972 = vmatmul.mubr.f32.gmra.mrb[0].mxu0 %v759
        %v973 = vpop.f32.mrb[0].mxu0
        %v974 = vadd.f32 %v650, %v973
        %v975 = vpop.f32.mrb[0].mxu0
        %976 = vmatprep.mubr.f32.mxu0 0.0
        %977 = vmatmul.mubr.f32.gmra.mrb[0].mxu0 %v762
        %v978 = vpop.f32.mrb[0].mxu0
        %v979 = vadd.f32 %v655, %v978
        %v980 = vpop.f32.mrb[0].mxu0
        %981 = vmatprep.mubr.f32.mxu0 0.0
        %982 = vmatmul.mubr.f32.gmra.mrb[0].mxu0 %v765
        %v983 = vpop.f32.mrb[0].mxu0
        %v984 = vadd.f32 %v660, %v983
        %v985 = vpop.f32.mrb[0].mxu0
        %986 = vmatprep.mubr.f32.mxu0 0.0
        %987 = vmatmul.mubr.f32.gmra.mrb[0].mxu0 %v768
        %v988 = vpop.f32.mrb[0].mxu0
        %v989 = vadd.f32 %v665, %v988
        %v990 = vpop.f32.mrb[0].mxu0
        %991 = vmatprep.mubr.f32.mxu0 0.0
        %992 = vmatmul.mubr.f32.gmra.mrb[0].mxu0 %v771
        %v993 = vpop.f32.mrb[0].mxu0
        %v994 = vadd.f32 %v670, %v993
        %v995 = vpop.f32.mrb[0].mxu0
        %996 = vmatprep.mubr.f32.mxu0 0.0
        %997 = vmatmul.mubr.f32.gmra.mrb[0].mxu0 %v774
        %v998 = vpop.f32.mrb[0].mxu0
        %v999 = vadd.f32 %v675, %v998
        %v1000 = vpop.f32.mrb[0].mxu0
        %1001 = vmatprep.mubr.f32.mxu0 0.0
        %1002 = vmatmul.mubr.f32.gmra.mrb[0].mxu0 %v777
        %v1003 = vpop.f32.mrb[0].mxu0
        %v1004 = vadd.f32 %v680, %v1003
        %v1005 = vpop.f32.mrb[0].mxu0
        %1006 = vdwg.mxu0
        %v1007 = vld [vmem:[%s236 + $0x2] sm:$0xff]
        %v1008 = vld [vmem:[%s236 + $0xa] sm:$0xff]
        %v1009 = vld [vmem:[%s236 + $0x1a] sm:$0xff]
        %v1010 = vld [vmem:[%s236 + $0x22] sm:$0xff]
        %v1011 = vld [vmem:[%s236 + $0x32] sm:$0xff]
        %v1012 = vld [vmem:[%s236 + $0x3a] sm:$0xff]
        %v1013 = vld [vmem:[%s236 + $0x4a] sm:$0xff]
        %v1014 = vld [vmem:[%s236 + $0x52] sm:$0xff]
        %v1015 = vld [vmem:[%s236 + $0x62] sm:$0xff]
        %v1016 = vld [vmem:[%s236 + $0x6a] sm:$0xff]
        %v1017 = vld [vmem:[%s236 + $0x7a] sm:$0xff]
        %v1018 = vld [vmem:[%s236 + $0x82] sm:$0xff]
        %v1019 = vld [vmem:[%s236 + $0x92] sm:$0xff]
        %v1020 = vld [vmem:[%s236 + $0x9a] sm:$0xff]
        %v1021 = vld [vmem:[%s236 + $0xaa] sm:$0xff]
        %v1022 = vld [vmem:[%s236 + $0xb2] sm:$0xff]
        %v1023 = vld [vmem:[%s236 + $0xc2] sm:$0xff]
        %v1024 = vld [vmem:[%s236 + $0xca] sm:$0xff]
        %v1025 = vld [vmem:[%s236 + $0xda] sm:$0xff]
        %v1026 = vld [vmem:[%s236 + $0xe2] sm:$0xff]
        %v1027 = vld [vmem:[%s236 + $0xf2] sm:$0xff]
        %v1028 = vld [vmem:[%s236 + $0xfa] sm:$0xff]
        %v1029 = vld [vmem:[%s236 + $0x10a] sm:$0xff]
        %v1030 = vld [vmem:[%s236 + $0x112] sm:$0xff]
        %v1031 = vld [vmem:[%s236 + $0x122] sm:$0xff]
        %v1032 = vld [vmem:[%s236 + $0x12a] sm:$0xff]
        %v1033 = vld [vmem:[%s236 + $0x13a] sm:$0xff]
        %v1034 = vld [vmem:[%s236 + $0x142] sm:$0xff]
        %v1035 = vld [vmem:[%s236 + $0x152] sm:$0xff]
        %v1036 = vld [vmem:[%s236 + $0x15a] sm:$0xff]
        %v1037 = vld [vmem:[%s236 + $0x16a] sm:$0xff]
        %v1038 = vld [vmem:[%s236 + $0x172] sm:$0xff]
        %s1039 = scalar_lea.vmem %s245, 8 [#allocation5]
        %v1040 = vld [vmem:[%s1039] sm:$0xf]
        %v1042 = vsel %vm357, %v1007, 0
        %v1045 = vsel %vm357, %v1008, 0
        %v1048 = vsel %vm357, %v1009, 0
        %v1051 = vsel %vm357, %v1010, 0
        %v1054 = vsel %vm357, %v1011, 0
        %v1057 = vsel %vm357, %v1012, 0
        %v1060 = vsel %vm357, %v1013, 0
        %v1063 = vsel %vm357, %v1014, 0
        %v1066 = vsel %vm357, %v1015, 0
        %v1069 = vsel %vm357, %v1016, 0
        %v1072 = vsel %vm357, %v1017, 0
        %v1075 = vsel %vm357, %v1018, 0
        %v1078 = vsel %vm357, %v1019, 0
        %v1081 = vsel %vm357, %v1020, 0
        %v1084 = vsel %vm357, %v1021, 0
        %v1087 = vsel %vm357, %v1022, 0
        %v1090 = vsel %vm357, %v1023, 0
        %v1093 = vsel %vm357, %v1024, 0
        %v1096 = vsel %vm357, %v1025, 0
        %v1099 = vsel %vm357, %v1026, 0
        %v1102 = vsel %vm357, %v1027, 0
        %v1105 = vsel %vm357, %v1028, 0
        %v1108 = vsel %vm357, %v1029, 0
        %v1111 = vsel %vm357, %v1030, 0
        %v1114 = vsel %vm357, %v1031, 0
        %v1117 = vsel %vm357, %v1032, 0
        %v1120 = vsel %vm357, %v1033, 0
        %v1123 = vsel %vm357, %v1034, 0
        %v1126 = vsel %vm357, %v1035, 0
        %v1129 = vsel %vm357, %v1036, 0
        %v1132 = vsel %vm357, %v1037, 0
        %v1135 = vsel %vm357, %v1038, 0
        %v1138 = vsel %vm454, %v1040, 0
        %1140 = vmatprep.subr.mxu0 0.0
        %1141 = vmatpush1.msra.mxu0 %v1138
        %1142 = vmatprep.subr.mxu0 0.0
        %1143 = vmatpush1.msra.mxu0 0.0
        %1144 = vmatprep.subr.mxu0 0.0
        %1145 = vmatpush1.msra.mxu0 0.0
        %1146 = vmatprep.subr.mxu0 0.0
        %1147 = vmatpush1.msra.mxu0 0.0
        %1148 = vmatprep.subr.mxu0 0.0
        %1149 = vmatpush1.msra.mxu0 0.0
        %1150 = vmatprep.subr.mxu0 0.0
        %1151 = vmatpush1.msra.mxu0 0.0
        %1152 = vmatprep.subr.mxu0 0.0
        %1153 = vmatpush1.msra.mxu0 0.0
        %1154 = vmatprep.subr.mxu0 0.0
        %1155 = vmatpush1.msra.mxu0 0.0
        %1156 = vmatprep.subr.mxu0 0.0
        %1157 = vmatpush1.msra.mxu0 0.0
        %1158 = vmatprep.subr.mxu0 0.0
        %1159 = vmatpush1.msra.mxu0 0.0
        %1160 = vmatprep.subr.mxu0 0.0
        %1161 = vmatpush1.msra.mxu0 0.0
        %1162 = vmatprep.subr.mxu0 0.0
        %1163 = vmatpush1.msra.mxu0 0.0
        %1164 = vmatprep.subr.mxu0 0.0
        %1165 = vmatpush1.msra.mxu0 0.0
        %1166 = vmatprep.subr.mxu0 0.0
        %1167 = vmatpush1.msra.mxu0 0.0
        %1168 = vmatprep.subr.mxu0 0.0
        %1169 = vmatpush1.msra.mxu0 0.0
        %1170 = vmatprep.subr.mxu0 0.0
        %1171 = vmatpush1.msra.mxu0 0.0
        %1172 = vmatprep.subr.mxu0 0.0
        %1173 = vmatpush1.msra.mxu0 0.0
        %1174 = vmatprep.subr.mxu0 0.0
        %1175 = vmatpush1.msra.mxu0 0.0
        %1176 = vmatprep.subr.mxu0 0.0
        %1177 = vmatpush1.msra.mxu0 0.0
        %1178 = vmatprep.subr.mxu0 0.0
        %1179 = vmatpush1.msra.mxu0 0.0
        %1180 = vmatprep.subr.mxu0 0.0
        %1181 = vmatpush1.msra.mxu0 0.0
        %1182 = vmatprep.subr.mxu0 0.0
        %1183 = vmatpush1.msra.mxu0 0.0
        %1184 = vmatprep.subr.mxu0 0.0
        %1185 = vmatpush1.msra.mxu0 0.0
        %1186 = vmatprep.subr.mxu0 0.0
        %1187 = vmatpush1.msra.mxu0 0.0
        %1188 = vmatprep.subr.mxu0 0.0
        %1189 = vmatpush1.msra.mxu0 0.0
        %1190 = vmatprep.subr.mxu0 0.0
        %1191 = vmatpush1.msra.mxu0 0.0
        %1192 = vmatprep.subr.mxu0 0.0
        %1193 = vmatpush1.msra.mxu0 0.0
        %1194 = vmatprep.subr.mxu0 0.0
        %1195 = vmatpush1.msra.mxu0 0.0
        %1196 = vmatprep.subr.mxu0 0.0
        %1197 = vmatpush1.msra.mxu0 0.0
        %1198 = vmatprep.subr.mxu0 0.0
        %1199 = vmatpush1.msra.mxu0 0.0
        %1200 = vmatprep.subr.mxu0 0.0
        %1201 = vmatpush1.msra.mxu0 0.0
        %1202 = vmatprep.subr.mxu0 0.0
        %1203 = vmatpush1.msra.mxu0 0.0
        %1204 = vmatprep.mubr.f32.mxu0 0.0
        %1205 = vmatmul.mubr.f32.gmra.mrb[0].mxu0 %v1042
        %v1206 = vpop.f32.mrb[0].mxu0
        %v1207 = vadd.f32 0.0, %v1206
        %v1208 = vpop.f32.mrb[0].mxu0
        %1209 = vmatprep.mubr.f32.mxu0 0.0
        %1210 = vmatmul.mubr.f32.gmra.mrb[0].mxu0 %v1045
        %v1211 = vpop.f32.mrb[0].mxu0
        %v1212 = vadd.f32 0.0, %v1211
        %v1213 = vpop.f32.mrb[0].mxu0
        %1214 = vmatprep.mubr.f32.mxu0 0.0
        %1215 = vmatmul.mubr.f32.gmra.mrb[0].mxu0 %v1048
        %v1216 = vpop.f32.mrb[0].mxu0
        %v1217 = vadd.f32 0.0, %v1216
        %v1218 = vpop.f32.mrb[0].mxu0
        %1219 = vmatprep.mubr.f32.mxu0 0.0
        %1220 = vmatmul.mubr.f32.gmra.mrb[0].mxu0 %v1051
        %v1221 = vpop.f32.mrb[0].mxu0
        %v1222 = vadd.f32 0.0, %v1221
        %v1223 = vpop.f32.mrb[0].mxu0
        %1224 = vmatprep.mubr.f32.mxu0 0.0
        %1225 = vmatmul.mubr.f32.gmra.mrb[0].mxu0 %v1054
        %v1226 = vpop.f32.mrb[0].mxu0
        %v1227 = vadd.f32 0.0, %v1226
        %v1228 = vpop.f32.mrb[0].mxu0
        %1229 = vmatprep.mubr.f32.mxu0 0.0
        %1230 = vmatmul.mubr.f32.gmra.mrb[0].mxu0 %v1057
        %v1231 = vpop.f32.mrb[0].mxu0
        %v1232 = vadd.f32 0.0, %v1231
        %v1233 = vpop.f32.mrb[0].mxu0
        %1234 = vmatprep.mubr.f32.mxu0 0.0
        %1235 = vmatmul.mubr.f32.gmra.mrb[0].mxu0 %v1060
        %v1236 = vpop.f32.mrb[0].mxu0
        %v1237 = vadd.f32 0.0, %v1236
        %v1238 = vpop.f32.mrb[0].mxu0
        %1239 = vmatprep.mubr.f32.mxu0 0.0
        %1240 = vmatmul.mubr.f32.gmra.mrb[0].mxu0 %v1063
        %v1241 = vpop.f32.mrb[0].mxu0
        %v1242 = vadd.f32 0.0, %v1241
        %v1243 = vpop.f32.mrb[0].mxu0
        %1244 = vmatprep.mubr.f32.mxu0 0.0
        %1245 = vmatmul.mubr.f32.gmra.mrb[0].mxu0 %v1066
        %v1246 = vpop.f32.mrb[0].mxu0
        %v1247 = vadd.f32 0.0, %v1246
        %v1248 = vpop.f32.mrb[0].mxu0
        %1249 = vmatprep.mubr.f32.mxu0 0.0
        %1250 = vmatmul.mubr.f32.gmra.mrb[0].mxu0 %v1069
        %v1251 = vpop.f32.mrb[0].mxu0
        %v1252 = vadd.f32 0.0, %v1251
        %v1253 = vpop.f32.mrb[0].mxu0
        %1254 = vmatprep.mubr.f32.mxu0 0.0
        %1255 = vmatmul.mubr.f32.gmra.mrb[0].mxu0 %v1072
        %v1256 = vpop.f32.mrb[0].mxu0
        %v1257 = vadd.f32 0.0, %v1256
        %v1258 = vpop.f32.mrb[0].mxu0
        %1259 = vmatprep.mubr.f32.mxu0 0.0
        %1260 = vmatmul.mubr.f32.gmra.mrb[0].mxu0 %v1075
        %v1261 = vpop.f32.mrb[0].mxu0
        %v1262 = vadd.f32 0.0, %v1261
        %v1263 = vpop.f32.mrb[0].mxu0
        %1264 = vmatprep.mubr.f32.mxu0 0.0
        %1265 = vmatmul.mubr.f32.gmra.mrb[0].mxu0 %v1078
        %v1266 = vpop.f32.mrb[0].mxu0
        %v1267 = vadd.f32 0.0, %v1266
        %v1268 = vpop.f32.mrb[0].mxu0
        %1269 = vmatprep.mubr.f32.mxu0 0.0
        %1270 = vmatmul.mubr.f32.gmra.mrb[0].mxu0 %v1081
        %v1271 = vpop.f32.mrb[0].mxu0
        %v1272 = vadd.f32 0.0, %v1271
        %v1273 = vpop.f32.mrb[0].mxu0
        %1274 = vmatprep.mubr.f32.mxu0 0.0
        %1275 = vmatmul.mubr.f32.gmra.mrb[0].mxu0 %v1084
        %v1276 = vpop.f32.mrb[0].mxu0
        %v1277 = vadd.f32 0.0, %v1276
        %v1278 = vpop.f32.mrb[0].mxu0
        %1279 = vmatprep.mubr.f32.mxu0 0.0
        %1280 = vmatmul.mubr.f32.gmra.mrb[0].mxu0 %v1087
        %v1281 = vpop.f32.mrb[0].mxu0
        %v1282 = vadd.f32 0.0, %v1281
        %v1283 = vpop.f32.mrb[0].mxu0
        %1284 = vmatprep.mubr.f32.mxu0 0.0
        %1285 = vmatmul.mubr.f32.gmra.mrb[0].mxu0 %v1090
        %v1286 = vpop.f32.mrb[0].mxu0
        %v1287 = vadd.f32 0.0, %v1286
        %v1288 = vpop.f32.mrb[0].mxu0
        %1289 = vmatprep.mubr.f32.mxu0 0.0
        %1290 = vmatmul.mubr.f32.gmra.mrb[0].mxu0 %v1093
        %v1291 = vpop.f32.mrb[0].mxu0
        %v1292 = vadd.f32 0.0, %v1291
        %v1293 = vpop.f32.mrb[0].mxu0
        %1294 = vmatprep.mubr.f32.mxu0 0.0
        %1295 = vmatmul.mubr.f32.gmra.mrb[0].mxu0 %v1096
        %v1296 = vpop.f32.mrb[0].mxu0
        %v1297 = vadd.f32 0.0, %v1296
        %v1298 = vpop.f32.mrb[0].mxu0
        %1299 = vmatprep.mubr.f32.mxu0 0.0
        %1300 = vmatmul.mubr.f32.gmra.mrb[0].mxu0 %v1099
        %v1301 = vpop.f32.mrb[0].mxu0
        %v1302 = vadd.f32 0.0, %v1301
        %v1303 = vpop.f32.mrb[0].mxu0
        %1304 = vmatprep.mubr.f32.mxu0 0.0
        %1305 = vmatmul.mubr.f32.gmra.mrb[0].mxu0 %v1102
        %v1306 = vpop.f32.mrb[0].mxu0
        %v1307 = vadd.f32 0.0, %v1306
        %v1308 = vpop.f32.mrb[0].mxu0
        %1309 = vmatprep.mubr.f32.mxu0 0.0
        %1310 = vmatmul.mubr.f32.gmra.mrb[0].mxu0 %v1105
        %v1311 = vpop.f32.mrb[0].mxu0
        %v1312 = vadd.f32 0.0, %v1311
        %v1313 = vpop.f32.mrb[0].mxu0
        %1314 = vmatprep.mubr.f32.mxu0 0.0
        %1315 = vmatmul.mubr.f32.gmra.mrb[0].mxu0 %v1108
        %v1316 = vpop.f32.mrb[0].mxu0
        %v1317 = vadd.f32 0.0, %v1316
        %v1318 = vpop.f32.mrb[0].mxu0
        %1319 = vmatprep.mubr.f32.mxu0 0.0
        %1320 = vmatmul.mubr.f32.gmra.mrb[0].mxu0 %v1111
        %v1321 = vpop.f32.mrb[0].mxu0
        %v1322 = vadd.f32 0.0, %v1321
        %v1323 = vpop.f32.mrb[0].mxu0
        %1324 = vmatprep.mubr.f32.mxu0 0.0
        %1325 = vmatmul.mubr.f32.gmra.mrb[0].mxu0 %v1114
        %v1326 = vpop.f32.mrb[0].mxu0
        %v1327 = vadd.f32 0.0, %v1326
        %v1328 = vpop.f32.mrb[0].mxu0
        %1329 = vmatprep.mubr.f32.mxu0 0.0
        %1330 = vmatmul.mubr.f32.gmra.mrb[0].mxu0 %v1117
        %v1331 = vpop.f32.mrb[0].mxu0
        %v1332 = vadd.f32 0.0, %v1331
        %v1333 = vpop.f32.mrb[0].mxu0
        %1334 = vmatprep.mubr.f32.mxu0 0.0
        %1335 = vmatmul.mubr.f32.gmra.mrb[0].mxu0 %v1120
        %v1336 = vpop.f32.mrb[0].mxu0
        %v1337 = vadd.f32 0.0, %v1336
        %v1338 = vpop.f32.mrb[0].mxu0
        %1339 = vmatprep.mubr.f32.mxu0 0.0
        %1340 = vmatmul.mubr.f32.gmra.mrb[0].mxu0 %v1123
        %v1341 = vpop.f32.mrb[0].mxu0
        %v1342 = vadd.f32 0.0, %v1341
        %v1343 = vpop.f32.mrb[0].mxu0
        %1344 = vmatprep.mubr.f32.mxu0 0.0
        %1345 = vmatmul.mubr.f32.gmra.mrb[0].mxu0 %v1126
        %v1346 = vpop.f32.mrb[0].mxu0
        %v1347 = vadd.f32 0.0, %v1346
        %v1348 = vpop.f32.mrb[0].mxu0
        %1349 = vmatprep.mubr.f32.mxu0 0.0
        %1350 = vmatmul.mubr.f32.gmra.mrb[0].mxu0 %v1129
        %v1351 = vpop.f32.mrb[0].mxu0
        %v1352 = vadd.f32 0.0, %v1351
        %v1353 = vpop.f32.mrb[0].mxu0
        %1354 = vmatprep.mubr.f32.mxu0 0.0
        %1355 = vmatmul.mubr.f32.gmra.mrb[0].mxu0 %v1132
        %v1356 = vpop.f32.mrb[0].mxu0
        %v1357 = vadd.f32 0.0, %v1356
        %v1358 = vpop.f32.mrb[0].mxu0
        %1359 = vmatprep.mubr.f32.mxu0 0.0
        %1360 = vmatmul.mubr.f32.gmra.mrb[0].mxu0 %v1135
        %v1361 = vpop.f32.mrb[0].mxu0
        %v1362 = vadd.f32 0.0, %v1361
        %v1363 = vpop.f32.mrb[0].mxu0
        %1364 = vdwg.mxu0
        %v1365 = vadd.f32 %v849, %v1207
        %v1366 = vadd.f32 %v854, %v1212
        %v1367 = vadd.f32 %v859, %v1217
        %v1368 = vadd.f32 %v864, %v1222
        %v1369 = vadd.f32 %v869, %v1227
        %v1370 = vadd.f32 %v874, %v1232
        %v1371 = vadd.f32 %v879, %v1237
        %v1372 = vadd.f32 %v884, %v1242
        %v1373 = vadd.f32 %v889, %v1247
        %v1374 = vadd.f32 %v894, %v1252
        %v1375 = vadd.f32 %v899, %v1257
        %v1376 = vadd.f32 %v904, %v1262
        %v1377 = vadd.f32 %v909, %v1267
        %v1378 = vadd.f32 %v914, %v1272
        %v1379 = vadd.f32 %v919, %v1277
        %v1380 = vadd.f32 %v924, %v1282
        %v1381 = vadd.f32 %v929, %v1287
        %v1382 = vadd.f32 %v934, %v1292
        %v1383 = vadd.f32 %v939, %v1297
        %v1384 = vadd.f32 %v944, %v1302
        %v1385 = vadd.f32 %v949, %v1307
        %v1386 = vadd.f32 %v954, %v1312
        %v1387 = vadd.f32 %v959, %v1317
        %v1388 = vadd.f32 %v964, %v1322
        %v1389 = vadd.f32 %v969, %v1327
        %v1390 = vadd.f32 %v974, %v1332
        %v1391 = vadd.f32 %v979, %v1337
        %v1392 = vadd.f32 %v984, %v1342
        %v1393 = vadd.f32 %v989, %v1347
        %v1394 = vadd.f32 %v994, %v1352
        %v1395 = vadd.f32 %v999, %v1357
        %v1396 = vadd.f32 %v1004, %v1362
        %s1397 = scalar_lea.vmem %s236, 24 [#allocation2]
        %v1398 = vld [vmem:[%s1397] sm:$0xff]
        %v1399 = vld [vmem:[%s1397 + $0x8] sm:$0xff]
        %v1400 = vld [vmem:[%s1397 + $0x18] sm:$0xff]
        %v1401 = vld [vmem:[%s1397 + $0x20] sm:$0xff]
        %v1402 = vld [vmem:[%s1397 + $0x30] sm:$0xff]
        %v1403 = vld [vmem:[%s1397 + $0x38] sm:$0xff]
        %v1404 = vld [vmem:[%s1397 + $0x48] sm:$0xff]
        %v1405 = vld [vmem:[%s1397 + $0x50] sm:$0xff]
        %v1406 = vld [vmem:[%s1397 + $0x60] sm:$0xff]
        %v1407 = vld [vmem:[%s1397 + $0x68] sm:$0xff]
        %v1408 = vld [vmem:[%s1397 + $0x78] sm:$0xff]
        %v1409 = vld [vmem:[%s1397 + $0x80] sm:$0xff]
        %v1410 = vld [vmem:[%s1397 + $0x90] sm:$0xff]
        %v1411 = vld [vmem:[%s1397 + $0x98] sm:$0xff]
        %v1412 = vld [vmem:[%s1397 + $0xa8] sm:$0xff]
        %v1413 = vld [vmem:[%s1397 + $0xb0] sm:$0xff]
        %v1414 = vld [vmem:[%s1397 + $0xc0] sm:$0xff]
        %v1415 = vld [vmem:[%s1397 + $0xc8] sm:$0xff]
        %v1416 = vld [vmem:[%s1397 + $0xd8] sm:$0xff]
        %v1417 = vld [vmem:[%s1397 + $0xe0] sm:$0xff]
        %v1418 = vld [vmem:[%s1397 + $0xf0] sm:$0xff]
        %v1419 = vld [vmem:[%s1397 + $0xf8] sm:$0xff]
        %v1420 = vld [vmem:[%s1397 + $0x108] sm:$0xff]
        %v1421 = vld [vmem:[%s1397 + $0x110] sm:$0xff]
        %v1422 = vld [vmem:[%s1397 + $0x120] sm:$0xff]
        %v1423 = vld [vmem:[%s1397 + $0x128] sm:$0xff]
        %v1424 = vld [vmem:[%s1397 + $0x138] sm:$0xff]
        %v1425 = vld [vmem:[%s1397 + $0x140] sm:$0xff]
        %v1426 = vld [vmem:[%s1397 + $0x150] sm:$0xff]
        %v1427 = vld [vmem:[%s1397 + $0x158] sm:$0xff]
        %v1428 = vld [vmem:[%s1397 + $0x168] sm:$0xff]
        %v1429 = vld [vmem:[%s1397 + $0x170] sm:$0xff]
        %s1430 = scalar_lea.vmem %s245, 12 [#allocation5]
        %v1431 = vld [vmem:[%s1430] sm:$0xf]
        %v1433 = vsel %vm357, %v1398, 0
        %v1436 = vsel %vm357, %v1399, 0
        %v1439 = vsel %vm357, %v1400, 0
        %v1442 = vsel %vm357, %v1401, 0
        %v1445 = vsel %vm357, %v1402, 0
        %v1448 = vsel %vm357, %v1403, 0
        %v1451 = vsel %vm357, %v1404, 0
        %v1454 = vsel %vm357, %v1405, 0
        %v1457 = vsel %vm357, %v1406, 0
        %v1460 = vsel %vm357, %v1407, 0
        %v1463 = vsel %vm357, %v1408, 0
        %v1466 = vsel %vm357, %v1409, 0
        %v1469 = vsel %vm357, %v1410, 0
        %v1472 = vsel %vm357, %v1411, 0
        %v1475 = vsel %vm357, %v1412, 0
        %v1478 = vsel %vm357, %v1413, 0
        %v1481 = vsel %vm357, %v1414, 0
        %v1484 = vsel %vm357, %v1415, 0
        %v1487 = vsel %vm357, %v1416, 0
        %v1490 = vsel %vm357, %v1417, 0
        %v1493 = vsel %vm357, %v1418, 0
        %v1496 = vsel %vm357, %v1419, 0
        %v1499 = vsel %vm357, %v1420, 0
        %v1502 = vsel %vm357, %v1421, 0
        %v1505 = vsel %vm357, %v1422, 0
        %v1508 = vsel %vm357, %v1423, 0
        %v1511 = vsel %vm357, %v1424, 0
        %v1514 = vsel %vm357, %v1425, 0
        %v1517 = vsel %vm357, %v1426, 0
        %v1520 = vsel %vm357, %v1427, 0
        %v1523 = vsel %vm357, %v1428, 0
        %v1526 = vsel %vm357, %v1429, 0
        %v1529 = vsel %vm454, %v1431, 0
        %1531 = vmatprep.subr.mxu0 0.0
        %1532 = vmatpush1.msra.mxu0 %v1529
        %1533 = vmatprep.subr.mxu0 0.0
        %1534 = vmatpush1.msra.mxu0 0.0
        %1535 = vmatprep.subr.mxu0 0.0
        %1536 = vmatpush1.msra.mxu0 0.0
        %1537 = vmatprep.subr.mxu0 0.0
        %1538 = vmatpush1.msra.mxu0 0.0
        %1539 = vmatprep.subr.mxu0 0.0
        %1540 = vmatpush1.msra.mxu0 0.0
        %1541 = vmatprep.subr.mxu0 0.0
        %1542 = vmatpush1.msra.mxu0 0.0
        %1543 = vmatprep.subr.mxu0 0.0
        %1544 = vmatpush1.msra.mxu0 0.0
        %1545 = vmatprep.subr.mxu0 0.0
        %1546 = vmatpush1.msra.mxu0 0.0
        %1547 = vmatprep.subr.mxu0 0.0
        %1548 = vmatpush1.msra.mxu0 0.0
        %1549 = vmatprep.subr.mxu0 0.0
        %1550 = vmatpush1.msra.mxu0 0.0
        %1551 = vmatprep.subr.mxu0 0.0
        %1552 = vmatpush1.msra.mxu0 0.0
        %1553 = vmatprep.subr.mxu0 0.0
        %1554 = vmatpush1.msra.mxu0 0.0
        %1555 = vmatprep.subr.mxu0 0.0
        %1556 = vmatpush1.msra.mxu0 0.0
        %1557 = vmatprep.subr.mxu0 0.0
        %1558 = vmatpush1.msra.mxu0 0.0
        %1559 = vmatprep.subr.mxu0 0.0
        %1560 = vmatpush1.msra.mxu0 0.0
        %1561 = vmatprep.subr.mxu0 0.0
        %1562 = vmatpush1.msra.mxu0 0.0
        %1563 = vmatprep.subr.mxu0 0.0
        %1564 = vmatpush1.msra.mxu0 0.0
        %1565 = vmatprep.subr.mxu0 0.0
        %1566 = vmatpush1.msra.mxu0 0.0
        %1567 = vmatprep.subr.mxu0 0.0
        %1568 = vmatpush1.msra.mxu0 0.0
        %1569 = vmatprep.subr.mxu0 0.0
        %1570 = vmatpush1.msra.mxu0 0.0
        %1571 = vmatprep.subr.mxu0 0.0
        %1572 = vmatpush1.msra.mxu0 0.0
        %1573 = vmatprep.subr.mxu0 0.0
        %1574 = vmatpush1.msra.mxu0 0.0
        %1575 = vmatprep.subr.mxu0 0.0
        %1576 = vmatpush1.msra.mxu0 0.0
        %1577 = vmatprep.subr.mxu0 0.0
        %1578 = vmatpush1.msra.mxu0 0.0
        %1579 = vmatprep.subr.mxu0 0.0
        %1580 = vmatpush1.msra.mxu0 0.0
        %1581 = vmatprep.subr.mxu0 0.0
        %1582 = vmatpush1.msra.mxu0 0.0
        %1583 = vmatprep.subr.mxu0 0.0
        %1584 = vmatpush1.msra.mxu0 0.0
        %1585 = vmatprep.subr.mxu0 0.0
        %1586 = vmatpush1.msra.mxu0 0.0
        %1587 = vmatprep.subr.mxu0 0.0
        %1588 = vmatpush1.msra.mxu0 0.0
        %1589 = vmatprep.subr.mxu0 0.0
        %1590 = vmatpush1.msra.mxu0 0.0
        %1591 = vmatprep.subr.mxu0 0.0
        %1592 = vmatpush1.msra.mxu0 0.0
        %1593 = vmatprep.subr.mxu0 0.0
        %1594 = vmatpush1.msra.mxu0 0.0
        %1595 = vmatprep.mubr.f32.mxu0 0.0
        %1596 = vmatmul.mubr.f32.gmra.mrb[0].mxu0 %v1433
        %v1597 = vpop.f32.mrb[0].mxu0
        %v1598 = vadd.f32 0.0, %v1597
        %v1599 = vpop.f32.mrb[0].mxu0
        %1600 = vmatprep.mubr.f32.mxu0 0.0
        %1601 = vmatmul.mubr.f32.gmra.mrb[0].mxu0 %v1436
        %v1602 = vpop.f32.mrb[0].mxu0
        %v1603 = vadd.f32 0.0, %v1602
        %v1604 = vpop.f32.mrb[0].mxu0
        %1605 = vmatprep.mubr.f32.mxu0 0.0
        %1606 = vmatmul.mubr.f32.gmra.mrb[0].mxu0 %v1439
        %v1607 = vpop.f32.mrb[0].mxu0
        %v1608 = vadd.f32 0.0, %v1607
        %v1609 = vpop.f32.mrb[0].mxu0
        %1610 = vmatprep.mubr.f32.mxu0 0.0
        %1611 = vmatmul.mubr.f32.gmra.mrb[0].mxu0 %v1442
        %v1612 = vpop.f32.mrb[0].mxu0
        %v1613 = vadd.f32 0.0, %v1612
        %v1614 = vpop.f32.mrb[0].mxu0
        %1615 = vmatprep.mubr.f32.mxu0 0.0
        %1616 = vmatmul.mubr.f32.gmra.mrb[0].mxu0 %v1445
        %v1617 = vpop.f32.mrb[0].mxu0
        %v1618 = vadd.f32 0.0, %v1617
        %v1619 = vpop.f32.mrb[0].mxu0
        %1620 = vmatprep.mubr.f32.mxu0 0.0
        %1621 = vmatmul.mubr.f32.gmra.mrb[0].mxu0 %v1448
        %v1622 = vpop.f32.mrb[0].mxu0
        %v1623 = vadd.f32 0.0, %v1622
        %v1624 = vpop.f32.mrb[0].mxu0
        %1625 = vmatprep.mubr.f32.mxu0 0.0
        %1626 = vmatmul.mubr.f32.gmra.mrb[0].mxu0 %v1451
        %v1627 = vpop.f32.mrb[0].mxu0
        %v1628 = vadd.f32 0.0, %v1627
        %v1629 = vpop.f32.mrb[0].mxu0
        %1630 = vmatprep.mubr.f32.mxu0 0.0
        %1631 = vmatmul.mubr.f32.gmra.mrb[0].mxu0 %v1454
        %v1632 = vpop.f32.mrb[0].mxu0
        %v1633 = vadd.f32 0.0, %v1632
        %v1634 = vpop.f32.mrb[0].mxu0
        %1635 = vmatprep.mubr.f32.mxu0 0.0
        %1636 = vmatmul.mubr.f32.gmra.mrb[0].mxu0 %v1457
        %v1637 = vpop.f32.mrb[0].mxu0
        %v1638 = vadd.f32 0.0, %v1637
        %v1639 = vpop.f32.mrb[0].mxu0
        %1640 = vmatprep.mubr.f32.mxu0 0.0
        %1641 = vmatmul.mubr.f32.gmra.mrb[0].mxu0 %v1460
        %v1642 = vpop.f32.mrb[0].mxu0
        %v1643 = vadd.f32 0.0, %v1642
        %v1644 = vpop.f32.mrb[0].mxu0
        %1645 = vmatprep.mubr.f32.mxu0 0.0
        %1646 = vmatmul.mubr.f32.gmra.mrb[0].mxu0 %v1463
        %v1647 = vpop.f32.mrb[0].mxu0
        %v1648 = vadd.f32 0.0, %v1647
        %v1649 = vpop.f32.mrb[0].mxu0
        %1650 = vmatprep.mubr.f32.mxu0 0.0
        %1651 = vmatmul.mubr.f32.gmra.mrb[0].mxu0 %v1466
        %v1652 = vpop.f32.mrb[0].mxu0
        %v1653 = vadd.f32 0.0, %v1652
        %v1654 = vpop.f32.mrb[0].mxu0
        %1655 = vmatprep.mubr.f32.mxu0 0.0
        %1656 = vmatmul.mubr.f32.gmra.mrb[0].mxu0 %v1469
        %v1657 = vpop.f32.mrb[0].mxu0
        %v1658 = vadd.f32 0.0, %v1657
        %v1659 = vpop.f32.mrb[0].mxu0
        %1660 = vmatprep.mubr.f32.mxu0 0.0
        %1661 = vmatmul.mubr.f32.gmra.mrb[0].mxu0 %v1472
        %v1662 = vpop.f32.mrb[0].mxu0
        %v1663 = vadd.f32 0.0, %v1662
        %v1664 = vpop.f32.mrb[0].mxu0
        %1665 = vmatprep.mubr.f32.mxu0 0.0
        %1666 = vmatmul.mubr.f32.gmra.mrb[0].mxu0 %v1475
        %v1667 = vpop.f32.mrb[0].mxu0
        %v1668 = vadd.f32 0.0, %v1667
        %v1669 = vpop.f32.mrb[0].mxu0
        %1670 = vmatprep.mubr.f32.mxu0 0.0
        %1671 = vmatmul.mubr.f32.gmra.mrb[0].mxu0 %v1478
        %v1672 = vpop.f32.mrb[0].mxu0
        %v1673 = vadd.f32 0.0, %v1672
        %v1674 = vpop.f32.mrb[0].mxu0
        %1675 = vmatprep.mubr.f32.mxu0 0.0
        %1676 = vmatmul.mubr.f32.gmra.mrb[0].mxu0 %v1481
        %v1677 = vpop.f32.mrb[0].mxu0
        %v1678 = vadd.f32 0.0, %v1677
        %v1679 = vpop.f32.mrb[0].mxu0
        %1680 = vmatprep.mubr.f32.mxu0 0.0
        %1681 = vmatmul.mubr.f32.gmra.mrb[0].mxu0 %v1484
        %v1682 = vpop.f32.mrb[0].mxu0
        %v1683 = vadd.f32 0.0, %v1682
        %v1684 = vpop.f32.mrb[0].mxu0
        %1685 = vmatprep.mubr.f32.mxu0 0.0
        %1686 = vmatmul.mubr.f32.gmra.mrb[0].mxu0 %v1487
        %v1687 = vpop.f32.mrb[0].mxu0
        %v1688 = vadd.f32 0.0, %v1687
        %v1689 = vpop.f32.mrb[0].mxu0
        %1690 = vmatprep.mubr.f32.mxu0 0.0
        %1691 = vmatmul.mubr.f32.gmra.mrb[0].mxu0 %v1490
        %v1692 = vpop.f32.mrb[0].mxu0
        %v1693 = vadd.f32 0.0, %v1692
        %v1694 = vpop.f32.mrb[0].mxu0
        %1695 = vmatprep.mubr.f32.mxu0 0.0
        %1696 = vmatmul.mubr.f32.gmra.mrb[0].mxu0 %v1493
        %v1697 = vpop.f32.mrb[0].mxu0
        %v1698 = vadd.f32 0.0, %v1697
        %v1699 = vpop.f32.mrb[0].mxu0
        %1700 = vmatprep.mubr.f32.mxu0 0.0
        %1701 = vmatmul.mubr.f32.gmra.mrb[0].mxu0 %v1496
        %v1702 = vpop.f32.mrb[0].mxu0
        %v1703 = vadd.f32 0.0, %v1702
        %v1704 = vpop.f32.mrb[0].mxu0
        %1705 = vmatprep.mubr.f32.mxu0 0.0
        %1706 = vmatmul.mubr.f32.gmra.mrb[0].mxu0 %v1499
        %v1707 = vpop.f32.mrb[0].mxu0
        %v1708 = vadd.f32 0.0, %v1707
        %v1709 = vpop.f32.mrb[0].mxu0
        %1710 = vmatprep.mubr.f32.mxu0 0.0
        %1711 = vmatmul.mubr.f32.gmra.mrb[0].mxu0 %v1502
        %v1712 = vpop.f32.mrb[0].mxu0
        %v1713 = vadd.f32 0.0, %v1712
        %v1714 = vpop.f32.mrb[0].mxu0
        %1715 = vmatprep.mubr.f32.mxu0 0.0
        %1716 = vmatmul.mubr.f32.gmra.mrb[0].mxu0 %v1505
        %v1717 = vpop.f32.mrb[0].mxu0
        %v1718 = vadd.f32 0.0, %v1717
        %v1719 = vpop.f32.mrb[0].mxu0
        %1720 = vmatprep.mubr.f32.mxu0 0.0
        %1721 = vmatmul.mubr.f32.gmra.mrb[0].mxu0 %v1508
        %v1722 = vpop.f32.mrb[0].mxu0
        %v1723 = vadd.f32 0.0, %v1722
        %v1724 = vpop.f32.mrb[0].mxu0
        %1725 = vmatprep.mubr.f32.mxu0 0.0
        %1726 = vmatmul.mubr.f32.gmra.mrb[0].mxu0 %v1511
        %v1727 = vpop.f32.mrb[0].mxu0
        %v1728 = vadd.f32 0.0, %v1727
        %v1729 = vpop.f32.mrb[0].mxu0
        %1730 = vmatprep.mubr.f32.mxu0 0.0
        %1731 = vmatmul.mubr.f32.gmra.mrb[0].mxu0 %v1514
        %v1732 = vpop.f32.mrb[0].mxu0
        %v1733 = vadd.f32 0.0, %v1732
        %v1734 = vpop.f32.mrb[0].mxu0
        %1735 = vmatprep.mubr.f32.mxu0 0.0
        %1736 = vmatmul.mubr.f32.gmra.mrb[0].mxu0 %v1517
        %v1737 = vpop.f32.mrb[0].mxu0
        %v1738 = vadd.f32 0.0, %v1737
        %v1739 = vpop.f32.mrb[0].mxu0
        %1740 = vmatprep.mubr.f32.mxu0 0.0
        %1741 = vmatmul.mubr.f32.gmra.mrb[0].mxu0 %v1520
        %v1742 = vpop.f32.mrb[0].mxu0
        %v1743 = vadd.f32 0.0, %v1742
        %v1744 = vpop.f32.mrb[0].mxu0
        %1745 = vmatprep.mubr.f32.mxu0 0.0
        %1746 = vmatmul.mubr.f32.gmra.mrb[0].mxu0 %v1523
        %v1747 = vpop.f32.mrb[0].mxu0
        %v1748 = vadd.f32 0.0, %v1747
        %v1749 = vpop.f32.mrb[0].mxu0
        %1750 = vmatprep.mubr.f32.mxu0 0.0
        %1751 = vmatmul.mubr.f32.gmra.mrb[0].mxu0 %v1526
        %v1752 = vpop.f32.mrb[0].mxu0
        %v1753 = vadd.f32 0.0, %v1752
        %v1754 = vpop.f32.mrb[0].mxu0
        %1755 = vdwg.mxu0
        %v1756 = vadd.f32 %v1365, %v1598
        %v1757 = vadd.f32 %v1366, %v1603
        %v1758 = vadd.f32 %v1367, %v1608
        %v1759 = vadd.f32 %v1368, %v1613
        %v1760 = vadd.f32 %v1369, %v1618
        %v1761 = vadd.f32 %v1370, %v1623
        %v1762 = vadd.f32 %v1371, %v1628
        %v1763 = vadd.f32 %v1372, %v1633
        %v1764 = vadd.f32 %v1373, %v1638
        %v1765 = vadd.f32 %v1374, %v1643
        %v1766 = vadd.f32 %v1375, %v1648
        %v1767 = vadd.f32 %v1376, %v1653
        %v1768 = vadd.f32 %v1377, %v1658
        %v1769 = vadd.f32 %v1378, %v1663
        %v1770 = vadd.f32 %v1379, %v1668
        %v1771 = vadd.f32 %v1380, %v1673
        %v1772 = vadd.f32 %v1381, %v1678
        %v1773 = vadd.f32 %v1382, %v1683
        %v1774 = vadd.f32 %v1383, %v1688
        %v1775 = vadd.f32 %v1384, %v1693
        %v1776 = vadd.f32 %v1385, %v1698
        %v1777 = vadd.f32 %v1386, %v1703
        %v1778 = vadd.f32 %v1387, %v1708
        %v1779 = vadd.f32 %v1388, %v1713
        %v1780 = vadd.f32 %v1389, %v1718
        %v1781 = vadd.f32 %v1390, %v1723
        %v1782 = vadd.f32 %v1391, %v1728
        %v1783 = vadd.f32 %v1392, %v1733
        %v1784 = vadd.f32 %v1393, %v1738
        %v1785 = vadd.f32 %v1394, %v1743
        %v1786 = vadd.f32 %v1395, %v1748
        %v1787 = vadd.f32 %v1396, %v1753
        %v1788 = vld [vmem:[%s1397 + $0x1] sm:$0xff]
        %v1789 = vld [vmem:[%s1397 + $0x9] sm:$0xff]
        %v1790 = vld [vmem:[%s1397 + $0x19] sm:$0xff]
        %v1791 = vld [vmem:[%s1397 + $0x21] sm:$0xff]
        %v1792 = vld [vmem:[%s1397 + $0x31] sm:$0xff]
        %v1793 = vld [vmem:[%s1397 + $0x39] sm:$0xff]
        %v1794 = vld [vmem:[%s1397 + $0x49] sm:$0xff]
        %v1795 = vld [vmem:[%s1397 + $0x51] sm:$0xff]
        %v1796 = vld [vmem:[%s1397 + $0x61] sm:$0xff]
        %v1797 = vld [vmem:[%s1397 + $0x69] sm:$0xff]
        %v1798 = vld [vmem:[%s1397 + $0x79] sm:$0xff]
        %v1799 = vld [vmem:[%s1397 + $0x81] sm:$0xff]
        %v1800 = vld [vmem:[%s1397 + $0x91] sm:$0xff]
        %v1801 = vld [vmem:[%s1397 + $0x99] sm:$0xff]
        %v1802 = vld [vmem:[%s1397 + $0xa9] sm:$0xff]
        %v1803 = vld [vmem:[%s1397 + $0xb1] sm:$0xff]
        %v1804 = vld [vmem:[%s1397 + $0xc1] sm:$0xff]
        %v1805 = vld [vmem:[%s1397 + $0xc9] sm:$0xff]
        %v1806 = vld [vmem:[%s1397 + $0xd9] sm:$0xff]
        %v1807 = vld [vmem:[%s1397 + $0xe1] sm:$0xff]
        %v1808 = vld [vmem:[%s1397 + $0xf1] sm:$0xff]
        %v1809 = vld [vmem:[%s1397 + $0xf9] sm:$0xff]
        %v1810 = vld [vmem:[%s1397 + $0x109] sm:$0xff]
        %v1811 = vld [vmem:[%s1397 + $0x111] sm:$0xff]
        %v1812 = vld [vmem:[%s1397 + $0x121] sm:$0xff]
        %v1813 = vld [vmem:[%s1397 + $0x129] sm:$0xff]
        %v1814 = vld [vmem:[%s1397 + $0x139] sm:$0xff]
        %v1815 = vld [vmem:[%s1397 + $0x141] sm:$0xff]
        %v1816 = vld [vmem:[%s1397 + $0x151] sm:$0xff]
        %v1817 = vld [vmem:[%s1397 + $0x159] sm:$0xff]
        %v1818 = vld [vmem:[%s1397 + $0x169] sm:$0xff]
        %v1819 = vld [vmem:[%s1397 + $0x171] sm:$0xff]
        %s1820 = scalar_lea.vmem %s245, 16 [#allocation5]
        %v1821 = vld [vmem:[%s1820] sm:$0xf]
        %v1823 = vsel %vm357, %v1788, 0
        %v1826 = vsel %vm357, %v1789, 0
        %v1829 = vsel %vm357, %v1790, 0
        %v1832 = vsel %vm357, %v1791, 0
        %v1835 = vsel %vm357, %v1792, 0
        %v1838 = vsel %vm357, %v1793, 0
        %v1841 = vsel %vm357, %v1794, 0
        %v1844 = vsel %vm357, %v1795, 0
        %v1847 = vsel %vm357, %v1796, 0
        %v1850 = vsel %vm357, %v1797, 0
        %v1853 = vsel %vm357, %v1798, 0
        %v1856 = vsel %vm357, %v1799, 0
        %v1859 = vsel %vm357, %v1800, 0
        %v1862 = vsel %vm357, %v1801, 0
        %v1865 = vsel %vm357, %v1802, 0
        %v1868 = vsel %vm357, %v1803, 0
        %v1871 = vsel %vm357, %v1804, 0
        %v1874 = vsel %vm357, %v1805, 0
        %v1877 = vsel %vm357, %v1806, 0
        %v1880 = vsel %vm357, %v1807, 0
        %v1883 = vsel %vm357, %v1808, 0
        %v1886 = vsel %vm357, %v1809, 0
        %v1889 = vsel %vm357, %v1810, 0
        %v1892 = vsel %vm357, %v1811, 0
        %v1895 = vsel %vm357, %v1812, 0
        %v1898 = vsel %vm357, %v1813, 0
        %v1901 = vsel %vm357, %v1814, 0
        %v1904 = vsel %vm357, %v1815, 0
        %v1907 = vsel %vm357, %v1816, 0
        %v1910 = vsel %vm357, %v1817, 0
        %v1913 = vsel %vm357, %v1818, 0
        %v1916 = vsel %vm357, %v1819, 0
        %v1919 = vsel %vm454, %v1821, 0
        %1921 = vmatprep.subr.mxu0 0.0
        %1922 = vmatpush1.msra.mxu0 %v1919
        %1923 = vmatprep.subr.mxu0 0.0
        %1924 = vmatpush1.msra.mxu0 0.0
        %1925 = vmatprep.subr.mxu0 0.0
        %1926 = vmatpush1.msra.mxu0 0.0
        %1927 = vmatprep.subr.mxu0 0.0
        %1928 = vmatpush1.msra.mxu0 0.0
        %1929 = vmatprep.subr.mxu0 0.0
        %1930 = vmatpush1.msra.mxu0 0.0
        %1931 = vmatprep.subr.mxu0 0.0
        %1932 = vmatpush1.msra.mxu0 0.0
        %1933 = vmatprep.subr.mxu0 0.0
        %1934 = vmatpush1.msra.mxu0 0.0
        %1935 = vmatprep.subr.mxu0 0.0
        %1936 = vmatpush1.msra.mxu0 0.0
        %1937 = vmatprep.subr.mxu0 0.0
        %1938 = vmatpush1.msra.mxu0 0.0
        %1939 = vmatprep.subr.mxu0 0.0
        %1940 = vmatpush1.msra.mxu0 0.0
        %1941 = vmatprep.subr.mxu0 0.0
        %1942 = vmatpush1.msra.mxu0 0.0
        %1943 = vmatprep.subr.mxu0 0.0
        %1944 = vmatpush1.msra.mxu0 0.0
        %1945 = vmatprep.subr.mxu0 0.0
        %1946 = vmatpush1.msra.mxu0 0.0
        %1947 = vmatprep.subr.mxu0 0.0
        %1948 = vmatpush1.msra.mxu0 0.0
        %1949 = vmatprep.subr.mxu0 0.0
        %1950 = vmatpush1.msra.mxu0 0.0
        %1951 = vmatprep.subr.mxu0 0.0
        %1952 = vmatpush1.msra.mxu0 0.0
        %1953 = vmatprep.subr.mxu0 0.0
        %1954 = vmatpush1.msra.mxu0 0.0
        %1955 = vmatprep.subr.mxu0 0.0
        %1956 = vmatpush1.msra.mxu0 0.0
        %1957 = vmatprep.subr.mxu0 0.0
        %1958 = vmatpush1.msra.mxu0 0.0
        %1959 = vmatprep.subr.mxu0 0.0
        %1960 = vmatpush1.msra.mxu0 0.0
        %1961 = vmatprep.subr.mxu0 0.0
        %1962 = vmatpush1.msra.mxu0 0.0
        %1963 = vmatprep.subr.mxu0 0.0
        %1964 = vmatpush1.msra.mxu0 0.0
        %1965 = vmatprep.subr.mxu0 0.0
        %1966 = vmatpush1.msra.mxu0 0.0
        %1967 = vmatprep.subr.mxu0 0.0
        %1968 = vmatpush1.msra.mxu0 0.0
        %1969 = vmatprep.subr.mxu0 0.0
        %1970 = vmatpush1.msra.mxu0 0.0
        %1971 = vmatprep.subr.mxu0 0.0
        %1972 = vmatpush1.msra.mxu0 0.0
        %1973 = vmatprep.subr.mxu0 0.0
        %1974 = vmatpush1.msra.mxu0 0.0
        %1975 = vmatprep.subr.mxu0 0.0
        %1976 = vmatpush1.msra.mxu0 0.0
        %1977 = vmatprep.subr.mxu0 0.0
        %1978 = vmatpush1.msra.mxu0 0.0
        %1979 = vmatprep.subr.mxu0 0.0
        %1980 = vmatpush1.msra.mxu0 0.0
        %1981 = vmatprep.subr.mxu0 0.0
        %1982 = vmatpush1.msra.mxu0 0.0
        %1983 = vmatprep.subr.mxu0 0.0
        %1984 = vmatpush1.msra.mxu0 0.0
        %1985 = vmatprep.mubr.f32.mxu0 0.0
        %1986 = vmatmul.mubr.f32.gmra.mrb[0].mxu0 %v1823
        %v1987 = vpop.f32.mrb[0].mxu0
        %v1988 = vadd.f32 0.0, %v1987
        %v1989 = vpop.f32.mrb[0].mxu0
        %1990 = vmatprep.mubr.f32.mxu0 0.0
        %1991 = vmatmul.mubr.f32.gmra.mrb[0].mxu0 %v1826
        %v1992 = vpop.f32.mrb[0].mxu0
        %v1993 = vadd.f32 0.0, %v1992
        %v1994 = vpop.f32.mrb[0].mxu0
        %1995 = vmatprep.mubr.f32.mxu0 0.0
        %1996 = vmatmul.mubr.f32.gmra.mrb[0].mxu0 %v1829
        %v1997 = vpop.f32.mrb[0].mxu0
        %v1998 = vadd.f32 0.0, %v1997
        %v1999 = vpop.f32.mrb[0].mxu0
        %2000 = vmatprep.mubr.f32.mxu0 0.0
        %2001 = vmatmul.mubr.f32.gmra.mrb[0].mxu0 %v1832
        %v2002 = vpop.f32.mrb[0].mxu0
        %v2003 = vadd.f32 0.0, %v2002
        %v2004 = vpop.f32.mrb[0].mxu0
        %2005 = vmatprep.mubr.f32.mxu0 0.0
        %2006 = vmatmul.mubr.f32.gmra.mrb[0].mxu0 %v1835
        %v2007 = vpop.f32.mrb[0].mxu0
        %v2008 = vadd.f32 0.0, %v2007
        %v2009 = vpop.f32.mrb[0].mxu0
        %2010 = vmatprep.mubr.f32.mxu0 0.0
        %2011 = vmatmul.mubr.f32.gmra.mrb[0].mxu0 %v1838
        %v2012 = vpop.f32.mrb[0].mxu0
        %v2013 = vadd.f32 0.0, %v2012
        %v2014 = vpop.f32.mrb[0].mxu0
        %2015 = vmatprep.mubr.f32.mxu0 0.0
        %2016 = vmatmul.mubr.f32.gmra.mrb[0].mxu0 %v1841
        %v2017 = vpop.f32.mrb[0].mxu0
        %v2018 = vadd.f32 0.0, %v2017
        %v2019 = vpop.f32.mrb[0].mxu0
        %2020 = vmatprep.mubr.f32.mxu0 0.0
        %2021 = vmatmul.mubr.f32.gmra.mrb[0].mxu0 %v1844
        %v2022 = vpop.f32.mrb[0].mxu0
        %v2023 = vadd.f32 0.0, %v2022
        %v2024 = vpop.f32.mrb[0].mxu0
        %2025 = vmatprep.mubr.f32.mxu0 0.0
        %2026 = vmatmul.mubr.f32.gmra.mrb[0].mxu0 %v1847
        %v2027 = vpop.f32.mrb[0].mxu0
        %v2028 = vadd.f32 0.0, %v2027
        %v2029 = vpop.f32.mrb[0].mxu0
        %2030 = vmatprep.mubr.f32.mxu0 0.0
        %2031 = vmatmul.mubr.f32.gmra.mrb[0].mxu0 %v1850
        %v2032 = vpop.f32.mrb[0].mxu0
        %v2033 = vadd.f32 0.0, %v2032
        %v2034 = vpop.f32.mrb[0].mxu0
        %2035 = vmatprep.mubr.f32.mxu0 0.0
        %2036 = vmatmul.mubr.f32.gmra.mrb[0].mxu0 %v1853
        %v2037 = vpop.f32.mrb[0].mxu0
        %v2038 = vadd.f32 0.0, %v2037
        %v2039 = vpop.f32.mrb[0].mxu0
        %2040 = vmatprep.mubr.f32.mxu0 0.0
        %2041 = vmatmul.mubr.f32.gmra.mrb[0].mxu0 %v1856
        %v2042 = vpop.f32.mrb[0].mxu0
        %v2043 = vadd.f32 0.0, %v2042
        %v2044 = vpop.f32.mrb[0].mxu0
        %2045 = vmatprep.mubr.f32.mxu0 0.0
        %2046 = vmatmul.mubr.f32.gmra.mrb[0].mxu0 %v1859
        %v2047 = vpop.f32.mrb[0].mxu0
        %v2048 = vadd.f32 0.0, %v2047
        %v2049 = vpop.f32.mrb[0].mxu0
        %2050 = vmatprep.mubr.f32.mxu0 0.0
        %2051 = vmatmul.mubr.f32.gmra.mrb[0].mxu0 %v1862
        %v2052 = vpop.f32.mrb[0].mxu0
        %v2053 = vadd.f32 0.0, %v2052
        %v2054 = vpop.f32.mrb[0].mxu0
        %2055 = vmatprep.mubr.f32.mxu0 0.0
        %2056 = vmatmul.mubr.f32.gmra.mrb[0].mxu0 %v1865
        %v2057 = vpop.f32.mrb[0].mxu0
        %v2058 = vadd.f32 0.0, %v2057
        %v2059 = vpop.f32.mrb[0].mxu0
        %2060 = vmatprep.mubr.f32.mxu0 0.0
        %2061 = vmatmul.mubr.f32.gmra.mrb[0].mxu0 %v1868
        %v2062 = vpop.f32.mrb[0].mxu0
        %v2063 = vadd.f32 0.0, %v2062
        %v2064 = vpop.f32.mrb[0].mxu0
        %2065 = vmatprep.mubr.f32.mxu0 0.0
        %2066 = vmatmul.mubr.f32.gmra.mrb[0].mxu0 %v1871
        %v2067 = vpop.f32.mrb[0].mxu0
        %v2068 = vadd.f32 0.0, %v2067
        %v2069 = vpop.f32.mrb[0].mxu0
        %2070 = vmatprep.mubr.f32.mxu0 0.0
        %2071 = vmatmul.mubr.f32.gmra.mrb[0].mxu0 %v1874
        %v2072 = vpop.f32.mrb[0].mxu0
        %v2073 = vadd.f32 0.0, %v2072
        %v2074 = vpop.f32.mrb[0].mxu0
        %2075 = vmatprep.mubr.f32.mxu0 0.0
        %2076 = vmatmul.mubr.f32.gmra.mrb[0].mxu0 %v1877
        %v2077 = vpop.f32.mrb[0].mxu0
        %v2078 = vadd.f32 0.0, %v2077
        %v2079 = vpop.f32.mrb[0].mxu0
        %2080 = vmatprep.mubr.f32.mxu0 0.0
        %2081 = vmatmul.mubr.f32.gmra.mrb[0].mxu0 %v1880
        %v2082 = vpop.f32.mrb[0].mxu0
        %v2083 = vadd.f32 0.0, %v2082
        %v2084 = vpop.f32.mrb[0].mxu0
        %2085 = vmatprep.mubr.f32.mxu0 0.0
        %2086 = vmatmul.mubr.f32.gmra.mrb[0].mxu0 %v1883
        %v2087 = vpop.f32.mrb[0].mxu0
        %v2088 = vadd.f32 0.0, %v2087
        %v2089 = vpop.f32.mrb[0].mxu0
        %2090 = vmatprep.mubr.f32.mxu0 0.0
        %2091 = vmatmul.mubr.f32.gmra.mrb[0].mxu0 %v1886
        %v2092 = vpop.f32.mrb[0].mxu0
        %v2093 = vadd.f32 0.0, %v2092
        %v2094 = vpop.f32.mrb[0].mxu0
        %2095 = vmatprep.mubr.f32.mxu0 0.0
        %2096 = vmatmul.mubr.f32.gmra.mrb[0].mxu0 %v1889
        %v2097 = vpop.f32.mrb[0].mxu0
        %v2098 = vadd.f32 0.0, %v2097
        %v2099 = vpop.f32.mrb[0].mxu0
        %2100 = vmatprep.mubr.f32.mxu0 0.0
        %2101 = vmatmul.mubr.f32.gmra.mrb[0].mxu0 %v1892
        %v2102 = vpop.f32.mrb[0].mxu0
        %v2103 = vadd.f32 0.0, %v2102
        %v2104 = vpop.f32.mrb[0].mxu0
        %2105 = vmatprep.mubr.f32.mxu0 0.0
        %2106 = vmatmul.mubr.f32.gmra.mrb[0].mxu0 %v1895
        %v2107 = vpop.f32.mrb[0].mxu0
        %v2108 = vadd.f32 0.0, %v2107
        %v2109 = vpop.f32.mrb[0].mxu0
        %2110 = vmatprep.mubr.f32.mxu0 0.0
        %2111 = vmatmul.mubr.f32.gmra.mrb[0].mxu0 %v1898
        %v2112 = vpop.f32.mrb[0].mxu0
        %v2113 = vadd.f32 0.0, %v2112
        %v2114 = vpop.f32.mrb[0].mxu0
        %2115 = vmatprep.mubr.f32.mxu0 0.0
        %2116 = vmatmul.mubr.f32.gmra.mrb[0].mxu0 %v1901
        %v2117 = vpop.f32.mrb[0].mxu0
        %v2118 = vadd.f32 0.0, %v2117
        %v2119 = vpop.f32.mrb[0].mxu0
        %2120 = vmatprep.mubr.f32.mxu0 0.0
        %2121 = vmatmul.mubr.f32.gmra.mrb[0].mxu0 %v1904
        %v2122 = vpop.f32.mrb[0].mxu0
        %v2123 = vadd.f32 0.0, %v2122
        %v2124 = vpop.f32.mrb[0].mxu0
        %2125 = vmatprep.mubr.f32.mxu0 0.0
        %2126 = vmatmul.mubr.f32.gmra.mrb[0].mxu0 %v1907
        %v2127 = vpop.f32.mrb[0].mxu0
        %v2128 = vadd.f32 0.0, %v2127
        %v2129 = vpop.f32.mrb[0].mxu0
        %2130 = vmatprep.mubr.f32.mxu0 0.0
        %2131 = vmatmul.mubr.f32.gmra.mrb[0].mxu0 %v1910
        %v2132 = vpop.f32.mrb[0].mxu0
        %v2133 = vadd.f32 0.0, %v2132
        %v2134 = vpop.f32.mrb[0].mxu0
        %2135 = vmatprep.mubr.f32.mxu0 0.0
        %2136 = vmatmul.mubr.f32.gmra.mrb[0].mxu0 %v1913
        %v2137 = vpop.f32.mrb[0].mxu0
        %v2138 = vadd.f32 0.0, %v2137
        %v2139 = vpop.f32.mrb[0].mxu0
        %2140 = vmatprep.mubr.f32.mxu0 0.0
        %2141 = vmatmul.mubr.f32.gmra.mrb[0].mxu0 %v1916
        %v2142 = vpop.f32.mrb[0].mxu0
        %v2143 = vadd.f32 0.0, %v2142
        %v2144 = vpop.f32.mrb[0].mxu0
        %2145 = vdwg.mxu0
        %v2146 = vadd.f32 %v1756, %v1988
        %v2147 = vadd.f32 %v1757, %v1993
        %v2148 = vadd.f32 %v1758, %v1998
        %v2149 = vadd.f32 %v1759, %v2003
        %v2150 = vadd.f32 %v1760, %v2008
        %v2151 = vadd.f32 %v1761, %v2013
        %v2152 = vadd.f32 %v1762, %v2018
        %v2153 = vadd.f32 %v1763, %v2023
        %v2154 = vadd.f32 %v1764, %v2028
        %v2155 = vadd.f32 %v1765, %v2033
        %v2156 = vadd.f32 %v1766, %v2038
        %v2157 = vadd.f32 %v1767, %v2043
        %v2158 = vadd.f32 %v1768, %v2048
        %v2159 = vadd.f32 %v1769, %v2053
        %v2160 = vadd.f32 %v1770, %v2058
        %v2161 = vadd.f32 %v1771, %v2063
        %v2162 = vadd.f32 %v1772, %v2068
        %v2163 = vadd.f32 %v1773, %v2073
        %v2164 = vadd.f32 %v1774, %v2078
        %v2165 = vadd.f32 %v1775, %v2083
        %v2166 = vadd.f32 %v1776, %v2088
        %v2167 = vadd.f32 %v1777, %v2093
        %v2168 = vadd.f32 %v1778, %v2098
        %v2169 = vadd.f32 %v1779, %v2103
        %v2170 = vadd.f32 %v1780, %v2108
        %v2171 = vadd.f32 %v1781, %v2113
        %v2172 = vadd.f32 %v1782, %v2118
        %v2173 = vadd.f32 %v1783, %v2123
        %v2174 = vadd.f32 %v1784, %v2128
        %v2175 = vadd.f32 %v1785, %v2133
        %v2176 = vadd.f32 %v1786, %v2138
        %v2177 = vadd.f32 %v1787, %v2143
        %v2178 = vld [vmem:[%s1397 + $0x2] sm:$0xff]
        %v2179 = vld [vmem:[%s1397 + $0xa] sm:$0xff]
        %v2180 = vld [vmem:[%s1397 + $0x1a] sm:$0xff]
        %v2181 = vld [vmem:[%s1397 + $0x22] sm:$0xff]
        %v2182 = vld [vmem:[%s1397 + $0x32] sm:$0xff]
        %v2183 = vld [vmem:[%s1397 + $0x3a] sm:$0xff]
        %v2184 = vld [vmem:[%s1397 + $0x4a] sm:$0xff]
        %v2185 = vld [vmem:[%s1397 + $0x52] sm:$0xff]
        %v2186 = vld [vmem:[%s1397 + $0x62] sm:$0xff]
        %v2187 = vld [vmem:[%s1397 + $0x6a] sm:$0xff]
        %v2188 = vld [vmem:[%s1397 + $0x7a] sm:$0xff]
        %v2189 = vld [vmem:[%s1397 + $0x82] sm:$0xff]
        %v2190 = vld [vmem:[%s1397 + $0x92] sm:$0xff]
        %v2191 = vld [vmem:[%s1397 + $0x9a] sm:$0xff]
        %v2192 = vld [vmem:[%s1397 + $0xaa] sm:$0xff]
        %v2193 = vld [vmem:[%s1397 + $0xb2] sm:$0xff]
        %v2194 = vld [vmem:[%s1397 + $0xc2] sm:$0xff]
        %v2195 = vld [vmem:[%s1397 + $0xca] sm:$0xff]
        %v2196 = vld [vmem:[%s1397 + $0xda] sm:$0xff]
        %v2197 = vld [vmem:[%s1397 + $0xe2] sm:$0xff]
        %v2198 = vld [vmem:[%s1397 + $0xf2] sm:$0xff]
        %v2199 = vld [vmem:[%s1397 + $0xfa] sm:$0xff]
        %v2200 = vld [vmem:[%s1397 + $0x10a] sm:$0xff]
        %v2201 = vld [vmem:[%s1397 + $0x112] sm:$0xff]
        %v2202 = vld [vmem:[%s1397 + $0x122] sm:$0xff]
        %v2203 = vld [vmem:[%s1397 + $0x12a] sm:$0xff]
        %v2204 = vld [vmem:[%s1397 + $0x13a] sm:$0xff]
        %v2205 = vld [vmem:[%s1397 + $0x142] sm:$0xff]
        %v2206 = vld [vmem:[%s1397 + $0x152] sm:$0xff]
        %v2207 = vld [vmem:[%s1397 + $0x15a] sm:$0xff]
        %v2208 = vld [vmem:[%s1397 + $0x16a] sm:$0xff]
        %v2209 = vld [vmem:[%s1397 + $0x172] sm:$0xff]
        %s2210 = scalar_lea.vmem %s245, 20 [#allocation5]
        %v2211 = vld [vmem:[%s2210] sm:$0xf]
        %v2213 = vsel %vm357, %v2178, 0
        %v2216 = vsel %vm357, %v2179, 0
        %v2219 = vsel %vm357, %v2180, 0
        %v2222 = vsel %vm357, %v2181, 0
        %v2225 = vsel %vm357, %v2182, 0
        %v2228 = vsel %vm357, %v2183, 0
        %v2231 = vsel %vm357, %v2184, 0
        %v2234 = vsel %vm357, %v2185, 0
        %v2237 = vsel %vm357, %v2186, 0
        %v2240 = vsel %vm357, %v2187, 0
        %v2243 = vsel %vm357, %v2188, 0
        %v2246 = vsel %vm357, %v2189, 0
        %v2249 = vsel %vm357, %v2190, 0
        %v2252 = vsel %vm357, %v2191, 0
        %v2255 = vsel %vm357, %v2192, 0
        %v2258 = vsel %vm357, %v2193, 0
        %v2261 = vsel %vm357, %v2194, 0
        %v2264 = vsel %vm357, %v2195, 0
        %v2267 = vsel %vm357, %v2196, 0
        %v2270 = vsel %vm357, %v2197, 0
        %v2273 = vsel %vm357, %v2198, 0
        %v2276 = vsel %vm357, %v2199, 0
        %v2279 = vsel %vm357, %v2200, 0
        %v2282 = vsel %vm357, %v2201, 0
        %v2285 = vsel %vm357, %v2202, 0
        %v2288 = vsel %vm357, %v2203, 0
        %v2291 = vsel %vm357, %v2204, 0
        %v2294 = vsel %vm357, %v2205, 0
        %v2297 = vsel %vm357, %v2206, 0
        %v2300 = vsel %vm357, %v2207, 0
        %v2303 = vsel %vm357, %v2208, 0
        %v2306 = vsel %vm357, %v2209, 0
        %v2309 = vsel %vm454, %v2211, 0
        %2311 = vmatprep.subr.mxu0 0.0
        %2312 = vmatpush1.msra.mxu0 %v2309
        %2313 = vmatprep.subr.mxu0 0.0
        %2314 = vmatpush1.msra.mxu0 0.0
        %2315 = vmatprep.subr.mxu0 0.0
        %2316 = vmatpush1.msra.mxu0 0.0
        %2317 = vmatprep.subr.mxu0 0.0
        %2318 = vmatpush1.msra.mxu0 0.0
        %2319 = vmatprep.subr.mxu0 0.0
        %2320 = vmatpush1.msra.mxu0 0.0
        %2321 = vmatprep.subr.mxu0 0.0
        %2322 = vmatpush1.msra.mxu0 0.0
        %2323 = vmatprep.subr.mxu0 0.0
        %2324 = vmatpush1.msra.mxu0 0.0
        %2325 = vmatprep.subr.mxu0 0.0
        %2326 = vmatpush1.msra.mxu0 0.0
        %2327 = vmatprep.subr.mxu0 0.0
        %2328 = vmatpush1.msra.mxu0 0.0
        %2329 = vmatprep.subr.mxu0 0.0
        %2330 = vmatpush1.msra.mxu0 0.0
        %2331 = vmatprep.subr.mxu0 0.0
        %2332 = vmatpush1.msra.mxu0 0.0
        %2333 = vmatprep.subr.mxu0 0.0
        %2334 = vmatpush1.msra.mxu0 0.0
        %2335 = vmatprep.subr.mxu0 0.0
        %2336 = vmatpush1.msra.mxu0 0.0
        %2337 = vmatprep.subr.mxu0 0.0
        %2338 = vmatpush1.msra.mxu0 0.0
        %2339 = vmatprep.subr.mxu0 0.0
        %2340 = vmatpush1.msra.mxu0 0.0
        %2341 = vmatprep.subr.mxu0 0.0
        %2342 = vmatpush1.msra.mxu0 0.0
        %2343 = vmatprep.subr.mxu0 0.0
        %2344 = vmatpush1.msra.mxu0 0.0
        %2345 = vmatprep.subr.mxu0 0.0
        %2346 = vmatpush1.msra.mxu0 0.0
        %2347 = vmatprep.subr.mxu0 0.0
        %2348 = vmatpush1.msra.mxu0 0.0
        %2349 = vmatprep.subr.mxu0 0.0
        %2350 = vmatpush1.msra.mxu0 0.0
        %2351 = vmatprep.subr.mxu0 0.0
        %2352 = vmatpush1.msra.mxu0 0.0
        %2353 = vmatprep.subr.mxu0 0.0
        %2354 = vmatpush1.msra.mxu0 0.0
        %2355 = vmatprep.subr.mxu0 0.0
        %2356 = vmatpush1.msra.mxu0 0.0
        %2357 = vmatprep.subr.mxu0 0.0
        %2358 = vmatpush1.msra.mxu0 0.0
        %2359 = vmatprep.subr.mxu0 0.0
        %2360 = vmatpush1.msra.mxu0 0.0
        %2361 = vmatprep.subr.mxu0 0.0
        %2362 = vmatpush1.msra.mxu0 0.0
        %2363 = vmatprep.subr.mxu0 0.0
        %2364 = vmatpush1.msra.mxu0 0.0
        %2365 = vmatprep.subr.mxu0 0.0
        %2366 = vmatpush1.msra.mxu0 0.0
        %2367 = vmatprep.subr.mxu0 0.0
        %2368 = vmatpush1.msra.mxu0 0.0
        %2369 = vmatprep.subr.mxu0 0.0
        %2370 = vmatpush1.msra.mxu0 0.0
        %2371 = vmatprep.subr.mxu0 0.0
        %2372 = vmatpush1.msra.mxu0 0.0
        %2373 = vmatprep.subr.mxu0 0.0
        %2374 = vmatpush1.msra.mxu0 0.0
        %2375 = vmatprep.mubr.f32.mxu0 0.0
        %2376 = vmatmul.mubr.f32.gmra.mrb[0].mxu0 %v2213
        %v2377 = vpop.f32.mrb[0].mxu0
        %v2378 = vadd.f32 0.0, %v2377
        %v2379 = vpop.f32.mrb[0].mxu0
        %2380 = vmatprep.mubr.f32.mxu0 0.0
        %2381 = vmatmul.mubr.f32.gmra.mrb[0].mxu0 %v2216
        %v2382 = vpop.f32.mrb[0].mxu0
        %v2383 = vadd.f32 0.0, %v2382
        %v2384 = vpop.f32.mrb[0].mxu0
        %2385 = vmatprep.mubr.f32.mxu0 0.0
        %2386 = vmatmul.mubr.f32.gmra.mrb[0].mxu0 %v2219
        %v2387 = vpop.f32.mrb[0].mxu0
        %v2388 = vadd.f32 0.0, %v2387
        %v2389 = vpop.f32.mrb[0].mxu0
        %2390 = vmatprep.mubr.f32.mxu0 0.0
        %2391 = vmatmul.mubr.f32.gmra.mrb[0].mxu0 %v2222
        %v2392 = vpop.f32.mrb[0].mxu0
        %v2393 = vadd.f32 0.0, %v2392
        %v2394 = vpop.f32.mrb[0].mxu0
        %2395 = vmatprep.mubr.f32.mxu0 0.0
        %2396 = vmatmul.mubr.f32.gmra.mrb[0].mxu0 %v2225
        %v2397 = vpop.f32.mrb[0].mxu0
        %v2398 = vadd.f32 0.0, %v2397
        %v2399 = vpop.f32.mrb[0].mxu0
        %2400 = vmatprep.mubr.f32.mxu0 0.0
        %2401 = vmatmul.mubr.f32.gmra.mrb[0].mxu0 %v2228
        %v2402 = vpop.f32.mrb[0].mxu0
        %v2403 = vadd.f32 0.0, %v2402
        %v2404 = vpop.f32.mrb[0].mxu0
        %2405 = vmatprep.mubr.f32.mxu0 0.0
        %2406 = vmatmul.mubr.f32.gmra.mrb[0].mxu0 %v2231
        %v2407 = vpop.f32.mrb[0].mxu0
        %v2408 = vadd.f32 0.0, %v2407
        %v2409 = vpop.f32.mrb[0].mxu0
        %2410 = vmatprep.mubr.f32.mxu0 0.0
        %2411 = vmatmul.mubr.f32.gmra.mrb[0].mxu0 %v2234
        %v2412 = vpop.f32.mrb[0].mxu0
        %v2413 = vadd.f32 0.0, %v2412
        %v2414 = vpop.f32.mrb[0].mxu0
        %2415 = vmatprep.mubr.f32.mxu0 0.0
        %2416 = vmatmul.mubr.f32.gmra.mrb[0].mxu0 %v2237
        %v2417 = vpop.f32.mrb[0].mxu0
        %v2418 = vadd.f32 0.0, %v2417
        %v2419 = vpop.f32.mrb[0].mxu0
        %2420 = vmatprep.mubr.f32.mxu0 0.0
        %2421 = vmatmul.mubr.f32.gmra.mrb[0].mxu0 %v2240
        %v2422 = vpop.f32.mrb[0].mxu0
        %v2423 = vadd.f32 0.0, %v2422
        %v2424 = vpop.f32.mrb[0].mxu0
        %2425 = vmatprep.mubr.f32.mxu0 0.0
        %2426 = vmatmul.mubr.f32.gmra.mrb[0].mxu0 %v2243
        %v2427 = vpop.f32.mrb[0].mxu0
        %v2428 = vadd.f32 0.0, %v2427
        %v2429 = vpop.f32.mrb[0].mxu0
        %2430 = vmatprep.mubr.f32.mxu0 0.0
        %2431 = vmatmul.mubr.f32.gmra.mrb[0].mxu0 %v2246
        %v2432 = vpop.f32.mrb[0].mxu0
        %v2433 = vadd.f32 0.0, %v2432
        %v2434 = vpop.f32.mrb[0].mxu0
        %2435 = vmatprep.mubr.f32.mxu0 0.0
        %2436 = vmatmul.mubr.f32.gmra.mrb[0].mxu0 %v2249
        %v2437 = vpop.f32.mrb[0].mxu0
        %v2438 = vadd.f32 0.0, %v2437
        %v2439 = vpop.f32.mrb[0].mxu0
        %2440 = vmatprep.mubr.f32.mxu0 0.0
        %2441 = vmatmul.mubr.f32.gmra.mrb[0].mxu0 %v2252
        %v2442 = vpop.f32.mrb[0].mxu0
        %v2443 = vadd.f32 0.0, %v2442
        %v2444 = vpop.f32.mrb[0].mxu0
        %2445 = vmatprep.mubr.f32.mxu0 0.0
        %2446 = vmatmul.mubr.f32.gmra.mrb[0].mxu0 %v2255
        %v2447 = vpop.f32.mrb[0].mxu0
        %v2448 = vadd.f32 0.0, %v2447
        %v2449 = vpop.f32.mrb[0].mxu0
        %2450 = vmatprep.mubr.f32.mxu0 0.0
        %2451 = vmatmul.mubr.f32.gmra.mrb[0].mxu0 %v2258
        %v2452 = vpop.f32.mrb[0].mxu0
        %v2453 = vadd.f32 0.0, %v2452
        %v2454 = vpop.f32.mrb[0].mxu0
        %2455 = vmatprep.mubr.f32.mxu0 0.0
        %2456 = vmatmul.mubr.f32.gmra.mrb[0].mxu0 %v2261
        %v2457 = vpop.f32.mrb[0].mxu0
        %v2458 = vadd.f32 0.0, %v2457
        %v2459 = vpop.f32.mrb[0].mxu0
        %2460 = vmatprep.mubr.f32.mxu0 0.0
        %2461 = vmatmul.mubr.f32.gmra.mrb[0].mxu0 %v2264
        %v2462 = vpop.f32.mrb[0].mxu0
        %v2463 = vadd.f32 0.0, %v2462
        %v2464 = vpop.f32.mrb[0].mxu0
        %2465 = vmatprep.mubr.f32.mxu0 0.0
        %2466 = vmatmul.mubr.f32.gmra.mrb[0].mxu0 %v2267
        %v2467 = vpop.f32.mrb[0].mxu0
        %v2468 = vadd.f32 0.0, %v2467
        %v2469 = vpop.f32.mrb[0].mxu0
        %2470 = vmatprep.mubr.f32.mxu0 0.0
        %2471 = vmatmul.mubr.f32.gmra.mrb[0].mxu0 %v2270
        %v2472 = vpop.f32.mrb[0].mxu0
        %v2473 = vadd.f32 0.0, %v2472
        %v2474 = vpop.f32.mrb[0].mxu0
        %2475 = vmatprep.mubr.f32.mxu0 0.0
        %2476 = vmatmul.mubr.f32.gmra.mrb[0].mxu0 %v2273
        %v2477 = vpop.f32.mrb[0].mxu0
        %v2478 = vadd.f32 0.0, %v2477
        %v2479 = vpop.f32.mrb[0].mxu0
        %2480 = vmatprep.mubr.f32.mxu0 0.0
        %2481 = vmatmul.mubr.f32.gmra.mrb[0].mxu0 %v2276
        %v2482 = vpop.f32.mrb[0].mxu0
        %v2483 = vadd.f32 0.0, %v2482
        %v2484 = vpop.f32.mrb[0].mxu0
        %2485 = vmatprep.mubr.f32.mxu0 0.0
        %2486 = vmatmul.mubr.f32.gmra.mrb[0].mxu0 %v2279
        %v2487 = vpop.f32.mrb[0].mxu0
        %v2488 = vadd.f32 0.0, %v2487
        %v2489 = vpop.f32.mrb[0].mxu0
        %2490 = vmatprep.mubr.f32.mxu0 0.0
        %2491 = vmatmul.mubr.f32.gmra.mrb[0].mxu0 %v2282
        %v2492 = vpop.f32.mrb[0].mxu0
        %v2493 = vadd.f32 0.0, %v2492
        %v2494 = vpop.f32.mrb[0].mxu0
        %2495 = vmatprep.mubr.f32.mxu0 0.0
        %2496 = vmatmul.mubr.f32.gmra.mrb[0].mxu0 %v2285
        %v2497 = vpop.f32.mrb[0].mxu0
        %v2498 = vadd.f32 0.0, %v2497
        %v2499 = vpop.f32.mrb[0].mxu0
        %2500 = vmatprep.mubr.f32.mxu0 0.0
        %2501 = vmatmul.mubr.f32.gmra.mrb[0].mxu0 %v2288
        %v2502 = vpop.f32.mrb[0].mxu0
        %v2503 = vadd.f32 0.0, %v2502
        %v2504 = vpop.f32.mrb[0].mxu0
        %2505 = vmatprep.mubr.f32.mxu0 0.0
        %2506 = vmatmul.mubr.f32.gmra.mrb[0].mxu0 %v2291
        %v2507 = vpop.f32.mrb[0].mxu0
        %v2508 = vadd.f32 0.0, %v2507
        %v2509 = vpop.f32.mrb[0].mxu0
        %2510 = vmatprep.mubr.f32.mxu0 0.0
        %2511 = vmatmul.mubr.f32.gmra.mrb[0].mxu0 %v2294
        %v2512 = vpop.f32.mrb[0].mxu0
        %v2513 = vadd.f32 0.0, %v2512
        %v2514 = vpop.f32.mrb[0].mxu0
        %2515 = vmatprep.mubr.f32.mxu0 0.0
        %2516 = vmatmul.mubr.f32.gmra.mrb[0].mxu0 %v2297
        %v2517 = vpop.f32.mrb[0].mxu0
        %v2518 = vadd.f32 0.0, %v2517
        %v2519 = vpop.f32.mrb[0].mxu0
        %2520 = vmatprep.mubr.f32.mxu0 0.0
        %2521 = vmatmul.mubr.f32.gmra.mrb[0].mxu0 %v2300
        %v2522 = vpop.f32.mrb[0].mxu0
        %v2523 = vadd.f32 0.0, %v2522
        %v2524 = vpop.f32.mrb[0].mxu0
        %2525 = vmatprep.mubr.f32.mxu0 0.0
        %2526 = vmatmul.mubr.f32.gmra.mrb[0].mxu0 %v2303
        %v2527 = vpop.f32.mrb[0].mxu0
        %v2528 = vadd.f32 0.0, %v2527
        %v2529 = vpop.f32.mrb[0].mxu0
        %2530 = vmatprep.mubr.f32.mxu0 0.0
        %2531 = vmatmul.mubr.f32.gmra.mrb[0].mxu0 %v2306
        %v2532 = vpop.f32.mrb[0].mxu0
        %v2533 = vadd.f32 0.0, %v2532
        %v2534 = vpop.f32.mrb[0].mxu0
        %2535 = vdwg.mxu0
        %v2536 = vadd.f32 %v2146, %v2378
        %v2537 = vadd.f32 %v2147, %v2383
        %v2538 = vadd.f32 %v2148, %v2388
        %v2539 = vadd.f32 %v2149, %v2393
        %v2540 = vadd.f32 %v2150, %v2398
        %v2541 = vadd.f32 %v2151, %v2403
        %v2542 = vadd.f32 %v2152, %v2408
        %v2543 = vadd.f32 %v2153, %v2413
        %v2544 = vadd.f32 %v2154, %v2418
        %v2545 = vadd.f32 %v2155, %v2423
        %v2546 = vadd.f32 %v2156, %v2428
        %v2547 = vadd.f32 %v2157, %v2433
        %v2548 = vadd.f32 %v2158, %v2438
        %v2549 = vadd.f32 %v2159, %v2443
        %v2550 = vadd.f32 %v2160, %v2448
        %v2551 = vadd.f32 %v2161, %v2453
        %v2552 = vadd.f32 %v2162, %v2458
        %v2553 = vadd.f32 %v2163, %v2463
        %v2554 = vadd.f32 %v2164, %v2468
        %v2555 = vadd.f32 %v2165, %v2473
        %v2556 = vadd.f32 %v2166, %v2478
        %v2557 = vadd.f32 %v2167, %v2483
        %v2558 = vadd.f32 %v2168, %v2488
        %v2559 = vadd.f32 %v2169, %v2493
        %v2560 = vadd.f32 %v2170, %v2498
        %v2561 = vadd.f32 %v2171, %v2503
        %v2562 = vadd.f32 %v2172, %v2508
        %v2563 = vadd.f32 %v2173, %v2513
        %v2564 = vadd.f32 %v2174, %v2518
        %v2565 = vadd.f32 %v2175, %v2523
        %v2566 = vadd.f32 %v2176, %v2528
        %v2567 = vadd.f32 %v2177, %v2533
        %s2568 = scalar_lea.vmem %s236, 48 [#allocation2]
        %v2569 = vld [vmem:[%s2568] sm:$0xff]
        %v2570 = vld [vmem:[%s2568 + $0x8] sm:$0xff]
        %v2571 = vld [vmem:[%s2568 + $0x18] sm:$0xff]
        %v2572 = vld [vmem:[%s2568 + $0x20] sm:$0xff]
        %v2573 = vld [vmem:[%s2568 + $0x30] sm:$0xff]
        %v2574 = vld [vmem:[%s2568 + $0x38] sm:$0xff]
        %v2575 = vld [vmem:[%s2568 + $0x48] sm:$0xff]
        %v2576 = vld [vmem:[%s2568 + $0x50] sm:$0xff]
        %v2577 = vld [vmem:[%s2568 + $0x60] sm:$0xff]
        %v2578 = vld [vmem:[%s2568 + $0x68] sm:$0xff]
        %v2579 = vld [vmem:[%s2568 + $0x78] sm:$0xff]
        %v2580 = vld [vmem:[%s2568 + $0x80] sm:$0xff]
        %v2581 = vld [vmem:[%s2568 + $0x90] sm:$0xff]
        %v2582 = vld [vmem:[%s2568 + $0x98] sm:$0xff]
        %v2583 = vld [vmem:[%s2568 + $0xa8] sm:$0xff]
        %v2584 = vld [vmem:[%s2568 + $0xb0] sm:$0xff]
        %v2585 = vld [vmem:[%s2568 + $0xc0] sm:$0xff]
        %v2586 = vld [vmem:[%s2568 + $0xc8] sm:$0xff]
        %v2587 = vld [vmem:[%s2568 + $0xd8] sm:$0xff]
        %v2588 = vld [vmem:[%s2568 + $0xe0] sm:$0xff]
        %v2589 = vld [vmem:[%s2568 + $0xf0] sm:$0xff]
        %v2590 = vld [vmem:[%s2568 + $0xf8] sm:$0xff]
        %v2591 = vld [vmem:[%s2568 + $0x108] sm:$0xff]
        %v2592 = vld [vmem:[%s2568 + $0x110] sm:$0xff]
        %v2593 = vld [vmem:[%s2568 + $0x120] sm:$0xff]
        %v2594 = vld [vmem:[%s2568 + $0x128] sm:$0xff]
        %v2595 = vld [vmem:[%s2568 + $0x138] sm:$0xff]
        %v2596 = vld [vmem:[%s2568 + $0x140] sm:$0xff]
        %v2597 = vld [vmem:[%s2568 + $0x150] sm:$0xff]
        %v2598 = vld [vmem:[%s2568 + $0x158] sm:$0xff]
        %v2599 = vld [vmem:[%s2568 + $0x168] sm:$0xff]
        %v2600 = vld [vmem:[%s2568 + $0x170] sm:$0xff]
        %s2601 = scalar_lea.vmem %s245, 24 [#allocation5]
        %v2602 = vld [vmem:[%s2601] sm:$0xf]
        %v2604 = vsel %vm357, %v2569, 0
        %v2607 = vsel %vm357, %v2570, 0
        %v2610 = vsel %vm357, %v2571, 0
        %v2613 = vsel %vm357, %v2572, 0
        %v2616 = vsel %vm357, %v2573, 0
        %v2619 = vsel %vm357, %v2574, 0
        %v2622 = vsel %vm357, %v2575, 0
        %v2625 = vsel %vm357, %v2576, 0
        %v2628 = vsel %vm357, %v2577, 0
        %v2631 = vsel %vm357, %v2578, 0
        %v2634 = vsel %vm357, %v2579, 0
        %v2637 = vsel %vm357, %v2580, 0
        %v2640 = vsel %vm357, %v2581, 0
        %v2643 = vsel %vm357, %v2582, 0
        %v2646 = vsel %vm357, %v2583, 0
        %v2649 = vsel %vm357, %v2584, 0
        %v2652 = vsel %vm357, %v2585, 0
        %v2655 = vsel %vm357, %v2586, 0
        %v2658 = vsel %vm357, %v2587, 0
        %v2661 = vsel %vm357, %v2588, 0
        %v2664 = vsel %vm357, %v2589, 0
        %v2667 = vsel %vm357, %v2590, 0
        %v2670 = vsel %vm357, %v2591, 0
        %v2673 = vsel %vm357, %v2592, 0
        %v2676 = vsel %vm357, %v2593, 0
        %v2679 = vsel %vm357, %v2594, 0
        %v2682 = vsel %vm357, %v2595, 0
        %v2685 = vsel %vm357, %v2596, 0
        %v2688 = vsel %vm357, %v2597, 0
        %v2691 = vsel %vm357, %v2598, 0
        %v2694 = vsel %vm357, %v2599, 0
        %v2697 = vsel %vm357, %v2600, 0
        %v2700 = vsel %vm454, %v2602, 0
        %2702 = vmatprep.subr.mxu0 0.0
        %2703 = vmatpush1.msra.mxu0 %v2700
        %2704 = vmatprep.subr.mxu0 0.0
        %2705 = vmatpush1.msra.mxu0 0.0
        %2706 = vmatprep.subr.mxu0 0.0
        %2707 = vmatpush1.msra.mxu0 0.0
        %2708 = vmatprep.subr.mxu0 0.0
        %2709 = vmatpush1.msra.mxu0 0.0
        %2710 = vmatprep.subr.mxu0 0.0
        %2711 = vmatpush1.msra.mxu0 0.0
        %2712 = vmatprep.subr.mxu0 0.0
        %2713 = vmatpush1.msra.mxu0 0.0
        %2714 = vmatprep.subr.mxu0 0.0
        %2715 = vmatpush1.msra.mxu0 0.0
        %2716 = vmatprep.subr.mxu0 0.0
        %2717 = vmatpush1.msra.mxu0 0.0
        %2718 = vmatprep.subr.mxu0 0.0
        %2719 = vmatpush1.msra.mxu0 0.0
        %2720 = vmatprep.subr.mxu0 0.0
        %2721 = vmatpush1.msra.mxu0 0.0
        %2722 = vmatprep.subr.mxu0 0.0
        %2723 = vmatpush1.msra.mxu0 0.0
        %2724 = vmatprep.subr.mxu0 0.0
        %2725 = vmatpush1.msra.mxu0 0.0
        %2726 = vmatprep.subr.mxu0 0.0
        %2727 = vmatpush1.msra.mxu0 0.0
        %2728 = vmatprep.subr.mxu0 0.0
        %2729 = vmatpush1.msra.mxu0 0.0
        %2730 = vmatprep.subr.mxu0 0.0
        %2731 = vmatpush1.msra.mxu0 0.0
        %2732 = vmatprep.subr.mxu0 0.0
        %2733 = vmatpush1.msra.mxu0 0.0
        %2734 = vmatprep.subr.mxu0 0.0
        %2735 = vmatpush1.msra.mxu0 0.0
        %2736 = vmatprep.subr.mxu0 0.0
        %2737 = vmatpush1.msra.mxu0 0.0
        %2738 = vmatprep.subr.mxu0 0.0
        %2739 = vmatpush1.msra.mxu0 0.0
        %2740 = vmatprep.subr.mxu0 0.0
        %2741 = vmatpush1.msra.mxu0 0.0
        %2742 = vmatprep.subr.mxu0 0.0
        %2743 = vmatpush1.msra.mxu0 0.0
        %2744 = vmatprep.subr.mxu0 0.0
        %2745 = vmatpush1.msra.mxu0 0.0
        %2746 = vmatprep.subr.mxu0 0.0
        %2747 = vmatpush1.msra.mxu0 0.0
        %2748 = vmatprep.subr.mxu0 0.0
        %2749 = vmatpush1.msra.mxu0 0.0
        %2750 = vmatprep.subr.mxu0 0.0
        %2751 = vmatpush1.msra.mxu0 0.0
        %2752 = vmatprep.subr.mxu0 0.0
        %2753 = vmatpush1.msra.mxu0 0.0
        %2754 = vmatprep.subr.mxu0 0.0
        %2755 = vmatpush1.msra.mxu0 0.0
        %2756 = vmatprep.subr.mxu0 0.0
        %2757 = vmatpush1.msra.mxu0 0.0
        %2758 = vmatprep.subr.mxu0 0.0
        %2759 = vmatpush1.msra.mxu0 0.0
        %2760 = vmatprep.subr.mxu0 0.0
        %2761 = vmatpush1.msra.mxu0 0.0
        %2762 = vmatprep.subr.mxu0 0.0
        %2763 = vmatpush1.msra.mxu0 0.0
        %2764 = vmatprep.subr.mxu0 0.0
        %2765 = vmatpush1.msra.mxu0 0.0
        %2766 = vmatprep.mubr.f32.mxu0 0.0
        %2767 = vmatmul.mubr.f32.gmra.mrb[0].mxu0 %v2604
        %v2768 = vpop.f32.mrb[0].mxu0
        %v2769 = vadd.f32 0.0, %v2768
        %v2770 = vpop.f32.mrb[0].mxu0
        %2771 = vmatprep.mubr.f32.mxu0 0.0
        %2772 = vmatmul.mubr.f32.gmra.mrb[0].mxu0 %v2607
        %v2773 = vpop.f32.mrb[0].mxu0
        %v2774 = vadd.f32 0.0, %v2773
        %v2775 = vpop.f32.mrb[0].mxu0
        %2776 = vmatprep.mubr.f32.mxu0 0.0
        %2777 = vmatmul.mubr.f32.gmra.mrb[0].mxu0 %v2610
        %v2778 = vpop.f32.mrb[0].mxu0
        %v2779 = vadd.f32 0.0, %v2778
        %v2780 = vpop.f32.mrb[0].mxu0
        %2781 = vmatprep.mubr.f32.mxu0 0.0
        %2782 = vmatmul.mubr.f32.gmra.mrb[0].mxu0 %v2613
        %v2783 = vpop.f32.mrb[0].mxu0
        %v2784 = vadd.f32 0.0, %v2783
        %v2785 = vpop.f32.mrb[0].mxu0
        %2786 = vmatprep.mubr.f32.mxu0 0.0
        %2787 = vmatmul.mubr.f32.gmra.mrb[0].mxu0 %v2616
        %v2788 = vpop.f32.mrb[0].mxu0
        %v2789 = vadd.f32 0.0, %v2788
        %v2790 = vpop.f32.mrb[0].mxu0
        %2791 = vmatprep.mubr.f32.mxu0 0.0
        %2792 = vmatmul.mubr.f32.gmra.mrb[0].mxu0 %v2619
        %v2793 = vpop.f32.mrb[0].mxu0
        %v2794 = vadd.f32 0.0, %v2793
        %v2795 = vpop.f32.mrb[0].mxu0
        %2796 = vmatprep.mubr.f32.mxu0 0.0
        %2797 = vmatmul.mubr.f32.gmra.mrb[0].mxu0 %v2622
        %v2798 = vpop.f32.mrb[0].mxu0
        %v2799 = vadd.f32 0.0, %v2798
        %v2800 = vpop.f32.mrb[0].mxu0
        %2801 = vmatprep.mubr.f32.mxu0 0.0
        %2802 = vmatmul.mubr.f32.gmra.mrb[0].mxu0 %v2625
        %v2803 = vpop.f32.mrb[0].mxu0
        %v2804 = vadd.f32 0.0, %v2803
        %v2805 = vpop.f32.mrb[0].mxu0
        %2806 = vmatprep.mubr.f32.mxu0 0.0
        %2807 = vmatmul.mubr.f32.gmra.mrb[0].mxu0 %v2628
        %v2808 = vpop.f32.mrb[0].mxu0
        %v2809 = vadd.f32 0.0, %v2808
        %v2810 = vpop.f32.mrb[0].mxu0
        %2811 = vmatprep.mubr.f32.mxu0 0.0
        %2812 = vmatmul.mubr.f32.gmra.mrb[0].mxu0 %v2631
        %v2813 = vpop.f32.mrb[0].mxu0
        %v2814 = vadd.f32 0.0, %v2813
        %v2815 = vpop.f32.mrb[0].mxu0
        %2816 = vmatprep.mubr.f32.mxu0 0.0
        %2817 = vmatmul.mubr.f32.gmra.mrb[0].mxu0 %v2634
        %v2818 = vpop.f32.mrb[0].mxu0
        %v2819 = vadd.f32 0.0, %v2818
        %v2820 = vpop.f32.mrb[0].mxu0
        %2821 = vmatprep.mubr.f32.mxu0 0.0
        %2822 = vmatmul.mubr.f32.gmra.mrb[0].mxu0 %v2637
        %v2823 = vpop.f32.mrb[0].mxu0
        %v2824 = vadd.f32 0.0, %v2823
        %v2825 = vpop.f32.mrb[0].mxu0
        %2826 = vmatprep.mubr.f32.mxu0 0.0
        %2827 = vmatmul.mubr.f32.gmra.mrb[0].mxu0 %v2640
        %v2828 = vpop.f32.mrb[0].mxu0
        %v2829 = vadd.f32 0.0, %v2828
        %v2830 = vpop.f32.mrb[0].mxu0
        %2831 = vmatprep.mubr.f32.mxu0 0.0
        %2832 = vmatmul.mubr.f32.gmra.mrb[0].mxu0 %v2643
        %v2833 = vpop.f32.mrb[0].mxu0
        %v2834 = vadd.f32 0.0, %v2833
        %v2835 = vpop.f32.mrb[0].mxu0
        %2836 = vmatprep.mubr.f32.mxu0 0.0
        %2837 = vmatmul.mubr.f32.gmra.mrb[0].mxu0 %v2646
        %v2838 = vpop.f32.mrb[0].mxu0
        %v2839 = vadd.f32 0.0, %v2838
        %v2840 = vpop.f32.mrb[0].mxu0
        %2841 = vmatprep.mubr.f32.mxu0 0.0
        %2842 = vmatmul.mubr.f32.gmra.mrb[0].mxu0 %v2649
        %v2843 = vpop.f32.mrb[0].mxu0
        %v2844 = vadd.f32 0.0, %v2843
        %v2845 = vpop.f32.mrb[0].mxu0
        %2846 = vmatprep.mubr.f32.mxu0 0.0
        %2847 = vmatmul.mubr.f32.gmra.mrb[0].mxu0 %v2652
        %v2848 = vpop.f32.mrb[0].mxu0
        %v2849 = vadd.f32 0.0, %v2848
        %v2850 = vpop.f32.mrb[0].mxu0
        %2851 = vmatprep.mubr.f32.mxu0 0.0
        %2852 = vmatmul.mubr.f32.gmra.mrb[0].mxu0 %v2655
        %v2853 = vpop.f32.mrb[0].mxu0
        %v2854 = vadd.f32 0.0, %v2853
        %v2855 = vpop.f32.mrb[0].mxu0
        %2856 = vmatprep.mubr.f32.mxu0 0.0
        %2857 = vmatmul.mubr.f32.gmra.mrb[0].mxu0 %v2658
        %v2858 = vpop.f32.mrb[0].mxu0
        %v2859 = vadd.f32 0.0, %v2858
        %v2860 = vpop.f32.mrb[0].mxu0
        %2861 = vmatprep.mubr.f32.mxu0 0.0
        %2862 = vmatmul.mubr.f32.gmra.mrb[0].mxu0 %v2661
        %v2863 = vpop.f32.mrb[0].mxu0
        %v2864 = vadd.f32 0.0, %v2863
        %v2865 = vpop.f32.mrb[0].mxu0
        %2866 = vmatprep.mubr.f32.mxu0 0.0
        %2867 = vmatmul.mubr.f32.gmra.mrb[0].mxu0 %v2664
        %v2868 = vpop.f32.mrb[0].mxu0
        %v2869 = vadd.f32 0.0, %v2868
        %v2870 = vpop.f32.mrb[0].mxu0
        %2871 = vmatprep.mubr.f32.mxu0 0.0
        %2872 = vmatmul.mubr.f32.gmra.mrb[0].mxu0 %v2667
        %v2873 = vpop.f32.mrb[0].mxu0
        %v2874 = vadd.f32 0.0, %v2873
        %v2875 = vpop.f32.mrb[0].mxu0
        %2876 = vmatprep.mubr.f32.mxu0 0.0
        %2877 = vmatmul.mubr.f32.gmra.mrb[0].mxu0 %v2670
        %v2878 = vpop.f32.mrb[0].mxu0
        %v2879 = vadd.f32 0.0, %v2878
        %v2880 = vpop.f32.mrb[0].mxu0
        %2881 = vmatprep.mubr.f32.mxu0 0.0
        %2882 = vmatmul.mubr.f32.gmra.mrb[0].mxu0 %v2673
        %v2883 = vpop.f32.mrb[0].mxu0
        %v2884 = vadd.f32 0.0, %v2883
        %v2885 = vpop.f32.mrb[0].mxu0
        %2886 = vmatprep.mubr.f32.mxu0 0.0
        %2887 = vmatmul.mubr.f32.gmra.mrb[0].mxu0 %v2676
        %v2888 = vpop.f32.mrb[0].mxu0
        %v2889 = vadd.f32 0.0, %v2888
        %v2890 = vpop.f32.mrb[0].mxu0
        %2891 = vmatprep.mubr.f32.mxu0 0.0
        %2892 = vmatmul.mubr.f32.gmra.mrb[0].mxu0 %v2679
        %v2893 = vpop.f32.mrb[0].mxu0
        %v2894 = vadd.f32 0.0, %v2893
        %v2895 = vpop.f32.mrb[0].mxu0
        %2896 = vmatprep.mubr.f32.mxu0 0.0
        %2897 = vmatmul.mubr.f32.gmra.mrb[0].mxu0 %v2682
        %v2898 = vpop.f32.mrb[0].mxu0
        %v2899 = vadd.f32 0.0, %v2898
        %v2900 = vpop.f32.mrb[0].mxu0
        %2901 = vmatprep.mubr.f32.mxu0 0.0
        %2902 = vmatmul.mubr.f32.gmra.mrb[0].mxu0 %v2685
        %v2903 = vpop.f32.mrb[0].mxu0
        %v2904 = vadd.f32 0.0, %v2903
        %v2905 = vpop.f32.mrb[0].mxu0
        %2906 = vmatprep.mubr.f32.mxu0 0.0
        %2907 = vmatmul.mubr.f32.gmra.mrb[0].mxu0 %v2688
        %v2908 = vpop.f32.mrb[0].mxu0
        %v2909 = vadd.f32 0.0, %v2908
        %v2910 = vpop.f32.mrb[0].mxu0
        %2911 = vmatprep.mubr.f32.mxu0 0.0
        %2912 = vmatmul.mubr.f32.gmra.mrb[0].mxu0 %v2691
        %v2913 = vpop.f32.mrb[0].mxu0
        %v2914 = vadd.f32 0.0, %v2913
        %v2915 = vpop.f32.mrb[0].mxu0
        %2916 = vmatprep.mubr.f32.mxu0 0.0
        %2917 = vmatmul.mubr.f32.gmra.mrb[0].mxu0 %v2694
        %v2918 = vpop.f32.mrb[0].mxu0
        %v2919 = vadd.f32 0.0, %v2918
        %v2920 = vpop.f32.mrb[0].mxu0
        %2921 = vmatprep.mubr.f32.mxu0 0.0
        %2922 = vmatmul.mubr.f32.gmra.mrb[0].mxu0 %v2697
        %v2923 = vpop.f32.mrb[0].mxu0
        %v2924 = vadd.f32 0.0, %v2923
        %v2925 = vpop.f32.mrb[0].mxu0
        %2926 = vdwg.mxu0
        %v2927 = vadd.f32 %v2536, %v2769
        %v2928 = vadd.f32 %v2537, %v2774
        %v2929 = vadd.f32 %v2538, %v2779
        %v2930 = vadd.f32 %v2539, %v2784
        %v2931 = vadd.f32 %v2540, %v2789
        %v2932 = vadd.f32 %v2541, %v2794
        %v2933 = vadd.f32 %v2542, %v2799
        %v2934 = vadd.f32 %v2543, %v2804
        %v2935 = vadd.f32 %v2544, %v2809
        %v2936 = vadd.f32 %v2545, %v2814
        %v2937 = vadd.f32 %v2546, %v2819
        %v2938 = vadd.f32 %v2547, %v2824
        %v2939 = vadd.f32 %v2548, %v2829
        %v2940 = vadd.f32 %v2549, %v2834
        %v2941 = vadd.f32 %v2550, %v2839
        %v2942 = vadd.f32 %v2551, %v2844
        %v2943 = vadd.f32 %v2552, %v2849
        %v2944 = vadd.f32 %v2553, %v2854
        %v2945 = vadd.f32 %v2554, %v2859
        %v2946 = vadd.f32 %v2555, %v2864
        %v2947 = vadd.f32 %v2556, %v2869
        %v2948 = vadd.f32 %v2557, %v2874
        %v2949 = vadd.f32 %v2558, %v2879
        %v2950 = vadd.f32 %v2559, %v2884
        %v2951 = vadd.f32 %v2560, %v2889
        %v2952 = vadd.f32 %v2561, %v2894
        %v2953 = vadd.f32 %v2562, %v2899
        %v2954 = vadd.f32 %v2563, %v2904
        %v2955 = vadd.f32 %v2564, %v2909
        %v2956 = vadd.f32 %v2565, %v2914
        %v2957 = vadd.f32 %v2566, %v2919
        %v2958 = vadd.f32 %v2567, %v2924
        %v2959 = vld [vmem:[%s2568 + $0x1] sm:$0xff]
        %v2960 = vld [vmem:[%s2568 + $0x9] sm:$0xff]
        %v2961 = vld [vmem:[%s2568 + $0x19] sm:$0xff]
        %v2962 = vld [vmem:[%s2568 + $0x21] sm:$0xff]
        %v2963 = vld [vmem:[%s2568 + $0x31] sm:$0xff]
        %v2964 = vld [vmem:[%s2568 + $0x39] sm:$0xff]
        %v2965 = vld [vmem:[%s2568 + $0x49] sm:$0xff]
        %v2966 = vld [vmem:[%s2568 + $0x51] sm:$0xff]
        %v2967 = vld [vmem:[%s2568 + $0x61] sm:$0xff]
        %v2968 = vld [vmem:[%s2568 + $0x69] sm:$0xff]
        %v2969 = vld [vmem:[%s2568 + $0x79] sm:$0xff]
        %v2970 = vld [vmem:[%s2568 + $0x81] sm:$0xff]
        %v2971 = vld [vmem:[%s2568 + $0x91] sm:$0xff]
        %v2972 = vld [vmem:[%s2568 + $0x99] sm:$0xff]
        %v2973 = vld [vmem:[%s2568 + $0xa9] sm:$0xff]
        %v2974 = vld [vmem:[%s2568 + $0xb1] sm:$0xff]
        %v2975 = vld [vmem:[%s2568 + $0xc1] sm:$0xff]
        %v2976 = vld [vmem:[%s2568 + $0xc9] sm:$0xff]
        %v2977 = vld [vmem:[%s2568 + $0xd9] sm:$0xff]
        %v2978 = vld [vmem:[%s2568 + $0xe1] sm:$0xff]
        %v2979 = vld [vmem:[%s2568 + $0xf1] sm:$0xff]
        %v2980 = vld [vmem:[%s2568 + $0xf9] sm:$0xff]
        %v2981 = vld [vmem:[%s2568 + $0x109] sm:$0xff]
        %v2982 = vld [vmem:[%s2568 + $0x111] sm:$0xff]
        %v2983 = vld [vmem:[%s2568 + $0x121] sm:$0xff]
        %v2984 = vld [vmem:[%s2568 + $0x129] sm:$0xff]
        %v2985 = vld [vmem:[%s2568 + $0x139] sm:$0xff]
        %v2986 = vld [vmem:[%s2568 + $0x141] sm:$0xff]
        %v2987 = vld [vmem:[%s2568 + $0x151] sm:$0xff]
        %v2988 = vld [vmem:[%s2568 + $0x159] sm:$0xff]
        %v2989 = vld [vmem:[%s2568 + $0x169] sm:$0xff]
        %v2990 = vld [vmem:[%s2568 + $0x171] sm:$0xff]
        %s2991 = scalar_lea.vmem %s245, 28 [#allocation5]
        %v2992 = vld [vmem:[%s2991] sm:$0xf]
        %v2994 = vsel %vm357, %v2959, 0
        %v2997 = vsel %vm357, %v2960, 0
        %v3000 = vsel %vm357, %v2961, 0
        %v3003 = vsel %vm357, %v2962, 0
        %v3006 = vsel %vm357, %v2963, 0
        %v3009 = vsel %vm357, %v2964, 0
        %v3012 = vsel %vm357, %v2965, 0
        %v3015 = vsel %vm357, %v2966, 0
        %v3018 = vsel %vm357, %v2967, 0
        %v3021 = vsel %vm357, %v2968, 0
        %v3024 = vsel %vm357, %v2969, 0
        %v3027 = vsel %vm357, %v2970, 0
        %v3030 = vsel %vm357, %v2971, 0
        %v3033 = vsel %vm357, %v2972, 0
        %v3036 = vsel %vm357, %v2973, 0
        %v3039 = vsel %vm357, %v2974, 0
        %v3042 = vsel %vm357, %v2975, 0
        %v3045 = vsel %vm357, %v2976, 0
        %v3048 = vsel %vm357, %v2977, 0
        %v3051 = vsel %vm357, %v2978, 0
        %v3054 = vsel %vm357, %v2979, 0
        %v3057 = vsel %vm357, %v2980, 0
        %v3060 = vsel %vm357, %v2981, 0
        %v3063 = vsel %vm357, %v2982, 0
        %v3066 = vsel %vm357, %v2983, 0
        %v3069 = vsel %vm357, %v2984, 0
        %v3072 = vsel %vm357, %v2985, 0
        %v3075 = vsel %vm357, %v2986, 0
        %v3078 = vsel %vm357, %v2987, 0
        %v3081 = vsel %vm357, %v2988, 0
        %v3084 = vsel %vm357, %v2989, 0
        %v3087 = vsel %vm357, %v2990, 0
        %v3090 = vsel %vm454, %v2992, 0
        %3092 = vmatprep.subr.mxu0 0.0
        %3093 = vmatpush1.msra.mxu0 %v3090
        %3094 = vmatprep.subr.mxu0 0.0
        %3095 = vmatpush1.msra.mxu0 0.0
        %3096 = vmatprep.subr.mxu0 0.0
        %3097 = vmatpush1.msra.mxu0 0.0
        %3098 = vmatprep.subr.mxu0 0.0
        %3099 = vmatpush1.msra.mxu0 0.0
        %3100 = vmatprep.subr.mxu0 0.0
        %3101 = vmatpush1.msra.mxu0 0.0
        %3102 = vmatprep.subr.mxu0 0.0
        %3103 = vmatpush1.msra.mxu0 0.0
        %3104 = vmatprep.subr.mxu0 0.0
        %3105 = vmatpush1.msra.mxu0 0.0
        %3106 = vmatprep.subr.mxu0 0.0
        %3107 = vmatpush1.msra.mxu0 0.0
        %3108 = vmatprep.subr.mxu0 0.0
        %3109 = vmatpush1.msra.mxu0 0.0
        %3110 = vmatprep.subr.mxu0 0.0
        %3111 = vmatpush1.msra.mxu0 0.0
        %3112 = vmatprep.subr.mxu0 0.0
        %3113 = vmatpush1.msra.mxu0 0.0
        %3114 = vmatprep.subr.mxu0 0.0
        %3115 = vmatpush1.msra.mxu0 0.0
        %3116 = vmatprep.subr.mxu0 0.0
        %3117 = vmatpush1.msra.mxu0 0.0
        %3118 = vmatprep.subr.mxu0 0.0
        %3119 = vmatpush1.msra.mxu0 0.0
        %3120 = vmatprep.subr.mxu0 0.0
        %3121 = vmatpush1.msra.mxu0 0.0
        %3122 = vmatprep.subr.mxu0 0.0
        %3123 = vmatpush1.msra.mxu0 0.0
        %3124 = vmatprep.subr.mxu0 0.0
        %3125 = vmatpush1.msra.mxu0 0.0
        %3126 = vmatprep.subr.mxu0 0.0
        %3127 = vmatpush1.msra.mxu0 0.0
        %3128 = vmatprep.subr.mxu0 0.0
        %3129 = vmatpush1.msra.mxu0 0.0
        %3130 = vmatprep.subr.mxu0 0.0
        %3131 = vmatpush1.msra.mxu0 0.0
        %3132 = vmatprep.subr.mxu0 0.0
        %3133 = vmatpush1.msra.mxu0 0.0
        %3134 = vmatprep.subr.mxu0 0.0
        %3135 = vmatpush1.msra.mxu0 0.0
        %3136 = vmatprep.subr.mxu0 0.0
        %3137 = vmatpush1.msra.mxu0 0.0
        %3138 = vmatprep.subr.mxu0 0.0
        %3139 = vmatpush1.msra.mxu0 0.0
        %3140 = vmatprep.subr.mxu0 0.0
        %3141 = vmatpush1.msra.mxu0 0.0
        %3142 = vmatprep.subr.mxu0 0.0
        %3143 = vmatpush1.msra.mxu0 0.0
        %3144 = vmatprep.subr.mxu0 0.0
        %3145 = vmatpush1.msra.mxu0 0.0
        %3146 = vmatprep.subr.mxu0 0.0
        %3147 = vmatpush1.msra.mxu0 0.0
        %3148 = vmatprep.subr.mxu0 0.0
        %3149 = vmatpush1.msra.mxu0 0.0
        %3150 = vmatprep.subr.mxu0 0.0
        %3151 = vmatpush1.msra.mxu0 0.0
        %3152 = vmatprep.subr.mxu0 0.0
        %3153 = vmatpush1.msra.mxu0 0.0
        %3154 = vmatprep.subr.mxu0 0.0
        %3155 = vmatpush1.msra.mxu0 0.0
        %3156 = vmatprep.mubr.f32.mxu0 0.0
        %3157 = vmatmul.mubr.f32.gmra.mrb[0].mxu0 %v2994
        %v3158 = vpop.f32.mrb[0].mxu0
        %v3159 = vadd.f32 0.0, %v3158
        %v3160 = vpop.f32.mrb[0].mxu0
        %3161 = vmatprep.mubr.f32.mxu0 0.0
        %3162 = vmatmul.mubr.f32.gmra.mrb[0].mxu0 %v2997
        %v3163 = vpop.f32.mrb[0].mxu0
        %v3164 = vadd.f32 0.0, %v3163
        %v3165 = vpop.f32.mrb[0].mxu0
        %3166 = vmatprep.mubr.f32.mxu0 0.0
        %3167 = vmatmul.mubr.f32.gmra.mrb[0].mxu0 %v3000
        %v3168 = vpop.f32.mrb[0].mxu0
        %v3169 = vadd.f32 0.0, %v3168
        %v3170 = vpop.f32.mrb[0].mxu0
        %3171 = vmatprep.mubr.f32.mxu0 0.0
        %3172 = vmatmul.mubr.f32.gmra.mrb[0].mxu0 %v3003
        %v3173 = vpop.f32.mrb[0].mxu0
        %v3174 = vadd.f32 0.0, %v3173
        %v3175 = vpop.f32.mrb[0].mxu0
        %3176 = vmatprep.mubr.f32.mxu0 0.0
        %3177 = vmatmul.mubr.f32.gmra.mrb[0].mxu0 %v3006
        %v3178 = vpop.f32.mrb[0].mxu0
        %v3179 = vadd.f32 0.0, %v3178
        %v3180 = vpop.f32.mrb[0].mxu0
        %3181 = vmatprep.mubr.f32.mxu0 0.0
        %3182 = vmatmul.mubr.f32.gmra.mrb[0].mxu0 %v3009
        %v3183 = vpop.f32.mrb[0].mxu0
        %v3184 = vadd.f32 0.0, %v3183
        %v3185 = vpop.f32.mrb[0].mxu0
        %3186 = vmatprep.mubr.f32.mxu0 0.0
        %3187 = vmatmul.mubr.f32.gmra.mrb[0].mxu0 %v3012
        %v3188 = vpop.f32.mrb[0].mxu0
        %v3189 = vadd.f32 0.0, %v3188
        %v3190 = vpop.f32.mrb[0].mxu0
        %3191 = vmatprep.mubr.f32.mxu0 0.0
        %3192 = vmatmul.mubr.f32.gmra.mrb[0].mxu0 %v3015
        %v3193 = vpop.f32.mrb[0].mxu0
        %v3194 = vadd.f32 0.0, %v3193
        %v3195 = vpop.f32.mrb[0].mxu0
        %3196 = vmatprep.mubr.f32.mxu0 0.0
        %3197 = vmatmul.mubr.f32.gmra.mrb[0].mxu0 %v3018
        %v3198 = vpop.f32.mrb[0].mxu0
        %v3199 = vadd.f32 0.0, %v3198
        %v3200 = vpop.f32.mrb[0].mxu0
        %3201 = vmatprep.mubr.f32.mxu0 0.0
        %3202 = vmatmul.mubr.f32.gmra.mrb[0].mxu0 %v3021
        %v3203 = vpop.f32.mrb[0].mxu0
        %v3204 = vadd.f32 0.0, %v3203
        %v3205 = vpop.f32.mrb[0].mxu0
        %3206 = vmatprep.mubr.f32.mxu0 0.0
        %3207 = vmatmul.mubr.f32.gmra.mrb[0].mxu0 %v3024
        %v3208 = vpop.f32.mrb[0].mxu0
        %v3209 = vadd.f32 0.0, %v3208
        %v3210 = vpop.f32.mrb[0].mxu0
        %3211 = vmatprep.mubr.f32.mxu0 0.0
        %3212 = vmatmul.mubr.f32.gmra.mrb[0].mxu0 %v3027
        %v3213 = vpop.f32.mrb[0].mxu0
        %v3214 = vadd.f32 0.0, %v3213
        %v3215 = vpop.f32.mrb[0].mxu0
        %3216 = vmatprep.mubr.f32.mxu0 0.0
        %3217 = vmatmul.mubr.f32.gmra.mrb[0].mxu0 %v3030
        %v3218 = vpop.f32.mrb[0].mxu0
        %v3219 = vadd.f32 0.0, %v3218
        %v3220 = vpop.f32.mrb[0].mxu0
        %3221 = vmatprep.mubr.f32.mxu0 0.0
        %3222 = vmatmul.mubr.f32.gmra.mrb[0].mxu0 %v3033
        %v3223 = vpop.f32.mrb[0].mxu0
        %v3224 = vadd.f32 0.0, %v3223
        %v3225 = vpop.f32.mrb[0].mxu0
        %3226 = vmatprep.mubr.f32.mxu0 0.0
        %3227 = vmatmul.mubr.f32.gmra.mrb[0].mxu0 %v3036
        %v3228 = vpop.f32.mrb[0].mxu0
        %v3229 = vadd.f32 0.0, %v3228
        %v3230 = vpop.f32.mrb[0].mxu0
        %3231 = vmatprep.mubr.f32.mxu0 0.0
        %3232 = vmatmul.mubr.f32.gmra.mrb[0].mxu0 %v3039
        %v3233 = vpop.f32.mrb[0].mxu0
        %v3234 = vadd.f32 0.0, %v3233
        %v3235 = vpop.f32.mrb[0].mxu0
        %3236 = vmatprep.mubr.f32.mxu0 0.0
        %3237 = vmatmul.mubr.f32.gmra.mrb[0].mxu0 %v3042
        %v3238 = vpop.f32.mrb[0].mxu0
        %v3239 = vadd.f32 0.0, %v3238
        %v3240 = vpop.f32.mrb[0].mxu0
        %3241 = vmatprep.mubr.f32.mxu0 0.0
        %3242 = vmatmul.mubr.f32.gmra.mrb[0].mxu0 %v3045
        %v3243 = vpop.f32.mrb[0].mxu0
        %v3244 = vadd.f32 0.0, %v3243
        %v3245 = vpop.f32.mrb[0].mxu0
        %3246 = vmatprep.mubr.f32.mxu0 0.0
        %3247 = vmatmul.mubr.f32.gmra.mrb[0].mxu0 %v3048
        %v3248 = vpop.f32.mrb[0].mxu0
        %v3249 = vadd.f32 0.0, %v3248
        %v3250 = vpop.f32.mrb[0].mxu0
        %3251 = vmatprep.mubr.f32.mxu0 0.0
        %3252 = vmatmul.mubr.f32.gmra.mrb[0].mxu0 %v3051
        %v3253 = vpop.f32.mrb[0].mxu0
        %v3254 = vadd.f32 0.0, %v3253
        %v3255 = vpop.f32.mrb[0].mxu0
        %3256 = vmatprep.mubr.f32.mxu0 0.0
        %3257 = vmatmul.mubr.f32.gmra.mrb[0].mxu0 %v3054
        %v3258 = vpop.f32.mrb[0].mxu0
        %v3259 = vadd.f32 0.0, %v3258
        %v3260 = vpop.f32.mrb[0].mxu0
        %3261 = vmatprep.mubr.f32.mxu0 0.0
        %3262 = vmatmul.mubr.f32.gmra.mrb[0].mxu0 %v3057
        %v3263 = vpop.f32.mrb[0].mxu0
        %v3264 = vadd.f32 0.0, %v3263
        %v3265 = vpop.f32.mrb[0].mxu0
        %3266 = vmatprep.mubr.f32.mxu0 0.0
        %3267 = vmatmul.mubr.f32.gmra.mrb[0].mxu0 %v3060
        %v3268 = vpop.f32.mrb[0].mxu0
        %v3269 = vadd.f32 0.0, %v3268
        %v3270 = vpop.f32.mrb[0].mxu0
        %3271 = vmatprep.mubr.f32.mxu0 0.0
        %3272 = vmatmul.mubr.f32.gmra.mrb[0].mxu0 %v3063
        %v3273 = vpop.f32.mrb[0].mxu0
        %v3274 = vadd.f32 0.0, %v3273
        %v3275 = vpop.f32.mrb[0].mxu0
        %3276 = vmatprep.mubr.f32.mxu0 0.0
        %3277 = vmatmul.mubr.f32.gmra.mrb[0].mxu0 %v3066
        %v3278 = vpop.f32.mrb[0].mxu0
        %v3279 = vadd.f32 0.0, %v3278
        %v3280 = vpop.f32.mrb[0].mxu0
        %3281 = vmatprep.mubr.f32.mxu0 0.0
        %3282 = vmatmul.mubr.f32.gmra.mrb[0].mxu0 %v3069
        %v3283 = vpop.f32.mrb[0].mxu0
        %v3284 = vadd.f32 0.0, %v3283
        %v3285 = vpop.f32.mrb[0].mxu0
        %3286 = vmatprep.mubr.f32.mxu0 0.0
        %3287 = vmatmul.mubr.f32.gmra.mrb[0].mxu0 %v3072
        %v3288 = vpop.f32.mrb[0].mxu0
        %v3289 = vadd.f32 0.0, %v3288
        %v3290 = vpop.f32.mrb[0].mxu0
        %3291 = vmatprep.mubr.f32.mxu0 0.0
        %3292 = vmatmul.mubr.f32.gmra.mrb[0].mxu0 %v3075
        %v3293 = vpop.f32.mrb[0].mxu0
        %v3294 = vadd.f32 0.0, %v3293
        %v3295 = vpop.f32.mrb[0].mxu0
        %3296 = vmatprep.mubr.f32.mxu0 0.0
        %3297 = vmatmul.mubr.f32.gmra.mrb[0].mxu0 %v3078
        %v3298 = vpop.f32.mrb[0].mxu0
        %v3299 = vadd.f32 0.0, %v3298
        %v3300 = vpop.f32.mrb[0].mxu0
        %3301 = vmatprep.mubr.f32.mxu0 0.0
        %3302 = vmatmul.mubr.f32.gmra.mrb[0].mxu0 %v3081
        %v3303 = vpop.f32.mrb[0].mxu0
        %v3304 = vadd.f32 0.0, %v3303
        %v3305 = vpop.f32.mrb[0].mxu0
        %3306 = vmatprep.mubr.f32.mxu0 0.0
        %3307 = vmatmul.mubr.f32.gmra.mrb[0].mxu0 %v3084
        %v3308 = vpop.f32.mrb[0].mxu0
        %v3309 = vadd.f32 0.0, %v3308
        %v3310 = vpop.f32.mrb[0].mxu0
        %3311 = vmatprep.mubr.f32.mxu0 0.0
        %3312 = vmatmul.mubr.f32.gmra.mrb[0].mxu0 %v3087
        %v3313 = vpop.f32.mrb[0].mxu0
        %v3314 = vadd.f32 0.0, %v3313
        %v3315 = vpop.f32.mrb[0].mxu0
        %3316 = vdwg.mxu0
        %v3317 = vadd.f32 %v2927, %v3159
        %v3318 = vadd.f32 %v2928, %v3164
        %v3319 = vadd.f32 %v2929, %v3169
        %v3320 = vadd.f32 %v2930, %v3174
        %v3321 = vadd.f32 %v2931, %v3179
        %v3322 = vadd.f32 %v2932, %v3184
        %v3323 = vadd.f32 %v2933, %v3189
        %v3324 = vadd.f32 %v2934, %v3194
        %v3325 = vadd.f32 %v2935, %v3199
        %v3326 = vadd.f32 %v2936, %v3204
        %v3327 = vadd.f32 %v2937, %v3209
        %v3328 = vadd.f32 %v2938, %v3214
        %v3329 = vadd.f32 %v2939, %v3219
        %v3330 = vadd.f32 %v2940, %v3224
        %v3331 = vadd.f32 %v2941, %v3229
        %v3332 = vadd.f32 %v2942, %v3234
        %v3333 = vadd.f32 %v2943, %v3239
        %v3334 = vadd.f32 %v2944, %v3244
        %v3335 = vadd.f32 %v2945, %v3249
        %v3336 = vadd.f32 %v2946, %v3254
        %v3337 = vadd.f32 %v2947, %v3259
        %v3338 = vadd.f32 %v2948, %v3264
        %v3339 = vadd.f32 %v2949, %v3269
        %v3340 = vadd.f32 %v2950, %v3274
        %v3341 = vadd.f32 %v2951, %v3279
        %v3342 = vadd.f32 %v2952, %v3284
        %v3343 = vadd.f32 %v2953, %v3289
        %v3344 = vadd.f32 %v2954, %v3294
        %v3345 = vadd.f32 %v2955, %v3299
        %v3346 = vadd.f32 %v2956, %v3304
        %v3347 = vadd.f32 %v2957, %v3309
        %v3348 = vadd.f32 %v2958, %v3314
        %v3349 = vld [vmem:[%s2568 + $0x2] sm:$0xff]
        %v3350 = vld [vmem:[%s2568 + $0xa] sm:$0xff]
        %v3351 = vld [vmem:[%s2568 + $0x1a] sm:$0xff]
        %v3352 = vld [vmem:[%s2568 + $0x22] sm:$0xff]
        %v3353 = vld [vmem:[%s2568 + $0x32] sm:$0xff]
        %v3354 = vld [vmem:[%s2568 + $0x3a] sm:$0xff]
        %v3355 = vld [vmem:[%s2568 + $0x4a] sm:$0xff]
        %v3356 = vld [vmem:[%s2568 + $0x52] sm:$0xff]
        %v3357 = vld [vmem:[%s2568 + $0x62] sm:$0xff]
        %v3358 = vld [vmem:[%s2568 + $0x6a] sm:$0xff]
        %v3359 = vld [vmem:[%s2568 + $0x7a] sm:$0xff]
        %v3360 = vld [vmem:[%s2568 + $0x82] sm:$0xff]
        %v3361 = vld [vmem:[%s2568 + $0x92] sm:$0xff]
        %v3362 = vld [vmem:[%s2568 + $0x9a] sm:$0xff]
        %v3363 = vld [vmem:[%s2568 + $0xaa] sm:$0xff]
        %v3364 = vld [vmem:[%s2568 + $0xb2] sm:$0xff]
        %v3365 = vld [vmem:[%s2568 + $0xc2] sm:$0xff]
        %v3366 = vld [vmem:[%s2568 + $0xca] sm:$0xff]
        %v3367 = vld [vmem:[%s2568 + $0xda] sm:$0xff]
        %v3368 = vld [vmem:[%s2568 + $0xe2] sm:$0xff]
        %v3369 = vld [vmem:[%s2568 + $0xf2] sm:$0xff]
        %v3370 = vld [vmem:[%s2568 + $0xfa] sm:$0xff]
        %v3371 = vld [vmem:[%s2568 + $0x10a] sm:$0xff]
        %v3372 = vld [vmem:[%s2568 + $0x112] sm:$0xff]
        %v3373 = vld [vmem:[%s2568 + $0x122] sm:$0xff]
        %v3374 = vld [vmem:[%s2568 + $0x12a] sm:$0xff]
        %v3375 = vld [vmem:[%s2568 + $0x13a] sm:$0xff]
        %v3376 = vld [vmem:[%s2568 + $0x142] sm:$0xff]
        %v3377 = vld [vmem:[%s2568 + $0x152] sm:$0xff]
        %v3378 = vld [vmem:[%s2568 + $0x15a] sm:$0xff]
        %v3379 = vld [vmem:[%s2568 + $0x16a] sm:$0xff]
        %v3380 = vld [vmem:[%s2568 + $0x172] sm:$0xff]
        %s3381 = scalar_lea.vmem %s245, 32 [#allocation5]
        %v3382 = vld [vmem:[%s3381] sm:$0xf]
        %v3384 = vsel %vm357, %v3349, 0
        %v3387 = vsel %vm357, %v3350, 0
        %v3390 = vsel %vm357, %v3351, 0
        %v3393 = vsel %vm357, %v3352, 0
        %v3396 = vsel %vm357, %v3353, 0
        %v3399 = vsel %vm357, %v3354, 0
        %v3402 = vsel %vm357, %v3355, 0
        %v3405 = vsel %vm357, %v3356, 0
        %v3408 = vsel %vm357, %v3357, 0
        %v3411 = vsel %vm357, %v3358, 0
        %v3414 = vsel %vm357, %v3359, 0
        %v3417 = vsel %vm357, %v3360, 0
        %v3420 = vsel %vm357, %v3361, 0
        %v3423 = vsel %vm357, %v3362, 0
        %v3426 = vsel %vm357, %v3363, 0
        %v3429 = vsel %vm357, %v3364, 0
        %v3432 = vsel %vm357, %v3365, 0
        %v3435 = vsel %vm357, %v3366, 0
        %v3438 = vsel %vm357, %v3367, 0
        %v3441 = vsel %vm357, %v3368, 0
        %v3444 = vsel %vm357, %v3369, 0
        %v3447 = vsel %vm357, %v3370, 0
        %v3450 = vsel %vm357, %v3371, 0
        %v3453 = vsel %vm357, %v3372, 0
        %v3456 = vsel %vm357, %v3373, 0
        %v3459 = vsel %vm357, %v3374, 0
        %v3462 = vsel %vm357, %v3375, 0
        %v3465 = vsel %vm357, %v3376, 0
        %v3468 = vsel %vm357, %v3377, 0
        %v3471 = vsel %vm357, %v3378, 0
        %v3474 = vsel %vm357, %v3379, 0
        %v3477 = vsel %vm357, %v3380, 0
        %v3480 = vsel %vm454, %v3382, 0
        %3482 = vmatprep.subr.mxu0 0.0
        %3483 = vmatpush1.msra.mxu0 %v3480
        %3484 = vmatprep.subr.mxu0 0.0
        %3485 = vmatpush1.msra.mxu0 0.0
        %3486 = vmatprep.subr.mxu0 0.0
        %3487 = vmatpush1.msra.mxu0 0.0
        %3488 = vmatprep.subr.mxu0 0.0
        %3489 = vmatpush1.msra.mxu0 0.0
        %3490 = vmatprep.subr.mxu0 0.0
        %3491 = vmatpush1.msra.mxu0 0.0
        %3492 = vmatprep.subr.mxu0 0.0
        %3493 = vmatpush1.msra.mxu0 0.0
        %3494 = vmatprep.subr.mxu0 0.0
        %3495 = vmatpush1.msra.mxu0 0.0
        %3496 = vmatprep.subr.mxu0 0.0
        %3497 = vmatpush1.msra.mxu0 0.0
        %3498 = vmatprep.subr.mxu0 0.0
        %3499 = vmatpush1.msra.mxu0 0.0
        %3500 = vmatprep.subr.mxu0 0.0
        %3501 = vmatpush1.msra.mxu0 0.0
        %3502 = vmatprep.subr.mxu0 0.0
        %3503 = vmatpush1.msra.mxu0 0.0
        %3504 = vmatprep.subr.mxu0 0.0
        %3505 = vmatpush1.msra.mxu0 0.0
        %3506 = vmatprep.subr.mxu0 0.0
        %3507 = vmatpush1.msra.mxu0 0.0
        %3508 = vmatprep.subr.mxu0 0.0
        %3509 = vmatpush1.msra.mxu0 0.0
        %3510 = vmatprep.subr.mxu0 0.0
        %3511 = vmatpush1.msra.mxu0 0.0
        %3512 = vmatprep.subr.mxu0 0.0
        %3513 = vmatpush1.msra.mxu0 0.0
        %3514 = vmatprep.subr.mxu0 0.0
        %3515 = vmatpush1.msra.mxu0 0.0
        %3516 = vmatprep.subr.mxu0 0.0
        %3517 = vmatpush1.msra.mxu0 0.0
        %3518 = vmatprep.subr.mxu0 0.0
        %3519 = vmatpush1.msra.mxu0 0.0
        %3520 = vmatprep.subr.mxu0 0.0
        %3521 = vmatpush1.msra.mxu0 0.0
        %3522 = vmatprep.subr.mxu0 0.0
        %3523 = vmatpush1.msra.mxu0 0.0
        %3524 = vmatprep.subr.mxu0 0.0
        %3525 = vmatpush1.msra.mxu0 0.0
        %3526 = vmatprep.subr.mxu0 0.0
        %3527 = vmatpush1.msra.mxu0 0.0
        %3528 = vmatprep.subr.mxu0 0.0
        %3529 = vmatpush1.msra.mxu0 0.0
        %3530 = vmatprep.subr.mxu0 0.0
        %3531 = vmatpush1.msra.mxu0 0.0
        %3532 = vmatprep.subr.mxu0 0.0
        %3533 = vmatpush1.msra.mxu0 0.0
        %3534 = vmatprep.subr.mxu0 0.0
        %3535 = vmatpush1.msra.mxu0 0.0
        %3536 = vmatprep.subr.mxu0 0.0
        %3537 = vmatpush1.msra.mxu0 0.0
        %3538 = vmatprep.subr.mxu0 0.0
        %3539 = vmatpush1.msra.mxu0 0.0
        %3540 = vmatprep.subr.mxu0 0.0
        %3541 = vmatpush1.msra.mxu0 0.0
        %3542 = vmatprep.subr.mxu0 0.0
        %3543 = vmatpush1.msra.mxu0 0.0
        %3544 = vmatprep.subr.mxu0 0.0
        %3545 = vmatpush1.msra.mxu0 0.0
        %3546 = vmatprep.mubr.f32.mxu0 0.0
        %3547 = vmatmul.mubr.f32.gmra.mrb[0].mxu0 %v3384
        %v3548 = vpop.f32.mrb[0].mxu0
        %v3549 = vadd.f32 0.0, %v3548
        %v3550 = vpop.f32.mrb[0].mxu0
        %3551 = vmatprep.mubr.f32.mxu0 0.0
        %3552 = vmatmul.mubr.f32.gmra.mrb[0].mxu0 %v3387
        %v3553 = vpop.f32.mrb[0].mxu0
        %v3554 = vadd.f32 0.0, %v3553
        %v3555 = vpop.f32.mrb[0].mxu0
        %3556 = vmatprep.mubr.f32.mxu0 0.0
        %3557 = vmatmul.mubr.f32.gmra.mrb[0].mxu0 %v3390
        %v3558 = vpop.f32.mrb[0].mxu0
        %v3559 = vadd.f32 0.0, %v3558
        %v3560 = vpop.f32.mrb[0].mxu0
        %3561 = vmatprep.mubr.f32.mxu0 0.0
        %3562 = vmatmul.mubr.f32.gmra.mrb[0].mxu0 %v3393
        %v3563 = vpop.f32.mrb[0].mxu0
        %v3564 = vadd.f32 0.0, %v3563
        %v3565 = vpop.f32.mrb[0].mxu0
        %3566 = vmatprep.mubr.f32.mxu0 0.0
        %3567 = vmatmul.mubr.f32.gmra.mrb[0].mxu0 %v3396
        %v3568 = vpop.f32.mrb[0].mxu0
        %v3569 = vadd.f32 0.0, %v3568
        %v3570 = vpop.f32.mrb[0].mxu0
        %3571 = vmatprep.mubr.f32.mxu0 0.0
        %3572 = vmatmul.mubr.f32.gmra.mrb[0].mxu0 %v3399
        %v3573 = vpop.f32.mrb[0].mxu0
        %v3574 = vadd.f32 0.0, %v3573
        %v3575 = vpop.f32.mrb[0].mxu0
        %3576 = vmatprep.mubr.f32.mxu0 0.0
        %3577 = vmatmul.mubr.f32.gmra.mrb[0].mxu0 %v3402
        %v3578 = vpop.f32.mrb[0].mxu0
        %v3579 = vadd.f32 0.0, %v3578
        %v3580 = vpop.f32.mrb[0].mxu0
        %3581 = vmatprep.mubr.f32.mxu0 0.0
        %3582 = vmatmul.mubr.f32.gmra.mrb[0].mxu0 %v3405
        %v3583 = vpop.f32.mrb[0].mxu0
        %v3584 = vadd.f32 0.0, %v3583
        %v3585 = vpop.f32.mrb[0].mxu0
        %3586 = vmatprep.mubr.f32.mxu0 0.0
        %3587 = vmatmul.mubr.f32.gmra.mrb[0].mxu0 %v3408
        %v3588 = vpop.f32.mrb[0].mxu0
        %v3589 = vadd.f32 0.0, %v3588
        %v3590 = vpop.f32.mrb[0].mxu0
        %3591 = vmatprep.mubr.f32.mxu0 0.0
        %3592 = vmatmul.mubr.f32.gmra.mrb[0].mxu0 %v3411
        %v3593 = vpop.f32.mrb[0].mxu0
        %v3594 = vadd.f32 0.0, %v3593
        %v3595 = vpop.f32.mrb[0].mxu0
        %3596 = vmatprep.mubr.f32.mxu0 0.0
        %3597 = vmatmul.mubr.f32.gmra.mrb[0].mxu0 %v3414
        %v3598 = vpop.f32.mrb[0].mxu0
        %v3599 = vadd.f32 0.0, %v3598
        %v3600 = vpop.f32.mrb[0].mxu0
        %3601 = vmatprep.mubr.f32.mxu0 0.0
        %3602 = vmatmul.mubr.f32.gmra.mrb[0].mxu0 %v3417
        %v3603 = vpop.f32.mrb[0].mxu0
        %v3604 = vadd.f32 0.0, %v3603
        %v3605 = vpop.f32.mrb[0].mxu0
        %3606 = vmatprep.mubr.f32.mxu0 0.0
        %3607 = vmatmul.mubr.f32.gmra.mrb[0].mxu0 %v3420
        %v3608 = vpop.f32.mrb[0].mxu0
        %v3609 = vadd.f32 0.0, %v3608
        %v3610 = vpop.f32.mrb[0].mxu0
        %3611 = vmatprep.mubr.f32.mxu0 0.0
        %3612 = vmatmul.mubr.f32.gmra.mrb[0].mxu0 %v3423
        %v3613 = vpop.f32.mrb[0].mxu0
        %v3614 = vadd.f32 0.0, %v3613
        %v3615 = vpop.f32.mrb[0].mxu0
        %3616 = vmatprep.mubr.f32.mxu0 0.0
        %3617 = vmatmul.mubr.f32.gmra.mrb[0].mxu0 %v3426
        %v3618 = vpop.f32.mrb[0].mxu0
        %v3619 = vadd.f32 0.0, %v3618
        %v3620 = vpop.f32.mrb[0].mxu0
        %3621 = vmatprep.mubr.f32.mxu0 0.0
        %3622 = vmatmul.mubr.f32.gmra.mrb[0].mxu0 %v3429
        %v3623 = vpop.f32.mrb[0].mxu0
        %v3624 = vadd.f32 0.0, %v3623
        %v3625 = vpop.f32.mrb[0].mxu0
        %3626 = vmatprep.mubr.f32.mxu0 0.0
        %3627 = vmatmul.mubr.f32.gmra.mrb[0].mxu0 %v3432
        %v3628 = vpop.f32.mrb[0].mxu0
        %v3629 = vadd.f32 0.0, %v3628
        %v3630 = vpop.f32.mrb[0].mxu0
        %3631 = vmatprep.mubr.f32.mxu0 0.0
        %3632 = vmatmul.mubr.f32.gmra.mrb[0].mxu0 %v3435
        %v3633 = vpop.f32.mrb[0].mxu0
        %v3634 = vadd.f32 0.0, %v3633
        %v3635 = vpop.f32.mrb[0].mxu0
        %3636 = vmatprep.mubr.f32.mxu0 0.0
        %3637 = vmatmul.mubr.f32.gmra.mrb[0].mxu0 %v3438
        %v3638 = vpop.f32.mrb[0].mxu0
        %v3639 = vadd.f32 0.0, %v3638
        %v3640 = vpop.f32.mrb[0].mxu0
        %3641 = vmatprep.mubr.f32.mxu0 0.0
        %3642 = vmatmul.mubr.f32.gmra.mrb[0].mxu0 %v3441
        %v3643 = vpop.f32.mrb[0].mxu0
        %v3644 = vadd.f32 0.0, %v3643
        %v3645 = vpop.f32.mrb[0].mxu0
        %3646 = vmatprep.mubr.f32.mxu0 0.0
        %3647 = vmatmul.mubr.f32.gmra.mrb[0].mxu0 %v3444
        %v3648 = vpop.f32.mrb[0].mxu0
        %v3649 = vadd.f32 0.0, %v3648
        %v3650 = vpop.f32.mrb[0].mxu0
        %3651 = vmatprep.mubr.f32.mxu0 0.0
        %3652 = vmatmul.mubr.f32.gmra.mrb[0].mxu0 %v3447
        %v3653 = vpop.f32.mrb[0].mxu0
        %v3654 = vadd.f32 0.0, %v3653
        %v3655 = vpop.f32.mrb[0].mxu0
        %3656 = vmatprep.mubr.f32.mxu0 0.0
        %3657 = vmatmul.mubr.f32.gmra.mrb[0].mxu0 %v3450
        %v3658 = vpop.f32.mrb[0].mxu0
        %v3659 = vadd.f32 0.0, %v3658
        %v3660 = vpop.f32.mrb[0].mxu0
        %3661 = vmatprep.mubr.f32.mxu0 0.0
        %3662 = vmatmul.mubr.f32.gmra.mrb[0].mxu0 %v3453
        %v3663 = vpop.f32.mrb[0].mxu0
        %v3664 = vadd.f32 0.0, %v3663
        %v3665 = vpop.f32.mrb[0].mxu0
        %3666 = vmatprep.mubr.f32.mxu0 0.0
        %3667 = vmatmul.mubr.f32.gmra.mrb[0].mxu0 %v3456
        %v3668 = vpop.f32.mrb[0].mxu0
        %v3669 = vadd.f32 0.0, %v3668
        %v3670 = vpop.f32.mrb[0].mxu0
        %3671 = vmatprep.mubr.f32.mxu0 0.0
        %3672 = vmatmul.mubr.f32.gmra.mrb[0].mxu0 %v3459
        %v3673 = vpop.f32.mrb[0].mxu0
        %v3674 = vadd.f32 0.0, %v3673
        %v3675 = vpop.f32.mrb[0].mxu0
        %3676 = vmatprep.mubr.f32.mxu0 0.0
        %3677 = vmatmul.mubr.f32.gmra.mrb[0].mxu0 %v3462
        %v3678 = vpop.f32.mrb[0].mxu0
        %v3679 = vadd.f32 0.0, %v3678
        %v3680 = vpop.f32.mrb[0].mxu0
        %3681 = vmatprep.mubr.f32.mxu0 0.0
        %3682 = vmatmul.mubr.f32.gmra.mrb[0].mxu0 %v3465
        %v3683 = vpop.f32.mrb[0].mxu0
        %v3684 = vadd.f32 0.0, %v3683
        %v3685 = vpop.f32.mrb[0].mxu0
        %3686 = vmatprep.mubr.f32.mxu0 0.0
        %3687 = vmatmul.mubr.f32.gmra.mrb[0].mxu0 %v3468
        %v3688 = vpop.f32.mrb[0].mxu0
        %v3689 = vadd.f32 0.0, %v3688
        %v3690 = vpop.f32.mrb[0].mxu0
        %3691 = vmatprep.mubr.f32.mxu0 0.0
        %3692 = vmatmul.mubr.f32.gmra.mrb[0].mxu0 %v3471
        %v3693 = vpop.f32.mrb[0].mxu0
        %v3694 = vadd.f32 0.0, %v3693
        %v3695 = vpop.f32.mrb[0].mxu0
        %3696 = vmatprep.mubr.f32.mxu0 0.0
        %3697 = vmatmul.mubr.f32.gmra.mrb[0].mxu0 %v3474
        %v3698 = vpop.f32.mrb[0].mxu0
        %v3699 = vadd.f32 0.0, %v3698
        %v3700 = vpop.f32.mrb[0].mxu0
        %3701 = vmatprep.mubr.f32.mxu0 0.0
        %3702 = vmatmul.mubr.f32.gmra.mrb[0].mxu0 %v3477
        %v3703 = vpop.f32.mrb[0].mxu0
        %v3704 = vadd.f32 0.0, %v3703
        %v3705 = vpop.f32.mrb[0].mxu0
        %3706 = vdwg.mxu0
        %v3707 = vadd.f32 %v3317, %v3549
        %v3708 = vadd.f32 %v3318, %v3554
        %v3709 = vadd.f32 %v3319, %v3559
        %v3710 = vadd.f32 %v3320, %v3564
        %v3711 = vadd.f32 %v3321, %v3569
        %v3712 = vadd.f32 %v3322, %v3574
        %v3713 = vadd.f32 %v3323, %v3579
        %v3714 = vadd.f32 %v3324, %v3584
        %v3715 = vadd.f32 %v3325, %v3589
        %v3716 = vadd.f32 %v3326, %v3594
        %v3717 = vadd.f32 %v3327, %v3599
        %v3718 = vadd.f32 %v3328, %v3604
        %v3719 = vadd.f32 %v3329, %v3609
        %v3720 = vadd.f32 %v3330, %v3614
        %v3721 = vadd.f32 %v3331, %v3619
        %v3722 = vadd.f32 %v3332, %v3624
        %v3723 = vadd.f32 %v3333, %v3629
        %v3724 = vadd.f32 %v3334, %v3634
        %v3725 = vadd.f32 %v3335, %v3639
        %v3726 = vadd.f32 %v3336, %v3644
        %v3727 = vadd.f32 %v3337, %v3649
        %v3728 = vadd.f32 %v3338, %v3654
        %v3729 = vadd.f32 %v3339, %v3659
        %v3730 = vadd.f32 %v3340, %v3664
        %v3731 = vadd.f32 %v3341, %v3669
        %v3732 = vadd.f32 %v3342, %v3674
        %v3733 = vadd.f32 %v3343, %v3679
        %v3734 = vadd.f32 %v3344, %v3684
        %v3735 = vadd.f32 %v3345, %v3689
        %v3736 = vadd.f32 %v3346, %v3694
        %v3737 = vadd.f32 %v3347, %v3699
        %v3738 = vadd.f32 %v3348, %v3704
        %v3739 = vld [vmem:[%s254] sm:$0xff]
        %v3740 = vld [vmem:[%s254 + $0x8] sm:$0xff]
        %v3741 = vld [vmem:[%s254 + $0x10] sm:$0xff]
        %v3742 = vld [vmem:[%s254 + $0x18] sm:$0xff]
        %v3743 = vld [vmem:[%s254 + $0x20] sm:$0xff]
        %v3744 = vld [vmem:[%s254 + $0x28] sm:$0xff]
        %v3745 = vld [vmem:[%s254 + $0x30] sm:$0xff]
        %v3746 = vld [vmem:[%s254 + $0x38] sm:$0xff]
        %v3747 = vld [vmem:[%s254 + $0x40] sm:$0xff]
        %v3748 = vld [vmem:[%s254 + $0x48] sm:$0xff]
        %v3749 = vld [vmem:[%s254 + $0x50] sm:$0xff]
        %v3750 = vld [vmem:[%s254 + $0x58] sm:$0xff]
        %v3751 = vld [vmem:[%s254 + $0x60] sm:$0xff]
        %v3752 = vld [vmem:[%s254 + $0x68] sm:$0xff]
        %v3753 = vld [vmem:[%s254 + $0x70] sm:$0xff]
        %v3754 = vld [vmem:[%s254 + $0x78] sm:$0xff]
        %v3755 = vld [vmem:[%s254 + $0x80] sm:$0xff]
        %v3756 = vld [vmem:[%s254 + $0x88] sm:$0xff]
        %v3757 = vld [vmem:[%s254 + $0x90] sm:$0xff]
        %v3758 = vld [vmem:[%s254 + $0x98] sm:$0xff]
        %v3759 = vld [vmem:[%s254 + $0xa0] sm:$0xff]
        %v3760 = vld [vmem:[%s254 + $0xa8] sm:$0xff]
        %v3761 = vld [vmem:[%s254 + $0xb0] sm:$0xff]
        %v3762 = vld [vmem:[%s254 + $0xb8] sm:$0xff]
        %v3763 = vld [vmem:[%s254 + $0xc0] sm:$0xff]
        %v3764 = vld [vmem:[%s254 + $0xc8] sm:$0xff]
        %v3765 = vld [vmem:[%s254 + $0xd0] sm:$0xff]
        %v3766 = vld [vmem:[%s254 + $0xd8] sm:$0xff]
        %v3767 = vld [vmem:[%s254 + $0xe0] sm:$0xff]
        %v3768 = vld [vmem:[%s254 + $0xe8] sm:$0xff]
        %v3769 = vld [vmem:[%s254 + $0xf0] sm:$0xff]
        %v3770 = vld [vmem:[%s254 + $0xf8] sm:$0xff]
        %v3771 = vadd.f32 %v3707, %v3739
        %v3772 = vadd.f32 %v3708, %v3740
        %v3773 = vadd.f32 %v3709, %v3741
        %v3774 = vadd.f32 %v3710, %v3742
        %v3775 = vadd.f32 %v3711, %v3743
        %v3776 = vadd.f32 %v3712, %v3744
        %v3777 = vadd.f32 %v3713, %v3745
        %v3778 = vadd.f32 %v3714, %v3746
        %v3779 = vadd.f32 %v3715, %v3747
        %v3780 = vadd.f32 %v3716, %v3748
        %v3781 = vadd.f32 %v3717, %v3749
        %v3782 = vadd.f32 %v3718, %v3750
        %v3783 = vadd.f32 %v3719, %v3751
        %v3784 = vadd.f32 %v3720, %v3752
        %v3785 = vadd.f32 %v3721, %v3753
        %v3786 = vadd.f32 %v3722, %v3754
        %v3787 = vadd.f32 %v3723, %v3755
        %v3788 = vadd.f32 %v3724, %v3756
        %v3789 = vadd.f32 %v3725, %v3757
        %v3790 = vadd.f32 %v3726, %v3758
        %v3791 = vadd.f32 %v3727, %v3759
        %v3792 = vadd.f32 %v3728, %v3760
        %v3793 = vadd.f32 %v3729, %v3761
        %v3794 = vadd.f32 %v3730, %v3762
        %v3795 = vadd.f32 %v3731, %v3763
        %v3796 = vadd.f32 %v3732, %v3764
        %v3797 = vadd.f32 %v3733, %v3765
        %v3798 = vadd.f32 %v3734, %v3766
        %v3799 = vadd.f32 %v3735, %v3767
        %v3800 = vadd.f32 %v3736, %v3768
        %v3801 = vadd.f32 %v3737, %v3769
        %v3802 = vadd.f32 %v3738, %v3770
        %3803 = vst.msk [vmem:[%s286] sm:$0xff] %vm357, %v3771
        %3804 = vst.msk [vmem:[%s286 + $0x8] sm:$0xff] %vm357, %v3772
        %3805 = vst.msk [vmem:[%s286 + $0x10] sm:$0xff] %vm357, %v3773
        %3806 = vst.msk [vmem:[%s286 + $0x18] sm:$0xff] %vm357, %v3774
        %3807 = vst.msk [vmem:[%s286 + $0x20] sm:$0xff] %vm357, %v3775
        %3808 = vst.msk [vmem:[%s286 + $0x28] sm:$0xff] %vm357, %v3776
        %3809 = vst.msk [vmem:[%s286 + $0x30] sm:$0xff] %vm357, %v3777
        %3810 = vst.msk [vmem:[%s286 + $0x38] sm:$0xff] %vm357, %v3778
        %3811 = vst.msk [vmem:[%s286 + $0x40] sm:$0xff] %vm357, %v3779
        %3812 = vst.msk [vmem:[%s286 + $0x48] sm:$0xff] %vm357, %v3780
        %3813 = vst.msk [vmem:[%s286 + $0x50] sm:$0xff] %vm357, %v3781
        %3814 = vst.msk [vmem:[%s286 + $0x58] sm:$0xff] %vm357, %v3782
        %3815 = vst.msk [vmem:[%s286 + $0x60] sm:$0xff] %vm357, %v3783
        %3816 = vst.msk [vmem:[%s286 + $0x68] sm:$0xff] %vm357, %v3784
        %3817 = vst.msk [vmem:[%s286 + $0x70] sm:$0xff] %vm357, %v3785
        %3818 = vst.msk [vmem:[%s286 + $0x78] sm:$0xff] %vm357, %v3786
        %3819 = vst.msk [vmem:[%s286 + $0x80] sm:$0xff] %vm357, %v3787
        %3820 = vst.msk [vmem:[%s286 + $0x88] sm:$0xff] %vm357, %v3788
        %3821 = vst.msk [vmem:[%s286 + $0x90] sm:$0xff] %vm357, %v3789
        %3822 = vst.msk [vmem:[%s286 + $0x98] sm:$0xff] %vm357, %v3790
        %3823 = vst.msk [vmem:[%s286 + $0xa0] sm:$0xff] %vm357, %v3791
        %3824 = vst.msk [vmem:[%s286 + $0xa8] sm:$0xff] %vm357, %v3792
        %3825 = vst.msk [vmem:[%s286 + $0xb0] sm:$0xff] %vm357, %v3793
        %3826 = vst.msk [vmem:[%s286 + $0xb8] sm:$0xff] %vm357, %v3794
        %3827 = vst.msk [vmem:[%s286 + $0xc0] sm:$0xff] %vm357, %v3795
        %3828 = vst.msk [vmem:[%s286 + $0xc8] sm:$0xff] %vm357, %v3796
        %3829 = vst.msk [vmem:[%s286 + $0xd0] sm:$0xff] %vm357, %v3797
        %3830 = vst.msk [vmem:[%s286 + $0xd8] sm:$0xff] %vm357, %v3798
        %3831 = vst.msk [vmem:[%s286 + $0xe0] sm:$0xff] %vm357, %v3799
        %3832 = vst.msk [vmem:[%s286 + $0xe8] sm:$0xff] %vm357, %v3800
        %3833 = vst.msk [vmem:[%s286 + $0xf0] sm:$0xff] %vm357, %v3801
        %3834 = vst.msk [vmem:[%s286 + $0xf8] sm:$0xff] %vm357, %v3802
        %s3835 = sand.u32 %s127, 1
        %s3836 = scalar_lea.sflag [#allocation4], %s3835
        %s3837 = sand.u32 %s127, 1
        %s3838 = smul.addr %s3837, 256
        %s3839 = scalar_lea.vmem [#allocation8], %s3838
        // Predicated region
        $region45: #{c3_forward.6} parent=31 // pred_check
          %p3840 = pneg %p137
        $region46: #{c3_forward.6} parent=31 // pred_check_branch
          %3842 = sbr.rel (%p3840) target = $region48
        $region47: #{c3_forward.6} parent=31 // pred_region
          %s3843 = smul.u32 32, %s28
          %s3845 = ssub.s32 4096, 4096
          %3846 = vsyncadd %s3836, %s3845
          %s3847 = smul.addr %s27, 32
          %s3848 = sadd.s32 %s3843, %s3847
          %s3849 = smul.addr %s3848, 128
          %s3850 = scalar_lea.hbm %s3, %s3849
          %s3851 = sshll.u32 %s3839, 4
          %s3852 = int_to_ptr.vmem [resolvable:$true] %s3851
          %3857 = dma.vmem_to_hbm [thread:$0]  %s3852, 4096, %s3850, %s3836, 128, 128, 8
        $region48: #{c3_forward.6} parent=31 // pred_fallthru
          _
      $region32: #{c3_forward.6} parent=5 // pred_fallthru
        _
      %p3858 = scmp.le.s32.totalorder 2, %s18
      // Predicated region
      $region49: #{c3_forward.6} parent=5 // pred_check
        %p3859 = pneg %p3858
      $region50: #{c3_forward.6} parent=5 // pred_check_branch
        %3861 = sbr.rel (%p3859) target = $region52
      $region51: #{c3_forward.6} parent=5 // pred_region
        %s3862 = ssub.s32 %s18, 2
        // Predicated region
        $region53: #{c3_forward.6} parent=51 // pred_check
          %p3863 = pneg %p143
        $region54: #{c3_forward.6} parent=51 // pred_check_branch
          %3865 = sbr.rel (%p3863) target = $region56
        $region55: #{c3_forward.6} parent=51 // pred_region
          %s3866 = sand.u32 %s128, 1
          %s3867 = scalar_lea.sflag [#allocation4], %s3866
          %s3868 = sand.u32 %s128, 1
          %s3869 = smul.addr %s3868, 256
          %s3870 = scalar_lea.vmem [#allocation8], %s3869
          %3871 = dma.done %s3867, 4096
        $region56: #{c3_forward.6} parent=51 // pred_fallthru
          _
      $region52: #{c3_forward.6} parent=5 // pred_fallthru
        _
    $region6: #{c3_forward.6} parent=1 // loop_footer
      %s22 = sadd.s32 1, %s18
    $region7: #{c3_forward.6} parent=1 // loop_footer_branch
      %17 = sbr.rel target = $region3
    $region8: #{c3_forward.6} parent=1 // loop_exit
      _
    %3872 = vsyncpa [#allocation3], 1
    %s3873 = scalar_lea.sflag [#allocation3], 1
    %3874 = vsyncpa %s3873, 1
    %3875 = vsyncpa [#allocation6], 1
    %s3876 = scalar_lea.sflag [#allocation6], 1
    %3877 = vsyncpa %s3876, 1
    %3878 = vsyncpa [#allocation4], 1
    %s3879 = scalar_lea.sflag [#allocation4], 1
    %3880 = vsyncpa %s3879, 1

</llo_original>
